<compile_context>
chip_gen: v5e
topology: v5e:2x2
jax: 0.10.0
libtpu: 0.0.40
codegen_flags: <defaults>
</compile_context>

<pallas_src>
import math
from functools import partial

import numpy as np
import jax
import jax.numpy as jnp
from jax.experimental import pallas as pl
from jax.experimental.pallas import tpu as pltpu


# --------------------------- Pallas kernel ---------------------------------

def _flash_self_attention_kernel(x_ref, w_ref, perm_ref, o_ref,
                                 k_sc, v_sc, o_slab,
                                 *, n_heads, head_dim, tq, tk):
    """One (batch, q_tile) grid step of the fused SelfAttention forward.

    x_ref    : (1, n, E)  input dtype — full sequence of this batch element
    w_ref    : (E, 3E)    bf16  qkv weight, columns head-contiguous, 1/sqrt(d) folded into q
    perm_ref : (E, E)     bf16  0/1 matrix realizing the '(h d)' -> '(d h)' channel permute
    o_ref    : (1, tq, E) bf16  output tile in '(d h)' channel order (module contract)
    k_sc     : (n, E)     bf16  VMEM scratch — K, head-contiguous columns (per batch element)
    v_sc     : (n, E)     bf16  VMEM scratch — V, head-contiguous columns
    o_slab   : (tq, E)    bf16  VMEM scratch — per-head outputs, head-major order
    """
    qi = pl.program_id(1)
    n = x_ref.shape[1]
    E = x_ref.shape[2]
    d = head_dim
    H = n_heads
    num_kv = n // tk

    # --- K / V projection: once per batch element (q-tile grid axis is "arbitrary") ------
    @pl.when(qi == 0)
    def _():
        xf = x_ref[0].astype(jnp.bfloat16)                                   # (n, E)
        k_sc[...] = jnp.dot(xf, w_ref[:, E:2 * E],
                            preferred_element_type=jnp.float32).astype(jnp.bfloat16)
        v_sc[...] = jnp.dot(xf, w_ref[:, 2 * E:3 * E],
                            preferred_element_type=jnp.float32).astype(jnp.bfloat16)

    # --- Q projection for this q tile (1/sqrt(d) already folded into the weight) ---------
    q_start = pl.multiple_of(qi * tq, tq)
    xq = x_ref[0, pl.ds(q_start, tq), :].astype(jnp.bfloat16)                # (tq, E)
    q = jnp.dot(xq, w_ref[:, :E],
                preferred_element_type=jnp.float32).astype(jnp.bfloat16)     # (tq, E)

    # --- per-head flash attention over kv tiles -------------------------------------------
    for h in range(H):                                   # static unroll (H is small)
        q_h = q[:, h * d:(h + 1) * d]                    # (tq, d) bf16

        def kv_step(i, carry, *, h=h, q_h=q_h):
            m_prev, l_prev, acc_prev = carry
            k_start = pl.multiple_of(i * tk, tk)
            k_t = k_sc[pl.ds(k_start, tk), h * d:(h + 1) * d]                # (tk, d) bf16
            v_t = v_sc[pl.ds(k_start, tk), h * d:(h + 1) * d]                # (tk, d) bf16
            # scores: contraction over head_dim on both operands (no transpose needed)
            s = jax.lax.dot_general(q_h, k_t, (((1,), (1,)), ((), ())),
                                    preferred_element_type=jnp.float32)      # (tq, tk)
            m_new = jnp.maximum(m_prev, jnp.max(s, axis=-1, keepdims=True))
            alpha = jnp.exp(m_prev - m_new)
            e = jnp.exp(s - m_new)                       # f32 exp (v5e EUP has no bf16 path)
            l_new = alpha * l_prev + jnp.sum(e, axis=-1, keepdims=True)
            acc_new = alpha * acc_prev + jnp.dot(e.astype(jnp.bfloat16), v_t,
                                                 preferred_element_type=jnp.float32)
            return m_new, l_new, acc_new

        m0 = jnp.full((tq, 1), -jnp.inf, dtype=jnp.float32)
        l0 = jnp.zeros((tq, 1), dtype=jnp.float32)
        acc0 = jnp.zeros((tq, d), dtype=jnp.float32)
        _, l, acc = jax.lax.fori_loop(0, num_kv, kv_step, (m0, l0, acc0),
                                      unroll=num_kv <= 4)

        # Deferred normalization: (tq, d) multiplies instead of (tq, n); reciprocal on the EUP.
        # NOTE: approx reciprocal => softmax rows sum to 1 only to ~1e-3 (within test tolerance).
        o_slab[:, h * d:(h + 1) * d] = (acc * pl.reciprocal(l, approx=True)
                                        ).astype(jnp.bfloat16)

    # --- '(h d)' -> '(d h)' re-interleave as an exact 0/1 MXU matmul; lane-dense bf16 store
    o_ref[0] = jnp.dot(o_slab[...], perm_ref[...],
                       preferred_element_type=jnp.float32).astype(o_ref.dtype)


# --------------------------- wrapper ---------------------------------------

def self_attention(x, w_qkv_t, n_heads, *, tq=None, tk=None):
    """SelfAttention forward.

    x        : (B, n, E) float32 (or bf16) activations
    w_qkv_t  : (E, 3E) float32 — transposed torch qkv_linear.weight (so qkv = x @ w_qkv_t)
    returns  : (B, n, E) bfloat16, identical channel order to the PyTorch module.
    """
    B, n, E = x.shape
    assert w_qkv_t.shape == (E, 3 * E)
    assert E % n_heads == 0
    d = E // n_heads
    H = n_heads

    tq = tq if tq is not None else min(n, 256)
    tk = tk if tk is not None else min(n, 512)
    assert n % tq == 0 and n % tk == 0, (n, tq, tk)

    # 1/sqrt(d) folded into the q columns (exact for power-of-two d; weight-side, free).
    scale = 1.0 / math.sqrt(d)
    w_scaled = jnp.concatenate([w_qkv_t[:, :E] * scale, w_qkv_t[:, E:]], axis=1)

    # einops 'bs n (d h)': channel c belongs to head c % H at position c // H.  Permute the
    # projection columns (trace-time) so head h owns the contiguous slice [h*d, (h+1)*d).
    head_major = (np.arange(d)[None, :] * H + np.arange(H)[:, None]).reshape(-1)
    perm_cols = np.concatenate([s * E + head_major for s in range(3)])
    w_kernel = w_scaled[:, perm_cols].astype(jnp.bfloat16)

    # 0/1 matrix sending head-major column h*d + j to module-contract column j*H + h.
    src = np.arange(E)
    dst = (src % d) * H + (src // d)
    perm_mat = np.zeros((E, E), np.float32)
    perm_mat[src, dst] = 1.0
    perm_mat = jnp.asarray(perm_mat, dtype=jnp.bfloat16)

    kernel = partial(_flash_self_attention_kernel,
                     n_heads=H, head_dim=d, tq=tq, tk=tk)

    return pl.pallas_call(
        kernel,
        grid=(B, n // tq),
        in_specs=[
            pl.BlockSpec((1, n, E), lambda b, qi: (b, 0, 0)),      # full x per batch element
            pl.BlockSpec((E, 3 * E), lambda b, qi: (0, 0)),        # qkv weight (resident)
            pl.BlockSpec((E, E), lambda b, qi: (0, 0)),            # output permutation matrix
        ],
        out_specs=pl.BlockSpec((1, tq, E), lambda b, qi: (b, qi, 0)),
        out_shape=jax.ShapeDtypeStruct((B, n, E), jnp.bfloat16),
        scratch_shapes=[
            pltpu.VMEM((n, E), jnp.bfloat16),     # K scratch (head-contiguous)
            pltpu.VMEM((n, E), jnp.bfloat16),     # V scratch (head-contiguous)
            pltpu.VMEM((tq, E), jnp.bfloat16),    # per-q-tile head-major output slab
        ],
        compiler_params=pltpu.CompilerParams(
            # batch is megacore-parallel; the q-tile axis must stay "arbitrary" because the
            # K/V scratch computed at q_tile==0 persists across the per-batch q sweep.
            dimension_semantics=("parallel", "arbitrary"),
            vmem_limit_bytes=32 * 1024 * 1024,
        ),
    )(x, w_kernel, perm_mat)


# --------------------------- reference (same matmul precision) --------------

def reference_self_attention(x, w_qkv_t, n_heads):
    """Pure-JAX reference of the PyTorch module (bf16 matmuls, f32 accumulation/softmax)."""
    B, n, E = x.shape
    d = E // n_heads
    qkv = jnp.einsum('bne,ef->bnf',
                     x.astype(jnp.bfloat16), w_qkv_t.astype(jnp.bfloat16),
                     preferred_element_type=jnp.float32)
    q, k, v = qkv[..., :E], qkv[..., E:2 * E], qkv[..., 2 * E:]

    def split(t):  # 'bs n (d h) -> bs h n d'
        return t.reshape(B, n, d, n_heads).transpose(0, 3, 1, 2)

    qh, kh, vh = split(q), split(k), split(v)
    s = jnp.einsum('bhnd,bhmd->bhnm',
                   (qh * (1.0 / math.sqrt(d))).astype(jnp.bfloat16),
                   kh.astype(jnp.bfloat16),
                   preferred_element_type=jnp.float32)
    p = jax.nn.softmax(s, axis=-1)
    o = jnp.einsum('bhnm,bhmd->bhnd',
                   p.astype(jnp.bfloat16), vh.astype(jnp.bfloat16),
                   preferred_element_type=jnp.float32)
    return o.transpose(0, 2, 3, 1).reshape(B, n, E)     # 'bs h n d -> bs n (d h)'


# --------------------------- main -------------------------------------------

if __name__ == "__main__":
    batch, seq, embed_dim, n_heads = 2, 256, 256, 4      # head_dim = 64

    key = jax.random.PRNGKey(0)
    kx, kw = jax.random.split(key, 2)
    x = jax.random.normal(kx, (batch, seq, embed_dim), jnp.float32)
    # qkv_linear weight (stored transposed as (E, 3E)); 1/sqrt(E) scale keeps scores O(1)
    w_qkv_t = (jax.random.normal(kw, (embed_dim, 3 * embed_dim), jnp.float32)
               / math.sqrt(embed_dim))

    # tq/tk chosen so the q-tile grid axis and the kv online-softmax loop are both exercised.
    fwd = jax.jit(lambda xx, ww: self_attention(xx, ww, n_heads, tq=128, tk=128))
    out = fwd(x, w_qkv_t)
    jax.block_until_ready(out)

    assert out.shape == (batch, seq, embed_dim), out.shape
    assert out.dtype == jnp.bfloat16, out.dtype
    out_f32 = out.astype(jnp.float32)
    assert bool(jnp.all(jnp.isfinite(out_f32)))

    ref = reference_self_attention(x, w_qkv_t, n_heads)
    max_err = float(jnp.max(jnp.abs(out_f32 - ref)))
    assert max_err < 5e-2, f"mismatch vs reference: max abs err = {max_err}"

    print("KERNEL_OK")
</pallas_src>

<mosaic_0001>
module attributes {stable_mosaic.version = 11 : i64} {
  func.func @_flash_self_attention_kernel(%arg0: i32, %arg1: i32, %arg2: memref<1x256x256xf32, #tpu.memory_space<vmem>>, %arg3: memref<256x768xbf16, #tpu.memory_space<vmem>>, %arg4: memref<256x256xbf16, #tpu.memory_space<vmem>>, %arg5: memref<1x128x256xbf16, #tpu.memory_space<vmem>>, %arg6: memref<256x256xbf16, #tpu.memory_space<vmem>>, %arg7: memref<256x256xbf16, #tpu.memory_space<vmem>>, %arg8: memref<128x256xbf16, #tpu.memory_space<vmem>>) attributes {dimension_semantics = [#tpu.dimension_semantics<parallel>, #tpu.dimension_semantics<arbitrary>], iteration_bounds = array<i64: 2, 2>, scalar_prefetch = 0 : i64, scratch_operands = 3 : i64, tpu.core_type = #tpu.core_type<tc>, window_params = [{transform_indices = @transform_0, window_bounds = array<i64: 1, 256, 256>}, {pipeline_mode = #tpu.pipeline_mode<synchronous>, transform_indices = @transform_1, window_bounds = array<i64: 256, 768>}, {pipeline_mode = #tpu.pipeline_mode<synchronous>, transform_indices = @transform_2, window_bounds = array<i64: 256, 256>}, {transform_indices = @transform_3, window_bounds = array<i64: 1, 128, 256>}]} {
    %c0_i32 = arith.constant 0 : i32
    %0 = arith.cmpi eq, %arg1, %c0_i32 : i32
    %1 = arith.extui %0 : i1 to i32
    %c0_i32_0 = arith.constant 0 : i32
    %2 = arith.cmpi ne, %1, %c0_i32_0 : i32
    scf.if %2 {
      %c0_95 = arith.constant 0 : index
      %c0_96 = arith.constant 0 : index
      %c0_97 = arith.constant 0 : index
      %247 = vector.load %arg2[%c0_95, %c0_96, %c0_97] : memref<1x256x256xf32, #tpu.memory_space<vmem>>, vector<1x256x256xf32>
      %248 = vector.shape_cast %247 : vector<1x256x256xf32> to vector<256x256xf32>
      %249 = arith.truncf %248 : vector<256x256xf32> to vector<256x256xbf16>
      %c0_98 = arith.constant 0 : index
      %c256 = arith.constant 256 : index
      %250 = vector.load %arg3[%c0_98, %c256] : memref<256x768xbf16, #tpu.memory_space<vmem>>, vector<256x256xbf16>
      %cst_99 = arith.constant dense<0.000000e+00> : vector<256x256xf32>
      %251 = tpu.matmul %249, %250, %cst_99 {dimension_numbers = #tpu.dot_dimension_numbers<[1], [0], [0], [1], [0, 0, 1, 1], [], []>} : vector<256x256xbf16>, vector<256x256xbf16>, vector<256x256xf32> -> vector<256x256xf32>
      %252 = arith.truncf %251 : vector<256x256xf32> to vector<256x256xbf16>
      %c0_100 = arith.constant 0 : index
      %c0_101 = arith.constant 0 : index
      %253 = vector.load %arg6[%c0_100, %c0_101] : memref<256x256xbf16, #tpu.memory_space<vmem>>, vector<256x256xbf16>
      tpu.vector_store %arg6[%c0_100, %c0_101], %252 {strides = array<i32>} : memref<256x256xbf16, #tpu.memory_space<vmem>>, vector<256x256xbf16>,
      %c0_102 = arith.constant 0 : index
      %c512 = arith.constant 512 : index
      %254 = vector.load %arg3[%c0_102, %c512] : memref<256x768xbf16, #tpu.memory_space<vmem>>, vector<256x256xbf16>
      %cst_103 = arith.constant dense<0.000000e+00> : vector<256x256xf32>
      %255 = tpu.matmul %249, %254, %cst_103 {dimension_numbers = #tpu.dot_dimension_numbers<[1], [0], [0], [1], [0, 0, 1, 1], [], []>} : vector<256x256xbf16>, vector<256x256xbf16>, vector<256x256xf32> -> vector<256x256xf32>
      %256 = arith.truncf %255 : vector<256x256xf32> to vector<256x256xbf16>
      %c0_104 = arith.constant 0 : index
      %c0_105 = arith.constant 0 : index
      %257 = vector.load %arg7[%c0_104, %c0_105] : memref<256x256xbf16, #tpu.memory_space<vmem>>, vector<256x256xbf16>
      tpu.vector_store %arg7[%c0_104, %c0_105], %256 {strides = array<i32>} : memref<256x256xbf16, #tpu.memory_space<vmem>>, vector<256x256xbf16>,
    } else {
    }
    %c128_i32 = arith.constant 128 : i32
    %3 = arith.muli %arg1, %c128_i32 : i32
    %4 = tpu.assume_multiple %3, 128 : i32
    %c0 = arith.constant 0 : index
    %5 = arith.index_cast %4 : i32 to index
    %c0_1 = arith.constant 0 : index
    %6 = vector.load %arg2[%c0, %5, %c0_1] : memref<1x256x256xf32, #tpu.memory_space<vmem>>, vector<1x128x256xf32>
    %7 = vector.shape_cast %6 : vector<1x128x256xf32> to vector<128x256xf32>
    %8 = arith.truncf %7 : vector<128x256xf32> to vector<128x256xbf16>
    %c0_2 = arith.constant 0 : index
    %c0_3 = arith.constant 0 : index
    %9 = vector.load %arg3[%c0_2, %c0_3] : memref<256x768xbf16, #tpu.memory_space<vmem>>, vector<256x256xbf16>
    %cst = arith.constant dense<0.000000e+00> : vector<128x256xf32>
    %10 = tpu.matmul %8, %9, %cst {dimension_numbers = #tpu.dot_dimension_numbers<[1], [0], [0], [1], [0, 0, 1, 1], [], []>} : vector<128x256xbf16>, vector<256x256xbf16>, vector<128x256xf32> -> vector<128x256xf32>
    %11 = arith.truncf %10 : vector<128x256xf32> to vector<128x256xbf16>
    %12 = vector.extract_strided_slice %11 {offsets = [0, 0], sizes = [128, 64], strides = [1, 1]} : vector<128x256xbf16> to vector<128x64xbf16>
    %cst_4 = arith.constant 0xFF800000 : f32
    %13 = vector.broadcast %cst_4 : f32 to vector<128x1xf32>
    %cst_5 = arith.constant 0.000000e+00 : f32
    %14 = vector.broadcast %cst_5 : f32 to vector<128x1xf32>
    %cst_6 = arith.constant 0.000000e+00 : f32
    %15 = vector.broadcast %cst_6 : f32 to vector<128x64xf32>
    %c0_i32_7 = arith.constant 0 : i32
    %c128_i32_8 = arith.constant 128 : i32
    %16 = arith.muli %c0_i32_7, %c128_i32_8 : i32
    %17 = tpu.assume_multiple %16, 128 : i32
    %18 = arith.index_cast %17 : i32 to index
    %c0_9 = arith.constant 0 : index
    %19 = vector.load %arg6[%18, %c0_9] : memref<256x256xbf16, #tpu.memory_space<vmem>>, vector<128x64xbf16>
    %20 = arith.index_cast %17 : i32 to index
    %c0_10 = arith.constant 0 : index
    %21 = vector.load %arg7[%20, %c0_10] : memref<256x256xbf16, #tpu.memory_space<vmem>>, vector<128x64xbf16>
    %cst_11 = arith.constant dense<0.000000e+00> : vector<128x128xf32>
    %22 = tpu.matmul %12, %19, %cst_11 {dimension_numbers = #tpu.dot_dimension_numbers<[1], [1], [0], [0], [0, 0, 1, 0], [], []>} : vector<128x64xbf16>, vector<128x64xbf16>, vector<128x128xf32> -> vector<128x128xf32>
    %cst_12 = arith.constant dense<0xFF800000> : vector<128xf32>
    %23 = vector.multi_reduction <maximumf>, %22, %cst_12 [1] : vector<128x128xf32> to vector<128xf32>
    %24 = vector.shape_cast %23 : vector<128xf32> to vector<128x1xf32>
    %25 = arith.maximumf %13, %24 : vector<128x1xf32>
    %26 = arith.subf %13, %25 : vector<128x1xf32>
    %27 = math.exp %26 : vector<128x1xf32>
    %28 = vector.broadcast %25 : vector<128x1xf32> to vector<128x128xf32>
    %29 = arith.subf %22, %28 : vector<128x128xf32>
    %30 = math.exp %29 : vector<128x128xf32>
    %31 = arith.mulf %27, %14 : vector<128x1xf32>
    %cst_13 = arith.constant dense<0.000000e+00> : vector<128xf32>
    %32 = vector.multi_reduction <add>, %30, %cst_13 [1] : vector<128x128xf32> to vector<128xf32>
    %33 = vector.shape_cast %32 : vector<128xf32> to vector<128x1xf32>
    %34 = arith.addf %31, %33 : vector<128x1xf32>
    %35 = vector.broadcast %27 : vector<128x1xf32> to vector<128x64xf32>
    %36 = arith.mulf %35, %15 : vector<128x64xf32>
    %37 = arith.truncf %30 : vector<128x128xf32> to vector<128x128xbf16>
    %cst_14 = arith.constant dense<0.000000e+00> : vector<128x64xf32>
    %38 = tpu.matmul %37, %21, %cst_14 {dimension_numbers = #tpu.dot_dimension_numbers<[1], [0], [0], [1], [0, 0, 1, 1], [], []>} : vector<128x128xbf16>, vector<128x64xbf16>, vector<128x64xf32> -> vector<128x64xf32>
    %39 = arith.addf %36, %38 : vector<128x64xf32>
    %c1_i32 = arith.constant 1 : i32
    %c128_i32_15 = arith.constant 128 : i32
    %40 = arith.muli %c1_i32, %c128_i32_15 : i32
    %41 = tpu.assume_multiple %40, 128 : i32
    %42 = arith.index_cast %41 : i32 to index
    %c0_16 = arith.constant 0 : index
    %43 = vector.load %arg6[%42, %c0_16] : memref<256x256xbf16, #tpu.memory_space<vmem>>, vector<128x64xbf16>
    %44 = arith.index_cast %41 : i32 to index
    %c0_17 = arith.constant 0 : index
    %45 = vector.load %arg7[%44, %c0_17] : memref<256x256xbf16, #tpu.memory_space<vmem>>, vector<128x64xbf16>
    %cst_18 = arith.constant dense<0.000000e+00> : vector<128x128xf32>
    %46 = tpu.matmul %12, %43, %cst_18 {dimension_numbers = #tpu.dot_dimension_numbers<[1], [1], [0], [0], [0, 0, 1, 0], [], []>} : vector<128x64xbf16>, vector<128x64xbf16>, vector<128x128xf32> -> vector<128x128xf32>
    %cst_19 = arith.constant dense<0xFF800000> : vector<128xf32>
    %47 = vector.multi_reduction <maximumf>, %46, %cst_19 [1] : vector<128x128xf32> to vector<128xf32>
    %48 = vector.shape_cast %47 : vector<128xf32> to vector<128x1xf32>
    %49 = arith.maximumf %25, %48 : vector<128x1xf32>
    %50 = arith.subf %25, %49 : vector<128x1xf32>
    %51 = math.exp %50 : vector<128x1xf32>
    %52 = vector.broadcast %49 : vector<128x1xf32> to vector<128x128xf32>
    %53 = arith.subf %46, %52 : vector<128x128xf32>
    %54 = math.exp %53 : vector<128x128xf32>
    %55 = arith.mulf %51, %34 : vector<128x1xf32>
    %cst_20 = arith.constant dense<0.000000e+00> : vector<128xf32>
    %56 = vector.multi_reduction <add>, %54, %cst_20 [1] : vector<128x128xf32> to vector<128xf32>
    %57 = vector.shape_cast %56 : vector<128xf32> to vector<128x1xf32>
    %58 = arith.addf %55, %57 : vector<128x1xf32>
    %59 = vector.broadcast %51 : vector<128x1xf32> to vector<128x64xf32>
    %60 = arith.mulf %59, %39 : vector<128x64xf32>
    %61 = arith.truncf %54 : vector<128x128xf32> to vector<128x128xbf16>
    %cst_21 = arith.constant dense<0.000000e+00> : vector<128x64xf32>
    %62 = tpu.matmul %61, %45, %cst_21 {dimension_numbers = #tpu.dot_dimension_numbers<[1], [0], [0], [1], [0, 0, 1, 1], [], []>} : vector<128x128xbf16>, vector<128x64xbf16>, vector<128x64xf32> -> vector<128x64xf32>
    %63 = arith.addf %60, %62 : vector<128x64xf32>
    %c2_i32 = arith.constant 2 : i32
    %64 = tpu.reciprocal %58 {approx = true} : vector<128x1xf32> -> vector<128x1xf32>
    %65 = vector.broadcast %64 : vector<128x1xf32> to vector<128x64xf32>
    %66 = arith.mulf %63, %65 : vector<128x64xf32>
    %67 = arith.truncf %66 : vector<128x64xf32> to vector<128x64xbf16>
    %c0_22 = arith.constant 0 : index
    %c0_23 = arith.constant 0 : index
    %68 = vector.load %arg8[%c0_22, %c0_23] : memref<128x256xbf16, #tpu.memory_space<vmem>>, vector<128x64xbf16>
    tpu.vector_store %arg8[%c0_22, %c0_23], %67 {strides = array<i32>} : memref<128x256xbf16, #tpu.memory_space<vmem>>, vector<128x64xbf16>,
    %69 = vector.extract_strided_slice %11 {offsets = [0, 64], sizes = [128, 64], strides = [1, 1]} : vector<128x256xbf16> to vector<128x64xbf16>
    %cst_24 = arith.constant 0xFF800000 : f32
    %70 = vector.broadcast %cst_24 : f32 to vector<128x1xf32>
    %cst_25 = arith.constant 0.000000e+00 : f32
    %71 = vector.broadcast %cst_25 : f32 to vector<128x1xf32>
    %cst_26 = arith.constant 0.000000e+00 : f32
    %72 = vector.broadcast %cst_26 : f32 to vector<128x64xf32>
    %c0_i32_27 = arith.constant 0 : i32
    %c128_i32_28 = arith.constant 128 : i32
    %73 = arith.muli %c0_i32_27, %c128_i32_28 : i32
    %74 = tpu.assume_multiple %73, 128 : i32
    %75 = arith.index_cast %74 : i32 to index
    %c64 = arith.constant 64 : index
    %76 = vector.load %arg6[%75, %c64] : memref<256x256xbf16, #tpu.memory_space<vmem>>, vector<128x64xbf16>
    %77 = arith.index_cast %74 : i32 to index
    %c64_29 = arith.constant 64 : index
    %78 = vector.load %arg7[%77, %c64_29] : memref<256x256xbf16, #tpu.memory_space<vmem>>, vector<128x64xbf16>
    %cst_30 = arith.constant dense<0.000000e+00> : vector<128x128xf32>
    %79 = tpu.matmul %69, %76, %cst_30 {dimension_numbers = #tpu.dot_dimension_numbers<[1], [1], [0], [0], [0, 0, 1, 0], [], []>} : vector<128x64xbf16>, vector<128x64xbf16>, vector<128x128xf32> -> vector<128x128xf32>
    %cst_31 = arith.constant dense<0xFF800000> : vector<128xf32>
    %80 = vector.multi_reduction <maximumf>, %79, %cst_31 [1] : vector<128x128xf32> to vector<128xf32>
    %81 = vector.shape_cast %80 : vector<128xf32> to vector<128x1xf32>
    %82 = arith.maximumf %70, %81 : vector<128x1xf32>
    %83 = arith.subf %70, %82 : vector<128x1xf32>
    %84 = math.exp %83 : vector<128x1xf32>
    %85 = vector.broadcast %82 : vector<128x1xf32> to vector<128x128xf32>
    %86 = arith.subf %79, %85 : vector<128x128xf32>
    %87 = math.exp %86 : vector<128x128xf32>
    %88 = arith.mulf %84, %71 : vector<128x1xf32>
    %cst_32 = arith.constant dense<0.000000e+00> : vector<128xf32>
    %89 = vector.multi_reduction <add>, %87, %cst_32 [1] : vector<128x128xf32> to vector<128xf32>
    %90 = vector.shape_cast %89 : vector<128xf32> to vector<128x1xf32>
    %91 = arith.addf %88, %90 : vector<128x1xf32>
    %92 = vector.broadcast %84 : vector<128x1xf32> to vector<128x64xf32>
    %93 = arith.mulf %92, %72 : vector<128x64xf32>
    %94 = arith.truncf %87 : vector<128x128xf32> to vector<128x128xbf16>
    %cst_33 = arith.constant dense<0.000000e+00> : vector<128x64xf32>
    %95 = tpu.matmul %94, %78, %cst_33 {dimension_numbers = #tpu.dot_dimension_numbers<[1], [0], [0], [1], [0, 0, 1, 1], [], []>} : vector<128x128xbf16>, vector<128x64xbf16>, vector<128x64xf32> -> vector<128x64xf32>
    %96 = arith.addf %93, %95 : vector<128x64xf32>
    %c1_i32_34 = arith.constant 1 : i32
    %c128_i32_35 = arith.constant 128 : i32
    %97 = arith.muli %c1_i32_34, %c128_i32_35 : i32
    %98 = tpu.assume_multiple %97, 128 : i32
    %99 = arith.index_cast %98 : i32 to index
    %c64_36 = arith.constant 64 : index
    %100 = vector.load %arg6[%99, %c64_36] : memref<256x256xbf16, #tpu.memory_space<vmem>>, vector<128x64xbf16>
    %101 = arith.index_cast %98 : i32 to index
    %c64_37 = arith.constant 64 : index
    %102 = vector.load %arg7[%101, %c64_37] : memref<256x256xbf16, #tpu.memory_space<vmem>>, vector<128x64xbf16>
    %cst_38 = arith.constant dense<0.000000e+00> : vector<128x128xf32>
    %103 = tpu.matmul %69, %100, %cst_38 {dimension_numbers = #tpu.dot_dimension_numbers<[1], [1], [0], [0], [0, 0, 1, 0], [], []>} : vector<128x64xbf16>, vector<128x64xbf16>, vector<128x128xf32> -> vector<128x128xf32>
    %cst_39 = arith.constant dense<0xFF800000> : vector<128xf32>
    %104 = vector.multi_reduction <maximumf>, %103, %cst_39 [1] : vector<128x128xf32> to vector<128xf32>
    %105 = vector.shape_cast %104 : vector<128xf32> to vector<128x1xf32>
    %106 = arith.maximumf %82, %105 : vector<128x1xf32>
    %107 = arith.subf %82, %106 : vector<128x1xf32>
    %108 = math.exp %107 : vector<128x1xf32>
    %109 = vector.broadcast %106 : vector<128x1xf32> to vector<128x128xf32>
    %110 = arith.subf %103, %109 : vector<128x128xf32>
    %111 = math.exp %110 : vector<128x128xf32>
    %112 = arith.mulf %108, %91 : vector<128x1xf32>
    %cst_40 = arith.constant dense<0.000000e+00> : vector<128xf32>
    %113 = vector.multi_reduction <add>, %111, %cst_40 [1] : vector<128x128xf32> to vector<128xf32>
    %114 = vector.shape_cast %113 : vector<128xf32> to vector<128x1xf32>
    %115 = arith.addf %112, %114 : vector<128x1xf32>
    %116 = vector.broadcast %108 : vector<128x1xf32> to vector<128x64xf32>
    %117 = arith.mulf %116, %96 : vector<128x64xf32>
    %118 = arith.truncf %111 : vector<128x128xf32> to vector<128x128xbf16>
    %cst_41 = arith.constant dense<0.000000e+00> : vector<128x64xf32>
    %119 = tpu.matmul %118, %102, %cst_41 {dimension_numbers = #tpu.dot_dimension_numbers<[1], [0], [0], [1], [0, 0, 1, 1], [], []>} : vector<128x128xbf16>, vector<128x64xbf16>, vector<128x64xf32> -> vector<128x64xf32>
    %120 = arith.addf %117, %119 : vector<128x64xf32>
    %c2_i32_42 = arith.constant 2 : i32
    %121 = tpu.reciprocal %115 {approx = true} : vector<128x1xf32> -> vector<128x1xf32>
    %122 = vector.broadcast %121 : vector<128x1xf32> to vector<128x64xf32>
    %123 = arith.mulf %120, %122 : vector<128x64xf32>
    %124 = arith.truncf %123 : vector<128x64xf32> to vector<128x64xbf16>
    %c0_43 = arith.constant 0 : index
    %c64_44 = arith.constant 64 : index
    %125 = vector.load %arg8[%c0_43, %c64_44] : memref<128x256xbf16, #tpu.memory_space<vmem>>, vector<128x64xbf16>
    tpu.vector_store %arg8[%c0_43, %c64_44], %124 {strides = array<i32>} : memref<128x256xbf16, #tpu.memory_space<vmem>>, vector<128x64xbf16>,
    %126 = vector.extract_strided_slice %11 {offsets = [0, 128], sizes = [128, 64], strides = [1, 1]} : vector<128x256xbf16> to vector<128x64xbf16>
    %cst_45 = arith.constant 0xFF800000 : f32
    %127 = vector.broadcast %cst_45 : f32 to vector<128x1xf32>
    %cst_46 = arith.constant 0.000000e+00 : f32
    %128 = vector.broadcast %cst_46 : f32 to vector<128x1xf32>
    %cst_47 = arith.constant 0.000000e+00 : f32
    %129 = vector.broadcast %cst_47 : f32 to vector<128x64xf32>
    %c0_i32_48 = arith.constant 0 : i32
    %c128_i32_49 = arith.constant 128 : i32
    %130 = arith.muli %c0_i32_48, %c128_i32_49 : i32
    %131 = tpu.assume_multiple %130, 128 : i32
    %132 = arith.index_cast %131 : i32 to index
    %c128 = arith.constant 128 : index
    %133 = vector.load %arg6[%132, %c128] : memref<256x256xbf16, #tpu.memory_space<vmem>>, vector<128x64xbf16>
    %134 = arith.index_cast %131 : i32 to index
    %c128_50 = arith.constant 128 : index
    %135 = vector.load %arg7[%134, %c128_50] : memref<256x256xbf16, #tpu.memory_space<vmem>>, vector<128x64xbf16>
    %cst_51 = arith.constant dense<0.000000e+00> : vector<128x128xf32>
    %136 = tpu.matmul %126, %133, %cst_51 {dimension_numbers = #tpu.dot_dimension_numbers<[1], [1], [0], [0], [0, 0, 1, 0], [], []>} : vector<128x64xbf16>, vector<128x64xbf16>, vector<128x128xf32> -> vector<128x128xf32>
    %cst_52 = arith.constant dense<0xFF800000> : vector<128xf32>
    %137 = vector.multi_reduction <maximumf>, %136, %cst_52 [1] : vector<128x128xf32> to vector<128xf32>
    %138 = vector.shape_cast %137 : vector<128xf32> to vector<128x1xf32>
    %139 = arith.maximumf %127, %138 : vector<128x1xf32>
    %140 = arith.subf %127, %139 : vector<128x1xf32>
    %141 = math.exp %140 : vector<128x1xf32>
    %142 = vector.broadcast %139 : vector<128x1xf32> to vector<128x128xf32>
    %143 = arith.subf %136, %142 : vector<128x128xf32>
    %144 = math.exp %143 : vector<128x128xf32>
    %145 = arith.mulf %141, %128 : vector<128x1xf32>
    %cst_53 = arith.constant dense<0.000000e+00> : vector<128xf32>
    %146 = vector.multi_reduction <add>, %144, %cst_53 [1] : vector<128x128xf32> to vector<128xf32>
    %147 = vector.shape_cast %146 : vector<128xf32> to vector<128x1xf32>
    %148 = arith.addf %145, %147 : vector<128x1xf32>
    %149 = vector.broadcast %141 : vector<128x1xf32> to vector<128x64xf32>
    %150 = arith.mulf %149, %129 : vector<128x64xf32>
    %151 = arith.truncf %144 : vector<128x128xf32> to vector<128x128xbf16>
    %cst_54 = arith.constant dense<0.000000e+00> : vector<128x64xf32>
    %152 = tpu.matmul %151, %135, %cst_54 {dimension_numbers = #tpu.dot_dimension_numbers<[1], [0], [0], [1], [0, 0, 1, 1], [], []>} : vector<128x128xbf16>, vector<128x64xbf16>, vector<128x64xf32> -> vector<128x64xf32>
    %153 = arith.addf %150, %152 : vector<128x64xf32>
    %c1_i32_55 = arith.constant 1 : i32
    %c128_i32_56 = arith.constant 128 : i32
    %154 = arith.muli %c1_i32_55, %c128_i32_56 : i32
    %155 = tpu.assume_multiple %154, 128 : i32
    %156 = arith.index_cast %155 : i32 to index
    %c128_57 = arith.constant 128 : index
    %157 = vector.load %arg6[%156, %c128_57] : memref<256x256xbf16, #tpu.memory_space<vmem>>, vector<128x64xbf16>
    %158 = arith.index_cast %155 : i32 to index
    %c128_58 = arith.constant 128 : index
    %159 = vector.load %arg7[%158, %c128_58] : memref<256x256xbf16, #tpu.memory_space<vmem>>, vector<128x64xbf16>
    %cst_59 = arith.constant dense<0.000000e+00> : vector<128x128xf32>
    %160 = tpu.matmul %126, %157, %cst_59 {dimension_numbers = #tpu.dot_dimension_numbers<[1], [1], [0], [0], [0, 0, 1, 0], [], []>} : vector<128x64xbf16>, vector<128x64xbf16>, vector<128x128xf32> -> vector<128x128xf32>
    %cst_60 = arith.constant dense<0xFF800000> : vector<128xf32>
    %161 = vector.multi_reduction <maximumf>, %160, %cst_60 [1] : vector<128x128xf32> to vector<128xf32>
    %162 = vector.shape_cast %161 : vector<128xf32> to vector<128x1xf32>
    %163 = arith.maximumf %139, %162 : vector<128x1xf32>
    %164 = arith.subf %139, %163 : vector<128x1xf32>
    %165 = math.exp %164 : vector<128x1xf32>
    %166 = vector.broadcast %163 : vector<128x1xf32> to vector<128x128xf32>
    %167 = arith.subf %160, %166 : vector<128x128xf32>
    %168 = math.exp %167 : vector<128x128xf32>
    %169 = arith.mulf %165, %148 : vector<128x1xf32>
    %cst_61 = arith.constant dense<0.000000e+00> : vector<128xf32>
    %170 = vector.multi_reduction <add>, %168, %cst_61 [1] : vector<128x128xf32> to vector<128xf32>
    %171 = vector.shape_cast %170 : vector<128xf32> to vector<128x1xf32>
    %172 = arith.addf %169, %171 : vector<128x1xf32>
    %173 = vector.broadcast %165 : vector<128x1xf32> to vector<128x64xf32>
    %174 = arith.mulf %173, %153 : vector<128x64xf32>
    %175 = arith.truncf %168 : vector<128x128xf32> to vector<128x128xbf16>
    %cst_62 = arith.constant dense<0.000000e+00> : vector<128x64xf32>
    %176 = tpu.matmul %175, %159, %cst_62 {dimension_numbers = #tpu.dot_dimension_numbers<[1], [0], [0], [1], [0, 0, 1, 1], [], []>} : vector<128x128xbf16>, vector<128x64xbf16>, vector<128x64xf32> -> vector<128x64xf32>
    %177 = arith.addf %174, %176 : vector<128x64xf32>
    %c2_i32_63 = arith.constant 2 : i32
    %178 = tpu.reciprocal %172 {approx = true} : vector<128x1xf32> -> vector<128x1xf32>
    %179 = vector.broadcast %178 : vector<128x1xf32> to vector<128x64xf32>
    %180 = arith.mulf %177, %179 : vector<128x64xf32>
    %181 = arith.truncf %180 : vector<128x64xf32> to vector<128x64xbf16>
    %c0_64 = arith.constant 0 : index
    %c128_65 = arith.constant 128 : index
    %182 = vector.load %arg8[%c0_64, %c128_65] : memref<128x256xbf16, #tpu.memory_space<vmem>>, vector<128x64xbf16>
    tpu.vector_store %arg8[%c0_64, %c128_65], %181 {strides = array<i32>} : memref<128x256xbf16, #tpu.memory_space<vmem>>, vector<128x64xbf16>,
    %183 = vector.extract_strided_slice %11 {offsets = [0, 192], sizes = [128, 64], strides = [1, 1]} : vector<128x256xbf16> to vector<128x64xbf16>
    %cst_66 = arith.constant 0xFF800000 : f32
    %184 = vector.broadcast %cst_66 : f32 to vector<128x1xf32>
    %cst_67 = arith.constant 0.000000e+00 : f32
    %185 = vector.broadcast %cst_67 : f32 to vector<128x1xf32>
    %cst_68 = arith.constant 0.000000e+00 : f32
    %186 = vector.broadcast %cst_68 : f32 to vector<128x64xf32>
    %c0_i32_69 = arith.constant 0 : i32
    %c128_i32_70 = arith.constant 128 : i32
    %187 = arith.muli %c0_i32_69, %c128_i32_70 : i32
    %188 = tpu.assume_multiple %187, 128 : i32
    %189 = arith.index_cast %188 : i32 to index
    %c192 = arith.constant 192 : index
    %190 = vector.load %arg6[%189, %c192] : memref<256x256xbf16, #tpu.memory_space<vmem>>, vector<128x64xbf16>
    %191 = arith.index_cast %188 : i32 to index
    %c192_71 = arith.constant 192 : index
    %192 = vector.load %arg7[%191, %c192_71] : memref<256x256xbf16, #tpu.memory_space<vmem>>, vector<128x64xbf16>
    %cst_72 = arith.constant dense<0.000000e+00> : vector<128x128xf32>
    %193 = tpu.matmul %183, %190, %cst_72 {dimension_numbers = #tpu.dot_dimension_numbers<[1], [1], [0], [0], [0, 0, 1, 0], [], []>} : vector<128x64xbf16>, vector<128x64xbf16>, vector<128x128xf32> -> vector<128x128xf32>
    %cst_73 = arith.constant dense<0xFF800000> : vector<128xf32>
    %194 = vector.multi_reduction <maximumf>, %193, %cst_73 [1] : vector<128x128xf32> to vector<128xf32>
    %195 = vector.shape_cast %194 : vector<128xf32> to vector<128x1xf32>
    %196 = arith.maximumf %184, %195 : vector<128x1xf32>
    %197 = arith.subf %184, %196 : vector<128x1xf32>
    %198 = math.exp %197 : vector<128x1xf32>
    %199 = vector.broadcast %196 : vector<128x1xf32> to vector<128x128xf32>
    %200 = arith.subf %193, %199 : vector<128x128xf32>
    %201 = math.exp %200 : vector<128x128xf32>
    %202 = arith.mulf %198, %185 : vector<128x1xf32>
    %cst_74 = arith.constant dense<0.000000e+00> : vector<128xf32>
    %203 = vector.multi_reduction <add>, %201, %cst_74 [1] : vector<128x128xf32> to vector<128xf32>
    %204 = vector.shape_cast %203 : vector<128xf32> to vector<128x1xf32>
    %205 = arith.addf %202, %204 : vector<128x1xf32>
    %206 = vector.broadcast %198 : vector<128x1xf32> to vector<128x64xf32>
    %207 = arith.mulf %206, %186 : vector<128x64xf32>
    %208 = arith.truncf %201 : vector<128x128xf32> to vector<128x128xbf16>
    %cst_75 = arith.constant dense<0.000000e+00> : vector<128x64xf32>
    %209 = tpu.matmul %208, %192, %cst_75 {dimension_numbers = #tpu.dot_dimension_numbers<[1], [0], [0], [1], [0, 0, 1, 1], [], []>} : vector<128x128xbf16>, vector<128x64xbf16>, vector<128x64xf32> -> vector<128x64xf32>
    %210 = arith.addf %207, %209 : vector<128x64xf32>
    %c1_i32_76 = arith.constant 1 : i32
    %c128_i32_77 = arith.constant 128 : i32
    %211 = arith.muli %c1_i32_76, %c128_i32_77 : i32
    %212 = tpu.assume_multiple %211, 128 : i32
    %213 = arith.index_cast %212 : i32 to index
    %c192_78 = arith.constant 192 : index
    %214 = vector.load %arg6[%213, %c192_78] : memref<256x256xbf16, #tpu.memory_space<vmem>>, vector<128x64xbf16>
    %215 = arith.index_cast %212 : i32 to index
    %c192_79 = arith.constant 192 : index
    %216 = vector.load %arg7[%215, %c192_79] : memref<256x256xbf16, #tpu.memory_space<vmem>>, vector<128x64xbf16>
    %cst_80 = arith.constant dense<0.000000e+00> : vector<128x128xf32>
    %217 = tpu.matmul %183, %214, %cst_80 {dimension_numbers = #tpu.dot_dimension_numbers<[1], [1], [0], [0], [0, 0, 1, 0], [], []>} : vector<128x64xbf16>, vector<128x64xbf16>, vector<128x128xf32> -> vector<128x128xf32>
    %cst_81 = arith.constant dense<0xFF800000> : vector<128xf32>
    %218 = vector.multi_reduction <maximumf>, %217, %cst_81 [1] : vector<128x128xf32> to vector<128xf32>
    %219 = vector.shape_cast %218 : vector<128xf32> to vector<128x1xf32>
    %220 = arith.maximumf %196, %219 : vector<128x1xf32>
    %221 = arith.subf %196, %220 : vector<128x1xf32>
    %222 = math.exp %221 : vector<128x1xf32>
    %223 = vector.broadcast %220 : vector<128x1xf32> to vector<128x128xf32>
    %224 = arith.subf %217, %223 : vector<128x128xf32>
    %225 = math.exp %224 : vector<128x128xf32>
    %226 = arith.mulf %222, %205 : vector<128x1xf32>
    %cst_82 = arith.constant dense<0.000000e+00> : vector<128xf32>
    %227 = vector.multi_reduction <add>, %225, %cst_82 [1] : vector<128x128xf32> to vector<128xf32>
    %228 = vector.shape_cast %227 : vector<128xf32> to vector<128x1xf32>
    %229 = arith.addf %226, %228 : vector<128x1xf32>
    %230 = vector.broadcast %222 : vector<128x1xf32> to vector<128x64xf32>
    %231 = arith.mulf %230, %210 : vector<128x64xf32>
    %232 = arith.truncf %225 : vector<128x128xf32> to vector<128x128xbf16>
    %cst_83 = arith.constant dense<0.000000e+00> : vector<128x64xf32>
    %233 = tpu.matmul %232, %216, %cst_83 {dimension_numbers = #tpu.dot_dimension_numbers<[1], [0], [0], [1], [0, 0, 1, 1], [], []>} : vector<128x128xbf16>, vector<128x64xbf16>, vector<128x64xf32> -> vector<128x64xf32>
    %234 = arith.addf %231, %233 : vector<128x64xf32>
    %c2_i32_84 = arith.constant 2 : i32
    %235 = tpu.reciprocal %229 {approx = true} : vector<128x1xf32> -> vector<128x1xf32>
    %236 = vector.broadcast %235 : vector<128x1xf32> to vector<128x64xf32>
    %237 = arith.mulf %234, %236 : vector<128x64xf32>
    %238 = arith.truncf %237 : vector<128x64xf32> to vector<128x64xbf16>
    %c0_85 = arith.constant 0 : index
    %c192_86 = arith.constant 192 : index
    %239 = vector.load %arg8[%c0_85, %c192_86] : memref<128x256xbf16, #tpu.memory_space<vmem>>, vector<128x64xbf16>
    tpu.vector_store %arg8[%c0_85, %c192_86], %238 {strides = array<i32>} : memref<128x256xbf16, #tpu.memory_space<vmem>>, vector<128x64xbf16>,
    %c0_87 = arith.constant 0 : index
    %c0_88 = arith.constant 0 : index
    %240 = vector.load %arg8[%c0_87, %c0_88] : memref<128x256xbf16, #tpu.memory_space<vmem>>, vector<128x256xbf16>
    %c0_89 = arith.constant 0 : index
    %c0_90 = arith.constant 0 : index
    %241 = vector.load %arg4[%c0_89, %c0_90] : memref<256x256xbf16, #tpu.memory_space<vmem>>, vector<256x256xbf16>
    %cst_91 = arith.constant dense<0.000000e+00> : vector<128x256xf32>
    %242 = tpu.matmul %240, %241, %cst_91 {dimension_numbers = #tpu.dot_dimension_numbers<[1], [0], [0], [1], [0, 0, 1, 1], [], []>} : vector<128x256xbf16>, vector<256x256xbf16>, vector<128x256xf32> -> vector<128x256xf32>
    %243 = arith.truncf %242 : vector<128x256xf32> to vector<128x256xbf16>
    %c0_92 = arith.constant 0 : index
    %c0_93 = arith.constant 0 : index
    %c0_94 = arith.constant 0 : index
    %244 = vector.load %arg5[%c0_92, %c0_93, %c0_94] : memref<1x128x256xbf16, #tpu.memory_space<vmem>>, vector<1x128x256xbf16>
    %245 = vector.shape_cast %244 : vector<1x128x256xbf16> to vector<128x256xbf16>
    %246 = vector.shape_cast %243 : vector<128x256xbf16> to vector<1x128x256xbf16>
    tpu.vector_store %arg5[%c0_92, %c0_93, %c0_94], %246 {strides = array<i32>} : memref<1x128x256xbf16, #tpu.memory_space<vmem>>, vector<1x128x256xbf16>,
    return
  }
  func.func @transform_0(%arg0: i32, %arg1: i32) -> (i32, i32, i32) {
    %c0_i32 = arith.constant 0 : i32
    %c0_i32_0 = arith.constant 0 : i32
    %c0_i32_1 = arith.constant 0 : i32
    return %arg0, %c0_i32, %c0_i32_0 : i32, i32, i32
  }
  func.func @transform_1(%arg0: i32, %arg1: i32) -> (i32, i32) {
    %c0_i32 = arith.constant 0 : i32
    %c0_i32_0 = arith.constant 0 : i32
    %c0_i32_1 = arith.constant 0 : i32
    return %c0_i32, %c0_i32_0 : i32, i32
  }
  func.func @transform_2(%arg0: i32, %arg1: i32) -> (i32, i32) {
    %c0_i32 = arith.constant 0 : i32
    %c0_i32_0 = arith.constant 0 : i32
    %c0_i32_1 = arith.constant 0 : i32
    return %c0_i32, %c0_i32_0 : i32, i32
  }
  func.func @transform_3(%arg0: i32, %arg1: i32) -> (i32, i32, i32) {
    %c0_i32 = arith.constant 0 : i32
    %c0_i32_0 = arith.constant 0 : i32
    return %arg0, %arg1, %c0_i32 : i32, i32, i32
  }
}

</mosaic_0001>

<llo_original>
// kernel: _lambda_.1
$region0: #{_lambda_.1}
  #allocation0 [shape = 'u32[]', space=smem, size = 0x4, offset = 0x4, fixed_abs, tag = 'smem constant byte address 0x4 - core index']
  #allocation1 [shape = 'u32[72,128]{1,0:T(1,128)}', space=vmem, size = 0x9000, scoped, tag = 'internal scratch']
  #allocation2 [shape = 'bf16[256,256]{1,0:T(8,128)(2,1)}', space=vmem, size = 0x20000, scoped, tag = 'scratch operand']
  #allocation3 [shape = 'bf16[256,256]{1,0:T(8,128)(2,1)}', space=vmem, size = 0x20000, scoped, tag = 'scratch operand']
  #allocation4 [shape = 'bf16[128,256]{1,0:T(8,128)(2,1)}', space=vmem, size = 0x10000, scoped, tag = 'scratch operand']
  %s0 = inlined_call_operand.vmem [shape: f32[2,256,256], index: 0, kind: input, shape index: {}]
  %s1 = inlined_call_operand.vmem [shape: bf16[256,768], index: 1, kind: input, shape index: {}]
  %s2 = inlined_call_operand.vmem [shape: bf16[256,256], index: 2, kind: input, shape index: {}]
  %s3 = inlined_call_operand.hbm [shape: bf16[2,256,256], index: 3, kind: output, shape index: {}]
  %s4 = sld [smem:[#allocation0]]
  $region49: #{_lambda_.1} parent=0
    _
  %s6 = ssub.s32 1, %s4
  %s7 = scalar_select 0, %s6, %s4
  $region1: #{_lambda_.1} parent=0
    #allocation5 [shape = 'u8[131072]{0}', space=vmem, size = 0x20000, scoped, tag = 'output window, operand 0']
    #allocation6 [shape = 's32[2]{0}', space=sflag, size = 0x8, scoped, tag = 'scoped memory for _lambda_.1']
    %8 = vsyncpa [#allocation6], 0
    %s9 = scalar_lea.sflag [#allocation6], 1
    %10 = vsyncpa %s9, 0
    loop: start=0, step=1, limit=6
    $region2: #{_lambda_.1} parent=1 // loop_pre_header
      _
    $region3: #{_lambda_.1} parent=1 // loop_header
      %s12 = sphi 0, %s16
      %p13 = scmp.ge.s32.totalorder %s12, 6
      %s19 = sphi 0, %s31
      %s20 = sphi 0, %s27
      %s21 = sphi 0, %s19
      %s22 = sphi 0, %s20
      %s23 = sphi 0, %s21
      %s24 = sphi 0, %s22
      %s34 = sphi 0, %s36
      %s37 = sphi 0, %s34
      %s38 = sphi 0, %s37
      %s54 = sphi 0, %s38
      %s58 = sphi 0, %s58
      %s60 = sphi 0, %s58
      %s61 = sphi 0, %s60
      %s75 = sphi 0, %s61
      %s79 = sphi 0, %s79
      %s81 = sphi 0, %s79
      %s82 = sphi 0, %s81
      %s96 = sphi 0, %s82
      %s104 = sphi 0, %s106
      %s107 = sphi 0, %s104
      %s108 = sphi 0, %s107
      %s124 = sphi 0, %s108
    $region4: #{_lambda_.1} parent=1 // loop_header_branch
      %15 = sbr.rel (%p13) target = $region8
    $region5: #{_lambda_.1} parent=1 // loop_body
      %s17 = ssub.s32 %s12, 1
      %s18 = ssub.s32 %s12, 2
      %s25 = sadd.s32 1, %s20
      %p26 = scmp.ge.s32.totalorder %s25, 2
      %s27 = scalar_select %p26, 0, %s25
      %s28 = sadd.s32 1, %s19
      %s29 = scalar_select %p26, %s28, %s19
      %p30 = scmp.ge.s32.totalorder %s29, 2
      %s31 = scalar_select %p30, 0, %s29
      %s32 = ssub.s32 %s19, %s31
      %p33 = scmp.eq.s32.totalorder %s32, 0
      %s35 = sadd.s32 %s34, 1
      %s36 = scalar_select %p33, %s34, %s35
      %p39 = pneg %p33
      %p40 = scmp.eq.s32.totalorder %s12, 3
      %p41 = por %p39, %p40
      %p42 = scmp.ne.s32.totalorder %s34, %s37
      %p43 = scmp.eq.s32.totalorder %s12, 0
      %p44 = por %p42, %p43
      %p45 = scmp.ne.s32.totalorder %s34, %s37
      %p46 = scmp.eq.s32.totalorder %s17, 3
      %p47 = por %p45, %p46
      %p48 = scmp.ne.s32.totalorder %s37, %s38
      %p49 = scmp.eq.s32.totalorder %s17, 0
      %p50 = por %p48, %p49
      %p51 = scmp.ne.s32.totalorder %s37, %s38
      %p52 = scmp.eq.s32.totalorder %s18, 3
      %p53 = por %p51, %p52
      %p55 = scmp.ne.s32.totalorder %s38, %s54
      %p56 = scmp.eq.s32.totalorder %s18, 0
      %p57 = por %p55, %p56
      %s59 = sadd.s32 %s58, 1
      %p62 = scmp.eq.s32.totalorder %s12, 3
      %p63 = scmp.ne.s32.totalorder %s58, %s60
      %p64 = scmp.eq.s32.totalorder %s12, 0
      %p65 = por %p63, %p64
      %p66 = scmp.ne.s32.totalorder %s58, %s60
      %p67 = scmp.eq.s32.totalorder %s17, 3
      %p68 = por %p66, %p67
      %p69 = scmp.ne.s32.totalorder %s60, %s61
      %p70 = scmp.eq.s32.totalorder %s17, 0
      %p71 = por %p69, %p70
      %p72 = scmp.ne.s32.totalorder %s60, %s61
      %p73 = scmp.eq.s32.totalorder %s18, 3
      %p74 = por %p72, %p73
      %p76 = scmp.ne.s32.totalorder %s61, %s75
      %p77 = scmp.eq.s32.totalorder %s18, 0
      %p78 = por %p76, %p77
      %s80 = sadd.s32 %s79, 1
      %p83 = scmp.eq.s32.totalorder %s12, 3
      %p84 = scmp.ne.s32.totalorder %s79, %s81
      %p85 = scmp.eq.s32.totalorder %s12, 0
      %p86 = por %p84, %p85
      %p87 = scmp.ne.s32.totalorder %s79, %s81
      %p88 = scmp.eq.s32.totalorder %s17, 3
      %p89 = por %p87, %p88
      %p90 = scmp.ne.s32.totalorder %s81, %s82
      %p91 = scmp.eq.s32.totalorder %s17, 0
      %p92 = por %p90, %p91
      %p93 = scmp.ne.s32.totalorder %s81, %s82
      %p94 = scmp.eq.s32.totalorder %s18, 3
      %p95 = por %p93, %p94
      %p97 = scmp.ne.s32.totalorder %s82, %s96
      %p98 = scmp.eq.s32.totalorder %s18, 0
      %p99 = por %p97, %p98
      %s100 = ssub.s32 %s19, %s31
      %s101 = ssub.s32 %s20, %s27
      %s102 = sor.u32 %s100, %s101
      %p103 = scmp.eq.s32.totalorder %s102, 0
      %s105 = sadd.s32 %s104, 1
      %s106 = scalar_select %p103, %s104, %s105
      %p109 = pneg %p103
      %p110 = scmp.eq.s32.totalorder %s12, 3
      %p111 = por %p109, %p110
      %p112 = scmp.ne.s32.totalorder %s104, %s107
      %p113 = scmp.eq.s32.totalorder %s12, 0
      %p114 = por %p112, %p113
      %p115 = scmp.ne.s32.totalorder %s104, %s107
      %p116 = scmp.eq.s32.totalorder %s17, 3
      %p117 = por %p115, %p116
      %p118 = scmp.ne.s32.totalorder %s107, %s108
      %p119 = scmp.eq.s32.totalorder %s17, 0
      %p120 = por %p118, %p119
      %p121 = scmp.ne.s32.totalorder %s107, %s108
      %p122 = scmp.eq.s32.totalorder %s18, 3
      %p123 = por %p121, %p122
      %p125 = scmp.ne.s32.totalorder %s108, %s124
      %p126 = scmp.eq.s32.totalorder %s18, 0
      %p127 = por %p125, %p126
      %p128 = scmp.le.s32.totalorder 1, %s12
      %p129 = scmp.lt.s32.totalorder %s12, 5
      %p130 = pnand %p128, %p129
      %p131 = pneg %p130
      // Predicated region
      $region9: #{_lambda_.1} parent=5 // pred_check
        _
      $region10: #{_lambda_.1} parent=5 // pred_check_branch
        %133 = sbr.rel (%p130) target = $region12
      $region11: #{_lambda_.1} parent=5 // pred_region
        %s134 = ssub.s32 %s12, 1
        // Predicated region
        $region13: #{_lambda_.1} parent=11 // pred_check
          %p135 = pneg %p71
        $region14: #{_lambda_.1} parent=11 // pred_check_branch
          %137 = sbr.rel (%p135) target = $region16
        $region15: #{_lambda_.1} parent=11 // pred_region
          _
        $region16: #{_lambda_.1} parent=11 // pred_fallthru
          _
        // Predicated region
        $region17: #{_lambda_.1} parent=11 // pred_check
          %p138 = pneg %p92
        $region18: #{_lambda_.1} parent=11 // pred_check_branch
          %140 = sbr.rel (%p138) target = $region20
        $region19: #{_lambda_.1} parent=11 // pred_region
          _
        $region20: #{_lambda_.1} parent=11 // pred_fallthru
          _
      $region12: #{_lambda_.1} parent=5 // pred_fallthru
        _
      %p141 = scmp.lt.s32.totalorder %s12, 4
      // Predicated region
      $region21: #{_lambda_.1} parent=5 // pred_check
        %p142 = pneg %p141
      $region22: #{_lambda_.1} parent=5 // pred_check_branch
        %144 = sbr.rel (%p142) target = $region24
      $region23: #{_lambda_.1} parent=5 // pred_region
        // Predicated region
        $region25: #{_lambda_.1} parent=23 // pred_check
          %p145 = pneg %p44
        $region26: #{_lambda_.1} parent=23 // pred_check_branch
          %147 = sbr.rel (%p145) target = $region28
        $region27: #{_lambda_.1} parent=23 // pred_region
          %p148 = scmp.lt.s32.totalorder %s19, 1
          %s149 = scalar_select %p148, %s19, 1
          %s150 = smul.addr %s149, 64
          %s151 = smul.addr %s150, 8
          %s152 = scalar_lea.vmem %s0, %s151
        $region28: #{_lambda_.1} parent=23 // pred_fallthru
          _
      $region24: #{_lambda_.1} parent=5 // pred_fallthru
        _
      %p153 = scmp.le.s32.totalorder 1, %s12
      %p154 = scmp.lt.s32.totalorder %s12, 5
      %p155 = pnand %p153, %p154
      %p156 = pneg %p155
      // Predicated region
      $region29: #{_lambda_.1} parent=5 // pred_check
        _
      $region30: #{_lambda_.1} parent=5 // pred_check_branch
        %158 = sbr.rel (%p155) target = $region32
      $region31: #{_lambda_.1} parent=5 // pred_region
        %s159 = ssub.s32 %s12, 1
        %p160 = scmp.lt.s32.totalorder %s21, 1
        %s161 = scalar_select %p160, %s21, 1
        %s162 = smul.addr %s161, 64
        %s163 = smul.addr %s162, 8
        %s164 = scalar_lea.vmem %s0, %s163
        %p165 = pneg %p50
        %p166 = pneg %p47
        %p167 = pneg %p71
        %p168 = pneg %p68
        %p169 = pneg %p92
        %p170 = pneg %p89
        %p171 = pneg %p120
        %p172 = pneg %p117
        %s173 = sand.u32 %s107, 1
        %s174 = scalar_lea.sflag [#allocation6], %s173
        %s175 = sand.u32 %s107, 1
        %s176 = smul.addr %s175, 128
        %s177 = scalar_lea.vmem [#allocation5], %s176
        %p178 = scmp.lt.s32.totalorder %s21, 1
        %s179 = scalar_select %p178, %s21, 1
        %s180 = smul.addr %s179, 64
        %s181 = smul.addr %s180, 8
        %s182 = scalar_lea.vmem %s0, %s181
        %s183 = smul.u32 16, %s22
        %p184 = scmp.eq.s32.totalorder %s22, 0
        // Predicated region
        $region33: #{_lambda_.1} parent=31 // pred_check
          %p185 = pneg %p184
        $region34: #{_lambda_.1} parent=31 // pred_check_branch
          %187 = sbr.rel (%p185) target = $region36
        $region35: #{_lambda_.1} parent=31 // pred_region
          %v188 = vld [vmem:[%s182] sm:$0xff]
          %v189 = vld [vmem:[%s182 + $0x8] sm:$0xff]
          %v190 = vld [vmem:[%s182 + $0x10] sm:$0xff]
          %v191 = vld [vmem:[%s182 + $0x18] sm:$0xff]
          %v192 = vld [vmem:[%s182 + $0x20] sm:$0xff]
          %v193 = vld [vmem:[%s182 + $0x28] sm:$0xff]
          %v194 = vld [vmem:[%s182 + $0x30] sm:$0xff]
          %v195 = vld [vmem:[%s182 + $0x38] sm:$0xff]
          %v196 = vld [vmem:[%s182 + $0x40] sm:$0xff]
          %v197 = vld [vmem:[%s182 + $0x48] sm:$0xff]
          %v198 = vld [vmem:[%s182 + $0x50] sm:$0xff]
          %v199 = vld [vmem:[%s182 + $0x58] sm:$0xff]
          %v200 = vld [vmem:[%s182 + $0x60] sm:$0xff]
          %v201 = vld [vmem:[%s182 + $0x68] sm:$0xff]
          %v202 = vld [vmem:[%s182 + $0x70] sm:$0xff]
          %v203 = vld [vmem:[%s182 + $0x78] sm:$0xff]
          %v204 = vld [vmem:[%s182 + $0x80] sm:$0xff]
          %v205 = vld [vmem:[%s182 + $0x88] sm:$0xff]
          %v206 = vld [vmem:[%s182 + $0x90] sm:$0xff]
          %v207 = vld [vmem:[%s182 + $0x98] sm:$0xff]
          %v208 = vld [vmem:[%s182 + $0xa0] sm:$0xff]
          %v209 = vld [vmem:[%s182 + $0xa8] sm:$0xff]
          %v210 = vld [vmem:[%s182 + $0xb0] sm:$0xff]
          %v211 = vld [vmem:[%s182 + $0xb8] sm:$0xff]
          %v212 = vld [vmem:[%s182 + $0xc0] sm:$0xff]
          %v213 = vld [vmem:[%s182 + $0xc8] sm:$0xff]
          %v214 = vld [vmem:[%s182 + $0xd0] sm:$0xff]
          %v215 = vld [vmem:[%s182 + $0xd8] sm:$0xff]
          %v216 = vld [vmem:[%s182 + $0xe0] sm:$0xff]
          %v217 = vld [vmem:[%s182 + $0xe8] sm:$0xff]
          %v218 = vld [vmem:[%s182 + $0xf0] sm:$0xff]
          %v219 = vld [vmem:[%s182 + $0xf8] sm:$0xff]
          %v220 = vld [vmem:[%s182 + $0x100] sm:$0xff]
          %v221 = vld [vmem:[%s182 + $0x108] sm:$0xff]
          %v222 = vld [vmem:[%s182 + $0x110] sm:$0xff]
          %v223 = vld [vmem:[%s182 + $0x118] sm:$0xff]
          %v224 = vld [vmem:[%s182 + $0x120] sm:$0xff]
          %v225 = vld [vmem:[%s182 + $0x128] sm:$0xff]
          %v226 = vld [vmem:[%s182 + $0x130] sm:$0xff]
          %v227 = vld [vmem:[%s182 + $0x138] sm:$0xff]
          %v228 = vld [vmem:[%s182 + $0x140] sm:$0xff]
          %v229 = vld [vmem:[%s182 + $0x148] sm:$0xff]
          %v230 = vld [vmem:[%s182 + $0x150] sm:$0xff]
          %v231 = vld [vmem:[%s182 + $0x158] sm:$0xff]
          %v232 = vld [vmem:[%s182 + $0x160] sm:$0xff]
          %v233 = vld [vmem:[%s182 + $0x168] sm:$0xff]
          %v234 = vld [vmem:[%s182 + $0x170] sm:$0xff]
          %v235 = vld [vmem:[%s182 + $0x178] sm:$0xff]
          %v236 = vld [vmem:[%s182 + $0x180] sm:$0xff]
          %v237 = vld [vmem:[%s182 + $0x188] sm:$0xff]
          %v238 = vld [vmem:[%s182 + $0x190] sm:$0xff]
          %v239 = vld [vmem:[%s182 + $0x198] sm:$0xff]
          %v240 = vld [vmem:[%s182 + $0x1a0] sm:$0xff]
          %v241 = vld [vmem:[%s182 + $0x1a8] sm:$0xff]
          %v242 = vld [vmem:[%s182 + $0x1b0] sm:$0xff]
          %v243 = vld [vmem:[%s182 + $0x1b8] sm:$0xff]
          %v244 = vld [vmem:[%s182 + $0x1c0] sm:$0xff]
          %v245 = vld [vmem:[%s182 + $0x1c8] sm:$0xff]
          %v246 = vld [vmem:[%s182 + $0x1d0] sm:$0xff]
          %v247 = vld [vmem:[%s182 + $0x1d8] sm:$0xff]
          %v248 = vld [vmem:[%s182 + $0x1e0] sm:$0xff]
          %v249 = vld [vmem:[%s182 + $0x1e8] sm:$0xff]
          %v250 = vld [vmem:[%s182 + $0x1f0] sm:$0xff]
          %v251 = vld [vmem:[%s182 + $0x1f8] sm:$0xff]
          %v252 = vpack.c.bf16 %v190, %v188
          %v253 = vpack.c.bf16 %v191, %v189
          %v254 = vpack.c.bf16 %v194, %v192
          %v255 = vpack.c.bf16 %v195, %v193
          %v256 = vpack.c.bf16 %v198, %v196
          %v257 = vpack.c.bf16 %v199, %v197
          %v258 = vpack.c.bf16 %v202, %v200
          %v259 = vpack.c.bf16 %v203, %v201
          %v260 = vpack.c.bf16 %v206, %v204
          %v261 = vpack.c.bf16 %v207, %v205
          %v262 = vpack.c.bf16 %v210, %v208
          %v263 = vpack.c.bf16 %v211, %v209
          %v264 = vpack.c.bf16 %v214, %v212
          %v265 = vpack.c.bf16 %v215, %v213
          %v266 = vpack.c.bf16 %v218, %v216
          %v267 = vpack.c.bf16 %v219, %v217
          %v268 = vpack.c.bf16 %v222, %v220
          %v269 = vpack.c.bf16 %v223, %v221
          %v270 = vpack.c.bf16 %v226, %v224
          %v271 = vpack.c.bf16 %v227, %v225
          %v272 = vpack.c.bf16 %v230, %v228
          %v273 = vpack.c.bf16 %v231, %v229
          %v274 = vpack.c.bf16 %v234, %v232
          %v275 = vpack.c.bf16 %v235, %v233
          %v276 = vpack.c.bf16 %v238, %v236
          %v277 = vpack.c.bf16 %v239, %v237
          %v278 = vpack.c.bf16 %v242, %v240
          %v279 = vpack.c.bf16 %v243, %v241
          %v280 = vpack.c.bf16 %v246, %v244
          %v281 = vpack.c.bf16 %v247, %v245
          %v282 = vpack.c.bf16 %v250, %v248
          %v283 = vpack.c.bf16 %v251, %v249
          %v284 = vld [vmem:[%s1 + $0x8] sm:$0xff]
          %v285 = vld [vmem:[%s1 + $0x20] sm:$0xff]
          %v286 = vld [vmem:[%s1 + $0x38] sm:$0xff]
          %v287 = vld [vmem:[%s1 + $0x50] sm:$0xff]
          %v288 = vld [vmem:[%s1 + $0x68] sm:$0xff]
          %v289 = vld [vmem:[%s1 + $0x80] sm:$0xff]
          %v290 = vld [vmem:[%s1 + $0x98] sm:$0xff]
          %v291 = vld [vmem:[%s1 + $0xb0] sm:$0xff]
          %v292 = vld [vmem:[%s1 + $0xc8] sm:$0xff]
          %v293 = vld [vmem:[%s1 + $0xe0] sm:$0xff]
          %v294 = vld [vmem:[%s1 + $0xf8] sm:$0xff]
          %v295 = vld [vmem:[%s1 + $0x110] sm:$0xff]
          %v296 = vld [vmem:[%s1 + $0x128] sm:$0xff]
          %v297 = vld [vmem:[%s1 + $0x140] sm:$0xff]
          %v298 = vld [vmem:[%s1 + $0x158] sm:$0xff]
          %v299 = vld [vmem:[%s1 + $0x170] sm:$0xff]
          %v300 = vld [vmem:[%s1 + $0x188] sm:$0xff]
          %v301 = vld [vmem:[%s1 + $0x1a0] sm:$0xff]
          %v302 = vld [vmem:[%s1 + $0x1b8] sm:$0xff]
          %v303 = vld [vmem:[%s1 + $0x1d0] sm:$0xff]
          %v304 = vld [vmem:[%s1 + $0x1e8] sm:$0xff]
          %v305 = vld [vmem:[%s1 + $0x200] sm:$0xff]
          %v306 = vld [vmem:[%s1 + $0x218] sm:$0xff]
          %v307 = vld [vmem:[%s1 + $0x230] sm:$0xff]
          %v308 = vld [vmem:[%s1 + $0x248] sm:$0xff]
          %v309 = vld [vmem:[%s1 + $0x260] sm:$0xff]
          %v310 = vld [vmem:[%s1 + $0x278] sm:$0xff]
          %v311 = vld [vmem:[%s1 + $0x290] sm:$0xff]
          %v312 = vld [vmem:[%s1 + $0x2a8] sm:$0xff]
          %v313 = vld [vmem:[%s1 + $0x2c0] sm:$0xff]
          %v314 = vld [vmem:[%s1 + $0x2d8] sm:$0xff]
          %v315 = vld [vmem:[%s1 + $0x2f0] sm:$0xff]
          %v348 = vunpack.c.l.b16 %v284
          %v349 = vunpack.c.h.b16 %v284
          %v350 = vunpack.c.l.b16 %v285
          %v351 = vunpack.c.h.b16 %v285
          %v352 = vunpack.c.l.b16 %v286
          %v353 = vunpack.c.h.b16 %v286
          %v354 = vunpack.c.l.b16 %v287
          %v355 = vunpack.c.h.b16 %v287
          %v356 = vunpack.c.l.b16 %v288
          %v357 = vunpack.c.h.b16 %v288
          %v358 = vunpack.c.l.b16 %v289
          %v359 = vunpack.c.h.b16 %v289
          %v360 = vunpack.c.l.b16 %v290
          %v361 = vunpack.c.h.b16 %v290
          %v362 = vunpack.c.l.b16 %v291
          %v363 = vunpack.c.h.b16 %v291
          %v364 = vunpack.c.l.b16 %v292
          %v365 = vunpack.c.h.b16 %v292
          %v366 = vunpack.c.l.b16 %v293
          %v367 = vunpack.c.h.b16 %v293
          %v368 = vunpack.c.l.b16 %v294
          %v369 = vunpack.c.h.b16 %v294
          %v370 = vunpack.c.l.b16 %v295
          %v371 = vunpack.c.h.b16 %v295
          %v372 = vunpack.c.l.b16 %v296
          %v373 = vunpack.c.h.b16 %v296
          %v374 = vunpack.c.l.b16 %v297
          %v375 = vunpack.c.h.b16 %v297
          %v376 = vunpack.c.l.b16 %v298
          %v377 = vunpack.c.h.b16 %v298
          %v378 = vunpack.c.l.b16 %v299
          %v379 = vunpack.c.h.b16 %v299
          %v380 = vunpack.c.l.b16 %v300
          %v381 = vunpack.c.h.b16 %v300
          %v382 = vunpack.c.l.b16 %v301
          %v383 = vunpack.c.h.b16 %v301
          %v384 = vunpack.c.l.b16 %v302
          %v385 = vunpack.c.h.b16 %v302
          %v386 = vunpack.c.l.b16 %v303
          %v387 = vunpack.c.h.b16 %v303
          %v388 = vunpack.c.l.b16 %v304
          %v389 = vunpack.c.h.b16 %v304
          %v390 = vunpack.c.l.b16 %v305
          %v391 = vunpack.c.h.b16 %v305
          %v392 = vunpack.c.l.b16 %v306
          %v393 = vunpack.c.h.b16 %v306
          %v394 = vunpack.c.l.b16 %v307
          %v395 = vunpack.c.h.b16 %v307
          %v396 = vunpack.c.l.b16 %v308
          %v397 = vunpack.c.h.b16 %v308
          %v398 = vunpack.c.l.b16 %v309
          %v399 = vunpack.c.h.b16 %v309
          %v400 = vunpack.c.l.b16 %v310
          %v401 = vunpack.c.h.b16 %v310
          %v402 = vunpack.c.l.b16 %v311
          %v403 = vunpack.c.h.b16 %v311
          %v404 = vunpack.c.l.b16 %v312
          %v405 = vunpack.c.h.b16 %v312
          %v406 = vunpack.c.l.b16 %v313
          %v407 = vunpack.c.h.b16 %v313
          %v408 = vunpack.c.l.b16 %v314
          %v409 = vunpack.c.h.b16 %v314
          %v410 = vunpack.c.l.b16 %v315
          %v411 = vunpack.c.h.b16 %v315
          %v412 = vpack.c.b16 %v350, %v348
          %v413 = vpack.c.b16 %v351, %v349
          %v414 = vpack.c.b16 %v354, %v352
          %v415 = vpack.c.b16 %v355, %v353
          %v416 = vpack.c.b16 %v358, %v356
          %v417 = vpack.c.b16 %v359, %v357
          %v418 = vpack.c.b16 %v362, %v360
          %v419 = vpack.c.b16 %v363, %v361
          %v420 = vpack.c.b16 %v366, %v364
          %v421 = vpack.c.b16 %v367, %v365
          %v422 = vpack.c.b16 %v370, %v368
          %v423 = vpack.c.b16 %v371, %v369
          %v424 = vpack.c.b16 %v374, %v372
          %v425 = vpack.c.b16 %v375, %v373
          %v426 = vpack.c.b16 %v378, %v376
          %v427 = vpack.c.b16 %v379, %v377
          %v428 = vpack.c.b16 %v382, %v380
          %v429 = vpack.c.b16 %v383, %v381
          %v430 = vpack.c.b16 %v386, %v384
          %v431 = vpack.c.b16 %v387, %v385
          %v432 = vpack.c.b16 %v390, %v388
          %v433 = vpack.c.b16 %v391, %v389
          %v434 = vpack.c.b16 %v394, %v392
          %v435 = vpack.c.b16 %v395, %v393
          %v436 = vpack.c.b16 %v398, %v396
          %v437 = vpack.c.b16 %v399, %v397
          %v438 = vpack.c.b16 %v402, %v400
          %v439 = vpack.c.b16 %v403, %v401
          %v440 = vpack.c.b16 %v406, %v404
          %v441 = vpack.c.b16 %v407, %v405
          %v442 = vpack.c.b16 %v410, %v408
          %v443 = vpack.c.b16 %v411, %v409
          %476 = vmatpush.bf16.msra.mxu0 %v426
          %477 = vmatpush.bf16.msra.mxu0 %v424
          %478 = vmatpush.bf16.msra.mxu0 %v422
          %479 = vmatpush.bf16.msra.mxu0 %v420
          %480 = vmatpush.bf16.msra.mxu0 %v418
          %481 = vmatpush.bf16.msra.mxu0 %v416
          %482 = vmatpush.bf16.msra.mxu0 %v414
          %483 = vmatpush.bf16.msra.mxu0 %v412
          %484 = vmatmul.bf16.gmra.mxu0 %v252
          %v485 = vpop.f32.mrf.mxu0
          %v486 = vadd.f32 0.0, %v485
          %v487 = vpop.f32.mrf.mxu0
          %v488 = vadd.f32 0.0, %v487
          %489 = vmatmul.bf16.gmra.mxu0 %v254
          %v490 = vpop.f32.mrf.mxu0
          %v491 = vadd.f32 0.0, %v490
          %v492 = vpop.f32.mrf.mxu0
          %v493 = vadd.f32 0.0, %v492
          %494 = vmatmul.bf16.gmra.mxu0 %v256
          %v495 = vpop.f32.mrf.mxu0
          %v496 = vadd.f32 0.0, %v495
          %v497 = vpop.f32.mrf.mxu0
          %v498 = vadd.f32 0.0, %v497
          %499 = vmatmul.bf16.gmra.mxu0 %v258
          %v500 = vpop.f32.mrf.mxu0
          %v501 = vadd.f32 0.0, %v500
          %v502 = vpop.f32.mrf.mxu0
          %v503 = vadd.f32 0.0, %v502
          %504 = vmatmul.bf16.gmra.mxu0 %v260
          %v505 = vpop.f32.mrf.mxu0
          %v506 = vadd.f32 0.0, %v505
          %v507 = vpop.f32.mrf.mxu0
          %v508 = vadd.f32 0.0, %v507
          %509 = vmatmul.bf16.gmra.mxu0 %v262
          %v510 = vpop.f32.mrf.mxu0
          %v511 = vadd.f32 0.0, %v510
          %v512 = vpop.f32.mrf.mxu0
          %v513 = vadd.f32 0.0, %v512
          %514 = vmatmul.bf16.gmra.mxu0 %v264
          %v515 = vpop.f32.mrf.mxu0
          %v516 = vadd.f32 0.0, %v515
          %v517 = vpop.f32.mrf.mxu0
          %v518 = vadd.f32 0.0, %v517
          %519 = vmatmul.bf16.gmra.mxu0 %v266
          %v520 = vpop.f32.mrf.mxu0
          %v521 = vadd.f32 0.0, %v520
          %v522 = vpop.f32.mrf.mxu0
          %v523 = vadd.f32 0.0, %v522
          %524 = vmatmul.bf16.gmra.mxu0 %v268
          %v525 = vpop.f32.mrf.mxu0
          %v526 = vadd.f32 0.0, %v525
          %v527 = vpop.f32.mrf.mxu0
          %v528 = vadd.f32 0.0, %v527
          %529 = vmatmul.bf16.gmra.mxu0 %v270
          %v530 = vpop.f32.mrf.mxu0
          %v531 = vadd.f32 0.0, %v530
          %v532 = vpop.f32.mrf.mxu0
          %v533 = vadd.f32 0.0, %v532
          %534 = vmatmul.bf16.gmra.mxu0 %v272
          %v535 = vpop.f32.mrf.mxu0
          %v536 = vadd.f32 0.0, %v535
          %v537 = vpop.f32.mrf.mxu0
          %v538 = vadd.f32 0.0, %v537
          %539 = vmatmul.bf16.gmra.mxu0 %v274
          %v540 = vpop.f32.mrf.mxu0
          %v541 = vadd.f32 0.0, %v540
          %v542 = vpop.f32.mrf.mxu0
          %v543 = vadd.f32 0.0, %v542
          %544 = vmatmul.bf16.gmra.mxu0 %v276
          %v545 = vpop.f32.mrf.mxu0
          %v546 = vadd.f32 0.0, %v545
          %v547 = vpop.f32.mrf.mxu0
          %v548 = vadd.f32 0.0, %v547
          %549 = vmatmul.bf16.gmra.mxu0 %v278
          %v550 = vpop.f32.mrf.mxu0
          %v551 = vadd.f32 0.0, %v550
          %v552 = vpop.f32.mrf.mxu0
          %v553 = vadd.f32 0.0, %v552
          %554 = vmatmul.bf16.gmra.mxu0 %v280
          %v555 = vpop.f32.mrf.mxu0
          %v556 = vadd.f32 0.0, %v555
          %v557 = vpop.f32.mrf.mxu0
          %v558 = vadd.f32 0.0, %v557
          %559 = vmatmul.bf16.gmra.mxu0 %v282
          %v560 = vpop.f32.mrf.mxu0
          %v561 = vadd.f32 0.0, %v560
          %v562 = vpop.f32.mrf.mxu0
          %v563 = vadd.f32 0.0, %v562
          %564 = vdwg.mxu0
          %565 = vmatpush.bf16.msra.mxu0 %v442
          %566 = vmatpush.bf16.msra.mxu0 %v440
          %567 = vmatpush.bf16.msra.mxu0 %v438
          %568 = vmatpush.bf16.msra.mxu0 %v436
          %569 = vmatpush.bf16.msra.mxu0 %v434
          %570 = vmatpush.bf16.msra.mxu0 %v432
          %571 = vmatpush.bf16.msra.mxu0 %v430
          %572 = vmatpush.bf16.msra.mxu0 %v428
          %573 = vmatmul.bf16.gmra.mxu0 %v253
          %v574 = vpop.f32.mrf.mxu0
          %v575 = vadd.f32 %v486, %v574
          %v576 = vpop.f32.mrf.mxu0
          %v577 = vadd.f32 %v488, %v576
          %578 = vmatmul.bf16.gmra.mxu0 %v255
          %v579 = vpop.f32.mrf.mxu0
          %v580 = vadd.f32 %v491, %v579
          %v581 = vpop.f32.mrf.mxu0
          %v582 = vadd.f32 %v493, %v581
          %583 = vmatmul.bf16.gmra.mxu0 %v257
          %v584 = vpop.f32.mrf.mxu0
          %v585 = vadd.f32 %v496, %v584
          %v586 = vpop.f32.mrf.mxu0
          %v587 = vadd.f32 %v498, %v586
          %588 = vmatmul.bf16.gmra.mxu0 %v259
          %v589 = vpop.f32.mrf.mxu0
          %v590 = vadd.f32 %v501, %v589
          %v591 = vpop.f32.mrf.mxu0
          %v592 = vadd.f32 %v503, %v591
          %593 = vmatmul.bf16.gmra.mxu0 %v261
          %v594 = vpop.f32.mrf.mxu0
          %v595 = vadd.f32 %v506, %v594
          %v596 = vpop.f32.mrf.mxu0
          %v597 = vadd.f32 %v508, %v596
          %598 = vmatmul.bf16.gmra.mxu0 %v263
          %v599 = vpop.f32.mrf.mxu0
          %v600 = vadd.f32 %v511, %v599
          %v601 = vpop.f32.mrf.mxu0
          %v602 = vadd.f32 %v513, %v601
          %603 = vmatmul.bf16.gmra.mxu0 %v265
          %v604 = vpop.f32.mrf.mxu0
          %v605 = vadd.f32 %v516, %v604
          %v606 = vpop.f32.mrf.mxu0
          %v607 = vadd.f32 %v518, %v606
          %608 = vmatmul.bf16.gmra.mxu0 %v267
          %v609 = vpop.f32.mrf.mxu0
          %v610 = vadd.f32 %v521, %v609
          %v611 = vpop.f32.mrf.mxu0
          %v612 = vadd.f32 %v523, %v611
          %613 = vmatmul.bf16.gmra.mxu0 %v269
          %v614 = vpop.f32.mrf.mxu0
          %v615 = vadd.f32 %v526, %v614
          %v616 = vpop.f32.mrf.mxu0
          %v617 = vadd.f32 %v528, %v616
          %618 = vmatmul.bf16.gmra.mxu0 %v271
          %v619 = vpop.f32.mrf.mxu0
          %v620 = vadd.f32 %v531, %v619
          %v621 = vpop.f32.mrf.mxu0
          %v622 = vadd.f32 %v533, %v621
          %623 = vmatmul.bf16.gmra.mxu0 %v273
          %v624 = vpop.f32.mrf.mxu0
          %v625 = vadd.f32 %v536, %v624
          %v626 = vpop.f32.mrf.mxu0
          %v627 = vadd.f32 %v538, %v626
          %628 = vmatmul.bf16.gmra.mxu0 %v275
          %v629 = vpop.f32.mrf.mxu0
          %v630 = vadd.f32 %v541, %v629
          %v631 = vpop.f32.mrf.mxu0
          %v632 = vadd.f32 %v543, %v631
          %633 = vmatmul.bf16.gmra.mxu0 %v277
          %v634 = vpop.f32.mrf.mxu0
          %v635 = vadd.f32 %v546, %v634
          %v636 = vpop.f32.mrf.mxu0
          %v637 = vadd.f32 %v548, %v636
          %638 = vmatmul.bf16.gmra.mxu0 %v279
          %v639 = vpop.f32.mrf.mxu0
          %v640 = vadd.f32 %v551, %v639
          %v641 = vpop.f32.mrf.mxu0
          %v642 = vadd.f32 %v553, %v641
          %643 = vmatmul.bf16.gmra.mxu0 %v281
          %v644 = vpop.f32.mrf.mxu0
          %v645 = vadd.f32 %v556, %v644
          %v646 = vpop.f32.mrf.mxu0
          %v647 = vadd.f32 %v558, %v646
          %648 = vmatmul.bf16.gmra.mxu0 %v283
          %v649 = vpop.f32.mrf.mxu0
          %v650 = vadd.f32 %v561, %v649
          %v651 = vpop.f32.mrf.mxu0
          %v652 = vadd.f32 %v563, %v651
          %653 = vdwg.mxu0
          %654 = vmatpush.bf16.msra.mxu0 %v427
          %655 = vmatpush.bf16.msra.mxu0 %v425
          %656 = vmatpush.bf16.msra.mxu0 %v423
          %657 = vmatpush.bf16.msra.mxu0 %v421
          %658 = vmatpush.bf16.msra.mxu0 %v419
          %659 = vmatpush.bf16.msra.mxu0 %v417
          %660 = vmatpush.bf16.msra.mxu0 %v415
          %661 = vmatpush.bf16.msra.mxu0 %v413
          %662 = vmatmul.bf16.gmra.mxu0 %v252
          %v663 = vpop.f32.mrf.mxu0
          %v664 = vadd.f32 0.0, %v663
          %v665 = vpop.f32.mrf.mxu0
          %v666 = vadd.f32 0.0, %v665
          %667 = vmatmul.bf16.gmra.mxu0 %v254
          %v668 = vpop.f32.mrf.mxu0
          %v669 = vadd.f32 0.0, %v668
          %v670 = vpop.f32.mrf.mxu0
          %v671 = vadd.f32 0.0, %v670
          %672 = vmatmul.bf16.gmra.mxu0 %v256
          %v673 = vpop.f32.mrf.mxu0
          %v674 = vadd.f32 0.0, %v673
          %v675 = vpop.f32.mrf.mxu0
          %v676 = vadd.f32 0.0, %v675
          %677 = vmatmul.bf16.gmra.mxu0 %v258
          %v678 = vpop.f32.mrf.mxu0
          %v679 = vadd.f32 0.0, %v678
          %v680 = vpop.f32.mrf.mxu0
          %v681 = vadd.f32 0.0, %v680
          %682 = vmatmul.bf16.gmra.mxu0 %v260
          %v683 = vpop.f32.mrf.mxu0
          %v684 = vadd.f32 0.0, %v683
          %v685 = vpop.f32.mrf.mxu0
          %v686 = vadd.f32 0.0, %v685
          %687 = vmatmul.bf16.gmra.mxu0 %v262
          %v688 = vpop.f32.mrf.mxu0
          %v689 = vadd.f32 0.0, %v688
          %v690 = vpop.f32.mrf.mxu0
          %v691 = vadd.f32 0.0, %v690
          %692 = vmatmul.bf16.gmra.mxu0 %v264
          %v693 = vpop.f32.mrf.mxu0
          %v694 = vadd.f32 0.0, %v693
          %v695 = vpop.f32.mrf.mxu0
          %v696 = vadd.f32 0.0, %v695
          %697 = vmatmul.bf16.gmra.mxu0 %v266
          %v698 = vpop.f32.mrf.mxu0
          %v699 = vadd.f32 0.0, %v698
          %v700 = vpop.f32.mrf.mxu0
          %v701 = vadd.f32 0.0, %v700
          %702 = vmatmul.bf16.gmra.mxu0 %v268
          %v703 = vpop.f32.mrf.mxu0
          %v704 = vadd.f32 0.0, %v703
          %v705 = vpop.f32.mrf.mxu0
          %v706 = vadd.f32 0.0, %v705
          %707 = vmatmul.bf16.gmra.mxu0 %v270
          %v708 = vpop.f32.mrf.mxu0
          %v709 = vadd.f32 0.0, %v708
          %v710 = vpop.f32.mrf.mxu0
          %v711 = vadd.f32 0.0, %v710
          %712 = vmatmul.bf16.gmra.mxu0 %v272
          %v713 = vpop.f32.mrf.mxu0
          %v714 = vadd.f32 0.0, %v713
          %v715 = vpop.f32.mrf.mxu0
          %v716 = vadd.f32 0.0, %v715
          %717 = vmatmul.bf16.gmra.mxu0 %v274
          %v718 = vpop.f32.mrf.mxu0
          %v719 = vadd.f32 0.0, %v718
          %v720 = vpop.f32.mrf.mxu0
          %v721 = vadd.f32 0.0, %v720
          %722 = vmatmul.bf16.gmra.mxu0 %v276
          %v723 = vpop.f32.mrf.mxu0
          %v724 = vadd.f32 0.0, %v723
          %v725 = vpop.f32.mrf.mxu0
          %v726 = vadd.f32 0.0, %v725
          %727 = vmatmul.bf16.gmra.mxu0 %v278
          %v728 = vpop.f32.mrf.mxu0
          %v729 = vadd.f32 0.0, %v728
          %v730 = vpop.f32.mrf.mxu0
          %v731 = vadd.f32 0.0, %v730
          %732 = vmatmul.bf16.gmra.mxu0 %v280
          %v733 = vpop.f32.mrf.mxu0
          %v734 = vadd.f32 0.0, %v733
          %v735 = vpop.f32.mrf.mxu0
          %v736 = vadd.f32 0.0, %v735
          %737 = vmatmul.bf16.gmra.mxu0 %v282
          %v738 = vpop.f32.mrf.mxu0
          %v739 = vadd.f32 0.0, %v738
          %v740 = vpop.f32.mrf.mxu0
          %v741 = vadd.f32 0.0, %v740
          %742 = vdwg.mxu0
          %743 = vmatpush.bf16.msra.mxu0 %v443
          %744 = vmatpush.bf16.msra.mxu0 %v441
          %745 = vmatpush.bf16.msra.mxu0 %v439
          %746 = vmatpush.bf16.msra.mxu0 %v437
          %747 = vmatpush.bf16.msra.mxu0 %v435
          %748 = vmatpush.bf16.msra.mxu0 %v433
          %749 = vmatpush.bf16.msra.mxu0 %v431
          %750 = vmatpush.bf16.msra.mxu0 %v429
          %751 = vmatmul.bf16.gmra.mxu0 %v253
          %v752 = vpop.f32.mrf.mxu0
          %v753 = vadd.f32 %v664, %v752
          %v754 = vpop.f32.mrf.mxu0
          %v755 = vadd.f32 %v666, %v754
          %756 = vmatmul.bf16.gmra.mxu0 %v255
          %v757 = vpop.f32.mrf.mxu0
          %v758 = vadd.f32 %v669, %v757
          %v759 = vpop.f32.mrf.mxu0
          %v760 = vadd.f32 %v671, %v759
          %761 = vmatmul.bf16.gmra.mxu0 %v257
          %v762 = vpop.f32.mrf.mxu0
          %v763 = vadd.f32 %v674, %v762
          %v764 = vpop.f32.mrf.mxu0
          %v765 = vadd.f32 %v676, %v764
          %766 = vmatmul.bf16.gmra.mxu0 %v259
          %v767 = vpop.f32.mrf.mxu0
          %v768 = vadd.f32 %v679, %v767
          %v769 = vpop.f32.mrf.mxu0
          %v770 = vadd.f32 %v681, %v769
          %771 = vmatmul.bf16.gmra.mxu0 %v261
          %v772 = vpop.f32.mrf.mxu0
          %v773 = vadd.f32 %v684, %v772
          %v774 = vpop.f32.mrf.mxu0
          %v775 = vadd.f32 %v686, %v774
          %776 = vmatmul.bf16.gmra.mxu0 %v263
          %v777 = vpop.f32.mrf.mxu0
          %v778 = vadd.f32 %v689, %v777
          %v779 = vpop.f32.mrf.mxu0
          %v780 = vadd.f32 %v691, %v779
          %781 = vmatmul.bf16.gmra.mxu0 %v265
          %v782 = vpop.f32.mrf.mxu0
          %v783 = vadd.f32 %v694, %v782
          %v784 = vpop.f32.mrf.mxu0
          %v785 = vadd.f32 %v696, %v784
          %786 = vmatmul.bf16.gmra.mxu0 %v267
          %v787 = vpop.f32.mrf.mxu0
          %v788 = vadd.f32 %v699, %v787
          %v789 = vpop.f32.mrf.mxu0
          %v790 = vadd.f32 %v701, %v789
          %791 = vmatmul.bf16.gmra.mxu0 %v269
          %v792 = vpop.f32.mrf.mxu0
          %v793 = vadd.f32 %v704, %v792
          %v794 = vpop.f32.mrf.mxu0
          %v795 = vadd.f32 %v706, %v794
          %796 = vmatmul.bf16.gmra.mxu0 %v271
          %v797 = vpop.f32.mrf.mxu0
          %v798 = vadd.f32 %v709, %v797
          %v799 = vpop.f32.mrf.mxu0
          %v800 = vadd.f32 %v711, %v799
          %801 = vmatmul.bf16.gmra.mxu0 %v273
          %v802 = vpop.f32.mrf.mxu0
          %v803 = vadd.f32 %v714, %v802
          %v804 = vpop.f32.mrf.mxu0
          %v805 = vadd.f32 %v716, %v804
          %806 = vmatmul.bf16.gmra.mxu0 %v275
          %v807 = vpop.f32.mrf.mxu0
          %v808 = vadd.f32 %v719, %v807
          %v809 = vpop.f32.mrf.mxu0
          %v810 = vadd.f32 %v721, %v809
          %811 = vmatmul.bf16.gmra.mxu0 %v277
          %v812 = vpop.f32.mrf.mxu0
          %v813 = vadd.f32 %v724, %v812
          %v814 = vpop.f32.mrf.mxu0
          %v815 = vadd.f32 %v726, %v814
          %816 = vmatmul.bf16.gmra.mxu0 %v279
          %v817 = vpop.f32.mrf.mxu0
          %v818 = vadd.f32 %v729, %v817
          %v819 = vpop.f32.mrf.mxu0
          %v820 = vadd.f32 %v731, %v819
          %821 = vmatmul.bf16.gmra.mxu0 %v281
          %v822 = vpop.f32.mrf.mxu0
          %v823 = vadd.f32 %v734, %v822
          %v824 = vpop.f32.mrf.mxu0
          %v825 = vadd.f32 %v736, %v824
          %826 = vmatmul.bf16.gmra.mxu0 %v283
          %v827 = vpop.f32.mrf.mxu0
          %v828 = vadd.f32 %v739, %v827
          %v829 = vpop.f32.mrf.mxu0
          %v830 = vadd.f32 %v741, %v829
          %831 = vdwg.mxu0
          %v832 = vpack.c.bf16 %v753, %v575
          %v833 = vpack.c.bf16 %v755, %v577
          %v834 = vpack.c.bf16 %v758, %v580
          %v835 = vpack.c.bf16 %v760, %v582
          %v836 = vpack.c.bf16 %v763, %v585
          %v837 = vpack.c.bf16 %v765, %v587
          %v838 = vpack.c.bf16 %v768, %v590
          %v839 = vpack.c.bf16 %v770, %v592
          %v840 = vpack.c.bf16 %v773, %v595
          %v841 = vpack.c.bf16 %v775, %v597
          %v842 = vpack.c.bf16 %v778, %v600
          %v843 = vpack.c.bf16 %v780, %v602
          %v844 = vpack.c.bf16 %v783, %v605
          %v845 = vpack.c.bf16 %v785, %v607
          %v846 = vpack.c.bf16 %v788, %v610
          %v847 = vpack.c.bf16 %v790, %v612
          %v848 = vpack.c.bf16 %v793, %v615
          %v849 = vpack.c.bf16 %v795, %v617
          %v850 = vpack.c.bf16 %v798, %v620
          %v851 = vpack.c.bf16 %v800, %v622
          %v852 = vpack.c.bf16 %v803, %v625
          %v853 = vpack.c.bf16 %v805, %v627
          %v854 = vpack.c.bf16 %v808, %v630
          %v855 = vpack.c.bf16 %v810, %v632
          %v856 = vpack.c.bf16 %v813, %v635
          %v857 = vpack.c.bf16 %v815, %v637
          %v858 = vpack.c.bf16 %v818, %v640
          %v859 = vpack.c.bf16 %v820, %v642
          %v860 = vpack.c.bf16 %v823, %v645
          %v861 = vpack.c.bf16 %v825, %v647
          %v862 = vpack.c.bf16 %v828, %v650
          %v863 = vpack.c.bf16 %v830, %v652
          %864 = vst [vmem:[#allocation2] sm:$0xff] %v832
          %865 = vst [vmem:[#allocation2 + $0x8] sm:$0xff] %v833
          %866 = vst [vmem:[#allocation2 + $0x10] sm:$0xff] %v834
          %867 = vst [vmem:[#allocation2 + $0x18] sm:$0xff] %v835
          %868 = vst [vmem:[#allocation2 + $0x20] sm:$0xff] %v836
          %869 = vst [vmem:[#allocation2 + $0x28] sm:$0xff] %v837
          %870 = vst [vmem:[#allocation2 + $0x30] sm:$0xff] %v838
          %871 = vst [vmem:[#allocation2 + $0x38] sm:$0xff] %v839
          %872 = vst [vmem:[#allocation2 + $0x40] sm:$0xff] %v840
          %873 = vst [vmem:[#allocation2 + $0x48] sm:$0xff] %v841
          %874 = vst [vmem:[#allocation2 + $0x50] sm:$0xff] %v842
          %875 = vst [vmem:[#allocation2 + $0x58] sm:$0xff] %v843
          %876 = vst [vmem:[#allocation2 + $0x60] sm:$0xff] %v844
          %877 = vst [vmem:[#allocation2 + $0x68] sm:$0xff] %v845
          %878 = vst [vmem:[#allocation2 + $0x70] sm:$0xff] %v846
          %879 = vst [vmem:[#allocation2 + $0x78] sm:$0xff] %v847
          %880 = vst [vmem:[#allocation2 + $0x80] sm:$0xff] %v848
          %881 = vst [vmem:[#allocation2 + $0x88] sm:$0xff] %v849
          %882 = vst [vmem:[#allocation2 + $0x90] sm:$0xff] %v850
          %883 = vst [vmem:[#allocation2 + $0x98] sm:$0xff] %v851
          %884 = vst [vmem:[#allocation2 + $0xa0] sm:$0xff] %v852
          %885 = vst [vmem:[#allocation2 + $0xa8] sm:$0xff] %v853
          %886 = vst [vmem:[#allocation2 + $0xb0] sm:$0xff] %v854
          %887 = vst [vmem:[#allocation2 + $0xb8] sm:$0xff] %v855
          %888 = vst [vmem:[#allocation2 + $0xc0] sm:$0xff] %v856
          %889 = vst [vmem:[#allocation2 + $0xc8] sm:$0xff] %v857
          %890 = vst [vmem:[#allocation2 + $0xd0] sm:$0xff] %v858
          %891 = vst [vmem:[#allocation2 + $0xd8] sm:$0xff] %v859
          %892 = vst [vmem:[#allocation2 + $0xe0] sm:$0xff] %v860
          %893 = vst [vmem:[#allocation2 + $0xe8] sm:$0xff] %v861
          %894 = vst [vmem:[#allocation2 + $0xf0] sm:$0xff] %v862
          %895 = vst [vmem:[#allocation2 + $0xf8] sm:$0xff] %v863
          %v896 = vld [vmem:[%s1 + $0x10] sm:$0xff]
          %v897 = vld [vmem:[%s1 + $0x28] sm:$0xff]
          %v898 = vld [vmem:[%s1 + $0x40] sm:$0xff]
          %v899 = vld [vmem:[%s1 + $0x58] sm:$0xff]
          %v900 = vld [vmem:[%s1 + $0x70] sm:$0xff]
          %v901 = vld [vmem:[%s1 + $0x88] sm:$0xff]
          %v902 = vld [vmem:[%s1 + $0xa0] sm:$0xff]
          %v903 = vld [vmem:[%s1 + $0xb8] sm:$0xff]
          %v904 = vld [vmem:[%s1 + $0xd0] sm:$0xff]
          %v905 = vld [vmem:[%s1 + $0xe8] sm:$0xff]
          %v906 = vld [vmem:[%s1 + $0x100] sm:$0xff]
          %v907 = vld [vmem:[%s1 + $0x118] sm:$0xff]
          %v908 = vld [vmem:[%s1 + $0x130] sm:$0xff]
          %v909 = vld [vmem:[%s1 + $0x148] sm:$0xff]
          %v910 = vld [vmem:[%s1 + $0x160] sm:$0xff]
          %v911 = vld [vmem:[%s1 + $0x178] sm:$0xff]
          %v912 = vld [vmem:[%s1 + $0x190] sm:$0xff]
          %v913 = vld [vmem:[%s1 + $0x1a8] sm:$0xff]
          %v914 = vld [vmem:[%s1 + $0x1c0] sm:$0xff]
          %v915 = vld [vmem:[%s1 + $0x1d8] sm:$0xff]
          %v916 = vld [vmem:[%s1 + $0x1f0] sm:$0xff]
          %v917 = vld [vmem:[%s1 + $0x208] sm:$0xff]
          %v918 = vld [vmem:[%s1 + $0x220] sm:$0xff]
          %v919 = vld [vmem:[%s1 + $0x238] sm:$0xff]
          %v920 = vld [vmem:[%s1 + $0x250] sm:$0xff]
          %v921 = vld [vmem:[%s1 + $0x268] sm:$0xff]
          %v922 = vld [vmem:[%s1 + $0x280] sm:$0xff]
          %v923 = vld [vmem:[%s1 + $0x298] sm:$0xff]
          %v924 = vld [vmem:[%s1 + $0x2b0] sm:$0xff]
          %v925 = vld [vmem:[%s1 + $0x2c8] sm:$0xff]
          %v926 = vld [vmem:[%s1 + $0x2e0] sm:$0xff]
          %v927 = vld [vmem:[%s1 + $0x2f8] sm:$0xff]
          %v960 = vunpack.c.l.b16 %v896
          %v961 = vunpack.c.h.b16 %v896
          %v962 = vunpack.c.l.b16 %v897
          %v963 = vunpack.c.h.b16 %v897
          %v964 = vunpack.c.l.b16 %v898
          %v965 = vunpack.c.h.b16 %v898
          %v966 = vunpack.c.l.b16 %v899
          %v967 = vunpack.c.h.b16 %v899
          %v968 = vunpack.c.l.b16 %v900
          %v969 = vunpack.c.h.b16 %v900
          %v970 = vunpack.c.l.b16 %v901
          %v971 = vunpack.c.h.b16 %v901
          %v972 = vunpack.c.l.b16 %v902
          %v973 = vunpack.c.h.b16 %v902
          %v974 = vunpack.c.l.b16 %v903
          %v975 = vunpack.c.h.b16 %v903
          %v976 = vunpack.c.l.b16 %v904
          %v977 = vunpack.c.h.b16 %v904
          %v978 = vunpack.c.l.b16 %v905
          %v979 = vunpack.c.h.b16 %v905
          %v980 = vunpack.c.l.b16 %v906
          %v981 = vunpack.c.h.b16 %v906
          %v982 = vunpack.c.l.b16 %v907
          %v983 = vunpack.c.h.b16 %v907
          %v984 = vunpack.c.l.b16 %v908
          %v985 = vunpack.c.h.b16 %v908
          %v986 = vunpack.c.l.b16 %v909
          %v987 = vunpack.c.h.b16 %v909
          %v988 = vunpack.c.l.b16 %v910
          %v989 = vunpack.c.h.b16 %v910
          %v990 = vunpack.c.l.b16 %v911
          %v991 = vunpack.c.h.b16 %v911
          %v992 = vunpack.c.l.b16 %v912
          %v993 = vunpack.c.h.b16 %v912
          %v994 = vunpack.c.l.b16 %v913
          %v995 = vunpack.c.h.b16 %v913
          %v996 = vunpack.c.l.b16 %v914
          %v997 = vunpack.c.h.b16 %v914
          %v998 = vunpack.c.l.b16 %v915
          %v999 = vunpack.c.h.b16 %v915
          %v1000 = vunpack.c.l.b16 %v916
          %v1001 = vunpack.c.h.b16 %v916
          %v1002 = vunpack.c.l.b16 %v917
          %v1003 = vunpack.c.h.b16 %v917
          %v1004 = vunpack.c.l.b16 %v918
          %v1005 = vunpack.c.h.b16 %v918
          %v1006 = vunpack.c.l.b16 %v919
          %v1007 = vunpack.c.h.b16 %v919
          %v1008 = vunpack.c.l.b16 %v920
          %v1009 = vunpack.c.h.b16 %v920
          %v1010 = vunpack.c.l.b16 %v921
          %v1011 = vunpack.c.h.b16 %v921
          %v1012 = vunpack.c.l.b16 %v922
          %v1013 = vunpack.c.h.b16 %v922
          %v1014 = vunpack.c.l.b16 %v923
          %v1015 = vunpack.c.h.b16 %v923
          %v1016 = vunpack.c.l.b16 %v924
          %v1017 = vunpack.c.h.b16 %v924
          %v1018 = vunpack.c.l.b16 %v925
          %v1019 = vunpack.c.h.b16 %v925
          %v1020 = vunpack.c.l.b16 %v926
          %v1021 = vunpack.c.h.b16 %v926
          %v1022 = vunpack.c.l.b16 %v927
          %v1023 = vunpack.c.h.b16 %v927
          %v1024 = vpack.c.b16 %v962, %v960
          %v1025 = vpack.c.b16 %v963, %v961
          %v1026 = vpack.c.b16 %v966, %v964
          %v1027 = vpack.c.b16 %v967, %v965
          %v1028 = vpack.c.b16 %v970, %v968
          %v1029 = vpack.c.b16 %v971, %v969
          %v1030 = vpack.c.b16 %v974, %v972
          %v1031 = vpack.c.b16 %v975, %v973
          %v1032 = vpack.c.b16 %v978, %v976
          %v1033 = vpack.c.b16 %v979, %v977
          %v1034 = vpack.c.b16 %v982, %v980
          %v1035 = vpack.c.b16 %v983, %v981
          %v1036 = vpack.c.b16 %v986, %v984
          %v1037 = vpack.c.b16 %v987, %v985
          %v1038 = vpack.c.b16 %v990, %v988
          %v1039 = vpack.c.b16 %v991, %v989
          %v1040 = vpack.c.b16 %v994, %v992
          %v1041 = vpack.c.b16 %v995, %v993
          %v1042 = vpack.c.b16 %v998, %v996
          %v1043 = vpack.c.b16 %v999, %v997
          %v1044 = vpack.c.b16 %v1002, %v1000
          %v1045 = vpack.c.b16 %v1003, %v1001
          %v1046 = vpack.c.b16 %v1006, %v1004
          %v1047 = vpack.c.b16 %v1007, %v1005
          %v1048 = vpack.c.b16 %v1010, %v1008
          %v1049 = vpack.c.b16 %v1011, %v1009
          %v1050 = vpack.c.b16 %v1014, %v1012
          %v1051 = vpack.c.b16 %v1015, %v1013
          %v1052 = vpack.c.b16 %v1018, %v1016
          %v1053 = vpack.c.b16 %v1019, %v1017
          %v1054 = vpack.c.b16 %v1022, %v1020
          %v1055 = vpack.c.b16 %v1023, %v1021
          %1088 = vmatpush.bf16.msra.mxu0 %v1038
          %1089 = vmatpush.bf16.msra.mxu0 %v1036
          %1090 = vmatpush.bf16.msra.mxu0 %v1034
          %1091 = vmatpush.bf16.msra.mxu0 %v1032
          %1092 = vmatpush.bf16.msra.mxu0 %v1030
          %1093 = vmatpush.bf16.msra.mxu0 %v1028
          %1094 = vmatpush.bf16.msra.mxu0 %v1026
          %1095 = vmatpush.bf16.msra.mxu0 %v1024
          %1096 = vmatmul.bf16.gmra.mxu0 %v252
          %v1097 = vpop.f32.mrf.mxu0
          %v1098 = vadd.f32 0.0, %v1097
          %v1099 = vpop.f32.mrf.mxu0
          %v1100 = vadd.f32 0.0, %v1099
          %1101 = vmatmul.bf16.gmra.mxu0 %v254
          %v1102 = vpop.f32.mrf.mxu0
          %v1103 = vadd.f32 0.0, %v1102
          %v1104 = vpop.f32.mrf.mxu0
          %v1105 = vadd.f32 0.0, %v1104
          %1106 = vmatmul.bf16.gmra.mxu0 %v256
          %v1107 = vpop.f32.mrf.mxu0
          %v1108 = vadd.f32 0.0, %v1107
          %v1109 = vpop.f32.mrf.mxu0
          %v1110 = vadd.f32 0.0, %v1109
          %1111 = vmatmul.bf16.gmra.mxu0 %v258
          %v1112 = vpop.f32.mrf.mxu0
          %v1113 = vadd.f32 0.0, %v1112
          %v1114 = vpop.f32.mrf.mxu0
          %v1115 = vadd.f32 0.0, %v1114
          %1116 = vmatmul.bf16.gmra.mxu0 %v260
          %v1117 = vpop.f32.mrf.mxu0
          %v1118 = vadd.f32 0.0, %v1117
          %v1119 = vpop.f32.mrf.mxu0
          %v1120 = vadd.f32 0.0, %v1119
          %1121 = vmatmul.bf16.gmra.mxu0 %v262
          %v1122 = vpop.f32.mrf.mxu0
          %v1123 = vadd.f32 0.0, %v1122
          %v1124 = vpop.f32.mrf.mxu0
          %v1125 = vadd.f32 0.0, %v1124
          %1126 = vmatmul.bf16.gmra.mxu0 %v264
          %v1127 = vpop.f32.mrf.mxu0
          %v1128 = vadd.f32 0.0, %v1127
          %v1129 = vpop.f32.mrf.mxu0
          %v1130 = vadd.f32 0.0, %v1129
          %1131 = vmatmul.bf16.gmra.mxu0 %v266
          %v1132 = vpop.f32.mrf.mxu0
          %v1133 = vadd.f32 0.0, %v1132
          %v1134 = vpop.f32.mrf.mxu0
          %v1135 = vadd.f32 0.0, %v1134
          %1136 = vmatmul.bf16.gmra.mxu0 %v268
          %v1137 = vpop.f32.mrf.mxu0
          %v1138 = vadd.f32 0.0, %v1137
          %v1139 = vpop.f32.mrf.mxu0
          %v1140 = vadd.f32 0.0, %v1139
          %1141 = vmatmul.bf16.gmra.mxu0 %v270
          %v1142 = vpop.f32.mrf.mxu0
          %v1143 = vadd.f32 0.0, %v1142
          %v1144 = vpop.f32.mrf.mxu0
          %v1145 = vadd.f32 0.0, %v1144
          %1146 = vmatmul.bf16.gmra.mxu0 %v272
          %v1147 = vpop.f32.mrf.mxu0
          %v1148 = vadd.f32 0.0, %v1147
          %v1149 = vpop.f32.mrf.mxu0
          %v1150 = vadd.f32 0.0, %v1149
          %1151 = vmatmul.bf16.gmra.mxu0 %v274
          %v1152 = vpop.f32.mrf.mxu0
          %v1153 = vadd.f32 0.0, %v1152
          %v1154 = vpop.f32.mrf.mxu0
          %v1155 = vadd.f32 0.0, %v1154
          %1156 = vmatmul.bf16.gmra.mxu0 %v276
          %v1157 = vpop.f32.mrf.mxu0
          %v1158 = vadd.f32 0.0, %v1157
          %v1159 = vpop.f32.mrf.mxu0
          %v1160 = vadd.f32 0.0, %v1159
          %1161 = vmatmul.bf16.gmra.mxu0 %v278
          %v1162 = vpop.f32.mrf.mxu0
          %v1163 = vadd.f32 0.0, %v1162
          %v1164 = vpop.f32.mrf.mxu0
          %v1165 = vadd.f32 0.0, %v1164
          %1166 = vmatmul.bf16.gmra.mxu0 %v280
          %v1167 = vpop.f32.mrf.mxu0
          %v1168 = vadd.f32 0.0, %v1167
          %v1169 = vpop.f32.mrf.mxu0
          %v1170 = vadd.f32 0.0, %v1169
          %1171 = vmatmul.bf16.gmra.mxu0 %v282
          %v1172 = vpop.f32.mrf.mxu0
          %v1173 = vadd.f32 0.0, %v1172
          %v1174 = vpop.f32.mrf.mxu0
          %v1175 = vadd.f32 0.0, %v1174
          %1176 = vdwg.mxu0
          %1177 = vmatpush.bf16.msra.mxu0 %v1054
          %1178 = vmatpush.bf16.msra.mxu0 %v1052
          %1179 = vmatpush.bf16.msra.mxu0 %v1050
          %1180 = vmatpush.bf16.msra.mxu0 %v1048
          %1181 = vmatpush.bf16.msra.mxu0 %v1046
          %1182 = vmatpush.bf16.msra.mxu0 %v1044
          %1183 = vmatpush.bf16.msra.mxu0 %v1042
          %1184 = vmatpush.bf16.msra.mxu0 %v1040
          %1185 = vmatmul.bf16.gmra.mxu0 %v253
          %v1186 = vpop.f32.mrf.mxu0
          %v1187 = vadd.f32 %v1098, %v1186
          %v1188 = vpop.f32.mrf.mxu0
          %v1189 = vadd.f32 %v1100, %v1188
          %1190 = vmatmul.bf16.gmra.mxu0 %v255
          %v1191 = vpop.f32.mrf.mxu0
          %v1192 = vadd.f32 %v1103, %v1191
          %v1193 = vpop.f32.mrf.mxu0
          %v1194 = vadd.f32 %v1105, %v1193
          %1195 = vmatmul.bf16.gmra.mxu0 %v257
          %v1196 = vpop.f32.mrf.mxu0
          %v1197 = vadd.f32 %v1108, %v1196
          %v1198 = vpop.f32.mrf.mxu0
          %v1199 = vadd.f32 %v1110, %v1198
          %1200 = vmatmul.bf16.gmra.mxu0 %v259
          %v1201 = vpop.f32.mrf.mxu0
          %v1202 = vadd.f32 %v1113, %v1201
          %v1203 = vpop.f32.mrf.mxu0
          %v1204 = vadd.f32 %v1115, %v1203
          %1205 = vmatmul.bf16.gmra.mxu0 %v261
          %v1206 = vpop.f32.mrf.mxu0
          %v1207 = vadd.f32 %v1118, %v1206
          %v1208 = vpop.f32.mrf.mxu0
          %v1209 = vadd.f32 %v1120, %v1208
          %1210 = vmatmul.bf16.gmra.mxu0 %v263
          %v1211 = vpop.f32.mrf.mxu0
          %v1212 = vadd.f32 %v1123, %v1211
          %v1213 = vpop.f32.mrf.mxu0
          %v1214 = vadd.f32 %v1125, %v1213
          %1215 = vmatmul.bf16.gmra.mxu0 %v265
          %v1216 = vpop.f32.mrf.mxu0
          %v1217 = vadd.f32 %v1128, %v1216
          %v1218 = vpop.f32.mrf.mxu0
          %v1219 = vadd.f32 %v1130, %v1218
          %1220 = vmatmul.bf16.gmra.mxu0 %v267
          %v1221 = vpop.f32.mrf.mxu0
          %v1222 = vadd.f32 %v1133, %v1221
          %v1223 = vpop.f32.mrf.mxu0
          %v1224 = vadd.f32 %v1135, %v1223
          %1225 = vmatmul.bf16.gmra.mxu0 %v269
          %v1226 = vpop.f32.mrf.mxu0
          %v1227 = vadd.f32 %v1138, %v1226
          %v1228 = vpop.f32.mrf.mxu0
          %v1229 = vadd.f32 %v1140, %v1228
          %1230 = vmatmul.bf16.gmra.mxu0 %v271
          %v1231 = vpop.f32.mrf.mxu0
          %v1232 = vadd.f32 %v1143, %v1231
          %v1233 = vpop.f32.mrf.mxu0
          %v1234 = vadd.f32 %v1145, %v1233
          %1235 = vmatmul.bf16.gmra.mxu0 %v273
          %v1236 = vpop.f32.mrf.mxu0
          %v1237 = vadd.f32 %v1148, %v1236
          %v1238 = vpop.f32.mrf.mxu0
          %v1239 = vadd.f32 %v1150, %v1238
          %1240 = vmatmul.bf16.gmra.mxu0 %v275
          %v1241 = vpop.f32.mrf.mxu0
          %v1242 = vadd.f32 %v1153, %v1241
          %v1243 = vpop.f32.mrf.mxu0
          %v1244 = vadd.f32 %v1155, %v1243
          %1245 = vmatmul.bf16.gmra.mxu0 %v277
          %v1246 = vpop.f32.mrf.mxu0
          %v1247 = vadd.f32 %v1158, %v1246
          %v1248 = vpop.f32.mrf.mxu0
          %v1249 = vadd.f32 %v1160, %v1248
          %1250 = vmatmul.bf16.gmra.mxu0 %v279
          %v1251 = vpop.f32.mrf.mxu0
          %v1252 = vadd.f32 %v1163, %v1251
          %v1253 = vpop.f32.mrf.mxu0
          %v1254 = vadd.f32 %v1165, %v1253
          %1255 = vmatmul.bf16.gmra.mxu0 %v281
          %v1256 = vpop.f32.mrf.mxu0
          %v1257 = vadd.f32 %v1168, %v1256
          %v1258 = vpop.f32.mrf.mxu0
          %v1259 = vadd.f32 %v1170, %v1258
          %1260 = vmatmul.bf16.gmra.mxu0 %v283
          %v1261 = vpop.f32.mrf.mxu0
          %v1262 = vadd.f32 %v1173, %v1261
          %v1263 = vpop.f32.mrf.mxu0
          %v1264 = vadd.f32 %v1175, %v1263
          %1265 = vdwg.mxu0
          %1266 = vmatpush.bf16.msra.mxu0 %v1039
          %1267 = vmatpush.bf16.msra.mxu0 %v1037
          %1268 = vmatpush.bf16.msra.mxu0 %v1035
          %1269 = vmatpush.bf16.msra.mxu0 %v1033
          %1270 = vmatpush.bf16.msra.mxu0 %v1031
          %1271 = vmatpush.bf16.msra.mxu0 %v1029
          %1272 = vmatpush.bf16.msra.mxu0 %v1027
          %1273 = vmatpush.bf16.msra.mxu0 %v1025
          %1274 = vmatmul.bf16.gmra.mxu0 %v252
          %v1275 = vpop.f32.mrf.mxu0
          %v1276 = vadd.f32 0.0, %v1275
          %v1277 = vpop.f32.mrf.mxu0
          %v1278 = vadd.f32 0.0, %v1277
          %1279 = vmatmul.bf16.gmra.mxu0 %v254
          %v1280 = vpop.f32.mrf.mxu0
          %v1281 = vadd.f32 0.0, %v1280
          %v1282 = vpop.f32.mrf.mxu0
          %v1283 = vadd.f32 0.0, %v1282
          %1284 = vmatmul.bf16.gmra.mxu0 %v256
          %v1285 = vpop.f32.mrf.mxu0
          %v1286 = vadd.f32 0.0, %v1285
          %v1287 = vpop.f32.mrf.mxu0
          %v1288 = vadd.f32 0.0, %v1287
          %1289 = vmatmul.bf16.gmra.mxu0 %v258
          %v1290 = vpop.f32.mrf.mxu0
          %v1291 = vadd.f32 0.0, %v1290
          %v1292 = vpop.f32.mrf.mxu0
          %v1293 = vadd.f32 0.0, %v1292
          %1294 = vmatmul.bf16.gmra.mxu0 %v260
          %v1295 = vpop.f32.mrf.mxu0
          %v1296 = vadd.f32 0.0, %v1295
          %v1297 = vpop.f32.mrf.mxu0
          %v1298 = vadd.f32 0.0, %v1297
          %1299 = vmatmul.bf16.gmra.mxu0 %v262
          %v1300 = vpop.f32.mrf.mxu0
          %v1301 = vadd.f32 0.0, %v1300
          %v1302 = vpop.f32.mrf.mxu0
          %v1303 = vadd.f32 0.0, %v1302
          %1304 = vmatmul.bf16.gmra.mxu0 %v264
          %v1305 = vpop.f32.mrf.mxu0
          %v1306 = vadd.f32 0.0, %v1305
          %v1307 = vpop.f32.mrf.mxu0
          %v1308 = vadd.f32 0.0, %v1307
          %1309 = vmatmul.bf16.gmra.mxu0 %v266
          %v1310 = vpop.f32.mrf.mxu0
          %v1311 = vadd.f32 0.0, %v1310
          %v1312 = vpop.f32.mrf.mxu0
          %v1313 = vadd.f32 0.0, %v1312
          %1314 = vmatmul.bf16.gmra.mxu0 %v268
          %v1315 = vpop.f32.mrf.mxu0
          %v1316 = vadd.f32 0.0, %v1315
          %v1317 = vpop.f32.mrf.mxu0
          %v1318 = vadd.f32 0.0, %v1317
          %1319 = vmatmul.bf16.gmra.mxu0 %v270
          %v1320 = vpop.f32.mrf.mxu0
          %v1321 = vadd.f32 0.0, %v1320
          %v1322 = vpop.f32.mrf.mxu0
          %v1323 = vadd.f32 0.0, %v1322
          %1324 = vmatmul.bf16.gmra.mxu0 %v272
          %v1325 = vpop.f32.mrf.mxu0
          %v1326 = vadd.f32 0.0, %v1325
          %v1327 = vpop.f32.mrf.mxu0
          %v1328 = vadd.f32 0.0, %v1327
          %1329 = vmatmul.bf16.gmra.mxu0 %v274
          %v1330 = vpop.f32.mrf.mxu0
          %v1331 = vadd.f32 0.0, %v1330
          %v1332 = vpop.f32.mrf.mxu0
          %v1333 = vadd.f32 0.0, %v1332
          %1334 = vmatmul.bf16.gmra.mxu0 %v276
          %v1335 = vpop.f32.mrf.mxu0
          %v1336 = vadd.f32 0.0, %v1335
          %v1337 = vpop.f32.mrf.mxu0
          %v1338 = vadd.f32 0.0, %v1337
          %1339 = vmatmul.bf16.gmra.mxu0 %v278
          %v1340 = vpop.f32.mrf.mxu0
          %v1341 = vadd.f32 0.0, %v1340
          %v1342 = vpop.f32.mrf.mxu0
          %v1343 = vadd.f32 0.0, %v1342
          %1344 = vmatmul.bf16.gmra.mxu0 %v280
          %v1345 = vpop.f32.mrf.mxu0
          %v1346 = vadd.f32 0.0, %v1345
          %v1347 = vpop.f32.mrf.mxu0
          %v1348 = vadd.f32 0.0, %v1347
          %1349 = vmatmul.bf16.gmra.mxu0 %v282
          %v1350 = vpop.f32.mrf.mxu0
          %v1351 = vadd.f32 0.0, %v1350
          %v1352 = vpop.f32.mrf.mxu0
          %v1353 = vadd.f32 0.0, %v1352
          %1354 = vdwg.mxu0
          %1355 = vmatpush.bf16.msra.mxu0 %v1055
          %1356 = vmatpush.bf16.msra.mxu0 %v1053
          %1357 = vmatpush.bf16.msra.mxu0 %v1051
          %1358 = vmatpush.bf16.msra.mxu0 %v1049
          %1359 = vmatpush.bf16.msra.mxu0 %v1047
          %1360 = vmatpush.bf16.msra.mxu0 %v1045
          %1361 = vmatpush.bf16.msra.mxu0 %v1043
          %1362 = vmatpush.bf16.msra.mxu0 %v1041
          %1363 = vmatmul.bf16.gmra.mxu0 %v253
          %v1364 = vpop.f32.mrf.mxu0
          %v1365 = vadd.f32 %v1276, %v1364
          %v1366 = vpop.f32.mrf.mxu0
          %v1367 = vadd.f32 %v1278, %v1366
          %1368 = vmatmul.bf16.gmra.mxu0 %v255
          %v1369 = vpop.f32.mrf.mxu0
          %v1370 = vadd.f32 %v1281, %v1369
          %v1371 = vpop.f32.mrf.mxu0
          %v1372 = vadd.f32 %v1283, %v1371
          %1373 = vmatmul.bf16.gmra.mxu0 %v257
          %v1374 = vpop.f32.mrf.mxu0
          %v1375 = vadd.f32 %v1286, %v1374
          %v1376 = vpop.f32.mrf.mxu0
          %v1377 = vadd.f32 %v1288, %v1376
          %1378 = vmatmul.bf16.gmra.mxu0 %v259
          %v1379 = vpop.f32.mrf.mxu0
          %v1380 = vadd.f32 %v1291, %v1379
          %v1381 = vpop.f32.mrf.mxu0
          %v1382 = vadd.f32 %v1293, %v1381
          %1383 = vmatmul.bf16.gmra.mxu0 %v261
          %v1384 = vpop.f32.mrf.mxu0
          %v1385 = vadd.f32 %v1296, %v1384
          %v1386 = vpop.f32.mrf.mxu0
          %v1387 = vadd.f32 %v1298, %v1386
          %1388 = vmatmul.bf16.gmra.mxu0 %v263
          %v1389 = vpop.f32.mrf.mxu0
          %v1390 = vadd.f32 %v1301, %v1389
          %v1391 = vpop.f32.mrf.mxu0
          %v1392 = vadd.f32 %v1303, %v1391
          %1393 = vmatmul.bf16.gmra.mxu0 %v265
          %v1394 = vpop.f32.mrf.mxu0
          %v1395 = vadd.f32 %v1306, %v1394
          %v1396 = vpop.f32.mrf.mxu0
          %v1397 = vadd.f32 %v1308, %v1396
          %1398 = vmatmul.bf16.gmra.mxu0 %v267
          %v1399 = vpop.f32.mrf.mxu0
          %v1400 = vadd.f32 %v1311, %v1399
          %v1401 = vpop.f32.mrf.mxu0
          %v1402 = vadd.f32 %v1313, %v1401
          %1403 = vmatmul.bf16.gmra.mxu0 %v269
          %v1404 = vpop.f32.mrf.mxu0
          %v1405 = vadd.f32 %v1316, %v1404
          %v1406 = vpop.f32.mrf.mxu0
          %v1407 = vadd.f32 %v1318, %v1406
          %1408 = vmatmul.bf16.gmra.mxu0 %v271
          %v1409 = vpop.f32.mrf.mxu0
          %v1410 = vadd.f32 %v1321, %v1409
          %v1411 = vpop.f32.mrf.mxu0
          %v1412 = vadd.f32 %v1323, %v1411
          %1413 = vmatmul.bf16.gmra.mxu0 %v273
          %v1414 = vpop.f32.mrf.mxu0
          %v1415 = vadd.f32 %v1326, %v1414
          %v1416 = vpop.f32.mrf.mxu0
          %v1417 = vadd.f32 %v1328, %v1416
          %1418 = vmatmul.bf16.gmra.mxu0 %v275
          %v1419 = vpop.f32.mrf.mxu0
          %v1420 = vadd.f32 %v1331, %v1419
          %v1421 = vpop.f32.mrf.mxu0
          %v1422 = vadd.f32 %v1333, %v1421
          %1423 = vmatmul.bf16.gmra.mxu0 %v277
          %v1424 = vpop.f32.mrf.mxu0
          %v1425 = vadd.f32 %v1336, %v1424
          %v1426 = vpop.f32.mrf.mxu0
          %v1427 = vadd.f32 %v1338, %v1426
          %1428 = vmatmul.bf16.gmra.mxu0 %v279
          %v1429 = vpop.f32.mrf.mxu0
          %v1430 = vadd.f32 %v1341, %v1429
          %v1431 = vpop.f32.mrf.mxu0
          %v1432 = vadd.f32 %v1343, %v1431
          %1433 = vmatmul.bf16.gmra.mxu0 %v281
          %v1434 = vpop.f32.mrf.mxu0
          %v1435 = vadd.f32 %v1346, %v1434
          %v1436 = vpop.f32.mrf.mxu0
          %v1437 = vadd.f32 %v1348, %v1436
          %1438 = vmatmul.bf16.gmra.mxu0 %v283
          %v1439 = vpop.f32.mrf.mxu0
          %v1440 = vadd.f32 %v1351, %v1439
          %v1441 = vpop.f32.mrf.mxu0
          %v1442 = vadd.f32 %v1353, %v1441
          %1443 = vdwg.mxu0
          %v1444 = vpack.c.bf16 %v1365, %v1187
          %v1445 = vpack.c.bf16 %v1367, %v1189
          %v1446 = vpack.c.bf16 %v1370, %v1192
          %v1447 = vpack.c.bf16 %v1372, %v1194
          %v1448 = vpack.c.bf16 %v1375, %v1197
          %v1449 = vpack.c.bf16 %v1377, %v1199
          %v1450 = vpack.c.bf16 %v1380, %v1202
          %v1451 = vpack.c.bf16 %v1382, %v1204
          %v1452 = vpack.c.bf16 %v1385, %v1207
          %v1453 = vpack.c.bf16 %v1387, %v1209
          %v1454 = vpack.c.bf16 %v1390, %v1212
          %v1455 = vpack.c.bf16 %v1392, %v1214
          %v1456 = vpack.c.bf16 %v1395, %v1217
          %v1457 = vpack.c.bf16 %v1397, %v1219
          %v1458 = vpack.c.bf16 %v1400, %v1222
          %v1459 = vpack.c.bf16 %v1402, %v1224
          %v1460 = vpack.c.bf16 %v1405, %v1227
          %v1461 = vpack.c.bf16 %v1407, %v1229
          %v1462 = vpack.c.bf16 %v1410, %v1232
          %v1463 = vpack.c.bf16 %v1412, %v1234
          %v1464 = vpack.c.bf16 %v1415, %v1237
          %v1465 = vpack.c.bf16 %v1417, %v1239
          %v1466 = vpack.c.bf16 %v1420, %v1242
          %v1467 = vpack.c.bf16 %v1422, %v1244
          %v1468 = vpack.c.bf16 %v1425, %v1247
          %v1469 = vpack.c.bf16 %v1427, %v1249
          %v1470 = vpack.c.bf16 %v1430, %v1252
          %v1471 = vpack.c.bf16 %v1432, %v1254
          %v1472 = vpack.c.bf16 %v1435, %v1257
          %v1473 = vpack.c.bf16 %v1437, %v1259
          %v1474 = vpack.c.bf16 %v1440, %v1262
          %v1475 = vpack.c.bf16 %v1442, %v1264
          %1476 = vst [vmem:[#allocation3] sm:$0xff] %v1444
          %1477 = vst [vmem:[#allocation3 + $0x8] sm:$0xff] %v1445
          %1478 = vst [vmem:[#allocation3 + $0x10] sm:$0xff] %v1446
          %1479 = vst [vmem:[#allocation3 + $0x18] sm:$0xff] %v1447
          %1480 = vst [vmem:[#allocation3 + $0x20] sm:$0xff] %v1448
          %1481 = vst [vmem:[#allocation3 + $0x28] sm:$0xff] %v1449
          %1482 = vst [vmem:[#allocation3 + $0x30] sm:$0xff] %v1450
          %1483 = vst [vmem:[#allocation3 + $0x38] sm:$0xff] %v1451
          %1484 = vst [vmem:[#allocation3 + $0x40] sm:$0xff] %v1452
          %1485 = vst [vmem:[#allocation3 + $0x48] sm:$0xff] %v1453
          %1486 = vst [vmem:[#allocation3 + $0x50] sm:$0xff] %v1454
          %1487 = vst [vmem:[#allocation3 + $0x58] sm:$0xff] %v1455
          %1488 = vst [vmem:[#allocation3 + $0x60] sm:$0xff] %v1456
          %1489 = vst [vmem:[#allocation3 + $0x68] sm:$0xff] %v1457
          %1490 = vst [vmem:[#allocation3 + $0x70] sm:$0xff] %v1458
          %1491 = vst [vmem:[#allocation3 + $0x78] sm:$0xff] %v1459
          %1492 = vst [vmem:[#allocation3 + $0x80] sm:$0xff] %v1460
          %1493 = vst [vmem:[#allocation3 + $0x88] sm:$0xff] %v1461
          %1494 = vst [vmem:[#allocation3 + $0x90] sm:$0xff] %v1462
          %1495 = vst [vmem:[#allocation3 + $0x98] sm:$0xff] %v1463
          %1496 = vst [vmem:[#allocation3 + $0xa0] sm:$0xff] %v1464
          %1497 = vst [vmem:[#allocation3 + $0xa8] sm:$0xff] %v1465
          %1498 = vst [vmem:[#allocation3 + $0xb0] sm:$0xff] %v1466
          %1499 = vst [vmem:[#allocation3 + $0xb8] sm:$0xff] %v1467
          %1500 = vst [vmem:[#allocation3 + $0xc0] sm:$0xff] %v1468
          %1501 = vst [vmem:[#allocation3 + $0xc8] sm:$0xff] %v1469
          %1502 = vst [vmem:[#allocation3 + $0xd0] sm:$0xff] %v1470
          %1503 = vst [vmem:[#allocation3 + $0xd8] sm:$0xff] %v1471
          %1504 = vst [vmem:[#allocation3 + $0xe0] sm:$0xff] %v1472
          %1505 = vst [vmem:[#allocation3 + $0xe8] sm:$0xff] %v1473
          %1506 = vst [vmem:[#allocation3 + $0xf0] sm:$0xff] %v1474
          %1507 = vst [vmem:[#allocation3 + $0xf8] sm:$0xff] %v1475
        $region36: #{_lambda_.1} parent=31 // pred_fallthru
          _
        %s1508 = smul.u32 %s22, 128
        %s1509 = sshra.s32 %s1508, 3
        %s1510 = sand.u32 %s1508, 7
        %s1511 = smul.u32 %s1509, 2
        %s1512 = smul.addr %s1511, 8
        %s1513 = scalar_lea.vmem %s182, %s1512
        %v1514 = vld [vmem:[%s1513] sm:$0xff]
        %v1515 = vld [vmem:[%s1513 + $0x8] sm:$0xff]
        %v1516 = vld [vmem:[%s1513 + $0x10] sm:$0xff]
        %v1517 = vld [vmem:[%s1513 + $0x18] sm:$0xff]
        %v1518 = vld [vmem:[%s1513 + $0x20] sm:$0xff]
        %v1519 = vld [vmem:[%s1513 + $0x28] sm:$0xff]
        %v1520 = vld [vmem:[%s1513 + $0x30] sm:$0xff]
        %v1521 = vld [vmem:[%s1513 + $0x38] sm:$0xff]
        %v1522 = vld [vmem:[%s1513 + $0x40] sm:$0xff]
        %v1523 = vld [vmem:[%s1513 + $0x48] sm:$0xff]
        %v1524 = vld [vmem:[%s1513 + $0x50] sm:$0xff]
        %v1525 = vld [vmem:[%s1513 + $0x58] sm:$0xff]
        %v1526 = vld [vmem:[%s1513 + $0x60] sm:$0xff]
        %v1527 = vld [vmem:[%s1513 + $0x68] sm:$0xff]
        %v1528 = vld [vmem:[%s1513 + $0x70] sm:$0xff]
        %v1529 = vld [vmem:[%s1513 + $0x78] sm:$0xff]
        %v1530 = vld [vmem:[%s1513 + $0x80] sm:$0xff]
        %v1531 = vld [vmem:[%s1513 + $0x88] sm:$0xff]
        %v1532 = vld [vmem:[%s1513 + $0x90] sm:$0xff]
        %v1533 = vld [vmem:[%s1513 + $0x98] sm:$0xff]
        %v1534 = vld [vmem:[%s1513 + $0xa0] sm:$0xff]
        %v1535 = vld [vmem:[%s1513 + $0xa8] sm:$0xff]
        %v1536 = vld [vmem:[%s1513 + $0xb0] sm:$0xff]
        %v1537 = vld [vmem:[%s1513 + $0xb8] sm:$0xff]
        %v1538 = vld [vmem:[%s1513 + $0xc0] sm:$0xff]
        %v1539 = vld [vmem:[%s1513 + $0xc8] sm:$0xff]
        %v1540 = vld [vmem:[%s1513 + $0xd0] sm:$0xff]
        %v1541 = vld [vmem:[%s1513 + $0xd8] sm:$0xff]
        %v1542 = vld [vmem:[%s1513 + $0xe0] sm:$0xff]
        %v1543 = vld [vmem:[%s1513 + $0xe8] sm:$0xff]
        %v1544 = vld [vmem:[%s1513 + $0xf0] sm:$0xff]
        %v1545 = vld [vmem:[%s1513 + $0xf8] sm:$0xff]
        %v1546 = vpack.c.bf16 %v1516, %v1514
        %v1547 = vpack.c.bf16 %v1517, %v1515
        %v1548 = vpack.c.bf16 %v1520, %v1518
        %v1549 = vpack.c.bf16 %v1521, %v1519
        %v1550 = vpack.c.bf16 %v1524, %v1522
        %v1551 = vpack.c.bf16 %v1525, %v1523
        %v1552 = vpack.c.bf16 %v1528, %v1526
        %v1553 = vpack.c.bf16 %v1529, %v1527
        %v1554 = vpack.c.bf16 %v1532, %v1530
        %v1555 = vpack.c.bf16 %v1533, %v1531
        %v1556 = vpack.c.bf16 %v1536, %v1534
        %v1557 = vpack.c.bf16 %v1537, %v1535
        %v1558 = vpack.c.bf16 %v1540, %v1538
        %v1559 = vpack.c.bf16 %v1541, %v1539
        %v1560 = vpack.c.bf16 %v1544, %v1542
        %v1561 = vpack.c.bf16 %v1545, %v1543
        %v1562 = vld [vmem:[%s1] sm:$0xff]
        %v1563 = vld [vmem:[%s1 + $0x18] sm:$0xff]
        %v1564 = vld [vmem:[%s1 + $0x30] sm:$0xff]
        %v1565 = vld [vmem:[%s1 + $0x48] sm:$0xff]
        %v1566 = vld [vmem:[%s1 + $0x60] sm:$0xff]
        %v1567 = vld [vmem:[%s1 + $0x78] sm:$0xff]
        %v1568 = vld [vmem:[%s1 + $0x90] sm:$0xff]
        %v1569 = vld [vmem:[%s1 + $0xa8] sm:$0xff]
        %v1570 = vld [vmem:[%s1 + $0xc0] sm:$0xff]
        %v1571 = vld [vmem:[%s1 + $0xd8] sm:$0xff]
        %v1572 = vld [vmem:[%s1 + $0xf0] sm:$0xff]
        %v1573 = vld [vmem:[%s1 + $0x108] sm:$0xff]
        %v1574 = vld [vmem:[%s1 + $0x120] sm:$0xff]
        %v1575 = vld [vmem:[%s1 + $0x138] sm:$0xff]
        %v1576 = vld [vmem:[%s1 + $0x150] sm:$0xff]
        %v1577 = vld [vmem:[%s1 + $0x168] sm:$0xff]
        %v1578 = vld [vmem:[%s1 + $0x180] sm:$0xff]
        %v1579 = vld [vmem:[%s1 + $0x198] sm:$0xff]
        %v1580 = vld [vmem:[%s1 + $0x1b0] sm:$0xff]
        %v1581 = vld [vmem:[%s1 + $0x1c8] sm:$0xff]
        %v1582 = vld [vmem:[%s1 + $0x1e0] sm:$0xff]
        %v1583 = vld [vmem:[%s1 + $0x1f8] sm:$0xff]
        %v1584 = vld [vmem:[%s1 + $0x210] sm:$0xff]
        %v1585 = vld [vmem:[%s1 + $0x228] sm:$0xff]
        %v1586 = vld [vmem:[%s1 + $0x240] sm:$0xff]
        %v1587 = vld [vmem:[%s1 + $0x258] sm:$0xff]
        %v1588 = vld [vmem:[%s1 + $0x270] sm:$0xff]
        %v1589 = vld [vmem:[%s1 + $0x288] sm:$0xff]
        %v1590 = vld [vmem:[%s1 + $0x2a0] sm:$0xff]
        %v1591 = vld [vmem:[%s1 + $0x2b8] sm:$0xff]
        %v1592 = vld [vmem:[%s1 + $0x2d0] sm:$0xff]
        %v1593 = vld [vmem:[%s1 + $0x2e8] sm:$0xff]
        %v1626 = vunpack.c.l.b16 %v1562
        %v1627 = vunpack.c.h.b16 %v1562
        %v1628 = vunpack.c.l.b16 %v1563
        %v1629 = vunpack.c.h.b16 %v1563
        %v1630 = vunpack.c.l.b16 %v1564
        %v1631 = vunpack.c.h.b16 %v1564
        %v1632 = vunpack.c.l.b16 %v1565
        %v1633 = vunpack.c.h.b16 %v1565
        %v1634 = vunpack.c.l.b16 %v1566
        %v1635 = vunpack.c.h.b16 %v1566
        %v1636 = vunpack.c.l.b16 %v1567
        %v1637 = vunpack.c.h.b16 %v1567
        %v1638 = vunpack.c.l.b16 %v1568
        %v1639 = vunpack.c.h.b16 %v1568
        %v1640 = vunpack.c.l.b16 %v1569
        %v1641 = vunpack.c.h.b16 %v1569
        %v1642 = vunpack.c.l.b16 %v1570
        %v1643 = vunpack.c.h.b16 %v1570
        %v1644 = vunpack.c.l.b16 %v1571
        %v1645 = vunpack.c.h.b16 %v1571
        %v1646 = vunpack.c.l.b16 %v1572
        %v1647 = vunpack.c.h.b16 %v1572
        %v1648 = vunpack.c.l.b16 %v1573
        %v1649 = vunpack.c.h.b16 %v1573
        %v1650 = vunpack.c.l.b16 %v1574
        %v1651 = vunpack.c.h.b16 %v1574
        %v1652 = vunpack.c.l.b16 %v1575
        %v1653 = vunpack.c.h.b16 %v1575
        %v1654 = vunpack.c.l.b16 %v1576
        %v1655 = vunpack.c.h.b16 %v1576
        %v1656 = vunpack.c.l.b16 %v1577
        %v1657 = vunpack.c.h.b16 %v1577
        %v1658 = vunpack.c.l.b16 %v1578
        %v1659 = vunpack.c.h.b16 %v1578
        %v1660 = vunpack.c.l.b16 %v1579
        %v1661 = vunpack.c.h.b16 %v1579
        %v1662 = vunpack.c.l.b16 %v1580
        %v1663 = vunpack.c.h.b16 %v1580
        %v1664 = vunpack.c.l.b16 %v1581
        %v1665 = vunpack.c.h.b16 %v1581
        %v1666 = vunpack.c.l.b16 %v1582
        %v1667 = vunpack.c.h.b16 %v1582
        %v1668 = vunpack.c.l.b16 %v1583
        %v1669 = vunpack.c.h.b16 %v1583
        %v1670 = vunpack.c.l.b16 %v1584
        %v1671 = vunpack.c.h.b16 %v1584
        %v1672 = vunpack.c.l.b16 %v1585
        %v1673 = vunpack.c.h.b16 %v1585
        %v1674 = vunpack.c.l.b16 %v1586
        %v1675 = vunpack.c.h.b16 %v1586
        %v1676 = vunpack.c.l.b16 %v1587
        %v1677 = vunpack.c.h.b16 %v1587
        %v1678 = vunpack.c.l.b16 %v1588
        %v1679 = vunpack.c.h.b16 %v1588
        %v1680 = vunpack.c.l.b16 %v1589
        %v1681 = vunpack.c.h.b16 %v1589
        %v1682 = vunpack.c.l.b16 %v1590
        %v1683 = vunpack.c.h.b16 %v1590
        %v1684 = vunpack.c.l.b16 %v1591
        %v1685 = vunpack.c.h.b16 %v1591
        %v1686 = vunpack.c.l.b16 %v1592
        %v1687 = vunpack.c.h.b16 %v1592
        %v1688 = vunpack.c.l.b16 %v1593
        %v1689 = vunpack.c.h.b16 %v1593
        %v1690 = vpack.c.b16 %v1628, %v1626
        %v1691 = vpack.c.b16 %v1629, %v1627
        %v1692 = vpack.c.b16 %v1632, %v1630
        %v1693 = vpack.c.b16 %v1633, %v1631
        %v1694 = vpack.c.b16 %v1636, %v1634
        %v1695 = vpack.c.b16 %v1637, %v1635
        %v1696 = vpack.c.b16 %v1640, %v1638
        %v1697 = vpack.c.b16 %v1641, %v1639
        %v1698 = vpack.c.b16 %v1644, %v1642
        %v1699 = vpack.c.b16 %v1645, %v1643
        %v1700 = vpack.c.b16 %v1648, %v1646
        %v1701 = vpack.c.b16 %v1649, %v1647
        %v1702 = vpack.c.b16 %v1652, %v1650
        %v1703 = vpack.c.b16 %v1653, %v1651
        %v1704 = vpack.c.b16 %v1656, %v1654
        %v1705 = vpack.c.b16 %v1657, %v1655
        %v1706 = vpack.c.b16 %v1660, %v1658
        %v1707 = vpack.c.b16 %v1661, %v1659
        %v1708 = vpack.c.b16 %v1664, %v1662
        %v1709 = vpack.c.b16 %v1665, %v1663
        %v1710 = vpack.c.b16 %v1668, %v1666
        %v1711 = vpack.c.b16 %v1669, %v1667
        %v1712 = vpack.c.b16 %v1672, %v1670
        %v1713 = vpack.c.b16 %v1673, %v1671
        %v1714 = vpack.c.b16 %v1676, %v1674
        %v1715 = vpack.c.b16 %v1677, %v1675
        %v1716 = vpack.c.b16 %v1680, %v1678
        %v1717 = vpack.c.b16 %v1681, %v1679
        %v1718 = vpack.c.b16 %v1684, %v1682
        %v1719 = vpack.c.b16 %v1685, %v1683
        %v1720 = vpack.c.b16 %v1688, %v1686
        %v1721 = vpack.c.b16 %v1689, %v1687
        %1754 = vmatpush.bf16.msra.mxu0 %v1704
        %1755 = vmatpush.bf16.msra.mxu0 %v1702
        %1756 = vmatpush.bf16.msra.mxu0 %v1700
        %1757 = vmatpush.bf16.msra.mxu0 %v1698
        %1758 = vmatpush.bf16.msra.mxu0 %v1696
        %1759 = vmatpush.bf16.msra.mxu0 %v1694
        %1760 = vmatpush.bf16.msra.mxu0 %v1692
        %1761 = vmatpush.bf16.msra.mxu0 %v1690
        %1762 = vmatmul.bf16.gmra.mxu0 %v1546
        %v1763 = vpop.f32.mrf.mxu0
        %v1764 = vadd.f32 0.0, %v1763
        %v1765 = vpop.f32.mrf.mxu0
        %v1766 = vadd.f32 0.0, %v1765
        %1767 = vmatmul.bf16.gmra.mxu0 %v1548
        %v1768 = vpop.f32.mrf.mxu0
        %v1769 = vadd.f32 0.0, %v1768
        %v1770 = vpop.f32.mrf.mxu0
        %v1771 = vadd.f32 0.0, %v1770
        %1772 = vmatmul.bf16.gmra.mxu0 %v1550
        %v1773 = vpop.f32.mrf.mxu0
        %v1774 = vadd.f32 0.0, %v1773
        %v1775 = vpop.f32.mrf.mxu0
        %v1776 = vadd.f32 0.0, %v1775
        %1777 = vmatmul.bf16.gmra.mxu0 %v1552
        %v1778 = vpop.f32.mrf.mxu0
        %v1779 = vadd.f32 0.0, %v1778
        %v1780 = vpop.f32.mrf.mxu0
        %v1781 = vadd.f32 0.0, %v1780
        %1782 = vmatmul.bf16.gmra.mxu0 %v1554
        %v1783 = vpop.f32.mrf.mxu0
        %v1784 = vadd.f32 0.0, %v1783
        %v1785 = vpop.f32.mrf.mxu0
        %v1786 = vadd.f32 0.0, %v1785
        %1787 = vmatmul.bf16.gmra.mxu0 %v1556
        %v1788 = vpop.f32.mrf.mxu0
        %v1789 = vadd.f32 0.0, %v1788
        %v1790 = vpop.f32.mrf.mxu0
        %v1791 = vadd.f32 0.0, %v1790
        %1792 = vmatmul.bf16.gmra.mxu0 %v1558
        %v1793 = vpop.f32.mrf.mxu0
        %v1794 = vadd.f32 0.0, %v1793
        %v1795 = vpop.f32.mrf.mxu0
        %v1796 = vadd.f32 0.0, %v1795
        %1797 = vmatmul.bf16.gmra.mxu0 %v1560
        %v1798 = vpop.f32.mrf.mxu0
        %v1799 = vadd.f32 0.0, %v1798
        %v1800 = vpop.f32.mrf.mxu0
        %v1801 = vadd.f32 0.0, %v1800
        %1802 = vdwg.mxu0
        %1803 = vmatpush.bf16.msra.mxu0 %v1720
        %1804 = vmatpush.bf16.msra.mxu0 %v1718
        %1805 = vmatpush.bf16.msra.mxu0 %v1716
        %1806 = vmatpush.bf16.msra.mxu0 %v1714
        %1807 = vmatpush.bf16.msra.mxu0 %v1712
        %1808 = vmatpush.bf16.msra.mxu0 %v1710
        %1809 = vmatpush.bf16.msra.mxu0 %v1708
        %1810 = vmatpush.bf16.msra.mxu0 %v1706
        %1811 = vmatmul.bf16.gmra.mxu0 %v1547
        %v1812 = vpop.f32.mrf.mxu0
        %v1813 = vadd.f32 %v1764, %v1812
        %v1814 = vpop.f32.mrf.mxu0
        %v1815 = vadd.f32 %v1766, %v1814
        %1816 = vmatmul.bf16.gmra.mxu0 %v1549
        %v1817 = vpop.f32.mrf.mxu0
        %v1818 = vadd.f32 %v1769, %v1817
        %v1819 = vpop.f32.mrf.mxu0
        %v1820 = vadd.f32 %v1771, %v1819
        %1821 = vmatmul.bf16.gmra.mxu0 %v1551
        %v1822 = vpop.f32.mrf.mxu0
        %v1823 = vadd.f32 %v1774, %v1822
        %v1824 = vpop.f32.mrf.mxu0
        %v1825 = vadd.f32 %v1776, %v1824
        %1826 = vmatmul.bf16.gmra.mxu0 %v1553
        %v1827 = vpop.f32.mrf.mxu0
        %v1828 = vadd.f32 %v1779, %v1827
        %v1829 = vpop.f32.mrf.mxu0
        %v1830 = vadd.f32 %v1781, %v1829
        %1831 = vmatmul.bf16.gmra.mxu0 %v1555
        %v1832 = vpop.f32.mrf.mxu0
        %v1833 = vadd.f32 %v1784, %v1832
        %v1834 = vpop.f32.mrf.mxu0
        %v1835 = vadd.f32 %v1786, %v1834
        %1836 = vmatmul.bf16.gmra.mxu0 %v1557
        %v1837 = vpop.f32.mrf.mxu0
        %v1838 = vadd.f32 %v1789, %v1837
        %v1839 = vpop.f32.mrf.mxu0
        %v1840 = vadd.f32 %v1791, %v1839
        %1841 = vmatmul.bf16.gmra.mxu0 %v1559
        %v1842 = vpop.f32.mrf.mxu0
        %v1843 = vadd.f32 %v1794, %v1842
        %v1844 = vpop.f32.mrf.mxu0
        %v1845 = vadd.f32 %v1796, %v1844
        %1846 = vmatmul.bf16.gmra.mxu0 %v1561
        %v1847 = vpop.f32.mrf.mxu0
        %v1848 = vadd.f32 %v1799, %v1847
        %v1849 = vpop.f32.mrf.mxu0
        %v1850 = vadd.f32 %v1801, %v1849
        %1851 = vdwg.mxu0
        %1852 = vmatpush.bf16.msra.mxu0 %v1705
        %1853 = vmatpush.bf16.msra.mxu0 %v1703
        %1854 = vmatpush.bf16.msra.mxu0 %v1701
        %1855 = vmatpush.bf16.msra.mxu0 %v1699
        %1856 = vmatpush.bf16.msra.mxu0 %v1697
        %1857 = vmatpush.bf16.msra.mxu0 %v1695
        %1858 = vmatpush.bf16.msra.mxu0 %v1693
        %1859 = vmatpush.bf16.msra.mxu0 %v1691
        %1860 = vmatmul.bf16.gmra.mxu0 %v1546
        %v1861 = vpop.f32.mrf.mxu0
        %v1862 = vadd.f32 0.0, %v1861
        %v1863 = vpop.f32.mrf.mxu0
        %v1864 = vadd.f32 0.0, %v1863
        %1865 = vmatmul.bf16.gmra.mxu0 %v1548
        %v1866 = vpop.f32.mrf.mxu0
        %v1867 = vadd.f32 0.0, %v1866
        %v1868 = vpop.f32.mrf.mxu0
        %v1869 = vadd.f32 0.0, %v1868
        %1870 = vmatmul.bf16.gmra.mxu0 %v1550
        %v1871 = vpop.f32.mrf.mxu0
        %v1872 = vadd.f32 0.0, %v1871
        %v1873 = vpop.f32.mrf.mxu0
        %v1874 = vadd.f32 0.0, %v1873
        %1875 = vmatmul.bf16.gmra.mxu0 %v1552
        %v1876 = vpop.f32.mrf.mxu0
        %v1877 = vadd.f32 0.0, %v1876
        %v1878 = vpop.f32.mrf.mxu0
        %v1879 = vadd.f32 0.0, %v1878
        %1880 = vmatmul.bf16.gmra.mxu0 %v1554
        %v1881 = vpop.f32.mrf.mxu0
        %v1882 = vadd.f32 0.0, %v1881
        %v1883 = vpop.f32.mrf.mxu0
        %v1884 = vadd.f32 0.0, %v1883
        %1885 = vmatmul.bf16.gmra.mxu0 %v1556
        %v1886 = vpop.f32.mrf.mxu0
        %v1887 = vadd.f32 0.0, %v1886
        %v1888 = vpop.f32.mrf.mxu0
        %v1889 = vadd.f32 0.0, %v1888
        %1890 = vmatmul.bf16.gmra.mxu0 %v1558
        %v1891 = vpop.f32.mrf.mxu0
        %v1892 = vadd.f32 0.0, %v1891
        %v1893 = vpop.f32.mrf.mxu0
        %v1894 = vadd.f32 0.0, %v1893
        %1895 = vmatmul.bf16.gmra.mxu0 %v1560
        %v1896 = vpop.f32.mrf.mxu0
        %v1897 = vadd.f32 0.0, %v1896
        %v1898 = vpop.f32.mrf.mxu0
        %v1899 = vadd.f32 0.0, %v1898
        %1900 = vdwg.mxu0
        %1901 = vmatpush.bf16.msra.mxu0 %v1721
        %1902 = vmatpush.bf16.msra.mxu0 %v1719
        %1903 = vmatpush.bf16.msra.mxu0 %v1717
        %1904 = vmatpush.bf16.msra.mxu0 %v1715
        %1905 = vmatpush.bf16.msra.mxu0 %v1713
        %1906 = vmatpush.bf16.msra.mxu0 %v1711
        %1907 = vmatpush.bf16.msra.mxu0 %v1709
        %1908 = vmatpush.bf16.msra.mxu0 %v1707
        %1909 = vmatmul.bf16.gmra.mxu0 %v1547
        %v1910 = vpop.f32.mrf.mxu0
        %v1911 = vadd.f32 %v1862, %v1910
        %v1912 = vpop.f32.mrf.mxu0
        %v1913 = vadd.f32 %v1864, %v1912
        %1914 = vmatmul.bf16.gmra.mxu0 %v1549
        %v1915 = vpop.f32.mrf.mxu0
        %v1916 = vadd.f32 %v1867, %v1915
        %v1917 = vpop.f32.mrf.mxu0
        %v1918 = vadd.f32 %v1869, %v1917
        %1919 = vmatmul.bf16.gmra.mxu0 %v1551
        %v1920 = vpop.f32.mrf.mxu0
        %v1921 = vadd.f32 %v1872, %v1920
        %v1922 = vpop.f32.mrf.mxu0
        %v1923 = vadd.f32 %v1874, %v1922
        %1924 = vmatmul.bf16.gmra.mxu0 %v1553
        %v1925 = vpop.f32.mrf.mxu0
        %v1926 = vadd.f32 %v1877, %v1925
        %v1927 = vpop.f32.mrf.mxu0
        %v1928 = vadd.f32 %v1879, %v1927
        %1929 = vmatmul.bf16.gmra.mxu0 %v1555
        %v1930 = vpop.f32.mrf.mxu0
        %v1931 = vadd.f32 %v1882, %v1930
        %v1932 = vpop.f32.mrf.mxu0
        %v1933 = vadd.f32 %v1884, %v1932
        %1934 = vmatmul.bf16.gmra.mxu0 %v1557
        %v1935 = vpop.f32.mrf.mxu0
        %v1936 = vadd.f32 %v1887, %v1935
        %v1937 = vpop.f32.mrf.mxu0
        %v1938 = vadd.f32 %v1889, %v1937
        %1939 = vmatmul.bf16.gmra.mxu0 %v1559
        %v1940 = vpop.f32.mrf.mxu0
        %v1941 = vadd.f32 %v1892, %v1940
        %v1942 = vpop.f32.mrf.mxu0
        %v1943 = vadd.f32 %v1894, %v1942
        %1944 = vmatmul.bf16.gmra.mxu0 %v1561
        %v1945 = vpop.f32.mrf.mxu0
        %v1946 = vadd.f32 %v1897, %v1945
        %v1947 = vpop.f32.mrf.mxu0
        %v1948 = vadd.f32 %v1899, %v1947
        %1949 = vdwg.mxu0
        %v1950 = vpack.c.bf16 %v1911, %v1813
        %v1951 = vpack.c.bf16 %v1913, %v1815
        %v1952 = vpack.c.bf16 %v1916, %v1818
        %v1953 = vpack.c.bf16 %v1918, %v1820
        %v1954 = vpack.c.bf16 %v1921, %v1823
        %v1955 = vpack.c.bf16 %v1923, %v1825
        %v1956 = vpack.c.bf16 %v1926, %v1828
        %v1957 = vpack.c.bf16 %v1928, %v1830
        %v1958 = vpack.c.bf16 %v1931, %v1833
        %v1959 = vpack.c.bf16 %v1933, %v1835
        %v1960 = vpack.c.bf16 %v1936, %v1838
        %v1961 = vpack.c.bf16 %v1938, %v1840
        %v1962 = vpack.c.bf16 %v1941, %v1843
        %v1963 = vpack.c.bf16 %v1943, %v1845
        %v1964 = vpack.c.bf16 %v1946, %v1848
        %v1965 = vpack.c.bf16 %v1948, %v1850
        %s1966 = smul.u32 0, 2
        %s1967 = smul.addr %s1966, 4
        %s1968 = scalar_lea.vmem [#allocation2], %s1967
        %v1969 = vld [vmem:[%s1968] sm:$0xf]
        %v1970 = vld [vmem:[%s1968 + $0x8] sm:$0xf]
        %v1971 = vld [vmem:[%s1968 + $0x10] sm:$0xf]
        %v1972 = vld [vmem:[%s1968 + $0x18] sm:$0xf]
        %v1973 = vld [vmem:[%s1968 + $0x20] sm:$0xf]
        %v1974 = vld [vmem:[%s1968 + $0x28] sm:$0xf]
        %v1975 = vld [vmem:[%s1968 + $0x30] sm:$0xf]
        %v1976 = vld [vmem:[%s1968 + $0x38] sm:$0xf]
        %v1977 = vld [vmem:[%s1968 + $0x40] sm:$0xf]
        %v1978 = vld [vmem:[%s1968 + $0x48] sm:$0xf]
        %v1979 = vld [vmem:[%s1968 + $0x50] sm:$0xf]
        %v1980 = vld [vmem:[%s1968 + $0x58] sm:$0xf]
        %v1981 = vld [vmem:[%s1968 + $0x60] sm:$0xf]
        %v1982 = vld [vmem:[%s1968 + $0x68] sm:$0xf]
        %v1983 = vld [vmem:[%s1968 + $0x70] sm:$0xf]
        %v1984 = vld [vmem:[%s1968 + $0x78] sm:$0xf]
        %s1985 = smul.addr %s1966, 4
        %s1986 = scalar_lea.vmem [#allocation3], %s1985
        %v1987 = vld [vmem:[%s1986] sm:$0xf]
        %v1988 = vld [vmem:[%s1986 + $0x8] sm:$0xf]
        %v1989 = vld [vmem:[%s1986 + $0x10] sm:$0xf]
        %v1990 = vld [vmem:[%s1986 + $0x18] sm:$0xf]
        %v1991 = vld [vmem:[%s1986 + $0x20] sm:$0xf]
        %v1992 = vld [vmem:[%s1986 + $0x28] sm:$0xf]
        %v1993 = vld [vmem:[%s1986 + $0x30] sm:$0xf]
        %v1994 = vld [vmem:[%s1986 + $0x38] sm:$0xf]
        %v1995 = vld [vmem:[%s1986 + $0x40] sm:$0xf]
        %v1996 = vld [vmem:[%s1986 + $0x48] sm:$0xf]
        %v1997 = vld [vmem:[%s1986 + $0x50] sm:$0xf]
        %v1998 = vld [vmem:[%s1986 + $0x58] sm:$0xf]
        %v1999 = vld [vmem:[%s1986 + $0x60] sm:$0xf]
        %v2000 = vld [vmem:[%s1986 + $0x68] sm:$0xf]
        %v2001 = vld [vmem:[%s1986 + $0x70] sm:$0xf]
        %v2002 = vld [vmem:[%s1986 + $0x78] sm:$0xf]
        %v2019 = vunpack.c.l.b16 %v1950
        %v2020 = vunpack.c.l.b16 %v1951
        %v2021 = vunpack.c.l.b16 %v1952
        %v2022 = vunpack.c.l.b16 %v1953
        %v2023 = vunpack.c.l.b16 %v1954
        %v2024 = vunpack.c.l.b16 %v1955
        %v2025 = vunpack.c.l.b16 %v1956
        %v2026 = vunpack.c.l.b16 %v1957
        %v2027 = vunpack.c.l.b16 %v1958
        %v2028 = vunpack.c.l.b16 %v1959
        %v2029 = vunpack.c.l.b16 %v1960
        %v2030 = vunpack.c.l.b16 %v1961
        %v2031 = vunpack.c.l.b16 %v1962
        %v2032 = vunpack.c.l.b16 %v1963
        %v2033 = vunpack.c.l.b16 %v1964
        %v2034 = vunpack.c.l.b16 %v1965
        %v2035 = vpack.c.b16 %v2020, %v2019
        %v2036 = vpack.c.b16 %v2022, %v2021
        %v2037 = vpack.c.b16 %v2024, %v2023
        %v2038 = vpack.c.b16 %v2026, %v2025
        %v2039 = vpack.c.b16 %v2028, %v2027
        %v2040 = vpack.c.b16 %v2030, %v2029
        %v2041 = vpack.c.b16 %v2032, %v2031
        %v2042 = vpack.c.b16 %v2034, %v2033
        %v2059 = vunpack.c.l.b16 %v1969
        %v2060 = vunpack.c.l.b16 %v1970
        %v2061 = vunpack.c.l.b16 %v1971
        %v2062 = vunpack.c.l.b16 %v1972
        %v2063 = vunpack.c.l.b16 %v1973
        %v2064 = vunpack.c.l.b16 %v1974
        %v2065 = vunpack.c.l.b16 %v1975
        %v2066 = vunpack.c.l.b16 %v1976
        %v2067 = vunpack.c.l.b16 %v1977
        %v2068 = vunpack.c.l.b16 %v1978
        %v2069 = vunpack.c.l.b16 %v1979
        %v2070 = vunpack.c.l.b16 %v1980
        %v2071 = vunpack.c.l.b16 %v1981
        %v2072 = vunpack.c.l.b16 %v1982
        %v2073 = vunpack.c.l.b16 %v1983
        %v2074 = vunpack.c.l.b16 %v1984
        %v2075 = vpack.c.b16 %v2060, %v2059
        %v2076 = vpack.c.b16 %v2062, %v2061
        %v2077 = vpack.c.b16 %v2064, %v2063
        %v2078 = vpack.c.b16 %v2066, %v2065
        %v2079 = vpack.c.b16 %v2068, %v2067
        %v2080 = vpack.c.b16 %v2070, %v2069
        %v2081 = vpack.c.b16 %v2072, %v2071
        %v2082 = vpack.c.b16 %v2074, %v2073
        %vm2083 = vcmask 523264
        %v2085 = vsel %vm2083, %v2035, 0
        %v2088 = vsel %vm2083, %v2036, 0
        %v2091 = vsel %vm2083, %v2037, 0
        %v2094 = vsel %vm2083, %v2038, 0
        %v2097 = vsel %vm2083, %v2039, 0
        %v2100 = vsel %vm2083, %v2040, 0
        %v2103 = vsel %vm2083, %v2041, 0
        %v2106 = vsel %vm2083, %v2042, 0
        %v2109 = vsel %vm2083, %v2075, 0
        %v2112 = vsel %vm2083, %v2076, 0
        %v2115 = vsel %vm2083, %v2077, 0
        %v2118 = vsel %vm2083, %v2078, 0
        %v2121 = vsel %vm2083, %v2079, 0
        %v2124 = vsel %vm2083, %v2080, 0
        %v2127 = vsel %vm2083, %v2081, 0
        %v2130 = vsel %vm2083, %v2082, 0
        %2132 = vmatpush.bf16.xpose.msra.mxu0 %v2130
        %2133 = vmatpush.bf16.xpose.msra.mxu0 %v2127
        %2134 = vmatpush.bf16.xpose.msra.mxu0 %v2124
        %2135 = vmatpush.bf16.xpose.msra.mxu0 %v2121
        %2136 = vmatpush.bf16.xpose.msra.mxu0 %v2118
        %2137 = vmatpush.bf16.xpose.msra.mxu0 %v2115
        %2138 = vmatpush.bf16.xpose.msra.mxu0 %v2112
        %2139 = vmatpush.bf16.xpose.msra.mxu0 %v2109
        %2140 = vmatmul.bf16.gmra.mxu0 %v2085
        %v2141 = vpop.f32.mrf.mxu0
        %v2142 = vadd.f32 0.0, %v2141
        %v2143 = vpop.f32.mrf.mxu0
        %v2144 = vadd.f32 0.0, %v2143
        %2145 = vmatmul.bf16.gmra.mxu0 %v2088
        %v2146 = vpop.f32.mrf.mxu0
        %v2147 = vadd.f32 0.0, %v2146
        %v2148 = vpop.f32.mrf.mxu0
        %v2149 = vadd.f32 0.0, %v2148
        %2150 = vmatmul.bf16.gmra.mxu0 %v2091
        %v2151 = vpop.f32.mrf.mxu0
        %v2152 = vadd.f32 0.0, %v2151
        %v2153 = vpop.f32.mrf.mxu0
        %v2154 = vadd.f32 0.0, %v2153
        %2155 = vmatmul.bf16.gmra.mxu0 %v2094
        %v2156 = vpop.f32.mrf.mxu0
        %v2157 = vadd.f32 0.0, %v2156
        %v2158 = vpop.f32.mrf.mxu0
        %v2159 = vadd.f32 0.0, %v2158
        %2160 = vmatmul.bf16.gmra.mxu0 %v2097
        %v2161 = vpop.f32.mrf.mxu0
        %v2162 = vadd.f32 0.0, %v2161
        %v2163 = vpop.f32.mrf.mxu0
        %v2164 = vadd.f32 0.0, %v2163
        %2165 = vmatmul.bf16.gmra.mxu0 %v2100
        %v2166 = vpop.f32.mrf.mxu0
        %v2167 = vadd.f32 0.0, %v2166
        %v2168 = vpop.f32.mrf.mxu0
        %v2169 = vadd.f32 0.0, %v2168
        %2170 = vmatmul.bf16.gmra.mxu0 %v2103
        %v2171 = vpop.f32.mrf.mxu0
        %v2172 = vadd.f32 0.0, %v2171
        %v2173 = vpop.f32.mrf.mxu0
        %v2174 = vadd.f32 0.0, %v2173
        %2175 = vmatmul.bf16.gmra.mxu0 %v2106
        %v2176 = vpop.f32.mrf.mxu0
        %v2177 = vadd.f32 0.0, %v2176
        %v2178 = vpop.f32.mrf.mxu0
        %v2179 = vadd.f32 0.0, %v2178
        %2180 = vdwg.mxu0
        %2181 = vmax.xlane.f32.xlu0 %v2142
        %v2182 = vpop.xlane.xlu0 %2181
        %2183 = vmax.xlane.f32.xlu0 %v2144
        %v2184 = vpop.xlane.xlu0 %2183
        %2185 = vmax.xlane.f32.xlu0 %v2147
        %v2186 = vpop.xlane.xlu0 %2185
        %2187 = vmax.xlane.f32.xlu0 %v2149
        %v2188 = vpop.xlane.xlu0 %2187
        %2189 = vmax.xlane.f32.xlu0 %v2152
        %v2190 = vpop.xlane.xlu0 %2189
        %2191 = vmax.xlane.f32.xlu0 %v2154
        %v2192 = vpop.xlane.xlu0 %2191
        %2193 = vmax.xlane.f32.xlu0 %v2157
        %v2194 = vpop.xlane.xlu0 %2193
        %2195 = vmax.xlane.f32.xlu0 %v2159
        %v2196 = vpop.xlane.xlu0 %2195
        %2197 = vmax.xlane.f32.xlu0 %v2162
        %v2198 = vpop.xlane.xlu0 %2197
        %2199 = vmax.xlane.f32.xlu0 %v2164
        %v2200 = vpop.xlane.xlu0 %2199
        %2201 = vmax.xlane.f32.xlu0 %v2167
        %v2202 = vpop.xlane.xlu0 %2201
        %2203 = vmax.xlane.f32.xlu0 %v2169
        %v2204 = vpop.xlane.xlu0 %2203
        %2205 = vmax.xlane.f32.xlu0 %v2172
        %v2206 = vpop.xlane.xlu0 %2205
        %2207 = vmax.xlane.f32.xlu0 %v2174
        %v2208 = vpop.xlane.xlu0 %2207
        %2209 = vmax.xlane.f32.xlu0 %v2177
        %v2210 = vpop.xlane.xlu0 %2209
        %2211 = vmax.xlane.f32.xlu0 %v2179
        %v2212 = vpop.xlane.xlu0 %2211
        %v2213 = vsub.f32 -inf, %v2182
        %v2214 = vsub.f32 -inf, %v2184
        %v2215 = vsub.f32 -inf, %v2186
        %v2216 = vsub.f32 -inf, %v2188
        %v2217 = vsub.f32 -inf, %v2190
        %v2218 = vsub.f32 -inf, %v2192
        %v2219 = vsub.f32 -inf, %v2194
        %v2220 = vsub.f32 -inf, %v2196
        %v2221 = vsub.f32 -inf, %v2198
        %v2222 = vsub.f32 -inf, %v2200
        %v2223 = vsub.f32 -inf, %v2202
        %v2224 = vsub.f32 -inf, %v2204
        %v2225 = vsub.f32 -inf, %v2206
        %v2226 = vsub.f32 -inf, %v2208
        %v2227 = vsub.f32 -inf, %v2210
        %v2228 = vsub.f32 -inf, %v2212
        %v2229 = vmul.f32 %v2213, 1.442695
        %v2230 = vpow.pop %v2229
        %v2231 = vmul.f32 %v2214, 1.442695
        %v2232 = vpow.pop %v2231
        %v2233 = vmul.f32 %v2215, 1.442695
        %v2234 = vpow.pop %v2233
        %v2235 = vmul.f32 %v2216, 1.442695
        %v2236 = vpow.pop %v2235
        %v2237 = vmul.f32 %v2217, 1.442695
        %v2238 = vpow.pop %v2237
        %v2239 = vmul.f32 %v2218, 1.442695
        %v2240 = vpow.pop %v2239
        %v2241 = vmul.f32 %v2219, 1.442695
        %v2242 = vpow.pop %v2241
        %v2243 = vmul.f32 %v2220, 1.442695
        %v2244 = vpow.pop %v2243
        %v2245 = vmul.f32 %v2221, 1.442695
        %v2246 = vpow.pop %v2245
        %v2247 = vmul.f32 %v2222, 1.442695
        %v2248 = vpow.pop %v2247
        %v2249 = vmul.f32 %v2223, 1.442695
        %v2250 = vpow.pop %v2249
        %v2251 = vmul.f32 %v2224, 1.442695
        %v2252 = vpow.pop %v2251
        %v2253 = vmul.f32 %v2225, 1.442695
        %v2254 = vpow.pop %v2253
        %v2255 = vmul.f32 %v2226, 1.442695
        %v2256 = vpow.pop %v2255
        %v2257 = vmul.f32 %v2227, 1.442695
        %v2258 = vpow.pop %v2257
        %v2259 = vmul.f32 %v2228, 1.442695
        %v2260 = vpow.pop %v2259
        %v2261 = vsub.f32 %v2142, %v2182
        %v2262 = vsub.f32 %v2144, %v2184
        %v2263 = vsub.f32 %v2147, %v2186
        %v2264 = vsub.f32 %v2149, %v2188
        %v2265 = vsub.f32 %v2152, %v2190
        %v2266 = vsub.f32 %v2154, %v2192
        %v2267 = vsub.f32 %v2157, %v2194
        %v2268 = vsub.f32 %v2159, %v2196
        %v2269 = vsub.f32 %v2162, %v2198
        %v2270 = vsub.f32 %v2164, %v2200
        %v2271 = vsub.f32 %v2167, %v2202
        %v2272 = vsub.f32 %v2169, %v2204
        %v2273 = vsub.f32 %v2172, %v2206
        %v2274 = vsub.f32 %v2174, %v2208
        %v2275 = vsub.f32 %v2177, %v2210
        %v2276 = vsub.f32 %v2179, %v2212
        %v2277 = vmul.f32 %v2261, 1.442695
        %v2278 = vpow.pop %v2277
        %v2279 = vmul.f32 %v2262, 1.442695
        %v2280 = vpow.pop %v2279
        %v2281 = vmul.f32 %v2263, 1.442695
        %v2282 = vpow.pop %v2281
        %v2283 = vmul.f32 %v2264, 1.442695
        %v2284 = vpow.pop %v2283
        %v2285 = vmul.f32 %v2265, 1.442695
        %v2286 = vpow.pop %v2285
        %v2287 = vmul.f32 %v2266, 1.442695
        %v2288 = vpow.pop %v2287
        %v2289 = vmul.f32 %v2267, 1.442695
        %v2290 = vpow.pop %v2289
        %v2291 = vmul.f32 %v2268, 1.442695
        %v2292 = vpow.pop %v2291
        %v2293 = vmul.f32 %v2269, 1.442695
        %v2294 = vpow.pop %v2293
        %v2295 = vmul.f32 %v2270, 1.442695
        %v2296 = vpow.pop %v2295
        %v2297 = vmul.f32 %v2271, 1.442695
        %v2298 = vpow.pop %v2297
        %v2299 = vmul.f32 %v2272, 1.442695
        %v2300 = vpow.pop %v2299
        %v2301 = vmul.f32 %v2273, 1.442695
        %v2302 = vpow.pop %v2301
        %v2303 = vmul.f32 %v2274, 1.442695
        %v2304 = vpow.pop %v2303
        %v2305 = vmul.f32 %v2275, 1.442695
        %v2306 = vpow.pop %v2305
        %v2307 = vmul.f32 %v2276, 1.442695
        %v2308 = vpow.pop %v2307
        %v2309 = vmul.f32 %v2230, 0.0
        %v2310 = vmul.f32 %v2232, 0.0
        %v2311 = vmul.f32 %v2234, 0.0
        %v2312 = vmul.f32 %v2236, 0.0
        %v2313 = vmul.f32 %v2238, 0.0
        %v2314 = vmul.f32 %v2240, 0.0
        %v2315 = vmul.f32 %v2242, 0.0
        %v2316 = vmul.f32 %v2244, 0.0
        %v2317 = vmul.f32 %v2246, 0.0
        %v2318 = vmul.f32 %v2248, 0.0
        %v2319 = vmul.f32 %v2250, 0.0
        %v2320 = vmul.f32 %v2252, 0.0
        %v2321 = vmul.f32 %v2254, 0.0
        %v2322 = vmul.f32 %v2256, 0.0
        %v2323 = vmul.f32 %v2258, 0.0
        %v2324 = vmul.f32 %v2260, 0.0
        %2325 = vadd.xlane.f32.xlu0 %v2278
        %v2326 = vpop.xlane.xlu0 %2325
        %2327 = vadd.xlane.f32.xlu0 %v2280
        %v2328 = vpop.xlane.xlu0 %2327
        %2329 = vadd.xlane.f32.xlu0 %v2282
        %v2330 = vpop.xlane.xlu0 %2329
        %2331 = vadd.xlane.f32.xlu0 %v2284
        %v2332 = vpop.xlane.xlu0 %2331
        %2333 = vadd.xlane.f32.xlu0 %v2286
        %v2334 = vpop.xlane.xlu0 %2333
        %2335 = vadd.xlane.f32.xlu0 %v2288
        %v2336 = vpop.xlane.xlu0 %2335
        %2337 = vadd.xlane.f32.xlu0 %v2290
        %v2338 = vpop.xlane.xlu0 %2337
        %2339 = vadd.xlane.f32.xlu0 %v2292
        %v2340 = vpop.xlane.xlu0 %2339
        %2341 = vadd.xlane.f32.xlu0 %v2294
        %v2342 = vpop.xlane.xlu0 %2341
        %2343 = vadd.xlane.f32.xlu0 %v2296
        %v2344 = vpop.xlane.xlu0 %2343
        %2345 = vadd.xlane.f32.xlu0 %v2298
        %v2346 = vpop.xlane.xlu0 %2345
        %2347 = vadd.xlane.f32.xlu0 %v2300
        %v2348 = vpop.xlane.xlu0 %2347
        %2349 = vadd.xlane.f32.xlu0 %v2302
        %v2350 = vpop.xlane.xlu0 %2349
        %2351 = vadd.xlane.f32.xlu0 %v2304
        %v2352 = vpop.xlane.xlu0 %2351
        %2353 = vadd.xlane.f32.xlu0 %v2306
        %v2354 = vpop.xlane.xlu0 %2353
        %2355 = vadd.xlane.f32.xlu0 %v2308
        %v2356 = vpop.xlane.xlu0 %2355
        %v2357 = vadd.f32 %v2309, %v2326
        %v2358 = vadd.f32 %v2310, %v2328
        %v2359 = vadd.f32 %v2311, %v2330
        %v2360 = vadd.f32 %v2312, %v2332
        %v2361 = vadd.f32 %v2313, %v2334
        %v2362 = vadd.f32 %v2314, %v2336
        %v2363 = vadd.f32 %v2315, %v2338
        %v2364 = vadd.f32 %v2316, %v2340
        %v2365 = vadd.f32 %v2317, %v2342
        %v2366 = vadd.f32 %v2318, %v2344
        %v2367 = vadd.f32 %v2319, %v2346
        %v2368 = vadd.f32 %v2320, %v2348
        %v2369 = vadd.f32 %v2321, %v2350
        %v2370 = vadd.f32 %v2322, %v2352
        %v2371 = vadd.f32 %v2323, %v2354
        %v2372 = vadd.f32 %v2324, %v2356
        %v2373 = vpack.c.bf16 %v2280, %v2278
        %v2374 = vpack.c.bf16 %v2284, %v2282
        %v2375 = vpack.c.bf16 %v2288, %v2286
        %v2376 = vpack.c.bf16 %v2292, %v2290
        %v2377 = vpack.c.bf16 %v2296, %v2294
        %v2378 = vpack.c.bf16 %v2300, %v2298
        %v2379 = vpack.c.bf16 %v2304, %v2302
        %v2380 = vpack.c.bf16 %v2308, %v2306
        %v2397 = vunpack.c.l.b16 %v1987
        %v2398 = vunpack.c.l.b16 %v1988
        %v2399 = vunpack.c.l.b16 %v1989
        %v2400 = vunpack.c.l.b16 %v1990
        %v2401 = vunpack.c.l.b16 %v1991
        %v2402 = vunpack.c.l.b16 %v1992
        %v2403 = vunpack.c.l.b16 %v1993
        %v2404 = vunpack.c.l.b16 %v1994
        %v2405 = vunpack.c.l.b16 %v1995
        %v2406 = vunpack.c.l.b16 %v1996
        %v2407 = vunpack.c.l.b16 %v1997
        %v2408 = vunpack.c.l.b16 %v1998
        %v2409 = vunpack.c.l.b16 %v1999
        %v2410 = vunpack.c.l.b16 %v2000
        %v2411 = vunpack.c.l.b16 %v2001
        %v2412 = vunpack.c.l.b16 %v2002
        %v2413 = vpack.c.b16 %v2398, %v2397
        %v2414 = vpack.c.b16 %v2400, %v2399
        %v2415 = vpack.c.b16 %v2402, %v2401
        %v2416 = vpack.c.b16 %v2404, %v2403
        %v2417 = vpack.c.b16 %v2406, %v2405
        %v2418 = vpack.c.b16 %v2408, %v2407
        %v2419 = vpack.c.b16 %v2410, %v2409
        %v2420 = vpack.c.b16 %v2412, %v2411
        %2429 = vmatpush.bf16.msra.mxu0 %v2420
        %2430 = vmatpush.bf16.msra.mxu0 %v2419
        %2431 = vmatpush.bf16.msra.mxu0 %v2418
        %2432 = vmatpush.bf16.msra.mxu0 %v2417
        %2433 = vmatpush.bf16.msra.mxu0 %v2416
        %2434 = vmatpush.bf16.msra.mxu0 %v2415
        %2435 = vmatpush.bf16.msra.mxu0 %v2414
        %2436 = vmatpush.bf16.msra.mxu0 %v2413
        %2437 = vmatmul.bf16.gmra.mxu0 %v2373
        %v2438 = vpop.f32.mrf.mxu0
        %v2439 = vadd.f32 0.0, %v2438
        %v2440 = vpop.f32.mrf.mxu0
        %v2441 = vadd.f32 0.0, %v2440
        %2442 = vmatmul.bf16.gmra.mxu0 %v2374
        %v2443 = vpop.f32.mrf.mxu0
        %v2444 = vadd.f32 0.0, %v2443
        %v2445 = vpop.f32.mrf.mxu0
        %v2446 = vadd.f32 0.0, %v2445
        %2447 = vmatmul.bf16.gmra.mxu0 %v2375
        %v2448 = vpop.f32.mrf.mxu0
        %v2449 = vadd.f32 0.0, %v2448
        %v2450 = vpop.f32.mrf.mxu0
        %v2451 = vadd.f32 0.0, %v2450
        %2452 = vmatmul.bf16.gmra.mxu0 %v2376
        %v2453 = vpop.f32.mrf.mxu0
        %v2454 = vadd.f32 0.0, %v2453
        %v2455 = vpop.f32.mrf.mxu0
        %v2456 = vadd.f32 0.0, %v2455
        %2457 = vmatmul.bf16.gmra.mxu0 %v2377
        %v2458 = vpop.f32.mrf.mxu0
        %v2459 = vadd.f32 0.0, %v2458
        %v2460 = vpop.f32.mrf.mxu0
        %v2461 = vadd.f32 0.0, %v2460
        %2462 = vmatmul.bf16.gmra.mxu0 %v2378
        %v2463 = vpop.f32.mrf.mxu0
        %v2464 = vadd.f32 0.0, %v2463
        %v2465 = vpop.f32.mrf.mxu0
        %v2466 = vadd.f32 0.0, %v2465
        %2467 = vmatmul.bf16.gmra.mxu0 %v2379
        %v2468 = vpop.f32.mrf.mxu0
        %v2469 = vadd.f32 0.0, %v2468
        %v2470 = vpop.f32.mrf.mxu0
        %v2471 = vadd.f32 0.0, %v2470
        %2472 = vmatmul.bf16.gmra.mxu0 %v2380
        %v2473 = vpop.f32.mrf.mxu0
        %v2474 = vadd.f32 0.0, %v2473
        %v2475 = vpop.f32.mrf.mxu0
        %v2476 = vadd.f32 0.0, %v2475
        %2477 = vdwg.mxu0
        %v2478 = vadd.f32 %v2309, %v2439
        %v2479 = vadd.f32 %v2310, %v2441
        %v2480 = vadd.f32 %v2311, %v2444
        %v2481 = vadd.f32 %v2312, %v2446
        %v2482 = vadd.f32 %v2313, %v2449
        %v2483 = vadd.f32 %v2314, %v2451
        %v2484 = vadd.f32 %v2315, %v2454
        %v2485 = vadd.f32 %v2316, %v2456
        %v2486 = vadd.f32 %v2317, %v2459
        %v2487 = vadd.f32 %v2318, %v2461
        %v2488 = vadd.f32 %v2319, %v2464
        %v2489 = vadd.f32 %v2320, %v2466
        %v2490 = vadd.f32 %v2321, %v2469
        %v2491 = vadd.f32 %v2322, %v2471
        %v2492 = vadd.f32 %v2323, %v2474
        %v2493 = vadd.f32 %v2324, %v2476
        %s2494 = smul.u32 16, 2
        %s2495 = smul.addr %s2494, 4
        %s2496 = scalar_lea.vmem [#allocation2], %s2495
        %v2497 = vld [vmem:[%s2496] sm:$0xf]
        %v2498 = vld [vmem:[%s2496 + $0x8] sm:$0xf]
        %v2499 = vld [vmem:[%s2496 + $0x10] sm:$0xf]
        %v2500 = vld [vmem:[%s2496 + $0x18] sm:$0xf]
        %v2501 = vld [vmem:[%s2496 + $0x20] sm:$0xf]
        %v2502 = vld [vmem:[%s2496 + $0x28] sm:$0xf]
        %v2503 = vld [vmem:[%s2496 + $0x30] sm:$0xf]
        %v2504 = vld [vmem:[%s2496 + $0x38] sm:$0xf]
        %v2505 = vld [vmem:[%s2496 + $0x40] sm:$0xf]
        %v2506 = vld [vmem:[%s2496 + $0x48] sm:$0xf]
        %v2507 = vld [vmem:[%s2496 + $0x50] sm:$0xf]
        %v2508 = vld [vmem:[%s2496 + $0x58] sm:$0xf]
        %v2509 = vld [vmem:[%s2496 + $0x60] sm:$0xf]
        %v2510 = vld [vmem:[%s2496 + $0x68] sm:$0xf]
        %v2511 = vld [vmem:[%s2496 + $0x70] sm:$0xf]
        %v2512 = vld [vmem:[%s2496 + $0x78] sm:$0xf]
        %s2513 = smul.addr %s2494, 4
        %s2514 = scalar_lea.vmem [#allocation3], %s2513
        %v2515 = vld [vmem:[%s2514] sm:$0xf]
        %v2516 = vld [vmem:[%s2514 + $0x8] sm:$0xf]
        %v2517 = vld [vmem:[%s2514 + $0x10] sm:$0xf]
        %v2518 = vld [vmem:[%s2514 + $0x18] sm:$0xf]
        %v2519 = vld [vmem:[%s2514 + $0x20] sm:$0xf]
        %v2520 = vld [vmem:[%s2514 + $0x28] sm:$0xf]
        %v2521 = vld [vmem:[%s2514 + $0x30] sm:$0xf]
        %v2522 = vld [vmem:[%s2514 + $0x38] sm:$0xf]
        %v2523 = vld [vmem:[%s2514 + $0x40] sm:$0xf]
        %v2524 = vld [vmem:[%s2514 + $0x48] sm:$0xf]
        %v2525 = vld [vmem:[%s2514 + $0x50] sm:$0xf]
        %v2526 = vld [vmem:[%s2514 + $0x58] sm:$0xf]
        %v2527 = vld [vmem:[%s2514 + $0x60] sm:$0xf]
        %v2528 = vld [vmem:[%s2514 + $0x68] sm:$0xf]
        %v2529 = vld [vmem:[%s2514 + $0x70] sm:$0xf]
        %v2530 = vld [vmem:[%s2514 + $0x78] sm:$0xf]
        %v2547 = vunpack.c.l.b16 %v2497
        %v2548 = vunpack.c.l.b16 %v2498
        %v2549 = vunpack.c.l.b16 %v2499
        %v2550 = vunpack.c.l.b16 %v2500
        %v2551 = vunpack.c.l.b16 %v2501
        %v2552 = vunpack.c.l.b16 %v2502
        %v2553 = vunpack.c.l.b16 %v2503
        %v2554 = vunpack.c.l.b16 %v2504
        %v2555 = vunpack.c.l.b16 %v2505
        %v2556 = vunpack.c.l.b16 %v2506
        %v2557 = vunpack.c.l.b16 %v2507
        %v2558 = vunpack.c.l.b16 %v2508
        %v2559 = vunpack.c.l.b16 %v2509
        %v2560 = vunpack.c.l.b16 %v2510
        %v2561 = vunpack.c.l.b16 %v2511
        %v2562 = vunpack.c.l.b16 %v2512
        %v2563 = vpack.c.b16 %v2548, %v2547
        %v2564 = vpack.c.b16 %v2550, %v2549
        %v2565 = vpack.c.b16 %v2552, %v2551
        %v2566 = vpack.c.b16 %v2554, %v2553
        %v2567 = vpack.c.b16 %v2556, %v2555
        %v2568 = vpack.c.b16 %v2558, %v2557
        %v2569 = vpack.c.b16 %v2560, %v2559
        %v2570 = vpack.c.b16 %v2562, %v2561
        %v2572 = vsel %vm2083, %v2563, 0
        %v2575 = vsel %vm2083, %v2564, 0
        %v2578 = vsel %vm2083, %v2565, 0
        %v2581 = vsel %vm2083, %v2566, 0
        %v2584 = vsel %vm2083, %v2567, 0
        %v2587 = vsel %vm2083, %v2568, 0
        %v2590 = vsel %vm2083, %v2569, 0
        %v2593 = vsel %vm2083, %v2570, 0
        %2595 = vmatpush.bf16.xpose.msra.mxu0 %v2593
        %2596 = vmatpush.bf16.xpose.msra.mxu0 %v2590
        %2597 = vmatpush.bf16.xpose.msra.mxu0 %v2587
        %2598 = vmatpush.bf16.xpose.msra.mxu0 %v2584
        %2599 = vmatpush.bf16.xpose.msra.mxu0 %v2581
        %2600 = vmatpush.bf16.xpose.msra.mxu0 %v2578
        %2601 = vmatpush.bf16.xpose.msra.mxu0 %v2575
        %2602 = vmatpush.bf16.xpose.msra.mxu0 %v2572
        %2603 = vmatmul.bf16.gmra.mxu0 %v2085
        %v2604 = vpop.f32.mrf.mxu0
        %v2605 = vadd.f32 0.0, %v2604
        %v2606 = vpop.f32.mrf.mxu0
        %v2607 = vadd.f32 0.0, %v2606
        %2608 = vmatmul.bf16.gmra.mxu0 %v2088
        %v2609 = vpop.f32.mrf.mxu0
        %v2610 = vadd.f32 0.0, %v2609
        %v2611 = vpop.f32.mrf.mxu0
        %v2612 = vadd.f32 0.0, %v2611
        %2613 = vmatmul.bf16.gmra.mxu0 %v2091
        %v2614 = vpop.f32.mrf.mxu0
        %v2615 = vadd.f32 0.0, %v2614
        %v2616 = vpop.f32.mrf.mxu0
        %v2617 = vadd.f32 0.0, %v2616
        %2618 = vmatmul.bf16.gmra.mxu0 %v2094
        %v2619 = vpop.f32.mrf.mxu0
        %v2620 = vadd.f32 0.0, %v2619
        %v2621 = vpop.f32.mrf.mxu0
        %v2622 = vadd.f32 0.0, %v2621
        %2623 = vmatmul.bf16.gmra.mxu0 %v2097
        %v2624 = vpop.f32.mrf.mxu0
        %v2625 = vadd.f32 0.0, %v2624
        %v2626 = vpop.f32.mrf.mxu0
        %v2627 = vadd.f32 0.0, %v2626
        %2628 = vmatmul.bf16.gmra.mxu0 %v2100
        %v2629 = vpop.f32.mrf.mxu0
        %v2630 = vadd.f32 0.0, %v2629
        %v2631 = vpop.f32.mrf.mxu0
        %v2632 = vadd.f32 0.0, %v2631
        %2633 = vmatmul.bf16.gmra.mxu0 %v2103
        %v2634 = vpop.f32.mrf.mxu0
        %v2635 = vadd.f32 0.0, %v2634
        %v2636 = vpop.f32.mrf.mxu0
        %v2637 = vadd.f32 0.0, %v2636
        %2638 = vmatmul.bf16.gmra.mxu0 %v2106
        %v2639 = vpop.f32.mrf.mxu0
        %v2640 = vadd.f32 0.0, %v2639
        %v2641 = vpop.f32.mrf.mxu0
        %v2642 = vadd.f32 0.0, %v2641
        %2643 = vdwg.mxu0
        %2644 = vmax.xlane.f32.xlu0 %v2605
        %v2645 = vpop.xlane.xlu0 %2644
        %2646 = vmax.xlane.f32.xlu0 %v2607
        %v2647 = vpop.xlane.xlu0 %2646
        %2648 = vmax.xlane.f32.xlu0 %v2610
        %v2649 = vpop.xlane.xlu0 %2648
        %2650 = vmax.xlane.f32.xlu0 %v2612
        %v2651 = vpop.xlane.xlu0 %2650
        %2652 = vmax.xlane.f32.xlu0 %v2615
        %v2653 = vpop.xlane.xlu0 %2652
        %2654 = vmax.xlane.f32.xlu0 %v2617
        %v2655 = vpop.xlane.xlu0 %2654
        %2656 = vmax.xlane.f32.xlu0 %v2620
        %v2657 = vpop.xlane.xlu0 %2656
        %2658 = vmax.xlane.f32.xlu0 %v2622
        %v2659 = vpop.xlane.xlu0 %2658
        %2660 = vmax.xlane.f32.xlu0 %v2625
        %v2661 = vpop.xlane.xlu0 %2660
        %2662 = vmax.xlane.f32.xlu0 %v2627
        %v2663 = vpop.xlane.xlu0 %2662
        %2664 = vmax.xlane.f32.xlu0 %v2630
        %v2665 = vpop.xlane.xlu0 %2664
        %2666 = vmax.xlane.f32.xlu0 %v2632
        %v2667 = vpop.xlane.xlu0 %2666
        %2668 = vmax.xlane.f32.xlu0 %v2635
        %v2669 = vpop.xlane.xlu0 %2668
        %2670 = vmax.xlane.f32.xlu0 %v2637
        %v2671 = vpop.xlane.xlu0 %2670
        %2672 = vmax.xlane.f32.xlu0 %v2640
        %v2673 = vpop.xlane.xlu0 %2672
        %2674 = vmax.xlane.f32.xlu0 %v2642
        %v2675 = vpop.xlane.xlu0 %2674
        %v2676 = vmax.f32 %v2182, %v2645
        %v2677 = vmax.f32 %v2184, %v2647
        %v2678 = vmax.f32 %v2186, %v2649
        %v2679 = vmax.f32 %v2188, %v2651
        %v2680 = vmax.f32 %v2190, %v2653
        %v2681 = vmax.f32 %v2192, %v2655
        %v2682 = vmax.f32 %v2194, %v2657
        %v2683 = vmax.f32 %v2196, %v2659
        %v2684 = vmax.f32 %v2198, %v2661
        %v2685 = vmax.f32 %v2200, %v2663
        %v2686 = vmax.f32 %v2202, %v2665
        %v2687 = vmax.f32 %v2204, %v2667
        %v2688 = vmax.f32 %v2206, %v2669
        %v2689 = vmax.f32 %v2208, %v2671
        %v2690 = vmax.f32 %v2210, %v2673
        %v2691 = vmax.f32 %v2212, %v2675
        %v2692 = vsub.f32 %v2182, %v2676
        %v2693 = vsub.f32 %v2184, %v2677
        %v2694 = vsub.f32 %v2186, %v2678
        %v2695 = vsub.f32 %v2188, %v2679
        %v2696 = vsub.f32 %v2190, %v2680
        %v2697 = vsub.f32 %v2192, %v2681
        %v2698 = vsub.f32 %v2194, %v2682
        %v2699 = vsub.f32 %v2196, %v2683
        %v2700 = vsub.f32 %v2198, %v2684
        %v2701 = vsub.f32 %v2200, %v2685
        %v2702 = vsub.f32 %v2202, %v2686
        %v2703 = vsub.f32 %v2204, %v2687
        %v2704 = vsub.f32 %v2206, %v2688
        %v2705 = vsub.f32 %v2208, %v2689
        %v2706 = vsub.f32 %v2210, %v2690
        %v2707 = vsub.f32 %v2212, %v2691
        %v2708 = vmul.f32 %v2692, 1.442695
        %v2709 = vpow.pop %v2708
        %v2710 = vmul.f32 %v2693, 1.442695
        %v2711 = vpow.pop %v2710
        %v2712 = vmul.f32 %v2694, 1.442695
        %v2713 = vpow.pop %v2712
        %v2714 = vmul.f32 %v2695, 1.442695
        %v2715 = vpow.pop %v2714
        %v2716 = vmul.f32 %v2696, 1.442695
        %v2717 = vpow.pop %v2716
        %v2718 = vmul.f32 %v2697, 1.442695
        %v2719 = vpow.pop %v2718
        %v2720 = vmul.f32 %v2698, 1.442695
        %v2721 = vpow.pop %v2720
        %v2722 = vmul.f32 %v2699, 1.442695
        %v2723 = vpow.pop %v2722
        %v2724 = vmul.f32 %v2700, 1.442695
        %v2725 = vpow.pop %v2724
        %v2726 = vmul.f32 %v2701, 1.442695
        %v2727 = vpow.pop %v2726
        %v2728 = vmul.f32 %v2702, 1.442695
        %v2729 = vpow.pop %v2728
        %v2730 = vmul.f32 %v2703, 1.442695
        %v2731 = vpow.pop %v2730
        %v2732 = vmul.f32 %v2704, 1.442695
        %v2733 = vpow.pop %v2732
        %v2734 = vmul.f32 %v2705, 1.442695
        %v2735 = vpow.pop %v2734
        %v2736 = vmul.f32 %v2706, 1.442695
        %v2737 = vpow.pop %v2736
        %v2738 = vmul.f32 %v2707, 1.442695
        %v2739 = vpow.pop %v2738
        %v2740 = vsub.f32 %v2605, %v2676
        %v2741 = vsub.f32 %v2607, %v2677
        %v2742 = vsub.f32 %v2610, %v2678
        %v2743 = vsub.f32 %v2612, %v2679
        %v2744 = vsub.f32 %v2615, %v2680
        %v2745 = vsub.f32 %v2617, %v2681
        %v2746 = vsub.f32 %v2620, %v2682
        %v2747 = vsub.f32 %v2622, %v2683
        %v2748 = vsub.f32 %v2625, %v2684
        %v2749 = vsub.f32 %v2627, %v2685
        %v2750 = vsub.f32 %v2630, %v2686
        %v2751 = vsub.f32 %v2632, %v2687
        %v2752 = vsub.f32 %v2635, %v2688
        %v2753 = vsub.f32 %v2637, %v2689
        %v2754 = vsub.f32 %v2640, %v2690
        %v2755 = vsub.f32 %v2642, %v2691
        %v2756 = vmul.f32 %v2740, 1.442695
        %v2757 = vpow.pop %v2756
        %v2758 = vmul.f32 %v2741, 1.442695
        %v2759 = vpow.pop %v2758
        %v2760 = vmul.f32 %v2742, 1.442695
        %v2761 = vpow.pop %v2760
        %v2762 = vmul.f32 %v2743, 1.442695
        %v2763 = vpow.pop %v2762
        %v2764 = vmul.f32 %v2744, 1.442695
        %v2765 = vpow.pop %v2764
        %v2766 = vmul.f32 %v2745, 1.442695
        %v2767 = vpow.pop %v2766
        %v2768 = vmul.f32 %v2746, 1.442695
        %v2769 = vpow.pop %v2768
        %v2770 = vmul.f32 %v2747, 1.442695
        %v2771 = vpow.pop %v2770
        %v2772 = vmul.f32 %v2748, 1.442695
        %v2773 = vpow.pop %v2772
        %v2774 = vmul.f32 %v2749, 1.442695
        %v2775 = vpow.pop %v2774
        %v2776 = vmul.f32 %v2750, 1.442695
        %v2777 = vpow.pop %v2776
        %v2778 = vmul.f32 %v2751, 1.442695
        %v2779 = vpow.pop %v2778
        %v2780 = vmul.f32 %v2752, 1.442695
        %v2781 = vpow.pop %v2780
        %v2782 = vmul.f32 %v2753, 1.442695
        %v2783 = vpow.pop %v2782
        %v2784 = vmul.f32 %v2754, 1.442695
        %v2785 = vpow.pop %v2784
        %v2786 = vmul.f32 %v2755, 1.442695
        %v2787 = vpow.pop %v2786
        %v2788 = vmul.f32 %v2709, %v2357
        %v2789 = vmul.f32 %v2711, %v2358
        %v2790 = vmul.f32 %v2713, %v2359
        %v2791 = vmul.f32 %v2715, %v2360
        %v2792 = vmul.f32 %v2717, %v2361
        %v2793 = vmul.f32 %v2719, %v2362
        %v2794 = vmul.f32 %v2721, %v2363
        %v2795 = vmul.f32 %v2723, %v2364
        %v2796 = vmul.f32 %v2725, %v2365
        %v2797 = vmul.f32 %v2727, %v2366
        %v2798 = vmul.f32 %v2729, %v2367
        %v2799 = vmul.f32 %v2731, %v2368
        %v2800 = vmul.f32 %v2733, %v2369
        %v2801 = vmul.f32 %v2735, %v2370
        %v2802 = vmul.f32 %v2737, %v2371
        %v2803 = vmul.f32 %v2739, %v2372
        %2804 = vadd.xlane.f32.xlu0 %v2757
        %v2805 = vpop.xlane.xlu0 %2804
        %2806 = vadd.xlane.f32.xlu0 %v2759
        %v2807 = vpop.xlane.xlu0 %2806
        %2808 = vadd.xlane.f32.xlu0 %v2761
        %v2809 = vpop.xlane.xlu0 %2808
        %2810 = vadd.xlane.f32.xlu0 %v2763
        %v2811 = vpop.xlane.xlu0 %2810
        %2812 = vadd.xlane.f32.xlu0 %v2765
        %v2813 = vpop.xlane.xlu0 %2812
        %2814 = vadd.xlane.f32.xlu0 %v2767
        %v2815 = vpop.xlane.xlu0 %2814
        %2816 = vadd.xlane.f32.xlu0 %v2769
        %v2817 = vpop.xlane.xlu0 %2816
        %2818 = vadd.xlane.f32.xlu0 %v2771
        %v2819 = vpop.xlane.xlu0 %2818
        %2820 = vadd.xlane.f32.xlu0 %v2773
        %v2821 = vpop.xlane.xlu0 %2820
        %2822 = vadd.xlane.f32.xlu0 %v2775
        %v2823 = vpop.xlane.xlu0 %2822
        %2824 = vadd.xlane.f32.xlu0 %v2777
        %v2825 = vpop.xlane.xlu0 %2824
        %2826 = vadd.xlane.f32.xlu0 %v2779
        %v2827 = vpop.xlane.xlu0 %2826
        %2828 = vadd.xlane.f32.xlu0 %v2781
        %v2829 = vpop.xlane.xlu0 %2828
        %2830 = vadd.xlane.f32.xlu0 %v2783
        %v2831 = vpop.xlane.xlu0 %2830
        %2832 = vadd.xlane.f32.xlu0 %v2785
        %v2833 = vpop.xlane.xlu0 %2832
        %2834 = vadd.xlane.f32.xlu0 %v2787
        %v2835 = vpop.xlane.xlu0 %2834
        %v2836 = vadd.f32 %v2788, %v2805
        %v2837 = vadd.f32 %v2789, %v2807
        %v2838 = vadd.f32 %v2790, %v2809
        %v2839 = vadd.f32 %v2791, %v2811
        %v2840 = vadd.f32 %v2792, %v2813
        %v2841 = vadd.f32 %v2793, %v2815
        %v2842 = vadd.f32 %v2794, %v2817
        %v2843 = vadd.f32 %v2795, %v2819
        %v2844 = vadd.f32 %v2796, %v2821
        %v2845 = vadd.f32 %v2797, %v2823
        %v2846 = vadd.f32 %v2798, %v2825
        %v2847 = vadd.f32 %v2799, %v2827
        %v2848 = vadd.f32 %v2800, %v2829
        %v2849 = vadd.f32 %v2801, %v2831
        %v2850 = vadd.f32 %v2802, %v2833
        %v2851 = vadd.f32 %v2803, %v2835
        %v2852 = vmul.f32 %v2709, %v2478
        %v2853 = vmul.f32 %v2711, %v2479
        %v2854 = vmul.f32 %v2713, %v2480
        %v2855 = vmul.f32 %v2715, %v2481
        %v2856 = vmul.f32 %v2717, %v2482
        %v2857 = vmul.f32 %v2719, %v2483
        %v2858 = vmul.f32 %v2721, %v2484
        %v2859 = vmul.f32 %v2723, %v2485
        %v2860 = vmul.f32 %v2725, %v2486
        %v2861 = vmul.f32 %v2727, %v2487
        %v2862 = vmul.f32 %v2729, %v2488
        %v2863 = vmul.f32 %v2731, %v2489
        %v2864 = vmul.f32 %v2733, %v2490
        %v2865 = vmul.f32 %v2735, %v2491
        %v2866 = vmul.f32 %v2737, %v2492
        %v2867 = vmul.f32 %v2739, %v2493
        %v2868 = vpack.c.bf16 %v2759, %v2757
        %v2869 = vpack.c.bf16 %v2763, %v2761
        %v2870 = vpack.c.bf16 %v2767, %v2765
        %v2871 = vpack.c.bf16 %v2771, %v2769
        %v2872 = vpack.c.bf16 %v2775, %v2773
        %v2873 = vpack.c.bf16 %v2779, %v2777
        %v2874 = vpack.c.bf16 %v2783, %v2781
        %v2875 = vpack.c.bf16 %v2787, %v2785
        %v2892 = vunpack.c.l.b16 %v2515
        %v2893 = vunpack.c.l.b16 %v2516
        %v2894 = vunpack.c.l.b16 %v2517
        %v2895 = vunpack.c.l.b16 %v2518
        %v2896 = vunpack.c.l.b16 %v2519
        %v2897 = vunpack.c.l.b16 %v2520
        %v2898 = vunpack.c.l.b16 %v2521
        %v2899 = vunpack.c.l.b16 %v2522
        %v2900 = vunpack.c.l.b16 %v2523
        %v2901 = vunpack.c.l.b16 %v2524
        %v2902 = vunpack.c.l.b16 %v2525
        %v2903 = vunpack.c.l.b16 %v2526
        %v2904 = vunpack.c.l.b16 %v2527
        %v2905 = vunpack.c.l.b16 %v2528
        %v2906 = vunpack.c.l.b16 %v2529
        %v2907 = vunpack.c.l.b16 %v2530
        %v2908 = vpack.c.b16 %v2893, %v2892
        %v2909 = vpack.c.b16 %v2895, %v2894
        %v2910 = vpack.c.b16 %v2897, %v2896
        %v2911 = vpack.c.b16 %v2899, %v2898
        %v2912 = vpack.c.b16 %v2901, %v2900
        %v2913 = vpack.c.b16 %v2903, %v2902
        %v2914 = vpack.c.b16 %v2905, %v2904
        %v2915 = vpack.c.b16 %v2907, %v2906
        %2924 = vmatpush.bf16.msra.mxu0 %v2915
        %2925 = vmatpush.bf16.msra.mxu0 %v2914
        %2926 = vmatpush.bf16.msra.mxu0 %v2913
        %2927 = vmatpush.bf16.msra.mxu0 %v2912
        %2928 = vmatpush.bf16.msra.mxu0 %v2911
        %2929 = vmatpush.bf16.msra.mxu0 %v2910
        %2930 = vmatpush.bf16.msra.mxu0 %v2909
        %2931 = vmatpush.bf16.msra.mxu0 %v2908
        %2932 = vmatmul.bf16.gmra.mxu0 %v2868
        %v2933 = vpop.f32.mrf.mxu0
        %v2934 = vadd.f32 0.0, %v2933
        %v2935 = vpop.f32.mrf.mxu0
        %v2936 = vadd.f32 0.0, %v2935
        %2937 = vmatmul.bf16.gmra.mxu0 %v2869
        %v2938 = vpop.f32.mrf.mxu0
        %v2939 = vadd.f32 0.0, %v2938
        %v2940 = vpop.f32.mrf.mxu0
        %v2941 = vadd.f32 0.0, %v2940
        %2942 = vmatmul.bf16.gmra.mxu0 %v2870
        %v2943 = vpop.f32.mrf.mxu0
        %v2944 = vadd.f32 0.0, %v2943
        %v2945 = vpop.f32.mrf.mxu0
        %v2946 = vadd.f32 0.0, %v2945
        %2947 = vmatmul.bf16.gmra.mxu0 %v2871
        %v2948 = vpop.f32.mrf.mxu0
        %v2949 = vadd.f32 0.0, %v2948
        %v2950 = vpop.f32.mrf.mxu0
        %v2951 = vadd.f32 0.0, %v2950
        %2952 = vmatmul.bf16.gmra.mxu0 %v2872
        %v2953 = vpop.f32.mrf.mxu0
        %v2954 = vadd.f32 0.0, %v2953
        %v2955 = vpop.f32.mrf.mxu0
        %v2956 = vadd.f32 0.0, %v2955
        %2957 = vmatmul.bf16.gmra.mxu0 %v2873
        %v2958 = vpop.f32.mrf.mxu0
        %v2959 = vadd.f32 0.0, %v2958
        %v2960 = vpop.f32.mrf.mxu0
        %v2961 = vadd.f32 0.0, %v2960
        %2962 = vmatmul.bf16.gmra.mxu0 %v2874
        %v2963 = vpop.f32.mrf.mxu0
        %v2964 = vadd.f32 0.0, %v2963
        %v2965 = vpop.f32.mrf.mxu0
        %v2966 = vadd.f32 0.0, %v2965
        %2967 = vmatmul.bf16.gmra.mxu0 %v2875
        %v2968 = vpop.f32.mrf.mxu0
        %v2969 = vadd.f32 0.0, %v2968
        %v2970 = vpop.f32.mrf.mxu0
        %v2971 = vadd.f32 0.0, %v2970
        %2972 = vdwg.mxu0
        %v2973 = vadd.f32 %v2852, %v2934
        %v2974 = vadd.f32 %v2853, %v2936
        %v2975 = vadd.f32 %v2854, %v2939
        %v2976 = vadd.f32 %v2855, %v2941
        %v2977 = vadd.f32 %v2856, %v2944
        %v2978 = vadd.f32 %v2857, %v2946
        %v2979 = vadd.f32 %v2858, %v2949
        %v2980 = vadd.f32 %v2859, %v2951
        %v2981 = vadd.f32 %v2860, %v2954
        %v2982 = vadd.f32 %v2861, %v2956
        %v2983 = vadd.f32 %v2862, %v2959
        %v2984 = vadd.f32 %v2863, %v2961
        %v2985 = vadd.f32 %v2864, %v2964
        %v2986 = vadd.f32 %v2865, %v2966
        %v2987 = vadd.f32 %v2866, %v2969
        %v2988 = vadd.f32 %v2867, %v2971
        %v2989 = vrcp.pop %v2836
        %v2990 = vrcp.pop %v2837
        %v2991 = vrcp.pop %v2838
        %v2992 = vrcp.pop %v2839
        %v2993 = vrcp.pop %v2840
        %v2994 = vrcp.pop %v2841
        %v2995 = vrcp.pop %v2842
        %v2996 = vrcp.pop %v2843
        %v2997 = vrcp.pop %v2844
        %v2998 = vrcp.pop %v2845
        %v2999 = vrcp.pop %v2846
        %v3000 = vrcp.pop %v2847
        %v3001 = vrcp.pop %v2848
        %v3002 = vrcp.pop %v2849
        %v3003 = vrcp.pop %v2850
        %v3004 = vrcp.pop %v2851
        %v3005 = vmul.f32 %v2973, %v2989
        %v3006 = vmul.f32 %v2974, %v2990
        %v3007 = vmul.f32 %v2975, %v2991
        %v3008 = vmul.f32 %v2976, %v2992
        %v3009 = vmul.f32 %v2977, %v2993
        %v3010 = vmul.f32 %v2978, %v2994
        %v3011 = vmul.f32 %v2979, %v2995
        %v3012 = vmul.f32 %v2980, %v2996
        %v3013 = vmul.f32 %v2981, %v2997
        %v3014 = vmul.f32 %v2982, %v2998
        %v3015 = vmul.f32 %v2983, %v2999
        %v3016 = vmul.f32 %v2984, %v3000
        %v3017 = vmul.f32 %v2985, %v3001
        %v3018 = vmul.f32 %v2986, %v3002
        %v3019 = vmul.f32 %v2987, %v3003
        %v3020 = vmul.f32 %v2988, %v3004
        %v3021 = vpack.c.bf16 %v3005, %v3005
        %v3022 = vpack.c.bf16 %v3006, %v3006
        %v3023 = vpack.c.bf16 %v3007, %v3007
        %v3024 = vpack.c.bf16 %v3008, %v3008
        %v3025 = vpack.c.bf16 %v3009, %v3009
        %v3026 = vpack.c.bf16 %v3010, %v3010
        %v3027 = vpack.c.bf16 %v3011, %v3011
        %v3028 = vpack.c.bf16 %v3012, %v3012
        %v3029 = vpack.c.bf16 %v3013, %v3013
        %v3030 = vpack.c.bf16 %v3014, %v3014
        %v3031 = vpack.c.bf16 %v3015, %v3015
        %v3032 = vpack.c.bf16 %v3016, %v3016
        %v3033 = vpack.c.bf16 %v3017, %v3017
        %v3034 = vpack.c.bf16 %v3018, %v3018
        %v3035 = vpack.c.bf16 %v3019, %v3019
        %v3036 = vpack.c.bf16 %v3020, %v3020
        %vm3037 = vcmask 519168
        %3038 = vst.msk [vmem:[#allocation4] sm:$0xf] %vm3037, %v3021
        %3039 = vst.msk [vmem:[#allocation4 + $0x8] sm:$0xf] %vm3037, %v3022
        %3040 = vst.msk [vmem:[#allocation4 + $0x10] sm:$0xf] %vm3037, %v3023
        %3041 = vst.msk [vmem:[#allocation4 + $0x18] sm:$0xf] %vm3037, %v3024
        %3042 = vst.msk [vmem:[#allocation4 + $0x20] sm:$0xf] %vm3037, %v3025
        %3043 = vst.msk [vmem:[#allocation4 + $0x28] sm:$0xf] %vm3037, %v3026
        %3044 = vst.msk [vmem:[#allocation4 + $0x30] sm:$0xf] %vm3037, %v3027
        %3045 = vst.msk [vmem:[#allocation4 + $0x38] sm:$0xf] %vm3037, %v3028
        %3046 = vst.msk [vmem:[#allocation4 + $0x40] sm:$0xf] %vm3037, %v3029
        %3047 = vst.msk [vmem:[#allocation4 + $0x48] sm:$0xf] %vm3037, %v3030
        %3048 = vst.msk [vmem:[#allocation4 + $0x50] sm:$0xf] %vm3037, %v3031
        %3049 = vst.msk [vmem:[#allocation4 + $0x58] sm:$0xf] %vm3037, %v3032
        %3050 = vst.msk [vmem:[#allocation4 + $0x60] sm:$0xf] %vm3037, %v3033
        %3051 = vst.msk [vmem:[#allocation4 + $0x68] sm:$0xf] %vm3037, %v3034
        %3052 = vst.msk [vmem:[#allocation4 + $0x70] sm:$0xf] %vm3037, %v3035
        %3053 = vst.msk [vmem:[#allocation4 + $0x78] sm:$0xf] %vm3037, %v3036
        %v3054 = vld [vmem:[%s1968] sm:$0xf]
        %v3055 = vld [vmem:[%s1968 + $0x8] sm:$0xf]
        %v3056 = vld [vmem:[%s1968 + $0x10] sm:$0xf]
        %v3057 = vld [vmem:[%s1968 + $0x18] sm:$0xf]
        %v3058 = vld [vmem:[%s1968 + $0x20] sm:$0xf]
        %v3059 = vld [vmem:[%s1968 + $0x28] sm:$0xf]
        %v3060 = vld [vmem:[%s1968 + $0x30] sm:$0xf]
        %v3061 = vld [vmem:[%s1968 + $0x38] sm:$0xf]
        %v3062 = vld [vmem:[%s1968 + $0x40] sm:$0xf]
        %v3063 = vld [vmem:[%s1968 + $0x48] sm:$0xf]
        %v3064 = vld [vmem:[%s1968 + $0x50] sm:$0xf]
        %v3065 = vld [vmem:[%s1968 + $0x58] sm:$0xf]
        %v3066 = vld [vmem:[%s1968 + $0x60] sm:$0xf]
        %v3067 = vld [vmem:[%s1968 + $0x68] sm:$0xf]
        %v3068 = vld [vmem:[%s1968 + $0x70] sm:$0xf]
        %v3069 = vld [vmem:[%s1968 + $0x78] sm:$0xf]
        %v3070 = vld [vmem:[%s1986] sm:$0xf]
        %v3071 = vld [vmem:[%s1986 + $0x8] sm:$0xf]
        %v3072 = vld [vmem:[%s1986 + $0x10] sm:$0xf]
        %v3073 = vld [vmem:[%s1986 + $0x18] sm:$0xf]
        %v3074 = vld [vmem:[%s1986 + $0x20] sm:$0xf]
        %v3075 = vld [vmem:[%s1986 + $0x28] sm:$0xf]
        %v3076 = vld [vmem:[%s1986 + $0x30] sm:$0xf]
        %v3077 = vld [vmem:[%s1986 + $0x38] sm:$0xf]
        %v3078 = vld [vmem:[%s1986 + $0x40] sm:$0xf]
        %v3079 = vld [vmem:[%s1986 + $0x48] sm:$0xf]
        %v3080 = vld [vmem:[%s1986 + $0x50] sm:$0xf]
        %v3081 = vld [vmem:[%s1986 + $0x58] sm:$0xf]
        %v3082 = vld [vmem:[%s1986 + $0x60] sm:$0xf]
        %v3083 = vld [vmem:[%s1986 + $0x68] sm:$0xf]
        %v3084 = vld [vmem:[%s1986 + $0x70] sm:$0xf]
        %v3085 = vld [vmem:[%s1986 + $0x78] sm:$0xf]
        %3086 = vrot.lane.b32.xlu0 %v2035, 64
        %v3087 = vpop.permute.xlu0 %3086
        %3088 = vrot.lane.b32.xlu0 %v2036, 64
        %v3089 = vpop.permute.xlu0 %3088
        %3090 = vrot.lane.b32.xlu0 %v2037, 64
        %v3091 = vpop.permute.xlu0 %3090
        %3092 = vrot.lane.b32.xlu0 %v2038, 64
        %v3093 = vpop.permute.xlu0 %3092
        %3094 = vrot.lane.b32.xlu0 %v2039, 64
        %v3095 = vpop.permute.xlu0 %3094
        %3096 = vrot.lane.b32.xlu0 %v2040, 64
        %v3097 = vpop.permute.xlu0 %3096
        %3098 = vrot.lane.b32.xlu0 %v2041, 64
        %v3099 = vpop.permute.xlu0 %3098
        %3100 = vrot.lane.b32.xlu0 %v2042, 64
        %v3101 = vpop.permute.xlu0 %3100
        %v3118 = vunpack.c.l.b16 %v3054
        %v3119 = vunpack.c.l.b16 %v3055
        %v3120 = vunpack.c.l.b16 %v3056
        %v3121 = vunpack.c.l.b16 %v3057
        %v3122 = vunpack.c.l.b16 %v3058
        %v3123 = vunpack.c.l.b16 %v3059
        %v3124 = vunpack.c.l.b16 %v3060
        %v3125 = vunpack.c.l.b16 %v3061
        %v3126 = vunpack.c.l.b16 %v3062
        %v3127 = vunpack.c.l.b16 %v3063
        %v3128 = vunpack.c.l.b16 %v3064
        %v3129 = vunpack.c.l.b16 %v3065
        %v3130 = vunpack.c.l.b16 %v3066
        %v3131 = vunpack.c.l.b16 %v3067
        %v3132 = vunpack.c.l.b16 %v3068
        %v3133 = vunpack.c.l.b16 %v3069
        %v3134 = vpack.c.b16 %v3119, %v3118
        %v3135 = vpack.c.b16 %v3121, %v3120
        %v3136 = vpack.c.b16 %v3123, %v3122
        %v3137 = vpack.c.b16 %v3125, %v3124
        %v3138 = vpack.c.b16 %v3127, %v3126
        %v3139 = vpack.c.b16 %v3129, %v3128
        %v3140 = vpack.c.b16 %v3131, %v3130
        %v3141 = vpack.c.b16 %v3133, %v3132
        %3142 = vrot.lane.b32.xlu0 %v3134, 64
        %v3143 = vpop.permute.xlu0 %3142
        %3144 = vrot.lane.b32.xlu0 %v3135, 64
        %v3145 = vpop.permute.xlu0 %3144
        %3146 = vrot.lane.b32.xlu0 %v3136, 64
        %v3147 = vpop.permute.xlu0 %3146
        %3148 = vrot.lane.b32.xlu0 %v3137, 64
        %v3149 = vpop.permute.xlu0 %3148
        %3150 = vrot.lane.b32.xlu0 %v3138, 64
        %v3151 = vpop.permute.xlu0 %3150
        %3152 = vrot.lane.b32.xlu0 %v3139, 64
        %v3153 = vpop.permute.xlu0 %3152
        %3154 = vrot.lane.b32.xlu0 %v3140, 64
        %v3155 = vpop.permute.xlu0 %3154
        %3156 = vrot.lane.b32.xlu0 %v3141, 64
        %v3157 = vpop.permute.xlu0 %3156
        %v3159 = vsel %vm2083, %v3087, 0
        %v3162 = vsel %vm2083, %v3089, 0
        %v3165 = vsel %vm2083, %v3091, 0
        %v3168 = vsel %vm2083, %v3093, 0
        %v3171 = vsel %vm2083, %v3095, 0
        %v3174 = vsel %vm2083, %v3097, 0
        %v3177 = vsel %vm2083, %v3099, 0
        %v3180 = vsel %vm2083, %v3101, 0
        %v3183 = vsel %vm2083, %v3143, 0
        %v3186 = vsel %vm2083, %v3145, 0
        %v3189 = vsel %vm2083, %v3147, 0
        %v3192 = vsel %vm2083, %v3149, 0
        %v3195 = vsel %vm2083, %v3151, 0
        %v3198 = vsel %vm2083, %v3153, 0
        %v3201 = vsel %vm2083, %v3155, 0
        %v3204 = vsel %vm2083, %v3157, 0
        %3206 = vmatpush.bf16.xpose.msra.mxu0 %v3204
        %3207 = vmatpush.bf16.xpose.msra.mxu0 %v3201
        %3208 = vmatpush.bf16.xpose.msra.mxu0 %v3198
        %3209 = vmatpush.bf16.xpose.msra.mxu0 %v3195
        %3210 = vmatpush.bf16.xpose.msra.mxu0 %v3192
        %3211 = vmatpush.bf16.xpose.msra.mxu0 %v3189
        %3212 = vmatpush.bf16.xpose.msra.mxu0 %v3186
        %3213 = vmatpush.bf16.xpose.msra.mxu0 %v3183
        %3214 = vmatmul.bf16.gmra.mxu0 %v3159
        %v3215 = vpop.f32.mrf.mxu0
        %v3216 = vadd.f32 0.0, %v3215
        %v3217 = vpop.f32.mrf.mxu0
        %v3218 = vadd.f32 0.0, %v3217
        %3219 = vmatmul.bf16.gmra.mxu0 %v3162
        %v3220 = vpop.f32.mrf.mxu0
        %v3221 = vadd.f32 0.0, %v3220
        %v3222 = vpop.f32.mrf.mxu0
        %v3223 = vadd.f32 0.0, %v3222
        %3224 = vmatmul.bf16.gmra.mxu0 %v3165
        %v3225 = vpop.f32.mrf.mxu0
        %v3226 = vadd.f32 0.0, %v3225
        %v3227 = vpop.f32.mrf.mxu0
        %v3228 = vadd.f32 0.0, %v3227
        %3229 = vmatmul.bf16.gmra.mxu0 %v3168
        %v3230 = vpop.f32.mrf.mxu0
        %v3231 = vadd.f32 0.0, %v3230
        %v3232 = vpop.f32.mrf.mxu0
        %v3233 = vadd.f32 0.0, %v3232
        %3234 = vmatmul.bf16.gmra.mxu0 %v3171
        %v3235 = vpop.f32.mrf.mxu0
        %v3236 = vadd.f32 0.0, %v3235
        %v3237 = vpop.f32.mrf.mxu0
        %v3238 = vadd.f32 0.0, %v3237
        %3239 = vmatmul.bf16.gmra.mxu0 %v3174
        %v3240 = vpop.f32.mrf.mxu0
        %v3241 = vadd.f32 0.0, %v3240
        %v3242 = vpop.f32.mrf.mxu0
        %v3243 = vadd.f32 0.0, %v3242
        %3244 = vmatmul.bf16.gmra.mxu0 %v3177
        %v3245 = vpop.f32.mrf.mxu0
        %v3246 = vadd.f32 0.0, %v3245
        %v3247 = vpop.f32.mrf.mxu0
        %v3248 = vadd.f32 0.0, %v3247
        %3249 = vmatmul.bf16.gmra.mxu0 %v3180
        %v3250 = vpop.f32.mrf.mxu0
        %v3251 = vadd.f32 0.0, %v3250
        %v3252 = vpop.f32.mrf.mxu0
        %v3253 = vadd.f32 0.0, %v3252
        %3254 = vdwg.mxu0
        %3255 = vmax.xlane.f32.xlu0 %v3216
        %v3256 = vpop.xlane.xlu0 %3255
        %3257 = vmax.xlane.f32.xlu0 %v3218
        %v3258 = vpop.xlane.xlu0 %3257
        %3259 = vmax.xlane.f32.xlu0 %v3221
        %v3260 = vpop.xlane.xlu0 %3259
        %3261 = vmax.xlane.f32.xlu0 %v3223
        %v3262 = vpop.xlane.xlu0 %3261
        %3263 = vmax.xlane.f32.xlu0 %v3226
        %v3264 = vpop.xlane.xlu0 %3263
        %3265 = vmax.xlane.f32.xlu0 %v3228
        %v3266 = vpop.xlane.xlu0 %3265
        %3267 = vmax.xlane.f32.xlu0 %v3231
        %v3268 = vpop.xlane.xlu0 %3267
        %3269 = vmax.xlane.f32.xlu0 %v3233
        %v3270 = vpop.xlane.xlu0 %3269
        %3271 = vmax.xlane.f32.xlu0 %v3236
        %v3272 = vpop.xlane.xlu0 %3271
        %3273 = vmax.xlane.f32.xlu0 %v3238
        %v3274 = vpop.xlane.xlu0 %3273
        %3275 = vmax.xlane.f32.xlu0 %v3241
        %v3276 = vpop.xlane.xlu0 %3275
        %3277 = vmax.xlane.f32.xlu0 %v3243
        %v3278 = vpop.xlane.xlu0 %3277
        %3279 = vmax.xlane.f32.xlu0 %v3246
        %v3280 = vpop.xlane.xlu0 %3279
        %3281 = vmax.xlane.f32.xlu0 %v3248
        %v3282 = vpop.xlane.xlu0 %3281
        %3283 = vmax.xlane.f32.xlu0 %v3251
        %v3284 = vpop.xlane.xlu0 %3283
        %3285 = vmax.xlane.f32.xlu0 %v3253
        %v3286 = vpop.xlane.xlu0 %3285
        %v3287 = vsub.f32 -inf, %v3256
        %v3288 = vsub.f32 -inf, %v3258
        %v3289 = vsub.f32 -inf, %v3260
        %v3290 = vsub.f32 -inf, %v3262
        %v3291 = vsub.f32 -inf, %v3264
        %v3292 = vsub.f32 -inf, %v3266
        %v3293 = vsub.f32 -inf, %v3268
        %v3294 = vsub.f32 -inf, %v3270
        %v3295 = vsub.f32 -inf, %v3272
        %v3296 = vsub.f32 -inf, %v3274
        %v3297 = vsub.f32 -inf, %v3276
        %v3298 = vsub.f32 -inf, %v3278
        %v3299 = vsub.f32 -inf, %v3280
        %v3300 = vsub.f32 -inf, %v3282
        %v3301 = vsub.f32 -inf, %v3284
        %v3302 = vsub.f32 -inf, %v3286
        %v3303 = vmul.f32 %v3287, 1.442695
        %v3304 = vpow.pop %v3303
        %v3305 = vmul.f32 %v3288, 1.442695
        %v3306 = vpow.pop %v3305
        %v3307 = vmul.f32 %v3289, 1.442695
        %v3308 = vpow.pop %v3307
        %v3309 = vmul.f32 %v3290, 1.442695
        %v3310 = vpow.pop %v3309
        %v3311 = vmul.f32 %v3291, 1.442695
        %v3312 = vpow.pop %v3311
        %v3313 = vmul.f32 %v3292, 1.442695
        %v3314 = vpow.pop %v3313
        %v3315 = vmul.f32 %v3293, 1.442695
        %v3316 = vpow.pop %v3315
        %v3317 = vmul.f32 %v3294, 1.442695
        %v3318 = vpow.pop %v3317
        %v3319 = vmul.f32 %v3295, 1.442695
        %v3320 = vpow.pop %v3319
        %v3321 = vmul.f32 %v3296, 1.442695
        %v3322 = vpow.pop %v3321
        %v3323 = vmul.f32 %v3297, 1.442695
        %v3324 = vpow.pop %v3323
        %v3325 = vmul.f32 %v3298, 1.442695
        %v3326 = vpow.pop %v3325
        %v3327 = vmul.f32 %v3299, 1.442695
        %v3328 = vpow.pop %v3327
        %v3329 = vmul.f32 %v3300, 1.442695
        %v3330 = vpow.pop %v3329
        %v3331 = vmul.f32 %v3301, 1.442695
        %v3332 = vpow.pop %v3331
        %v3333 = vmul.f32 %v3302, 1.442695
        %v3334 = vpow.pop %v3333
        %v3335 = vsub.f32 %v3216, %v3256
        %v3336 = vsub.f32 %v3218, %v3258
        %v3337 = vsub.f32 %v3221, %v3260
        %v3338 = vsub.f32 %v3223, %v3262
        %v3339 = vsub.f32 %v3226, %v3264
        %v3340 = vsub.f32 %v3228, %v3266
        %v3341 = vsub.f32 %v3231, %v3268
        %v3342 = vsub.f32 %v3233, %v3270
        %v3343 = vsub.f32 %v3236, %v3272
        %v3344 = vsub.f32 %v3238, %v3274
        %v3345 = vsub.f32 %v3241, %v3276
        %v3346 = vsub.f32 %v3243, %v3278
        %v3347 = vsub.f32 %v3246, %v3280
        %v3348 = vsub.f32 %v3248, %v3282
        %v3349 = vsub.f32 %v3251, %v3284
        %v3350 = vsub.f32 %v3253, %v3286
        %v3351 = vmul.f32 %v3335, 1.442695
        %v3352 = vpow.pop %v3351
        %v3353 = vmul.f32 %v3336, 1.442695
        %v3354 = vpow.pop %v3353
        %v3355 = vmul.f32 %v3337, 1.442695
        %v3356 = vpow.pop %v3355
        %v3357 = vmul.f32 %v3338, 1.442695
        %v3358 = vpow.pop %v3357
        %v3359 = vmul.f32 %v3339, 1.442695
        %v3360 = vpow.pop %v3359
        %v3361 = vmul.f32 %v3340, 1.442695
        %v3362 = vpow.pop %v3361
        %v3363 = vmul.f32 %v3341, 1.442695
        %v3364 = vpow.pop %v3363
        %v3365 = vmul.f32 %v3342, 1.442695
        %v3366 = vpow.pop %v3365
        %v3367 = vmul.f32 %v3343, 1.442695
        %v3368 = vpow.pop %v3367
        %v3369 = vmul.f32 %v3344, 1.442695
        %v3370 = vpow.pop %v3369
        %v3371 = vmul.f32 %v3345, 1.442695
        %v3372 = vpow.pop %v3371
        %v3373 = vmul.f32 %v3346, 1.442695
        %v3374 = vpow.pop %v3373
        %v3375 = vmul.f32 %v3347, 1.442695
        %v3376 = vpow.pop %v3375
        %v3377 = vmul.f32 %v3348, 1.442695
        %v3378 = vpow.pop %v3377
        %v3379 = vmul.f32 %v3349, 1.442695
        %v3380 = vpow.pop %v3379
        %v3381 = vmul.f32 %v3350, 1.442695
        %v3382 = vpow.pop %v3381
        %v3383 = vmul.f32 %v3304, 0.0
        %v3384 = vmul.f32 %v3306, 0.0
        %v3385 = vmul.f32 %v3308, 0.0
        %v3386 = vmul.f32 %v3310, 0.0
        %v3387 = vmul.f32 %v3312, 0.0
        %v3388 = vmul.f32 %v3314, 0.0
        %v3389 = vmul.f32 %v3316, 0.0
        %v3390 = vmul.f32 %v3318, 0.0
        %v3391 = vmul.f32 %v3320, 0.0
        %v3392 = vmul.f32 %v3322, 0.0
        %v3393 = vmul.f32 %v3324, 0.0
        %v3394 = vmul.f32 %v3326, 0.0
        %v3395 = vmul.f32 %v3328, 0.0
        %v3396 = vmul.f32 %v3330, 0.0
        %v3397 = vmul.f32 %v3332, 0.0
        %v3398 = vmul.f32 %v3334, 0.0
        %3399 = vadd.xlane.f32.xlu0 %v3352
        %v3400 = vpop.xlane.xlu0 %3399
        %3401 = vadd.xlane.f32.xlu0 %v3354
        %v3402 = vpop.xlane.xlu0 %3401
        %3403 = vadd.xlane.f32.xlu0 %v3356
        %v3404 = vpop.xlane.xlu0 %3403
        %3405 = vadd.xlane.f32.xlu0 %v3358
        %v3406 = vpop.xlane.xlu0 %3405
        %3407 = vadd.xlane.f32.xlu0 %v3360
        %v3408 = vpop.xlane.xlu0 %3407
        %3409 = vadd.xlane.f32.xlu0 %v3362
        %v3410 = vpop.xlane.xlu0 %3409
        %3411 = vadd.xlane.f32.xlu0 %v3364
        %v3412 = vpop.xlane.xlu0 %3411
        %3413 = vadd.xlane.f32.xlu0 %v3366
        %v3414 = vpop.xlane.xlu0 %3413
        %3415 = vadd.xlane.f32.xlu0 %v3368
        %v3416 = vpop.xlane.xlu0 %3415
        %3417 = vadd.xlane.f32.xlu0 %v3370
        %v3418 = vpop.xlane.xlu0 %3417
        %3419 = vadd.xlane.f32.xlu0 %v3372
        %v3420 = vpop.xlane.xlu0 %3419
        %3421 = vadd.xlane.f32.xlu0 %v3374
        %v3422 = vpop.xlane.xlu0 %3421
        %3423 = vadd.xlane.f32.xlu0 %v3376
        %v3424 = vpop.xlane.xlu0 %3423
        %3425 = vadd.xlane.f32.xlu0 %v3378
        %v3426 = vpop.xlane.xlu0 %3425
        %3427 = vadd.xlane.f32.xlu0 %v3380
        %v3428 = vpop.xlane.xlu0 %3427
        %3429 = vadd.xlane.f32.xlu0 %v3382
        %v3430 = vpop.xlane.xlu0 %3429
        %v3431 = vadd.f32 %v3383, %v3400
        %v3432 = vadd.f32 %v3384, %v3402
        %v3433 = vadd.f32 %v3385, %v3404
        %v3434 = vadd.f32 %v3386, %v3406
        %v3435 = vadd.f32 %v3387, %v3408
        %v3436 = vadd.f32 %v3388, %v3410
        %v3437 = vadd.f32 %v3389, %v3412
        %v3438 = vadd.f32 %v3390, %v3414
        %v3439 = vadd.f32 %v3391, %v3416
        %v3440 = vadd.f32 %v3392, %v3418
        %v3441 = vadd.f32 %v3393, %v3420
        %v3442 = vadd.f32 %v3394, %v3422
        %v3443 = vadd.f32 %v3395, %v3424
        %v3444 = vadd.f32 %v3396, %v3426
        %v3445 = vadd.f32 %v3397, %v3428
        %v3446 = vadd.f32 %v3398, %v3430
        %v3447 = vpack.c.bf16 %v3354, %v3352
        %v3448 = vpack.c.bf16 %v3358, %v3356
        %v3449 = vpack.c.bf16 %v3362, %v3360
        %v3450 = vpack.c.bf16 %v3366, %v3364
        %v3451 = vpack.c.bf16 %v3370, %v3368
        %v3452 = vpack.c.bf16 %v3374, %v3372
        %v3453 = vpack.c.bf16 %v3378, %v3376
        %v3454 = vpack.c.bf16 %v3382, %v3380
        %v3471 = vunpack.c.l.b16 %v3070
        %v3472 = vunpack.c.l.b16 %v3071
        %v3473 = vunpack.c.l.b16 %v3072
        %v3474 = vunpack.c.l.b16 %v3073
        %v3475 = vunpack.c.l.b16 %v3074
        %v3476 = vunpack.c.l.b16 %v3075
        %v3477 = vunpack.c.l.b16 %v3076
        %v3478 = vunpack.c.l.b16 %v3077
        %v3479 = vunpack.c.l.b16 %v3078
        %v3480 = vunpack.c.l.b16 %v3079
        %v3481 = vunpack.c.l.b16 %v3080
        %v3482 = vunpack.c.l.b16 %v3081
        %v3483 = vunpack.c.l.b16 %v3082
        %v3484 = vunpack.c.l.b16 %v3083
        %v3485 = vunpack.c.l.b16 %v3084
        %v3486 = vunpack.c.l.b16 %v3085
        %v3487 = vpack.c.b16 %v3472, %v3471
        %v3488 = vpack.c.b16 %v3474, %v3473
        %v3489 = vpack.c.b16 %v3476, %v3475
        %v3490 = vpack.c.b16 %v3478, %v3477
        %v3491 = vpack.c.b16 %v3480, %v3479
        %v3492 = vpack.c.b16 %v3482, %v3481
        %v3493 = vpack.c.b16 %v3484, %v3483
        %v3494 = vpack.c.b16 %v3486, %v3485
        %3495 = vrot.lane.b32.xlu0 %v3487, 64
        %v3496 = vpop.permute.xlu0 %3495
        %3497 = vrot.lane.b32.xlu0 %v3488, 64
        %v3498 = vpop.permute.xlu0 %3497
        %3499 = vrot.lane.b32.xlu0 %v3489, 64
        %v3500 = vpop.permute.xlu0 %3499
        %3501 = vrot.lane.b32.xlu0 %v3490, 64
        %v3502 = vpop.permute.xlu0 %3501
        %3503 = vrot.lane.b32.xlu0 %v3491, 64
        %v3504 = vpop.permute.xlu0 %3503
        %3505 = vrot.lane.b32.xlu0 %v3492, 64
        %v3506 = vpop.permute.xlu0 %3505
        %3507 = vrot.lane.b32.xlu0 %v3493, 64
        %v3508 = vpop.permute.xlu0 %3507
        %3509 = vrot.lane.b32.xlu0 %v3494, 64
        %v3510 = vpop.permute.xlu0 %3509
        %3519 = vmatpush.bf16.msra.mxu0 %v3510
        %3520 = vmatpush.bf16.msra.mxu0 %v3508
        %3521 = vmatpush.bf16.msra.mxu0 %v3506
        %3522 = vmatpush.bf16.msra.mxu0 %v3504
        %3523 = vmatpush.bf16.msra.mxu0 %v3502
        %3524 = vmatpush.bf16.msra.mxu0 %v3500
        %3525 = vmatpush.bf16.msra.mxu0 %v3498
        %3526 = vmatpush.bf16.msra.mxu0 %v3496
        %3527 = vmatmul.bf16.gmra.mxu0 %v3447
        %v3528 = vpop.f32.mrf.mxu0
        %v3529 = vadd.f32 0.0, %v3528
        %v3530 = vpop.f32.mrf.mxu0
        %v3531 = vadd.f32 0.0, %v3530
        %3532 = vmatmul.bf16.gmra.mxu0 %v3448
        %v3533 = vpop.f32.mrf.mxu0
        %v3534 = vadd.f32 0.0, %v3533
        %v3535 = vpop.f32.mrf.mxu0
        %v3536 = vadd.f32 0.0, %v3535
        %3537 = vmatmul.bf16.gmra.mxu0 %v3449
        %v3538 = vpop.f32.mrf.mxu0
        %v3539 = vadd.f32 0.0, %v3538
        %v3540 = vpop.f32.mrf.mxu0
        %v3541 = vadd.f32 0.0, %v3540
        %3542 = vmatmul.bf16.gmra.mxu0 %v3450
        %v3543 = vpop.f32.mrf.mxu0
        %v3544 = vadd.f32 0.0, %v3543
        %v3545 = vpop.f32.mrf.mxu0
        %v3546 = vadd.f32 0.0, %v3545
        %3547 = vmatmul.bf16.gmra.mxu0 %v3451
        %v3548 = vpop.f32.mrf.mxu0
        %v3549 = vadd.f32 0.0, %v3548
        %v3550 = vpop.f32.mrf.mxu0
        %v3551 = vadd.f32 0.0, %v3550
        %3552 = vmatmul.bf16.gmra.mxu0 %v3452
        %v3553 = vpop.f32.mrf.mxu0
        %v3554 = vadd.f32 0.0, %v3553
        %v3555 = vpop.f32.mrf.mxu0
        %v3556 = vadd.f32 0.0, %v3555
        %3557 = vmatmul.bf16.gmra.mxu0 %v3453
        %v3558 = vpop.f32.mrf.mxu0
        %v3559 = vadd.f32 0.0, %v3558
        %v3560 = vpop.f32.mrf.mxu0
        %v3561 = vadd.f32 0.0, %v3560
        %3562 = vmatmul.bf16.gmra.mxu0 %v3454
        %v3563 = vpop.f32.mrf.mxu0
        %v3564 = vadd.f32 0.0, %v3563
        %v3565 = vpop.f32.mrf.mxu0
        %v3566 = vadd.f32 0.0, %v3565
        %3567 = vdwg.mxu0
        %v3568 = vadd.f32 %v3383, %v3529
        %v3569 = vadd.f32 %v3384, %v3531
        %v3570 = vadd.f32 %v3385, %v3534
        %v3571 = vadd.f32 %v3386, %v3536
        %v3572 = vadd.f32 %v3387, %v3539
        %v3573 = vadd.f32 %v3388, %v3541
        %v3574 = vadd.f32 %v3389, %v3544
        %v3575 = vadd.f32 %v3390, %v3546
        %v3576 = vadd.f32 %v3391, %v3549
        %v3577 = vadd.f32 %v3392, %v3551
        %v3578 = vadd.f32 %v3393, %v3554
        %v3579 = vadd.f32 %v3394, %v3556
        %v3580 = vadd.f32 %v3395, %v3559
        %v3581 = vadd.f32 %v3396, %v3561
        %v3582 = vadd.f32 %v3397, %v3564
        %v3583 = vadd.f32 %v3398, %v3566
        %v3584 = vld [vmem:[%s2496] sm:$0xf]
        %v3585 = vld [vmem:[%s2496 + $0x8] sm:$0xf]
        %v3586 = vld [vmem:[%s2496 + $0x10] sm:$0xf]
        %v3587 = vld [vmem:[%s2496 + $0x18] sm:$0xf]
        %v3588 = vld [vmem:[%s2496 + $0x20] sm:$0xf]
        %v3589 = vld [vmem:[%s2496 + $0x28] sm:$0xf]
        %v3590 = vld [vmem:[%s2496 + $0x30] sm:$0xf]
        %v3591 = vld [vmem:[%s2496 + $0x38] sm:$0xf]
        %v3592 = vld [vmem:[%s2496 + $0x40] sm:$0xf]
        %v3593 = vld [vmem:[%s2496 + $0x48] sm:$0xf]
        %v3594 = vld [vmem:[%s2496 + $0x50] sm:$0xf]
        %v3595 = vld [vmem:[%s2496 + $0x58] sm:$0xf]
        %v3596 = vld [vmem:[%s2496 + $0x60] sm:$0xf]
        %v3597 = vld [vmem:[%s2496 + $0x68] sm:$0xf]
        %v3598 = vld [vmem:[%s2496 + $0x70] sm:$0xf]
        %v3599 = vld [vmem:[%s2496 + $0x78] sm:$0xf]
        %v3600 = vld [vmem:[%s2514] sm:$0xf]
        %v3601 = vld [vmem:[%s2514 + $0x8] sm:$0xf]
        %v3602 = vld [vmem:[%s2514 + $0x10] sm:$0xf]
        %v3603 = vld [vmem:[%s2514 + $0x18] sm:$0xf]
        %v3604 = vld [vmem:[%s2514 + $0x20] sm:$0xf]
        %v3605 = vld [vmem:[%s2514 + $0x28] sm:$0xf]
        %v3606 = vld [vmem:[%s2514 + $0x30] sm:$0xf]
        %v3607 = vld [vmem:[%s2514 + $0x38] sm:$0xf]
        %v3608 = vld [vmem:[%s2514 + $0x40] sm:$0xf]
        %v3609 = vld [vmem:[%s2514 + $0x48] sm:$0xf]
        %v3610 = vld [vmem:[%s2514 + $0x50] sm:$0xf]
        %v3611 = vld [vmem:[%s2514 + $0x58] sm:$0xf]
        %v3612 = vld [vmem:[%s2514 + $0x60] sm:$0xf]
        %v3613 = vld [vmem:[%s2514 + $0x68] sm:$0xf]
        %v3614 = vld [vmem:[%s2514 + $0x70] sm:$0xf]
        %v3615 = vld [vmem:[%s2514 + $0x78] sm:$0xf]
        %v3632 = vunpack.c.l.b16 %v3584
        %v3633 = vunpack.c.l.b16 %v3585
        %v3634 = vunpack.c.l.b16 %v3586
        %v3635 = vunpack.c.l.b16 %v3587
        %v3636 = vunpack.c.l.b16 %v3588
        %v3637 = vunpack.c.l.b16 %v3589
        %v3638 = vunpack.c.l.b16 %v3590
        %v3639 = vunpack.c.l.b16 %v3591
        %v3640 = vunpack.c.l.b16 %v3592
        %v3641 = vunpack.c.l.b16 %v3593
        %v3642 = vunpack.c.l.b16 %v3594
        %v3643 = vunpack.c.l.b16 %v3595
        %v3644 = vunpack.c.l.b16 %v3596
        %v3645 = vunpack.c.l.b16 %v3597
        %v3646 = vunpack.c.l.b16 %v3598
        %v3647 = vunpack.c.l.b16 %v3599
        %v3648 = vpack.c.b16 %v3633, %v3632
        %v3649 = vpack.c.b16 %v3635, %v3634
        %v3650 = vpack.c.b16 %v3637, %v3636
        %v3651 = vpack.c.b16 %v3639, %v3638
        %v3652 = vpack.c.b16 %v3641, %v3640
        %v3653 = vpack.c.b16 %v3643, %v3642
        %v3654 = vpack.c.b16 %v3645, %v3644
        %v3655 = vpack.c.b16 %v3647, %v3646
        %3656 = vrot.lane.b32.xlu0 %v3648, 64
        %v3657 = vpop.permute.xlu0 %3656
        %3658 = vrot.lane.b32.xlu0 %v3649, 64
        %v3659 = vpop.permute.xlu0 %3658
        %3660 = vrot.lane.b32.xlu0 %v3650, 64
        %v3661 = vpop.permute.xlu0 %3660
        %3662 = vrot.lane.b32.xlu0 %v3651, 64
        %v3663 = vpop.permute.xlu0 %3662
        %3664 = vrot.lane.b32.xlu0 %v3652, 64
        %v3665 = vpop.permute.xlu0 %3664
        %3666 = vrot.lane.b32.xlu0 %v3653, 64
        %v3667 = vpop.permute.xlu0 %3666
        %3668 = vrot.lane.b32.xlu0 %v3654, 64
        %v3669 = vpop.permute.xlu0 %3668
        %3670 = vrot.lane.b32.xlu0 %v3655, 64
        %v3671 = vpop.permute.xlu0 %3670
        %v3673 = vsel %vm2083, %v3657, 0
        %v3676 = vsel %vm2083, %v3659, 0
        %v3679 = vsel %vm2083, %v3661, 0
        %v3682 = vsel %vm2083, %v3663, 0
        %v3685 = vsel %vm2083, %v3665, 0
        %v3688 = vsel %vm2083, %v3667, 0
        %v3691 = vsel %vm2083, %v3669, 0
        %v3694 = vsel %vm2083, %v3671, 0
        %3696 = vmatpush.bf16.xpose.msra.mxu0 %v3694
        %3697 = vmatpush.bf16.xpose.msra.mxu0 %v3691
        %3698 = vmatpush.bf16.xpose.msra.mxu0 %v3688
        %3699 = vmatpush.bf16.xpose.msra.mxu0 %v3685
        %3700 = vmatpush.bf16.xpose.msra.mxu0 %v3682
        %3701 = vmatpush.bf16.xpose.msra.mxu0 %v3679
        %3702 = vmatpush.bf16.xpose.msra.mxu0 %v3676
        %3703 = vmatpush.bf16.xpose.msra.mxu0 %v3673
        %3704 = vmatmul.bf16.gmra.mxu0 %v3159
        %v3705 = vpop.f32.mrf.mxu0
        %v3706 = vadd.f32 0.0, %v3705
        %v3707 = vpop.f32.mrf.mxu0
        %v3708 = vadd.f32 0.0, %v3707
        %3709 = vmatmul.bf16.gmra.mxu0 %v3162
        %v3710 = vpop.f32.mrf.mxu0
        %v3711 = vadd.f32 0.0, %v3710
        %v3712 = vpop.f32.mrf.mxu0
        %v3713 = vadd.f32 0.0, %v3712
        %3714 = vmatmul.bf16.gmra.mxu0 %v3165
        %v3715 = vpop.f32.mrf.mxu0
        %v3716 = vadd.f32 0.0, %v3715
        %v3717 = vpop.f32.mrf.mxu0
        %v3718 = vadd.f32 0.0, %v3717
        %3719 = vmatmul.bf16.gmra.mxu0 %v3168
        %v3720 = vpop.f32.mrf.mxu0
        %v3721 = vadd.f32 0.0, %v3720
        %v3722 = vpop.f32.mrf.mxu0
        %v3723 = vadd.f32 0.0, %v3722
        %3724 = vmatmul.bf16.gmra.mxu0 %v3171
        %v3725 = vpop.f32.mrf.mxu0
        %v3726 = vadd.f32 0.0, %v3725
        %v3727 = vpop.f32.mrf.mxu0
        %v3728 = vadd.f32 0.0, %v3727
        %3729 = vmatmul.bf16.gmra.mxu0 %v3174
        %v3730 = vpop.f32.mrf.mxu0
        %v3731 = vadd.f32 0.0, %v3730
        %v3732 = vpop.f32.mrf.mxu0
        %v3733 = vadd.f32 0.0, %v3732
        %3734 = vmatmul.bf16.gmra.mxu0 %v3177
        %v3735 = vpop.f32.mrf.mxu0
        %v3736 = vadd.f32 0.0, %v3735
        %v3737 = vpop.f32.mrf.mxu0
        %v3738 = vadd.f32 0.0, %v3737
        %3739 = vmatmul.bf16.gmra.mxu0 %v3180
        %v3740 = vpop.f32.mrf.mxu0
        %v3741 = vadd.f32 0.0, %v3740
        %v3742 = vpop.f32.mrf.mxu0
        %v3743 = vadd.f32 0.0, %v3742
        %3744 = vdwg.mxu0
        %3745 = vmax.xlane.f32.xlu0 %v3706
        %v3746 = vpop.xlane.xlu0 %3745
        %3747 = vmax.xlane.f32.xlu0 %v3708
        %v3748 = vpop.xlane.xlu0 %3747
        %3749 = vmax.xlane.f32.xlu0 %v3711
        %v3750 = vpop.xlane.xlu0 %3749
        %3751 = vmax.xlane.f32.xlu0 %v3713
        %v3752 = vpop.xlane.xlu0 %3751
        %3753 = vmax.xlane.f32.xlu0 %v3716
        %v3754 = vpop.xlane.xlu0 %3753
        %3755 = vmax.xlane.f32.xlu0 %v3718
        %v3756 = vpop.xlane.xlu0 %3755
        %3757 = vmax.xlane.f32.xlu0 %v3721
        %v3758 = vpop.xlane.xlu0 %3757
        %3759 = vmax.xlane.f32.xlu0 %v3723
        %v3760 = vpop.xlane.xlu0 %3759
        %3761 = vmax.xlane.f32.xlu0 %v3726
        %v3762 = vpop.xlane.xlu0 %3761
        %3763 = vmax.xlane.f32.xlu0 %v3728
        %v3764 = vpop.xlane.xlu0 %3763
        %3765 = vmax.xlane.f32.xlu0 %v3731
        %v3766 = vpop.xlane.xlu0 %3765
        %3767 = vmax.xlane.f32.xlu0 %v3733
        %v3768 = vpop.xlane.xlu0 %3767
        %3769 = vmax.xlane.f32.xlu0 %v3736
        %v3770 = vpop.xlane.xlu0 %3769
        %3771 = vmax.xlane.f32.xlu0 %v3738
        %v3772 = vpop.xlane.xlu0 %3771
        %3773 = vmax.xlane.f32.xlu0 %v3741
        %v3774 = vpop.xlane.xlu0 %3773
        %3775 = vmax.xlane.f32.xlu0 %v3743
        %v3776 = vpop.xlane.xlu0 %3775
        %v3777 = vmax.f32 %v3256, %v3746
        %v3778 = vmax.f32 %v3258, %v3748
        %v3779 = vmax.f32 %v3260, %v3750
        %v3780 = vmax.f32 %v3262, %v3752
        %v3781 = vmax.f32 %v3264, %v3754
        %v3782 = vmax.f32 %v3266, %v3756
        %v3783 = vmax.f32 %v3268, %v3758
        %v3784 = vmax.f32 %v3270, %v3760
        %v3785 = vmax.f32 %v3272, %v3762
        %v3786 = vmax.f32 %v3274, %v3764
        %v3787 = vmax.f32 %v3276, %v3766
        %v3788 = vmax.f32 %v3278, %v3768
        %v3789 = vmax.f32 %v3280, %v3770
        %v3790 = vmax.f32 %v3282, %v3772
        %v3791 = vmax.f32 %v3284, %v3774
        %v3792 = vmax.f32 %v3286, %v3776
        %v3793 = vsub.f32 %v3256, %v3777
        %v3794 = vsub.f32 %v3258, %v3778
        %v3795 = vsub.f32 %v3260, %v3779
        %v3796 = vsub.f32 %v3262, %v3780
        %v3797 = vsub.f32 %v3264, %v3781
        %v3798 = vsub.f32 %v3266, %v3782
        %v3799 = vsub.f32 %v3268, %v3783
        %v3800 = vsub.f32 %v3270, %v3784
        %v3801 = vsub.f32 %v3272, %v3785
        %v3802 = vsub.f32 %v3274, %v3786
        %v3803 = vsub.f32 %v3276, %v3787
        %v3804 = vsub.f32 %v3278, %v3788
        %v3805 = vsub.f32 %v3280, %v3789
        %v3806 = vsub.f32 %v3282, %v3790
        %v3807 = vsub.f32 %v3284, %v3791
        %v3808 = vsub.f32 %v3286, %v3792
        %v3809 = vmul.f32 %v3793, 1.442695
        %v3810 = vpow.pop %v3809
        %v3811 = vmul.f32 %v3794, 1.442695
        %v3812 = vpow.pop %v3811
        %v3813 = vmul.f32 %v3795, 1.442695
        %v3814 = vpow.pop %v3813
        %v3815 = vmul.f32 %v3796, 1.442695
        %v3816 = vpow.pop %v3815
        %v3817 = vmul.f32 %v3797, 1.442695
        %v3818 = vpow.pop %v3817
        %v3819 = vmul.f32 %v3798, 1.442695
        %v3820 = vpow.pop %v3819
        %v3821 = vmul.f32 %v3799, 1.442695
        %v3822 = vpow.pop %v3821
        %v3823 = vmul.f32 %v3800, 1.442695
        %v3824 = vpow.pop %v3823
        %v3825 = vmul.f32 %v3801, 1.442695
        %v3826 = vpow.pop %v3825
        %v3827 = vmul.f32 %v3802, 1.442695
        %v3828 = vpow.pop %v3827
        %v3829 = vmul.f32 %v3803, 1.442695
        %v3830 = vpow.pop %v3829
        %v3831 = vmul.f32 %v3804, 1.442695
        %v3832 = vpow.pop %v3831
        %v3833 = vmul.f32 %v3805, 1.442695
        %v3834 = vpow.pop %v3833
        %v3835 = vmul.f32 %v3806, 1.442695
        %v3836 = vpow.pop %v3835
        %v3837 = vmul.f32 %v3807, 1.442695
        %v3838 = vpow.pop %v3837
        %v3839 = vmul.f32 %v3808, 1.442695
        %v3840 = vpow.pop %v3839
        %v3841 = vsub.f32 %v3706, %v3777
        %v3842 = vsub.f32 %v3708, %v3778
        %v3843 = vsub.f32 %v3711, %v3779
        %v3844 = vsub.f32 %v3713, %v3780
        %v3845 = vsub.f32 %v3716, %v3781
        %v3846 = vsub.f32 %v3718, %v3782
        %v3847 = vsub.f32 %v3721, %v3783
        %v3848 = vsub.f32 %v3723, %v3784
        %v3849 = vsub.f32 %v3726, %v3785
        %v3850 = vsub.f32 %v3728, %v3786
        %v3851 = vsub.f32 %v3731, %v3787
        %v3852 = vsub.f32 %v3733, %v3788
        %v3853 = vsub.f32 %v3736, %v3789
        %v3854 = vsub.f32 %v3738, %v3790
        %v3855 = vsub.f32 %v3741, %v3791
        %v3856 = vsub.f32 %v3743, %v3792
        %v3857 = vmul.f32 %v3841, 1.442695
        %v3858 = vpow.pop %v3857
        %v3859 = vmul.f32 %v3842, 1.442695
        %v3860 = vpow.pop %v3859
        %v3861 = vmul.f32 %v3843, 1.442695
        %v3862 = vpow.pop %v3861
        %v3863 = vmul.f32 %v3844, 1.442695
        %v3864 = vpow.pop %v3863
        %v3865 = vmul.f32 %v3845, 1.442695
        %v3866 = vpow.pop %v3865
        %v3867 = vmul.f32 %v3846, 1.442695
        %v3868 = vpow.pop %v3867
        %v3869 = vmul.f32 %v3847, 1.442695
        %v3870 = vpow.pop %v3869
        %v3871 = vmul.f32 %v3848, 1.442695
        %v3872 = vpow.pop %v3871
        %v3873 = vmul.f32 %v3849, 1.442695
        %v3874 = vpow.pop %v3873
        %v3875 = vmul.f32 %v3850, 1.442695
        %v3876 = vpow.pop %v3875
        %v3877 = vmul.f32 %v3851, 1.442695
        %v3878 = vpow.pop %v3877
        %v3879 = vmul.f32 %v3852, 1.442695
        %v3880 = vpow.pop %v3879
        %v3881 = vmul.f32 %v3853, 1.442695
        %v3882 = vpow.pop %v3881
        %v3883 = vmul.f32 %v3854, 1.442695
        %v3884 = vpow.pop %v3883
        %v3885 = vmul.f32 %v3855, 1.442695
        %v3886 = vpow.pop %v3885
        %v3887 = vmul.f32 %v3856, 1.442695
        %v3888 = vpow.pop %v3887
        %v3889 = vmul.f32 %v3810, %v3431
        %v3890 = vmul.f32 %v3812, %v3432
        %v3891 = vmul.f32 %v3814, %v3433
        %v3892 = vmul.f32 %v3816, %v3434
        %v3893 = vmul.f32 %v3818, %v3435
        %v3894 = vmul.f32 %v3820, %v3436
        %v3895 = vmul.f32 %v3822, %v3437
        %v3896 = vmul.f32 %v3824, %v3438
        %v3897 = vmul.f32 %v3826, %v3439
        %v3898 = vmul.f32 %v3828, %v3440
        %v3899 = vmul.f32 %v3830, %v3441
        %v3900 = vmul.f32 %v3832, %v3442
        %v3901 = vmul.f32 %v3834, %v3443
        %v3902 = vmul.f32 %v3836, %v3444
        %v3903 = vmul.f32 %v3838, %v3445
        %v3904 = vmul.f32 %v3840, %v3446
        %3905 = vadd.xlane.f32.xlu0 %v3858
        %v3906 = vpop.xlane.xlu0 %3905
        %3907 = vadd.xlane.f32.xlu0 %v3860
        %v3908 = vpop.xlane.xlu0 %3907
        %3909 = vadd.xlane.f32.xlu0 %v3862
        %v3910 = vpop.xlane.xlu0 %3909
        %3911 = vadd.xlane.f32.xlu0 %v3864
        %v3912 = vpop.xlane.xlu0 %3911
        %3913 = vadd.xlane.f32.xlu0 %v3866
        %v3914 = vpop.xlane.xlu0 %3913
        %3915 = vadd.xlane.f32.xlu0 %v3868
        %v3916 = vpop.xlane.xlu0 %3915
        %3917 = vadd.xlane.f32.xlu0 %v3870
        %v3918 = vpop.xlane.xlu0 %3917
        %3919 = vadd.xlane.f32.xlu0 %v3872
        %v3920 = vpop.xlane.xlu0 %3919
        %3921 = vadd.xlane.f32.xlu0 %v3874
        %v3922 = vpop.xlane.xlu0 %3921
        %3923 = vadd.xlane.f32.xlu0 %v3876
        %v3924 = vpop.xlane.xlu0 %3923
        %3925 = vadd.xlane.f32.xlu0 %v3878
        %v3926 = vpop.xlane.xlu0 %3925
        %3927 = vadd.xlane.f32.xlu0 %v3880
        %v3928 = vpop.xlane.xlu0 %3927
        %3929 = vadd.xlane.f32.xlu0 %v3882
        %v3930 = vpop.xlane.xlu0 %3929
        %3931 = vadd.xlane.f32.xlu0 %v3884
        %v3932 = vpop.xlane.xlu0 %3931
        %3933 = vadd.xlane.f32.xlu0 %v3886
        %v3934 = vpop.xlane.xlu0 %3933
        %3935 = vadd.xlane.f32.xlu0 %v3888
        %v3936 = vpop.xlane.xlu0 %3935
        %v3937 = vadd.f32 %v3889, %v3906
        %v3938 = vadd.f32 %v3890, %v3908
        %v3939 = vadd.f32 %v3891, %v3910
        %v3940 = vadd.f32 %v3892, %v3912
        %v3941 = vadd.f32 %v3893, %v3914
        %v3942 = vadd.f32 %v3894, %v3916
        %v3943 = vadd.f32 %v3895, %v3918
        %v3944 = vadd.f32 %v3896, %v3920
        %v3945 = vadd.f32 %v3897, %v3922
        %v3946 = vadd.f32 %v3898, %v3924
        %v3947 = vadd.f32 %v3899, %v3926
        %v3948 = vadd.f32 %v3900, %v3928
        %v3949 = vadd.f32 %v3901, %v3930
        %v3950 = vadd.f32 %v3902, %v3932
        %v3951 = vadd.f32 %v3903, %v3934
        %v3952 = vadd.f32 %v3904, %v3936
        %v3953 = vmul.f32 %v3810, %v3568
        %v3954 = vmul.f32 %v3812, %v3569
        %v3955 = vmul.f32 %v3814, %v3570
        %v3956 = vmul.f32 %v3816, %v3571
        %v3957 = vmul.f32 %v3818, %v3572
        %v3958 = vmul.f32 %v3820, %v3573
        %v3959 = vmul.f32 %v3822, %v3574
        %v3960 = vmul.f32 %v3824, %v3575
        %v3961 = vmul.f32 %v3826, %v3576
        %v3962 = vmul.f32 %v3828, %v3577
        %v3963 = vmul.f32 %v3830, %v3578
        %v3964 = vmul.f32 %v3832, %v3579
        %v3965 = vmul.f32 %v3834, %v3580
        %v3966 = vmul.f32 %v3836, %v3581
        %v3967 = vmul.f32 %v3838, %v3582
        %v3968 = vmul.f32 %v3840, %v3583
        %v3969 = vpack.c.bf16 %v3860, %v3858
        %v3970 = vpack.c.bf16 %v3864, %v3862
        %v3971 = vpack.c.bf16 %v3868, %v3866
        %v3972 = vpack.c.bf16 %v3872, %v3870
        %v3973 = vpack.c.bf16 %v3876, %v3874
        %v3974 = vpack.c.bf16 %v3880, %v3878
        %v3975 = vpack.c.bf16 %v3884, %v3882
        %v3976 = vpack.c.bf16 %v3888, %v3886
        %v3993 = vunpack.c.l.b16 %v3600
        %v3994 = vunpack.c.l.b16 %v3601
        %v3995 = vunpack.c.l.b16 %v3602
        %v3996 = vunpack.c.l.b16 %v3603
        %v3997 = vunpack.c.l.b16 %v3604
        %v3998 = vunpack.c.l.b16 %v3605
        %v3999 = vunpack.c.l.b16 %v3606
        %v4000 = vunpack.c.l.b16 %v3607
        %v4001 = vunpack.c.l.b16 %v3608
        %v4002 = vunpack.c.l.b16 %v3609
        %v4003 = vunpack.c.l.b16 %v3610
        %v4004 = vunpack.c.l.b16 %v3611
        %v4005 = vunpack.c.l.b16 %v3612
        %v4006 = vunpack.c.l.b16 %v3613
        %v4007 = vunpack.c.l.b16 %v3614
        %v4008 = vunpack.c.l.b16 %v3615
        %v4009 = vpack.c.b16 %v3994, %v3993
        %v4010 = vpack.c.b16 %v3996, %v3995
        %v4011 = vpack.c.b16 %v3998, %v3997
        %v4012 = vpack.c.b16 %v4000, %v3999
        %v4013 = vpack.c.b16 %v4002, %v4001
        %v4014 = vpack.c.b16 %v4004, %v4003
        %v4015 = vpack.c.b16 %v4006, %v4005
        %v4016 = vpack.c.b16 %v4008, %v4007
        %4017 = vrot.lane.b32.xlu0 %v4009, 64
        %v4018 = vpop.permute.xlu0 %4017
        %4019 = vrot.lane.b32.xlu0 %v4010, 64
        %v4020 = vpop.permute.xlu0 %4019
        %4021 = vrot.lane.b32.xlu0 %v4011, 64
        %v4022 = vpop.permute.xlu0 %4021
        %4023 = vrot.lane.b32.xlu0 %v4012, 64
        %v4024 = vpop.permute.xlu0 %4023
        %4025 = vrot.lane.b32.xlu0 %v4013, 64
        %v4026 = vpop.permute.xlu0 %4025
        %4027 = vrot.lane.b32.xlu0 %v4014, 64
        %v4028 = vpop.permute.xlu0 %4027
        %4029 = vrot.lane.b32.xlu0 %v4015, 64
        %v4030 = vpop.permute.xlu0 %4029
        %4031 = vrot.lane.b32.xlu0 %v4016, 64
        %v4032 = vpop.permute.xlu0 %4031
        %4041 = vmatpush.bf16.msra.mxu0 %v4032
        %4042 = vmatpush.bf16.msra.mxu0 %v4030
        %4043 = vmatpush.bf16.msra.mxu0 %v4028
        %4044 = vmatpush.bf16.msra.mxu0 %v4026
        %4045 = vmatpush.bf16.msra.mxu0 %v4024
        %4046 = vmatpush.bf16.msra.mxu0 %v4022
        %4047 = vmatpush.bf16.msra.mxu0 %v4020
        %4048 = vmatpush.bf16.msra.mxu0 %v4018
        %4049 = vmatmul.bf16.gmra.mxu0 %v3969
        %v4050 = vpop.f32.mrf.mxu0
        %v4051 = vadd.f32 0.0, %v4050
        %v4052 = vpop.f32.mrf.mxu0
        %v4053 = vadd.f32 0.0, %v4052
        %4054 = vmatmul.bf16.gmra.mxu0 %v3970
        %v4055 = vpop.f32.mrf.mxu0
        %v4056 = vadd.f32 0.0, %v4055
        %v4057 = vpop.f32.mrf.mxu0
        %v4058 = vadd.f32 0.0, %v4057
        %4059 = vmatmul.bf16.gmra.mxu0 %v3971
        %v4060 = vpop.f32.mrf.mxu0
        %v4061 = vadd.f32 0.0, %v4060
        %v4062 = vpop.f32.mrf.mxu0
        %v4063 = vadd.f32 0.0, %v4062
        %4064 = vmatmul.bf16.gmra.mxu0 %v3972
        %v4065 = vpop.f32.mrf.mxu0
        %v4066 = vadd.f32 0.0, %v4065
        %v4067 = vpop.f32.mrf.mxu0
        %v4068 = vadd.f32 0.0, %v4067
        %4069 = vmatmul.bf16.gmra.mxu0 %v3973
        %v4070 = vpop.f32.mrf.mxu0
        %v4071 = vadd.f32 0.0, %v4070
        %v4072 = vpop.f32.mrf.mxu0
        %v4073 = vadd.f32 0.0, %v4072
        %4074 = vmatmul.bf16.gmra.mxu0 %v3974
        %v4075 = vpop.f32.mrf.mxu0
        %v4076 = vadd.f32 0.0, %v4075
        %v4077 = vpop.f32.mrf.mxu0
        %v4078 = vadd.f32 0.0, %v4077
        %4079 = vmatmul.bf16.gmra.mxu0 %v3975
        %v4080 = vpop.f32.mrf.mxu0
        %v4081 = vadd.f32 0.0, %v4080
        %v4082 = vpop.f32.mrf.mxu0
        %v4083 = vadd.f32 0.0, %v4082
        %4084 = vmatmul.bf16.gmra.mxu0 %v3976
        %v4085 = vpop.f32.mrf.mxu0
        %v4086 = vadd.f32 0.0, %v4085
        %v4087 = vpop.f32.mrf.mxu0
        %v4088 = vadd.f32 0.0, %v4087
        %4089 = vdwg.mxu0
        %v4090 = vadd.f32 %v3953, %v4051
        %v4091 = vadd.f32 %v3954, %v4053
        %v4092 = vadd.f32 %v3955, %v4056
        %v4093 = vadd.f32 %v3956, %v4058
        %v4094 = vadd.f32 %v3957, %v4061
        %v4095 = vadd.f32 %v3958, %v4063
        %v4096 = vadd.f32 %v3959, %v4066
        %v4097 = vadd.f32 %v3960, %v4068
        %v4098 = vadd.f32 %v3961, %v4071
        %v4099 = vadd.f32 %v3962, %v4073
        %v4100 = vadd.f32 %v3963, %v4076
        %v4101 = vadd.f32 %v3964, %v4078
        %v4102 = vadd.f32 %v3965, %v4081
        %v4103 = vadd.f32 %v3966, %v4083
        %v4104 = vadd.f32 %v3967, %v4086
        %v4105 = vadd.f32 %v3968, %v4088
        %v4106 = vrcp.pop %v3937
        %v4107 = vrcp.pop %v3938
        %v4108 = vrcp.pop %v3939
        %v4109 = vrcp.pop %v3940
        %v4110 = vrcp.pop %v3941
        %v4111 = vrcp.pop %v3942
        %v4112 = vrcp.pop %v3943
        %v4113 = vrcp.pop %v3944
        %v4114 = vrcp.pop %v3945
        %v4115 = vrcp.pop %v3946
        %v4116 = vrcp.pop %v3947
        %v4117 = vrcp.pop %v3948
        %v4118 = vrcp.pop %v3949
        %v4119 = vrcp.pop %v3950
        %v4120 = vrcp.pop %v3951
        %v4121 = vrcp.pop %v3952
        %v4122 = vmul.f32 %v4090, %v4106
        %v4123 = vmul.f32 %v4091, %v4107
        %v4124 = vmul.f32 %v4092, %v4108
        %v4125 = vmul.f32 %v4093, %v4109
        %v4126 = vmul.f32 %v4094, %v4110
        %v4127 = vmul.f32 %v4095, %v4111
        %v4128 = vmul.f32 %v4096, %v4112
        %v4129 = vmul.f32 %v4097, %v4113
        %v4130 = vmul.f32 %v4098, %v4114
        %v4131 = vmul.f32 %v4099, %v4115
        %v4132 = vmul.f32 %v4100, %v4116
        %v4133 = vmul.f32 %v4101, %v4117
        %v4134 = vmul.f32 %v4102, %v4118
        %v4135 = vmul.f32 %v4103, %v4119
        %v4136 = vmul.f32 %v4104, %v4120
        %v4137 = vmul.f32 %v4105, %v4121
        %v4138 = vpack.c.bf16 %v4122, %v4122
        %v4139 = vpack.c.bf16 %v4123, %v4123
        %v4140 = vpack.c.bf16 %v4124, %v4124
        %v4141 = vpack.c.bf16 %v4125, %v4125
        %v4142 = vpack.c.bf16 %v4126, %v4126
        %v4143 = vpack.c.bf16 %v4127, %v4127
        %v4144 = vpack.c.bf16 %v4128, %v4128
        %v4145 = vpack.c.bf16 %v4129, %v4129
        %v4146 = vpack.c.bf16 %v4130, %v4130
        %v4147 = vpack.c.bf16 %v4131, %v4131
        %v4148 = vpack.c.bf16 %v4132, %v4132
        %v4149 = vpack.c.bf16 %v4133, %v4133
        %v4150 = vpack.c.bf16 %v4134, %v4134
        %v4151 = vpack.c.bf16 %v4135, %v4135
        %v4152 = vpack.c.bf16 %v4136, %v4136
        %v4153 = vpack.c.bf16 %v4137, %v4137
        %4170 = vrot.lane.b32.xlu0 %v4138, 64
        %v4171 = vpop.permute.xlu0 %4170
        %4172 = vrot.lane.b32.xlu0 %v4139, 64
        %v4173 = vpop.permute.xlu0 %4172
        %4174 = vrot.lane.b32.xlu0 %v4140, 64
        %v4175 = vpop.permute.xlu0 %4174
        %4176 = vrot.lane.b32.xlu0 %v4141, 64
        %v4177 = vpop.permute.xlu0 %4176
        %4178 = vrot.lane.b32.xlu0 %v4142, 64
        %v4179 = vpop.permute.xlu0 %4178
        %4180 = vrot.lane.b32.xlu0 %v4143, 64
        %v4181 = vpop.permute.xlu0 %4180
        %4182 = vrot.lane.b32.xlu0 %v4144, 64
        %v4183 = vpop.permute.xlu0 %4182
        %4184 = vrot.lane.b32.xlu0 %v4145, 64
        %v4185 = vpop.permute.xlu0 %4184
        %4186 = vrot.lane.b32.xlu0 %v4146, 64
        %v4187 = vpop.permute.xlu0 %4186
        %4188 = vrot.lane.b32.xlu0 %v4147, 64
        %v4189 = vpop.permute.xlu0 %4188
        %4190 = vrot.lane.b32.xlu0 %v4148, 64
        %v4191 = vpop.permute.xlu0 %4190
        %4192 = vrot.lane.b32.xlu0 %v4149, 64
        %v4193 = vpop.permute.xlu0 %4192
        %4194 = vrot.lane.b32.xlu0 %v4150, 64
        %v4195 = vpop.permute.xlu0 %4194
        %4196 = vrot.lane.b32.xlu0 %v4151, 64
        %v4197 = vpop.permute.xlu0 %4196
        %4198 = vrot.lane.b32.xlu0 %v4152, 64
        %v4199 = vpop.permute.xlu0 %4198
        %4200 = vrot.lane.b32.xlu0 %v4153, 64
        %v4201 = vpop.permute.xlu0 %4200
        %vm4218 = vcmask 1043968
        %4219 = vst.msk [vmem:[#allocation4] sm:$0xf] %vm4218, %v4171
        %4220 = vst.msk [vmem:[#allocation4 + $0x8] sm:$0xf] %vm4218, %v4173
        %4221 = vst.msk [vmem:[#allocation4 + $0x10] sm:$0xf] %vm4218, %v4175
        %4222 = vst.msk [vmem:[#allocation4 + $0x18] sm:$0xf] %vm4218, %v4177
        %4223 = vst.msk [vmem:[#allocation4 + $0x20] sm:$0xf] %vm4218, %v4179
        %4224 = vst.msk [vmem:[#allocation4 + $0x28] sm:$0xf] %vm4218, %v4181
        %4225 = vst.msk [vmem:[#allocation4 + $0x30] sm:$0xf] %vm4218, %v4183
        %4226 = vst.msk [vmem:[#allocation4 + $0x38] sm:$0xf] %vm4218, %v4185
        %4227 = vst.msk [vmem:[#allocation4 + $0x40] sm:$0xf] %vm4218, %v4187
        %4228 = vst.msk [vmem:[#allocation4 + $0x48] sm:$0xf] %vm4218, %v4189
        %4229 = vst.msk [vmem:[#allocation4 + $0x50] sm:$0xf] %vm4218, %v4191
        %4230 = vst.msk [vmem:[#allocation4 + $0x58] sm:$0xf] %vm4218, %v4193
        %4231 = vst.msk [vmem:[#allocation4 + $0x60] sm:$0xf] %vm4218, %v4195
        %4232 = vst.msk [vmem:[#allocation4 + $0x68] sm:$0xf] %vm4218, %v4197
        %4233 = vst.msk [vmem:[#allocation4 + $0x70] sm:$0xf] %vm4218, %v4199
        %4234 = vst.msk [vmem:[#allocation4 + $0x78] sm:$0xf] %vm4218, %v4201
        %v4235 = vld [vmem:[%s1968 + $0x4] sm:$0xf]
        %v4236 = vld [vmem:[%s1968 + $0xc] sm:$0xf]
        %v4237 = vld [vmem:[%s1968 + $0x14] sm:$0xf]
        %v4238 = vld [vmem:[%s1968 + $0x1c] sm:$0xf]
        %v4239 = vld [vmem:[%s1968 + $0x24] sm:$0xf]
        %v4240 = vld [vmem:[%s1968 + $0x2c] sm:$0xf]
        %v4241 = vld [vmem:[%s1968 + $0x34] sm:$0xf]
        %v4242 = vld [vmem:[%s1968 + $0x3c] sm:$0xf]
        %v4243 = vld [vmem:[%s1968 + $0x44] sm:$0xf]
        %v4244 = vld [vmem:[%s1968 + $0x4c] sm:$0xf]
        %v4245 = vld [vmem:[%s1968 + $0x54] sm:$0xf]
        %v4246 = vld [vmem:[%s1968 + $0x5c] sm:$0xf]
        %v4247 = vld [vmem:[%s1968 + $0x64] sm:$0xf]
        %v4248 = vld [vmem:[%s1968 + $0x6c] sm:$0xf]
        %v4249 = vld [vmem:[%s1968 + $0x74] sm:$0xf]
        %v4250 = vld [vmem:[%s1968 + $0x7c] sm:$0xf]
        %v4251 = vld [vmem:[%s1986 + $0x4] sm:$0xf]
        %v4252 = vld [vmem:[%s1986 + $0xc] sm:$0xf]
        %v4253 = vld [vmem:[%s1986 + $0x14] sm:$0xf]
        %v4254 = vld [vmem:[%s1986 + $0x1c] sm:$0xf]
        %v4255 = vld [vmem:[%s1986 + $0x24] sm:$0xf]
        %v4256 = vld [vmem:[%s1986 + $0x2c] sm:$0xf]
        %v4257 = vld [vmem:[%s1986 + $0x34] sm:$0xf]
        %v4258 = vld [vmem:[%s1986 + $0x3c] sm:$0xf]
        %v4259 = vld [vmem:[%s1986 + $0x44] sm:$0xf]
        %v4260 = vld [vmem:[%s1986 + $0x4c] sm:$0xf]
        %v4261 = vld [vmem:[%s1986 + $0x54] sm:$0xf]
        %v4262 = vld [vmem:[%s1986 + $0x5c] sm:$0xf]
        %v4263 = vld [vmem:[%s1986 + $0x64] sm:$0xf]
        %v4264 = vld [vmem:[%s1986 + $0x6c] sm:$0xf]
        %v4265 = vld [vmem:[%s1986 + $0x74] sm:$0xf]
        %v4266 = vld [vmem:[%s1986 + $0x7c] sm:$0xf]
        %v4267 = vunpack.c.h.b16 %v1950
        %v4268 = vunpack.c.h.b16 %v1951
        %v4269 = vunpack.c.h.b16 %v1952
        %v4270 = vunpack.c.h.b16 %v1953
        %v4271 = vunpack.c.h.b16 %v1954
        %v4272 = vunpack.c.h.b16 %v1955
        %v4273 = vunpack.c.h.b16 %v1956
        %v4274 = vunpack.c.h.b16 %v1957
        %v4275 = vunpack.c.h.b16 %v1958
        %v4276 = vunpack.c.h.b16 %v1959
        %v4277 = vunpack.c.h.b16 %v1960
        %v4278 = vunpack.c.h.b16 %v1961
        %v4279 = vunpack.c.h.b16 %v1962
        %v4280 = vunpack.c.h.b16 %v1963
        %v4281 = vunpack.c.h.b16 %v1964
        %v4282 = vunpack.c.h.b16 %v1965
        %v4283 = vpack.c.b16 %v4268, %v4267
        %v4284 = vpack.c.b16 %v4270, %v4269
        %v4285 = vpack.c.b16 %v4272, %v4271
        %v4286 = vpack.c.b16 %v4274, %v4273
        %v4287 = vpack.c.b16 %v4276, %v4275
        %v4288 = vpack.c.b16 %v4278, %v4277
        %v4289 = vpack.c.b16 %v4280, %v4279
        %v4290 = vpack.c.b16 %v4282, %v4281
        %v4307 = vunpack.c.l.b16 %v4235
        %v4308 = vunpack.c.l.b16 %v4236
        %v4309 = vunpack.c.l.b16 %v4237
        %v4310 = vunpack.c.l.b16 %v4238
        %v4311 = vunpack.c.l.b16 %v4239
        %v4312 = vunpack.c.l.b16 %v4240
        %v4313 = vunpack.c.l.b16 %v4241
        %v4314 = vunpack.c.l.b16 %v4242
        %v4315 = vunpack.c.l.b16 %v4243
        %v4316 = vunpack.c.l.b16 %v4244
        %v4317 = vunpack.c.l.b16 %v4245
        %v4318 = vunpack.c.l.b16 %v4246
        %v4319 = vunpack.c.l.b16 %v4247
        %v4320 = vunpack.c.l.b16 %v4248
        %v4321 = vunpack.c.l.b16 %v4249
        %v4322 = vunpack.c.l.b16 %v4250
        %v4323 = vpack.c.b16 %v4308, %v4307
        %v4324 = vpack.c.b16 %v4310, %v4309
        %v4325 = vpack.c.b16 %v4312, %v4311
        %v4326 = vpack.c.b16 %v4314, %v4313
        %v4327 = vpack.c.b16 %v4316, %v4315
        %v4328 = vpack.c.b16 %v4318, %v4317
        %v4329 = vpack.c.b16 %v4320, %v4319
        %v4330 = vpack.c.b16 %v4322, %v4321
        %v4332 = vsel %vm2083, %v4283, 0
        %v4335 = vsel %vm2083, %v4284, 0
        %v4338 = vsel %vm2083, %v4285, 0
        %v4341 = vsel %vm2083, %v4286, 0
        %v4344 = vsel %vm2083, %v4287, 0
        %v4347 = vsel %vm2083, %v4288, 0
        %v4350 = vsel %vm2083, %v4289, 0
        %v4353 = vsel %vm2083, %v4290, 0
        %v4356 = vsel %vm2083, %v4323, 0
        %v4359 = vsel %vm2083, %v4324, 0
        %v4362 = vsel %vm2083, %v4325, 0
        %v4365 = vsel %vm2083, %v4326, 0
        %v4368 = vsel %vm2083, %v4327, 0
        %v4371 = vsel %vm2083, %v4328, 0
        %v4374 = vsel %vm2083, %v4329, 0
        %v4377 = vsel %vm2083, %v4330, 0
        %4379 = vmatpush.bf16.xpose.msra.mxu0 %v4377
        %4380 = vmatpush.bf16.xpose.msra.mxu0 %v4374
        %4381 = vmatpush.bf16.xpose.msra.mxu0 %v4371
        %4382 = vmatpush.bf16.xpose.msra.mxu0 %v4368
        %4383 = vmatpush.bf16.xpose.msra.mxu0 %v4365
        %4384 = vmatpush.bf16.xpose.msra.mxu0 %v4362
        %4385 = vmatpush.bf16.xpose.msra.mxu0 %v4359
        %4386 = vmatpush.bf16.xpose.msra.mxu0 %v4356
        %4387 = vmatmul.bf16.gmra.mxu0 %v4332
        %v4388 = vpop.f32.mrf.mxu0
        %v4389 = vadd.f32 0.0, %v4388
        %v4390 = vpop.f32.mrf.mxu0
        %v4391 = vadd.f32 0.0, %v4390
        %4392 = vmatmul.bf16.gmra.mxu0 %v4335
        %v4393 = vpop.f32.mrf.mxu0
        %v4394 = vadd.f32 0.0, %v4393
        %v4395 = vpop.f32.mrf.mxu0
        %v4396 = vadd.f32 0.0, %v4395
        %4397 = vmatmul.bf16.gmra.mxu0 %v4338
        %v4398 = vpop.f32.mrf.mxu0
        %v4399 = vadd.f32 0.0, %v4398
        %v4400 = vpop.f32.mrf.mxu0
        %v4401 = vadd.f32 0.0, %v4400
        %4402 = vmatmul.bf16.gmra.mxu0 %v4341
        %v4403 = vpop.f32.mrf.mxu0
        %v4404 = vadd.f32 0.0, %v4403
        %v4405 = vpop.f32.mrf.mxu0
        %v4406 = vadd.f32 0.0, %v4405
        %4407 = vmatmul.bf16.gmra.mxu0 %v4344
        %v4408 = vpop.f32.mrf.mxu0
        %v4409 = vadd.f32 0.0, %v4408
        %v4410 = vpop.f32.mrf.mxu0
        %v4411 = vadd.f32 0.0, %v4410
        %4412 = vmatmul.bf16.gmra.mxu0 %v4347
        %v4413 = vpop.f32.mrf.mxu0
        %v4414 = vadd.f32 0.0, %v4413
        %v4415 = vpop.f32.mrf.mxu0
        %v4416 = vadd.f32 0.0, %v4415
        %4417 = vmatmul.bf16.gmra.mxu0 %v4350
        %v4418 = vpop.f32.mrf.mxu0
        %v4419 = vadd.f32 0.0, %v4418
        %v4420 = vpop.f32.mrf.mxu0
        %v4421 = vadd.f32 0.0, %v4420
        %4422 = vmatmul.bf16.gmra.mxu0 %v4353
        %v4423 = vpop.f32.mrf.mxu0
        %v4424 = vadd.f32 0.0, %v4423
        %v4425 = vpop.f32.mrf.mxu0
        %v4426 = vadd.f32 0.0, %v4425
        %4427 = vdwg.mxu0
        %4428 = vmax.xlane.f32.xlu0 %v4389
        %v4429 = vpop.xlane.xlu0 %4428
        %4430 = vmax.xlane.f32.xlu0 %v4391
        %v4431 = vpop.xlane.xlu0 %4430
        %4432 = vmax.xlane.f32.xlu0 %v4394
        %v4433 = vpop.xlane.xlu0 %4432
        %4434 = vmax.xlane.f32.xlu0 %v4396
        %v4435 = vpop.xlane.xlu0 %4434
        %4436 = vmax.xlane.f32.xlu0 %v4399
        %v4437 = vpop.xlane.xlu0 %4436
        %4438 = vmax.xlane.f32.xlu0 %v4401
        %v4439 = vpop.xlane.xlu0 %4438
        %4440 = vmax.xlane.f32.xlu0 %v4404
        %v4441 = vpop.xlane.xlu0 %4440
        %4442 = vmax.xlane.f32.xlu0 %v4406
        %v4443 = vpop.xlane.xlu0 %4442
        %4444 = vmax.xlane.f32.xlu0 %v4409
        %v4445 = vpop.xlane.xlu0 %4444
        %4446 = vmax.xlane.f32.xlu0 %v4411
        %v4447 = vpop.xlane.xlu0 %4446
        %4448 = vmax.xlane.f32.xlu0 %v4414
        %v4449 = vpop.xlane.xlu0 %4448
        %4450 = vmax.xlane.f32.xlu0 %v4416
        %v4451 = vpop.xlane.xlu0 %4450
        %4452 = vmax.xlane.f32.xlu0 %v4419
        %v4453 = vpop.xlane.xlu0 %4452
        %4454 = vmax.xlane.f32.xlu0 %v4421
        %v4455 = vpop.xlane.xlu0 %4454
        %4456 = vmax.xlane.f32.xlu0 %v4424
        %v4457 = vpop.xlane.xlu0 %4456
        %4458 = vmax.xlane.f32.xlu0 %v4426
        %v4459 = vpop.xlane.xlu0 %4458
        %v4460 = vsub.f32 -inf, %v4429
        %v4461 = vsub.f32 -inf, %v4431
        %v4462 = vsub.f32 -inf, %v4433
        %v4463 = vsub.f32 -inf, %v4435
        %v4464 = vsub.f32 -inf, %v4437
        %v4465 = vsub.f32 -inf, %v4439
        %v4466 = vsub.f32 -inf, %v4441
        %v4467 = vsub.f32 -inf, %v4443
        %v4468 = vsub.f32 -inf, %v4445
        %v4469 = vsub.f32 -inf, %v4447
        %v4470 = vsub.f32 -inf, %v4449
        %v4471 = vsub.f32 -inf, %v4451
        %v4472 = vsub.f32 -inf, %v4453
        %v4473 = vsub.f32 -inf, %v4455
        %v4474 = vsub.f32 -inf, %v4457
        %v4475 = vsub.f32 -inf, %v4459
        %v4476 = vmul.f32 %v4460, 1.442695
        %v4477 = vpow.pop %v4476
        %v4478 = vmul.f32 %v4461, 1.442695
        %v4479 = vpow.pop %v4478
        %v4480 = vmul.f32 %v4462, 1.442695
        %v4481 = vpow.pop %v4480
        %v4482 = vmul.f32 %v4463, 1.442695
        %v4483 = vpow.pop %v4482
        %v4484 = vmul.f32 %v4464, 1.442695
        %v4485 = vpow.pop %v4484
        %v4486 = vmul.f32 %v4465, 1.442695
        %v4487 = vpow.pop %v4486
        %v4488 = vmul.f32 %v4466, 1.442695
        %v4489 = vpow.pop %v4488
        %v4490 = vmul.f32 %v4467, 1.442695
        %v4491 = vpow.pop %v4490
        %v4492 = vmul.f32 %v4468, 1.442695
        %v4493 = vpow.pop %v4492
        %v4494 = vmul.f32 %v4469, 1.442695
        %v4495 = vpow.pop %v4494
        %v4496 = vmul.f32 %v4470, 1.442695
        %v4497 = vpow.pop %v4496
        %v4498 = vmul.f32 %v4471, 1.442695
        %v4499 = vpow.pop %v4498
        %v4500 = vmul.f32 %v4472, 1.442695
        %v4501 = vpow.pop %v4500
        %v4502 = vmul.f32 %v4473, 1.442695
        %v4503 = vpow.pop %v4502
        %v4504 = vmul.f32 %v4474, 1.442695
        %v4505 = vpow.pop %v4504
        %v4506 = vmul.f32 %v4475, 1.442695
        %v4507 = vpow.pop %v4506
        %v4508 = vsub.f32 %v4389, %v4429
        %v4509 = vsub.f32 %v4391, %v4431
        %v4510 = vsub.f32 %v4394, %v4433
        %v4511 = vsub.f32 %v4396, %v4435
        %v4512 = vsub.f32 %v4399, %v4437
        %v4513 = vsub.f32 %v4401, %v4439
        %v4514 = vsub.f32 %v4404, %v4441
        %v4515 = vsub.f32 %v4406, %v4443
        %v4516 = vsub.f32 %v4409, %v4445
        %v4517 = vsub.f32 %v4411, %v4447
        %v4518 = vsub.f32 %v4414, %v4449
        %v4519 = vsub.f32 %v4416, %v4451
        %v4520 = vsub.f32 %v4419, %v4453
        %v4521 = vsub.f32 %v4421, %v4455
        %v4522 = vsub.f32 %v4424, %v4457
        %v4523 = vsub.f32 %v4426, %v4459
        %v4524 = vmul.f32 %v4508, 1.442695
        %v4525 = vpow.pop %v4524
        %v4526 = vmul.f32 %v4509, 1.442695
        %v4527 = vpow.pop %v4526
        %v4528 = vmul.f32 %v4510, 1.442695
        %v4529 = vpow.pop %v4528
        %v4530 = vmul.f32 %v4511, 1.442695
        %v4531 = vpow.pop %v4530
        %v4532 = vmul.f32 %v4512, 1.442695
        %v4533 = vpow.pop %v4532
        %v4534 = vmul.f32 %v4513, 1.442695
        %v4535 = vpow.pop %v4534
        %v4536 = vmul.f32 %v4514, 1.442695
        %v4537 = vpow.pop %v4536
        %v4538 = vmul.f32 %v4515, 1.442695
        %v4539 = vpow.pop %v4538
        %v4540 = vmul.f32 %v4516, 1.442695
        %v4541 = vpow.pop %v4540
        %v4542 = vmul.f32 %v4517, 1.442695
        %v4543 = vpow.pop %v4542
        %v4544 = vmul.f32 %v4518, 1.442695
        %v4545 = vpow.pop %v4544
        %v4546 = vmul.f32 %v4519, 1.442695
        %v4547 = vpow.pop %v4546
        %v4548 = vmul.f32 %v4520, 1.442695
        %v4549 = vpow.pop %v4548
        %v4550 = vmul.f32 %v4521, 1.442695
        %v4551 = vpow.pop %v4550
        %v4552 = vmul.f32 %v4522, 1.442695
        %v4553 = vpow.pop %v4552
        %v4554 = vmul.f32 %v4523, 1.442695
        %v4555 = vpow.pop %v4554
        %v4556 = vmul.f32 %v4477, 0.0
        %v4557 = vmul.f32 %v4479, 0.0
        %v4558 = vmul.f32 %v4481, 0.0
        %v4559 = vmul.f32 %v4483, 0.0
        %v4560 = vmul.f32 %v4485, 0.0
        %v4561 = vmul.f32 %v4487, 0.0
        %v4562 = vmul.f32 %v4489, 0.0
        %v4563 = vmul.f32 %v4491, 0.0
        %v4564 = vmul.f32 %v4493, 0.0
        %v4565 = vmul.f32 %v4495, 0.0
        %v4566 = vmul.f32 %v4497, 0.0
        %v4567 = vmul.f32 %v4499, 0.0
        %v4568 = vmul.f32 %v4501, 0.0
        %v4569 = vmul.f32 %v4503, 0.0
        %v4570 = vmul.f32 %v4505, 0.0
        %v4571 = vmul.f32 %v4507, 0.0
        %4572 = vadd.xlane.f32.xlu0 %v4525
        %v4573 = vpop.xlane.xlu0 %4572
        %4574 = vadd.xlane.f32.xlu0 %v4527
        %v4575 = vpop.xlane.xlu0 %4574
        %4576 = vadd.xlane.f32.xlu0 %v4529
        %v4577 = vpop.xlane.xlu0 %4576
        %4578 = vadd.xlane.f32.xlu0 %v4531
        %v4579 = vpop.xlane.xlu0 %4578
        %4580 = vadd.xlane.f32.xlu0 %v4533
        %v4581 = vpop.xlane.xlu0 %4580
        %4582 = vadd.xlane.f32.xlu0 %v4535
        %v4583 = vpop.xlane.xlu0 %4582
        %4584 = vadd.xlane.f32.xlu0 %v4537
        %v4585 = vpop.xlane.xlu0 %4584
        %4586 = vadd.xlane.f32.xlu0 %v4539
        %v4587 = vpop.xlane.xlu0 %4586
        %4588 = vadd.xlane.f32.xlu0 %v4541
        %v4589 = vpop.xlane.xlu0 %4588
        %4590 = vadd.xlane.f32.xlu0 %v4543
        %v4591 = vpop.xlane.xlu0 %4590
        %4592 = vadd.xlane.f32.xlu0 %v4545
        %v4593 = vpop.xlane.xlu0 %4592
        %4594 = vadd.xlane.f32.xlu0 %v4547
        %v4595 = vpop.xlane.xlu0 %4594
        %4596 = vadd.xlane.f32.xlu0 %v4549
        %v4597 = vpop.xlane.xlu0 %4596
        %4598 = vadd.xlane.f32.xlu0 %v4551
        %v4599 = vpop.xlane.xlu0 %4598
        %4600 = vadd.xlane.f32.xlu0 %v4553
        %v4601 = vpop.xlane.xlu0 %4600
        %4602 = vadd.xlane.f32.xlu0 %v4555
        %v4603 = vpop.xlane.xlu0 %4602
        %v4604 = vadd.f32 %v4556, %v4573
        %v4605 = vadd.f32 %v4557, %v4575
        %v4606 = vadd.f32 %v4558, %v4577
        %v4607 = vadd.f32 %v4559, %v4579
        %v4608 = vadd.f32 %v4560, %v4581
        %v4609 = vadd.f32 %v4561, %v4583
        %v4610 = vadd.f32 %v4562, %v4585
        %v4611 = vadd.f32 %v4563, %v4587
        %v4612 = vadd.f32 %v4564, %v4589
        %v4613 = vadd.f32 %v4565, %v4591
        %v4614 = vadd.f32 %v4566, %v4593
        %v4615 = vadd.f32 %v4567, %v4595
        %v4616 = vadd.f32 %v4568, %v4597
        %v4617 = vadd.f32 %v4569, %v4599
        %v4618 = vadd.f32 %v4570, %v4601
        %v4619 = vadd.f32 %v4571, %v4603
        %v4620 = vpack.c.bf16 %v4527, %v4525
        %v4621 = vpack.c.bf16 %v4531, %v4529
        %v4622 = vpack.c.bf16 %v4535, %v4533
        %v4623 = vpack.c.bf16 %v4539, %v4537
        %v4624 = vpack.c.bf16 %v4543, %v4541
        %v4625 = vpack.c.bf16 %v4547, %v4545
        %v4626 = vpack.c.bf16 %v4551, %v4549
        %v4627 = vpack.c.bf16 %v4555, %v4553
        %v4644 = vunpack.c.l.b16 %v4251
        %v4645 = vunpack.c.l.b16 %v4252
        %v4646 = vunpack.c.l.b16 %v4253
        %v4647 = vunpack.c.l.b16 %v4254
        %v4648 = vunpack.c.l.b16 %v4255
        %v4649 = vunpack.c.l.b16 %v4256
        %v4650 = vunpack.c.l.b16 %v4257
        %v4651 = vunpack.c.l.b16 %v4258
        %v4652 = vunpack.c.l.b16 %v4259
        %v4653 = vunpack.c.l.b16 %v4260
        %v4654 = vunpack.c.l.b16 %v4261
        %v4655 = vunpack.c.l.b16 %v4262
        %v4656 = vunpack.c.l.b16 %v4263
        %v4657 = vunpack.c.l.b16 %v4264
        %v4658 = vunpack.c.l.b16 %v4265
        %v4659 = vunpack.c.l.b16 %v4266
        %v4660 = vpack.c.b16 %v4645, %v4644
        %v4661 = vpack.c.b16 %v4647, %v4646
        %v4662 = vpack.c.b16 %v4649, %v4648
        %v4663 = vpack.c.b16 %v4651, %v4650
        %v4664 = vpack.c.b16 %v4653, %v4652
        %v4665 = vpack.c.b16 %v4655, %v4654
        %v4666 = vpack.c.b16 %v4657, %v4656
        %v4667 = vpack.c.b16 %v4659, %v4658
        %4676 = vmatpush.bf16.msra.mxu0 %v4667
        %4677 = vmatpush.bf16.msra.mxu0 %v4666
        %4678 = vmatpush.bf16.msra.mxu0 %v4665
        %4679 = vmatpush.bf16.msra.mxu0 %v4664
        %4680 = vmatpush.bf16.msra.mxu0 %v4663
        %4681 = vmatpush.bf16.msra.mxu0 %v4662
        %4682 = vmatpush.bf16.msra.mxu0 %v4661
        %4683 = vmatpush.bf16.msra.mxu0 %v4660
        %4684 = vmatmul.bf16.gmra.mxu0 %v4620
        %v4685 = vpop.f32.mrf.mxu0
        %v4686 = vadd.f32 0.0, %v4685
        %v4687 = vpop.f32.mrf.mxu0
        %v4688 = vadd.f32 0.0, %v4687
        %4689 = vmatmul.bf16.gmra.mxu0 %v4621
        %v4690 = vpop.f32.mrf.mxu0
        %v4691 = vadd.f32 0.0, %v4690
        %v4692 = vpop.f32.mrf.mxu0
        %v4693 = vadd.f32 0.0, %v4692
        %4694 = vmatmul.bf16.gmra.mxu0 %v4622
        %v4695 = vpop.f32.mrf.mxu0
        %v4696 = vadd.f32 0.0, %v4695
        %v4697 = vpop.f32.mrf.mxu0
        %v4698 = vadd.f32 0.0, %v4697
        %4699 = vmatmul.bf16.gmra.mxu0 %v4623
        %v4700 = vpop.f32.mrf.mxu0
        %v4701 = vadd.f32 0.0, %v4700
        %v4702 = vpop.f32.mrf.mxu0
        %v4703 = vadd.f32 0.0, %v4702
        %4704 = vmatmul.bf16.gmra.mxu0 %v4624
        %v4705 = vpop.f32.mrf.mxu0
        %v4706 = vadd.f32 0.0, %v4705
        %v4707 = vpop.f32.mrf.mxu0
        %v4708 = vadd.f32 0.0, %v4707
        %4709 = vmatmul.bf16.gmra.mxu0 %v4625
        %v4710 = vpop.f32.mrf.mxu0
        %v4711 = vadd.f32 0.0, %v4710
        %v4712 = vpop.f32.mrf.mxu0
        %v4713 = vadd.f32 0.0, %v4712
        %4714 = vmatmul.bf16.gmra.mxu0 %v4626
        %v4715 = vpop.f32.mrf.mxu0
        %v4716 = vadd.f32 0.0, %v4715
        %v4717 = vpop.f32.mrf.mxu0
        %v4718 = vadd.f32 0.0, %v4717
        %4719 = vmatmul.bf16.gmra.mxu0 %v4627
        %v4720 = vpop.f32.mrf.mxu0
        %v4721 = vadd.f32 0.0, %v4720
        %v4722 = vpop.f32.mrf.mxu0
        %v4723 = vadd.f32 0.0, %v4722
        %4724 = vdwg.mxu0
        %v4725 = vadd.f32 %v4556, %v4686
        %v4726 = vadd.f32 %v4557, %v4688
        %v4727 = vadd.f32 %v4558, %v4691
        %v4728 = vadd.f32 %v4559, %v4693
        %v4729 = vadd.f32 %v4560, %v4696
        %v4730 = vadd.f32 %v4561, %v4698
        %v4731 = vadd.f32 %v4562, %v4701
        %v4732 = vadd.f32 %v4563, %v4703
        %v4733 = vadd.f32 %v4564, %v4706
        %v4734 = vadd.f32 %v4565, %v4708
        %v4735 = vadd.f32 %v4566, %v4711
        %v4736 = vadd.f32 %v4567, %v4713
        %v4737 = vadd.f32 %v4568, %v4716
        %v4738 = vadd.f32 %v4569, %v4718
        %v4739 = vadd.f32 %v4570, %v4721
        %v4740 = vadd.f32 %v4571, %v4723
        %v4741 = vld [vmem:[%s2496 + $0x4] sm:$0xf]
        %v4742 = vld [vmem:[%s2496 + $0xc] sm:$0xf]
        %v4743 = vld [vmem:[%s2496 + $0x14] sm:$0xf]
        %v4744 = vld [vmem:[%s2496 + $0x1c] sm:$0xf]
        %v4745 = vld [vmem:[%s2496 + $0x24] sm:$0xf]
        %v4746 = vld [vmem:[%s2496 + $0x2c] sm:$0xf]
        %v4747 = vld [vmem:[%s2496 + $0x34] sm:$0xf]
        %v4748 = vld [vmem:[%s2496 + $0x3c] sm:$0xf]
        %v4749 = vld [vmem:[%s2496 + $0x44] sm:$0xf]
        %v4750 = vld [vmem:[%s2496 + $0x4c] sm:$0xf]
        %v4751 = vld [vmem:[%s2496 + $0x54] sm:$0xf]
        %v4752 = vld [vmem:[%s2496 + $0x5c] sm:$0xf]
        %v4753 = vld [vmem:[%s2496 + $0x64] sm:$0xf]
        %v4754 = vld [vmem:[%s2496 + $0x6c] sm:$0xf]
        %v4755 = vld [vmem:[%s2496 + $0x74] sm:$0xf]
        %v4756 = vld [vmem:[%s2496 + $0x7c] sm:$0xf]
        %v4757 = vld [vmem:[%s2514 + $0x4] sm:$0xf]
        %v4758 = vld [vmem:[%s2514 + $0xc] sm:$0xf]
        %v4759 = vld [vmem:[%s2514 + $0x14] sm:$0xf]
        %v4760 = vld [vmem:[%s2514 + $0x1c] sm:$0xf]
        %v4761 = vld [vmem:[%s2514 + $0x24] sm:$0xf]
        %v4762 = vld [vmem:[%s2514 + $0x2c] sm:$0xf]
        %v4763 = vld [vmem:[%s2514 + $0x34] sm:$0xf]
        %v4764 = vld [vmem:[%s2514 + $0x3c] sm:$0xf]
        %v4765 = vld [vmem:[%s2514 + $0x44] sm:$0xf]
        %v4766 = vld [vmem:[%s2514 + $0x4c] sm:$0xf]
        %v4767 = vld [vmem:[%s2514 + $0x54] sm:$0xf]
        %v4768 = vld [vmem:[%s2514 + $0x5c] sm:$0xf]
        %v4769 = vld [vmem:[%s2514 + $0x64] sm:$0xf]
        %v4770 = vld [vmem:[%s2514 + $0x6c] sm:$0xf]
        %v4771 = vld [vmem:[%s2514 + $0x74] sm:$0xf]
        %v4772 = vld [vmem:[%s2514 + $0x7c] sm:$0xf]
        %v4789 = vunpack.c.l.b16 %v4741
        %v4790 = vunpack.c.l.b16 %v4742
        %v4791 = vunpack.c.l.b16 %v4743
        %v4792 = vunpack.c.l.b16 %v4744
        %v4793 = vunpack.c.l.b16 %v4745
        %v4794 = vunpack.c.l.b16 %v4746
        %v4795 = vunpack.c.l.b16 %v4747
        %v4796 = vunpack.c.l.b16 %v4748
        %v4797 = vunpack.c.l.b16 %v4749
        %v4798 = vunpack.c.l.b16 %v4750
        %v4799 = vunpack.c.l.b16 %v4751
        %v4800 = vunpack.c.l.b16 %v4752
        %v4801 = vunpack.c.l.b16 %v4753
        %v4802 = vunpack.c.l.b16 %v4754
        %v4803 = vunpack.c.l.b16 %v4755
        %v4804 = vunpack.c.l.b16 %v4756
        %v4805 = vpack.c.b16 %v4790, %v4789
        %v4806 = vpack.c.b16 %v4792, %v4791
        %v4807 = vpack.c.b16 %v4794, %v4793
        %v4808 = vpack.c.b16 %v4796, %v4795
        %v4809 = vpack.c.b16 %v4798, %v4797
        %v4810 = vpack.c.b16 %v4800, %v4799
        %v4811 = vpack.c.b16 %v4802, %v4801
        %v4812 = vpack.c.b16 %v4804, %v4803
        %v4814 = vsel %vm2083, %v4805, 0
        %v4817 = vsel %vm2083, %v4806, 0
        %v4820 = vsel %vm2083, %v4807, 0
        %v4823 = vsel %vm2083, %v4808, 0
        %v4826 = vsel %vm2083, %v4809, 0
        %v4829 = vsel %vm2083, %v4810, 0
        %v4832 = vsel %vm2083, %v4811, 0
        %v4835 = vsel %vm2083, %v4812, 0
        %4837 = vmatpush.bf16.xpose.msra.mxu0 %v4835
        %4838 = vmatpush.bf16.xpose.msra.mxu0 %v4832
        %4839 = vmatpush.bf16.xpose.msra.mxu0 %v4829
        %4840 = vmatpush.bf16.xpose.msra.mxu0 %v4826
        %4841 = vmatpush.bf16.xpose.msra.mxu0 %v4823
        %4842 = vmatpush.bf16.xpose.msra.mxu0 %v4820
        %4843 = vmatpush.bf16.xpose.msra.mxu0 %v4817
        %4844 = vmatpush.bf16.xpose.msra.mxu0 %v4814
        %4845 = vmatmul.bf16.gmra.mxu0 %v4332
        %v4846 = vpop.f32.mrf.mxu0
        %v4847 = vadd.f32 0.0, %v4846
        %v4848 = vpop.f32.mrf.mxu0
        %v4849 = vadd.f32 0.0, %v4848
        %4850 = vmatmul.bf16.gmra.mxu0 %v4335
        %v4851 = vpop.f32.mrf.mxu0
        %v4852 = vadd.f32 0.0, %v4851
        %v4853 = vpop.f32.mrf.mxu0
        %v4854 = vadd.f32 0.0, %v4853
        %4855 = vmatmul.bf16.gmra.mxu0 %v4338
        %v4856 = vpop.f32.mrf.mxu0
        %v4857 = vadd.f32 0.0, %v4856
        %v4858 = vpop.f32.mrf.mxu0
        %v4859 = vadd.f32 0.0, %v4858
        %4860 = vmatmul.bf16.gmra.mxu0 %v4341
        %v4861 = vpop.f32.mrf.mxu0
        %v4862 = vadd.f32 0.0, %v4861
        %v4863 = vpop.f32.mrf.mxu0
        %v4864 = vadd.f32 0.0, %v4863
        %4865 = vmatmul.bf16.gmra.mxu0 %v4344
        %v4866 = vpop.f32.mrf.mxu0
        %v4867 = vadd.f32 0.0, %v4866
        %v4868 = vpop.f32.mrf.mxu0
        %v4869 = vadd.f32 0.0, %v4868
        %4870 = vmatmul.bf16.gmra.mxu0 %v4347
        %v4871 = vpop.f32.mrf.mxu0
        %v4872 = vadd.f32 0.0, %v4871
        %v4873 = vpop.f32.mrf.mxu0
        %v4874 = vadd.f32 0.0, %v4873
        %4875 = vmatmul.bf16.gmra.mxu0 %v4350
        %v4876 = vpop.f32.mrf.mxu0
        %v4877 = vadd.f32 0.0, %v4876
        %v4878 = vpop.f32.mrf.mxu0
        %v4879 = vadd.f32 0.0, %v4878
        %4880 = vmatmul.bf16.gmra.mxu0 %v4353
        %v4881 = vpop.f32.mrf.mxu0
        %v4882 = vadd.f32 0.0, %v4881
        %v4883 = vpop.f32.mrf.mxu0
        %v4884 = vadd.f32 0.0, %v4883
        %4885 = vdwg.mxu0
        %4886 = vmax.xlane.f32.xlu0 %v4847
        %v4887 = vpop.xlane.xlu0 %4886
        %4888 = vmax.xlane.f32.xlu0 %v4849
        %v4889 = vpop.xlane.xlu0 %4888
        %4890 = vmax.xlane.f32.xlu0 %v4852
        %v4891 = vpop.xlane.xlu0 %4890
        %4892 = vmax.xlane.f32.xlu0 %v4854
        %v4893 = vpop.xlane.xlu0 %4892
        %4894 = vmax.xlane.f32.xlu0 %v4857
        %v4895 = vpop.xlane.xlu0 %4894
        %4896 = vmax.xlane.f32.xlu0 %v4859
        %v4897 = vpop.xlane.xlu0 %4896
        %4898 = vmax.xlane.f32.xlu0 %v4862
        %v4899 = vpop.xlane.xlu0 %4898
        %4900 = vmax.xlane.f32.xlu0 %v4864
        %v4901 = vpop.xlane.xlu0 %4900
        %4902 = vmax.xlane.f32.xlu0 %v4867
        %v4903 = vpop.xlane.xlu0 %4902
        %4904 = vmax.xlane.f32.xlu0 %v4869
        %v4905 = vpop.xlane.xlu0 %4904
        %4906 = vmax.xlane.f32.xlu0 %v4872
        %v4907 = vpop.xlane.xlu0 %4906
        %4908 = vmax.xlane.f32.xlu0 %v4874
        %v4909 = vpop.xlane.xlu0 %4908
        %4910 = vmax.xlane.f32.xlu0 %v4877
        %v4911 = vpop.xlane.xlu0 %4910
        %4912 = vmax.xlane.f32.xlu0 %v4879
        %v4913 = vpop.xlane.xlu0 %4912
        %4914 = vmax.xlane.f32.xlu0 %v4882
        %v4915 = vpop.xlane.xlu0 %4914
        %4916 = vmax.xlane.f32.xlu0 %v4884
        %v4917 = vpop.xlane.xlu0 %4916
        %v4918 = vmax.f32 %v4429, %v4887
        %v4919 = vmax.f32 %v4431, %v4889
        %v4920 = vmax.f32 %v4433, %v4891
        %v4921 = vmax.f32 %v4435, %v4893
        %v4922 = vmax.f32 %v4437, %v4895
        %v4923 = vmax.f32 %v4439, %v4897
        %v4924 = vmax.f32 %v4441, %v4899
        %v4925 = vmax.f32 %v4443, %v4901
        %v4926 = vmax.f32 %v4445, %v4903
        %v4927 = vmax.f32 %v4447, %v4905
        %v4928 = vmax.f32 %v4449, %v4907
        %v4929 = vmax.f32 %v4451, %v4909
        %v4930 = vmax.f32 %v4453, %v4911
        %v4931 = vmax.f32 %v4455, %v4913
        %v4932 = vmax.f32 %v4457, %v4915
        %v4933 = vmax.f32 %v4459, %v4917
        %v4934 = vsub.f32 %v4429, %v4918
        %v4935 = vsub.f32 %v4431, %v4919
        %v4936 = vsub.f32 %v4433, %v4920
        %v4937 = vsub.f32 %v4435, %v4921
        %v4938 = vsub.f32 %v4437, %v4922
        %v4939 = vsub.f32 %v4439, %v4923
        %v4940 = vsub.f32 %v4441, %v4924
        %v4941 = vsub.f32 %v4443, %v4925
        %v4942 = vsub.f32 %v4445, %v4926
        %v4943 = vsub.f32 %v4447, %v4927
        %v4944 = vsub.f32 %v4449, %v4928
        %v4945 = vsub.f32 %v4451, %v4929
        %v4946 = vsub.f32 %v4453, %v4930
        %v4947 = vsub.f32 %v4455, %v4931
        %v4948 = vsub.f32 %v4457, %v4932
        %v4949 = vsub.f32 %v4459, %v4933
        %v4950 = vmul.f32 %v4934, 1.442695
        %v4951 = vpow.pop %v4950
        %v4952 = vmul.f32 %v4935, 1.442695
        %v4953 = vpow.pop %v4952
        %v4954 = vmul.f32 %v4936, 1.442695
        %v4955 = vpow.pop %v4954
        %v4956 = vmul.f32 %v4937, 1.442695
        %v4957 = vpow.pop %v4956
        %v4958 = vmul.f32 %v4938, 1.442695
        %v4959 = vpow.pop %v4958
        %v4960 = vmul.f32 %v4939, 1.442695
        %v4961 = vpow.pop %v4960
        %v4962 = vmul.f32 %v4940, 1.442695
        %v4963 = vpow.pop %v4962
        %v4964 = vmul.f32 %v4941, 1.442695
        %v4965 = vpow.pop %v4964
        %v4966 = vmul.f32 %v4942, 1.442695
        %v4967 = vpow.pop %v4966
        %v4968 = vmul.f32 %v4943, 1.442695
        %v4969 = vpow.pop %v4968
        %v4970 = vmul.f32 %v4944, 1.442695
        %v4971 = vpow.pop %v4970
        %v4972 = vmul.f32 %v4945, 1.442695
        %v4973 = vpow.pop %v4972
        %v4974 = vmul.f32 %v4946, 1.442695
        %v4975 = vpow.pop %v4974
        %v4976 = vmul.f32 %v4947, 1.442695
        %v4977 = vpow.pop %v4976
        %v4978 = vmul.f32 %v4948, 1.442695
        %v4979 = vpow.pop %v4978
        %v4980 = vmul.f32 %v4949, 1.442695
        %v4981 = vpow.pop %v4980
        %v4982 = vsub.f32 %v4847, %v4918
        %v4983 = vsub.f32 %v4849, %v4919
        %v4984 = vsub.f32 %v4852, %v4920
        %v4985 = vsub.f32 %v4854, %v4921
        %v4986 = vsub.f32 %v4857, %v4922
        %v4987 = vsub.f32 %v4859, %v4923
        %v4988 = vsub.f32 %v4862, %v4924
        %v4989 = vsub.f32 %v4864, %v4925
        %v4990 = vsub.f32 %v4867, %v4926
        %v4991 = vsub.f32 %v4869, %v4927
        %v4992 = vsub.f32 %v4872, %v4928
        %v4993 = vsub.f32 %v4874, %v4929
        %v4994 = vsub.f32 %v4877, %v4930
        %v4995 = vsub.f32 %v4879, %v4931
        %v4996 = vsub.f32 %v4882, %v4932
        %v4997 = vsub.f32 %v4884, %v4933
        %v4998 = vmul.f32 %v4982, 1.442695
        %v4999 = vpow.pop %v4998
        %v5000 = vmul.f32 %v4983, 1.442695
        %v5001 = vpow.pop %v5000
        %v5002 = vmul.f32 %v4984, 1.442695
        %v5003 = vpow.pop %v5002
        %v5004 = vmul.f32 %v4985, 1.442695
        %v5005 = vpow.pop %v5004
        %v5006 = vmul.f32 %v4986, 1.442695
        %v5007 = vpow.pop %v5006
        %v5008 = vmul.f32 %v4987, 1.442695
        %v5009 = vpow.pop %v5008
        %v5010 = vmul.f32 %v4988, 1.442695
        %v5011 = vpow.pop %v5010
        %v5012 = vmul.f32 %v4989, 1.442695
        %v5013 = vpow.pop %v5012
        %v5014 = vmul.f32 %v4990, 1.442695
        %v5015 = vpow.pop %v5014
        %v5016 = vmul.f32 %v4991, 1.442695
        %v5017 = vpow.pop %v5016
        %v5018 = vmul.f32 %v4992, 1.442695
        %v5019 = vpow.pop %v5018
        %v5020 = vmul.f32 %v4993, 1.442695
        %v5021 = vpow.pop %v5020
        %v5022 = vmul.f32 %v4994, 1.442695
        %v5023 = vpow.pop %v5022
        %v5024 = vmul.f32 %v4995, 1.442695
        %v5025 = vpow.pop %v5024
        %v5026 = vmul.f32 %v4996, 1.442695
        %v5027 = vpow.pop %v5026
        %v5028 = vmul.f32 %v4997, 1.442695
        %v5029 = vpow.pop %v5028
        %v5030 = vmul.f32 %v4951, %v4604
        %v5031 = vmul.f32 %v4953, %v4605
        %v5032 = vmul.f32 %v4955, %v4606
        %v5033 = vmul.f32 %v4957, %v4607
        %v5034 = vmul.f32 %v4959, %v4608
        %v5035 = vmul.f32 %v4961, %v4609
        %v5036 = vmul.f32 %v4963, %v4610
        %v5037 = vmul.f32 %v4965, %v4611
        %v5038 = vmul.f32 %v4967, %v4612
        %v5039 = vmul.f32 %v4969, %v4613
        %v5040 = vmul.f32 %v4971, %v4614
        %v5041 = vmul.f32 %v4973, %v4615
        %v5042 = vmul.f32 %v4975, %v4616
        %v5043 = vmul.f32 %v4977, %v4617
        %v5044 = vmul.f32 %v4979, %v4618
        %v5045 = vmul.f32 %v4981, %v4619
        %5046 = vadd.xlane.f32.xlu0 %v4999
        %v5047 = vpop.xlane.xlu0 %5046
        %5048 = vadd.xlane.f32.xlu0 %v5001
        %v5049 = vpop.xlane.xlu0 %5048
        %5050 = vadd.xlane.f32.xlu0 %v5003
        %v5051 = vpop.xlane.xlu0 %5050
        %5052 = vadd.xlane.f32.xlu0 %v5005
        %v5053 = vpop.xlane.xlu0 %5052
        %5054 = vadd.xlane.f32.xlu0 %v5007
        %v5055 = vpop.xlane.xlu0 %5054
        %5056 = vadd.xlane.f32.xlu0 %v5009
        %v5057 = vpop.xlane.xlu0 %5056
        %5058 = vadd.xlane.f32.xlu0 %v5011
        %v5059 = vpop.xlane.xlu0 %5058
        %5060 = vadd.xlane.f32.xlu0 %v5013
        %v5061 = vpop.xlane.xlu0 %5060
        %5062 = vadd.xlane.f32.xlu0 %v5015
        %v5063 = vpop.xlane.xlu0 %5062
        %5064 = vadd.xlane.f32.xlu0 %v5017
        %v5065 = vpop.xlane.xlu0 %5064
        %5066 = vadd.xlane.f32.xlu0 %v5019
        %v5067 = vpop.xlane.xlu0 %5066
        %5068 = vadd.xlane.f32.xlu0 %v5021
        %v5069 = vpop.xlane.xlu0 %5068
        %5070 = vadd.xlane.f32.xlu0 %v5023
        %v5071 = vpop.xlane.xlu0 %5070
        %5072 = vadd.xlane.f32.xlu0 %v5025
        %v5073 = vpop.xlane.xlu0 %5072
        %5074 = vadd.xlane.f32.xlu0 %v5027
        %v5075 = vpop.xlane.xlu0 %5074
        %5076 = vadd.xlane.f32.xlu0 %v5029
        %v5077 = vpop.xlane.xlu0 %5076
        %v5078 = vadd.f32 %v5030, %v5047
        %v5079 = vadd.f32 %v5031, %v5049
        %v5080 = vadd.f32 %v5032, %v5051
        %v5081 = vadd.f32 %v5033, %v5053
        %v5082 = vadd.f32 %v5034, %v5055
        %v5083 = vadd.f32 %v5035, %v5057
        %v5084 = vadd.f32 %v5036, %v5059
        %v5085 = vadd.f32 %v5037, %v5061
        %v5086 = vadd.f32 %v5038, %v5063
        %v5087 = vadd.f32 %v5039, %v5065
        %v5088 = vadd.f32 %v5040, %v5067
        %v5089 = vadd.f32 %v5041, %v5069
        %v5090 = vadd.f32 %v5042, %v5071
        %v5091 = vadd.f32 %v5043, %v5073
        %v5092 = vadd.f32 %v5044, %v5075
        %v5093 = vadd.f32 %v5045, %v5077
        %v5094 = vmul.f32 %v4951, %v4725
        %v5095 = vmul.f32 %v4953, %v4726
        %v5096 = vmul.f32 %v4955, %v4727
        %v5097 = vmul.f32 %v4957, %v4728
        %v5098 = vmul.f32 %v4959, %v4729
        %v5099 = vmul.f32 %v4961, %v4730
        %v5100 = vmul.f32 %v4963, %v4731
        %v5101 = vmul.f32 %v4965, %v4732
        %v5102 = vmul.f32 %v4967, %v4733
        %v5103 = vmul.f32 %v4969, %v4734
        %v5104 = vmul.f32 %v4971, %v4735
        %v5105 = vmul.f32 %v4973, %v4736
        %v5106 = vmul.f32 %v4975, %v4737
        %v5107 = vmul.f32 %v4977, %v4738
        %v5108 = vmul.f32 %v4979, %v4739
        %v5109 = vmul.f32 %v4981, %v4740
        %v5110 = vpack.c.bf16 %v5001, %v4999
        %v5111 = vpack.c.bf16 %v5005, %v5003
        %v5112 = vpack.c.bf16 %v5009, %v5007
        %v5113 = vpack.c.bf16 %v5013, %v5011
        %v5114 = vpack.c.bf16 %v5017, %v5015
        %v5115 = vpack.c.bf16 %v5021, %v5019
        %v5116 = vpack.c.bf16 %v5025, %v5023
        %v5117 = vpack.c.bf16 %v5029, %v5027
        %v5134 = vunpack.c.l.b16 %v4757
        %v5135 = vunpack.c.l.b16 %v4758
        %v5136 = vunpack.c.l.b16 %v4759
        %v5137 = vunpack.c.l.b16 %v4760
        %v5138 = vunpack.c.l.b16 %v4761
        %v5139 = vunpack.c.l.b16 %v4762
        %v5140 = vunpack.c.l.b16 %v4763
        %v5141 = vunpack.c.l.b16 %v4764
        %v5142 = vunpack.c.l.b16 %v4765
        %v5143 = vunpack.c.l.b16 %v4766
        %v5144 = vunpack.c.l.b16 %v4767
        %v5145 = vunpack.c.l.b16 %v4768
        %v5146 = vunpack.c.l.b16 %v4769
        %v5147 = vunpack.c.l.b16 %v4770
        %v5148 = vunpack.c.l.b16 %v4771
        %v5149 = vunpack.c.l.b16 %v4772
        %v5150 = vpack.c.b16 %v5135, %v5134
        %v5151 = vpack.c.b16 %v5137, %v5136
        %v5152 = vpack.c.b16 %v5139, %v5138
        %v5153 = vpack.c.b16 %v5141, %v5140
        %v5154 = vpack.c.b16 %v5143, %v5142
        %v5155 = vpack.c.b16 %v5145, %v5144
        %v5156 = vpack.c.b16 %v5147, %v5146
        %v5157 = vpack.c.b16 %v5149, %v5148
        %5166 = vmatpush.bf16.msra.mxu0 %v5157
        %5167 = vmatpush.bf16.msra.mxu0 %v5156
        %5168 = vmatpush.bf16.msra.mxu0 %v5155
        %5169 = vmatpush.bf16.msra.mxu0 %v5154
        %5170 = vmatpush.bf16.msra.mxu0 %v5153
        %5171 = vmatpush.bf16.msra.mxu0 %v5152
        %5172 = vmatpush.bf16.msra.mxu0 %v5151
        %5173 = vmatpush.bf16.msra.mxu0 %v5150
        %5174 = vmatmul.bf16.gmra.mxu0 %v5110
        %v5175 = vpop.f32.mrf.mxu0
        %v5176 = vadd.f32 0.0, %v5175
        %v5177 = vpop.f32.mrf.mxu0
        %v5178 = vadd.f32 0.0, %v5177
        %5179 = vmatmul.bf16.gmra.mxu0 %v5111
        %v5180 = vpop.f32.mrf.mxu0
        %v5181 = vadd.f32 0.0, %v5180
        %v5182 = vpop.f32.mrf.mxu0
        %v5183 = vadd.f32 0.0, %v5182
        %5184 = vmatmul.bf16.gmra.mxu0 %v5112
        %v5185 = vpop.f32.mrf.mxu0
        %v5186 = vadd.f32 0.0, %v5185
        %v5187 = vpop.f32.mrf.mxu0
        %v5188 = vadd.f32 0.0, %v5187
        %5189 = vmatmul.bf16.gmra.mxu0 %v5113
        %v5190 = vpop.f32.mrf.mxu0
        %v5191 = vadd.f32 0.0, %v5190
        %v5192 = vpop.f32.mrf.mxu0
        %v5193 = vadd.f32 0.0, %v5192
        %5194 = vmatmul.bf16.gmra.mxu0 %v5114
        %v5195 = vpop.f32.mrf.mxu0
        %v5196 = vadd.f32 0.0, %v5195
        %v5197 = vpop.f32.mrf.mxu0
        %v5198 = vadd.f32 0.0, %v5197
        %5199 = vmatmul.bf16.gmra.mxu0 %v5115
        %v5200 = vpop.f32.mrf.mxu0
        %v5201 = vadd.f32 0.0, %v5200
        %v5202 = vpop.f32.mrf.mxu0
        %v5203 = vadd.f32 0.0, %v5202
        %5204 = vmatmul.bf16.gmra.mxu0 %v5116
        %v5205 = vpop.f32.mrf.mxu0
        %v5206 = vadd.f32 0.0, %v5205
        %v5207 = vpop.f32.mrf.mxu0
        %v5208 = vadd.f32 0.0, %v5207
        %5209 = vmatmul.bf16.gmra.mxu0 %v5117
        %v5210 = vpop.f32.mrf.mxu0
        %v5211 = vadd.f32 0.0, %v5210
        %v5212 = vpop.f32.mrf.mxu0
        %v5213 = vadd.f32 0.0, %v5212
        %5214 = vdwg.mxu0
        %v5215 = vadd.f32 %v5094, %v5176
        %v5216 = vadd.f32 %v5095, %v5178
        %v5217 = vadd.f32 %v5096, %v5181
        %v5218 = vadd.f32 %v5097, %v5183
        %v5219 = vadd.f32 %v5098, %v5186
        %v5220 = vadd.f32 %v5099, %v5188
        %v5221 = vadd.f32 %v5100, %v5191
        %v5222 = vadd.f32 %v5101, %v5193
        %v5223 = vadd.f32 %v5102, %v5196
        %v5224 = vadd.f32 %v5103, %v5198
        %v5225 = vadd.f32 %v5104, %v5201
        %v5226 = vadd.f32 %v5105, %v5203
        %v5227 = vadd.f32 %v5106, %v5206
        %v5228 = vadd.f32 %v5107, %v5208
        %v5229 = vadd.f32 %v5108, %v5211
        %v5230 = vadd.f32 %v5109, %v5213
        %v5231 = vrcp.pop %v5078
        %v5232 = vrcp.pop %v5079
        %v5233 = vrcp.pop %v5080
        %v5234 = vrcp.pop %v5081
        %v5235 = vrcp.pop %v5082
        %v5236 = vrcp.pop %v5083
        %v5237 = vrcp.pop %v5084
        %v5238 = vrcp.pop %v5085
        %v5239 = vrcp.pop %v5086
        %v5240 = vrcp.pop %v5087
        %v5241 = vrcp.pop %v5088
        %v5242 = vrcp.pop %v5089
        %v5243 = vrcp.pop %v5090
        %v5244 = vrcp.pop %v5091
        %v5245 = vrcp.pop %v5092
        %v5246 = vrcp.pop %v5093
        %v5247 = vmul.f32 %v5215, %v5231
        %v5248 = vmul.f32 %v5216, %v5232
        %v5249 = vmul.f32 %v5217, %v5233
        %v5250 = vmul.f32 %v5218, %v5234
        %v5251 = vmul.f32 %v5219, %v5235
        %v5252 = vmul.f32 %v5220, %v5236
        %v5253 = vmul.f32 %v5221, %v5237
        %v5254 = vmul.f32 %v5222, %v5238
        %v5255 = vmul.f32 %v5223, %v5239
        %v5256 = vmul.f32 %v5224, %v5240
        %v5257 = vmul.f32 %v5225, %v5241
        %v5258 = vmul.f32 %v5226, %v5242
        %v5259 = vmul.f32 %v5227, %v5243
        %v5260 = vmul.f32 %v5228, %v5244
        %v5261 = vmul.f32 %v5229, %v5245
        %v5262 = vmul.f32 %v5230, %v5246
        %v5263 = vpack.c.bf16 %v5247, %v5247
        %v5264 = vpack.c.bf16 %v5248, %v5248
        %v5265 = vpack.c.bf16 %v5249, %v5249
        %v5266 = vpack.c.bf16 %v5250, %v5250
        %v5267 = vpack.c.bf16 %v5251, %v5251
        %v5268 = vpack.c.bf16 %v5252, %v5252
        %v5269 = vpack.c.bf16 %v5253, %v5253
        %v5270 = vpack.c.bf16 %v5254, %v5254
        %v5271 = vpack.c.bf16 %v5255, %v5255
        %v5272 = vpack.c.bf16 %v5256, %v5256
        %v5273 = vpack.c.bf16 %v5257, %v5257
        %v5274 = vpack.c.bf16 %v5258, %v5258
        %v5275 = vpack.c.bf16 %v5259, %v5259
        %v5276 = vpack.c.bf16 %v5260, %v5260
        %v5277 = vpack.c.bf16 %v5261, %v5261
        %v5278 = vpack.c.bf16 %v5262, %v5262
        %5279 = vst.msk [vmem:[#allocation4 + $0x4] sm:$0xf] %vm3037, %v5263
        %5280 = vst.msk [vmem:[#allocation4 + $0xc] sm:$0xf] %vm3037, %v5264
        %5281 = vst.msk [vmem:[#allocation4 + $0x14] sm:$0xf] %vm3037, %v5265
        %5282 = vst.msk [vmem:[#allocation4 + $0x1c] sm:$0xf] %vm3037, %v5266
        %5283 = vst.msk [vmem:[#allocation4 + $0x24] sm:$0xf] %vm3037, %v5267
        %5284 = vst.msk [vmem:[#allocation4 + $0x2c] sm:$0xf] %vm3037, %v5268
        %5285 = vst.msk [vmem:[#allocation4 + $0x34] sm:$0xf] %vm3037, %v5269
        %5286 = vst.msk [vmem:[#allocation4 + $0x3c] sm:$0xf] %vm3037, %v5270
        %5287 = vst.msk [vmem:[#allocation4 + $0x44] sm:$0xf] %vm3037, %v5271
        %5288 = vst.msk [vmem:[#allocation4 + $0x4c] sm:$0xf] %vm3037, %v5272
        %5289 = vst.msk [vmem:[#allocation4 + $0x54] sm:$0xf] %vm3037, %v5273
        %5290 = vst.msk [vmem:[#allocation4 + $0x5c] sm:$0xf] %vm3037, %v5274
        %5291 = vst.msk [vmem:[#allocation4 + $0x64] sm:$0xf] %vm3037, %v5275
        %5292 = vst.msk [vmem:[#allocation4 + $0x6c] sm:$0xf] %vm3037, %v5276
        %5293 = vst.msk [vmem:[#allocation4 + $0x74] sm:$0xf] %vm3037, %v5277
        %5294 = vst.msk [vmem:[#allocation4 + $0x7c] sm:$0xf] %vm3037, %v5278
        %v5295 = vld [vmem:[%s1968 + $0x4] sm:$0xf]
        %v5296 = vld [vmem:[%s1968 + $0xc] sm:$0xf]
        %v5297 = vld [vmem:[%s1968 + $0x14] sm:$0xf]
        %v5298 = vld [vmem:[%s1968 + $0x1c] sm:$0xf]
        %v5299 = vld [vmem:[%s1968 + $0x24] sm:$0xf]
        %v5300 = vld [vmem:[%s1968 + $0x2c] sm:$0xf]
        %v5301 = vld [vmem:[%s1968 + $0x34] sm:$0xf]
        %v5302 = vld [vmem:[%s1968 + $0x3c] sm:$0xf]
        %v5303 = vld [vmem:[%s1968 + $0x44] sm:$0xf]
        %v5304 = vld [vmem:[%s1968 + $0x4c] sm:$0xf]
        %v5305 = vld [vmem:[%s1968 + $0x54] sm:$0xf]
        %v5306 = vld [vmem:[%s1968 + $0x5c] sm:$0xf]
        %v5307 = vld [vmem:[%s1968 + $0x64] sm:$0xf]
        %v5308 = vld [vmem:[%s1968 + $0x6c] sm:$0xf]
        %v5309 = vld [vmem:[%s1968 + $0x74] sm:$0xf]
        %v5310 = vld [vmem:[%s1968 + $0x7c] sm:$0xf]
        %v5311 = vld [vmem:[%s1986 + $0x4] sm:$0xf]
        %v5312 = vld [vmem:[%s1986 + $0xc] sm:$0xf]
        %v5313 = vld [vmem:[%s1986 + $0x14] sm:$0xf]
        %v5314 = vld [vmem:[%s1986 + $0x1c] sm:$0xf]
        %v5315 = vld [vmem:[%s1986 + $0x24] sm:$0xf]
        %v5316 = vld [vmem:[%s1986 + $0x2c] sm:$0xf]
        %v5317 = vld [vmem:[%s1986 + $0x34] sm:$0xf]
        %v5318 = vld [vmem:[%s1986 + $0x3c] sm:$0xf]
        %v5319 = vld [vmem:[%s1986 + $0x44] sm:$0xf]
        %v5320 = vld [vmem:[%s1986 + $0x4c] sm:$0xf]
        %v5321 = vld [vmem:[%s1986 + $0x54] sm:$0xf]
        %v5322 = vld [vmem:[%s1986 + $0x5c] sm:$0xf]
        %v5323 = vld [vmem:[%s1986 + $0x64] sm:$0xf]
        %v5324 = vld [vmem:[%s1986 + $0x6c] sm:$0xf]
        %v5325 = vld [vmem:[%s1986 + $0x74] sm:$0xf]
        %v5326 = vld [vmem:[%s1986 + $0x7c] sm:$0xf]
        %5327 = vrot.lane.b32.xlu0 %v4283, 64
        %v5328 = vpop.permute.xlu0 %5327
        %5329 = vrot.lane.b32.xlu0 %v4284, 64
        %v5330 = vpop.permute.xlu0 %5329
        %5331 = vrot.lane.b32.xlu0 %v4285, 64
        %v5332 = vpop.permute.xlu0 %5331
        %5333 = vrot.lane.b32.xlu0 %v4286, 64
        %v5334 = vpop.permute.xlu0 %5333
        %5335 = vrot.lane.b32.xlu0 %v4287, 64
        %v5336 = vpop.permute.xlu0 %5335
        %5337 = vrot.lane.b32.xlu0 %v4288, 64
        %v5338 = vpop.permute.xlu0 %5337
        %5339 = vrot.lane.b32.xlu0 %v4289, 64
        %v5340 = vpop.permute.xlu0 %5339
        %5341 = vrot.lane.b32.xlu0 %v4290, 64
        %v5342 = vpop.permute.xlu0 %5341
        %v5359 = vunpack.c.l.b16 %v5295
        %v5360 = vunpack.c.l.b16 %v5296
        %v5361 = vunpack.c.l.b16 %v5297
        %v5362 = vunpack.c.l.b16 %v5298
        %v5363 = vunpack.c.l.b16 %v5299
        %v5364 = vunpack.c.l.b16 %v5300
        %v5365 = vunpack.c.l.b16 %v5301
        %v5366 = vunpack.c.l.b16 %v5302
        %v5367 = vunpack.c.l.b16 %v5303
        %v5368 = vunpack.c.l.b16 %v5304
        %v5369 = vunpack.c.l.b16 %v5305
        %v5370 = vunpack.c.l.b16 %v5306
        %v5371 = vunpack.c.l.b16 %v5307
        %v5372 = vunpack.c.l.b16 %v5308
        %v5373 = vunpack.c.l.b16 %v5309
        %v5374 = vunpack.c.l.b16 %v5310
        %v5375 = vpack.c.b16 %v5360, %v5359
        %v5376 = vpack.c.b16 %v5362, %v5361
        %v5377 = vpack.c.b16 %v5364, %v5363
        %v5378 = vpack.c.b16 %v5366, %v5365
        %v5379 = vpack.c.b16 %v5368, %v5367
        %v5380 = vpack.c.b16 %v5370, %v5369
        %v5381 = vpack.c.b16 %v5372, %v5371
        %v5382 = vpack.c.b16 %v5374, %v5373
        %5383 = vrot.lane.b32.xlu0 %v5375, 64
        %v5384 = vpop.permute.xlu0 %5383
        %5385 = vrot.lane.b32.xlu0 %v5376, 64
        %v5386 = vpop.permute.xlu0 %5385
        %5387 = vrot.lane.b32.xlu0 %v5377, 64
        %v5388 = vpop.permute.xlu0 %5387
        %5389 = vrot.lane.b32.xlu0 %v5378, 64
        %v5390 = vpop.permute.xlu0 %5389
        %5391 = vrot.lane.b32.xlu0 %v5379, 64
        %v5392 = vpop.permute.xlu0 %5391
        %5393 = vrot.lane.b32.xlu0 %v5380, 64
        %v5394 = vpop.permute.xlu0 %5393
        %5395 = vrot.lane.b32.xlu0 %v5381, 64
        %v5396 = vpop.permute.xlu0 %5395
        %5397 = vrot.lane.b32.xlu0 %v5382, 64
        %v5398 = vpop.permute.xlu0 %5397
        %v5400 = vsel %vm2083, %v5328, 0
        %v5403 = vsel %vm2083, %v5330, 0
        %v5406 = vsel %vm2083, %v5332, 0
        %v5409 = vsel %vm2083, %v5334, 0
        %v5412 = vsel %vm2083, %v5336, 0
        %v5415 = vsel %vm2083, %v5338, 0
        %v5418 = vsel %vm2083, %v5340, 0
        %v5421 = vsel %vm2083, %v5342, 0
        %v5424 = vsel %vm2083, %v5384, 0
        %v5427 = vsel %vm2083, %v5386, 0
        %v5430 = vsel %vm2083, %v5388, 0
        %v5433 = vsel %vm2083, %v5390, 0
        %v5436 = vsel %vm2083, %v5392, 0
        %v5439 = vsel %vm2083, %v5394, 0
        %v5442 = vsel %vm2083, %v5396, 0
        %v5445 = vsel %vm2083, %v5398, 0
        %5447 = vmatpush.bf16.xpose.msra.mxu0 %v5445
        %5448 = vmatpush.bf16.xpose.msra.mxu0 %v5442
        %5449 = vmatpush.bf16.xpose.msra.mxu0 %v5439
        %5450 = vmatpush.bf16.xpose.msra.mxu0 %v5436
        %5451 = vmatpush.bf16.xpose.msra.mxu0 %v5433
        %5452 = vmatpush.bf16.xpose.msra.mxu0 %v5430
        %5453 = vmatpush.bf16.xpose.msra.mxu0 %v5427
        %5454 = vmatpush.bf16.xpose.msra.mxu0 %v5424
        %5455 = vmatmul.bf16.gmra.mxu0 %v5400
        %v5456 = vpop.f32.mrf.mxu0
        %v5457 = vadd.f32 0.0, %v5456
        %v5458 = vpop.f32.mrf.mxu0
        %v5459 = vadd.f32 0.0, %v5458
        %5460 = vmatmul.bf16.gmra.mxu0 %v5403
        %v5461 = vpop.f32.mrf.mxu0
        %v5462 = vadd.f32 0.0, %v5461
        %v5463 = vpop.f32.mrf.mxu0
        %v5464 = vadd.f32 0.0, %v5463
        %5465 = vmatmul.bf16.gmra.mxu0 %v5406
        %v5466 = vpop.f32.mrf.mxu0
        %v5467 = vadd.f32 0.0, %v5466
        %v5468 = vpop.f32.mrf.mxu0
        %v5469 = vadd.f32 0.0, %v5468
        %5470 = vmatmul.bf16.gmra.mxu0 %v5409
        %v5471 = vpop.f32.mrf.mxu0
        %v5472 = vadd.f32 0.0, %v5471
        %v5473 = vpop.f32.mrf.mxu0
        %v5474 = vadd.f32 0.0, %v5473
        %5475 = vmatmul.bf16.gmra.mxu0 %v5412
        %v5476 = vpop.f32.mrf.mxu0
        %v5477 = vadd.f32 0.0, %v5476
        %v5478 = vpop.f32.mrf.mxu0
        %v5479 = vadd.f32 0.0, %v5478
        %5480 = vmatmul.bf16.gmra.mxu0 %v5415
        %v5481 = vpop.f32.mrf.mxu0
        %v5482 = vadd.f32 0.0, %v5481
        %v5483 = vpop.f32.mrf.mxu0
        %v5484 = vadd.f32 0.0, %v5483
        %5485 = vmatmul.bf16.gmra.mxu0 %v5418
        %v5486 = vpop.f32.mrf.mxu0
        %v5487 = vadd.f32 0.0, %v5486
        %v5488 = vpop.f32.mrf.mxu0
        %v5489 = vadd.f32 0.0, %v5488
        %5490 = vmatmul.bf16.gmra.mxu0 %v5421
        %v5491 = vpop.f32.mrf.mxu0
        %v5492 = vadd.f32 0.0, %v5491
        %v5493 = vpop.f32.mrf.mxu0
        %v5494 = vadd.f32 0.0, %v5493
        %5495 = vdwg.mxu0
        %5496 = vmax.xlane.f32.xlu0 %v5457
        %v5497 = vpop.xlane.xlu0 %5496
        %5498 = vmax.xlane.f32.xlu0 %v5459
        %v5499 = vpop.xlane.xlu0 %5498
        %5500 = vmax.xlane.f32.xlu0 %v5462
        %v5501 = vpop.xlane.xlu0 %5500
        %5502 = vmax.xlane.f32.xlu0 %v5464
        %v5503 = vpop.xlane.xlu0 %5502
        %5504 = vmax.xlane.f32.xlu0 %v5467
        %v5505 = vpop.xlane.xlu0 %5504
        %5506 = vmax.xlane.f32.xlu0 %v5469
        %v5507 = vpop.xlane.xlu0 %5506
        %5508 = vmax.xlane.f32.xlu0 %v5472
        %v5509 = vpop.xlane.xlu0 %5508
        %5510 = vmax.xlane.f32.xlu0 %v5474
        %v5511 = vpop.xlane.xlu0 %5510
        %5512 = vmax.xlane.f32.xlu0 %v5477
        %v5513 = vpop.xlane.xlu0 %5512
        %5514 = vmax.xlane.f32.xlu0 %v5479
        %v5515 = vpop.xlane.xlu0 %5514
        %5516 = vmax.xlane.f32.xlu0 %v5482
        %v5517 = vpop.xlane.xlu0 %5516
        %5518 = vmax.xlane.f32.xlu0 %v5484
        %v5519 = vpop.xlane.xlu0 %5518
        %5520 = vmax.xlane.f32.xlu0 %v5487
        %v5521 = vpop.xlane.xlu0 %5520
        %5522 = vmax.xlane.f32.xlu0 %v5489
        %v5523 = vpop.xlane.xlu0 %5522
        %5524 = vmax.xlane.f32.xlu0 %v5492
        %v5525 = vpop.xlane.xlu0 %5524
        %5526 = vmax.xlane.f32.xlu0 %v5494
        %v5527 = vpop.xlane.xlu0 %5526
        %v5528 = vsub.f32 -inf, %v5497
        %v5529 = vsub.f32 -inf, %v5499
        %v5530 = vsub.f32 -inf, %v5501
        %v5531 = vsub.f32 -inf, %v5503
        %v5532 = vsub.f32 -inf, %v5505
        %v5533 = vsub.f32 -inf, %v5507
        %v5534 = vsub.f32 -inf, %v5509
        %v5535 = vsub.f32 -inf, %v5511
        %v5536 = vsub.f32 -inf, %v5513
        %v5537 = vsub.f32 -inf, %v5515
        %v5538 = vsub.f32 -inf, %v5517
        %v5539 = vsub.f32 -inf, %v5519
        %v5540 = vsub.f32 -inf, %v5521
        %v5541 = vsub.f32 -inf, %v5523
        %v5542 = vsub.f32 -inf, %v5525
        %v5543 = vsub.f32 -inf, %v5527
        %v5544 = vmul.f32 %v5528, 1.442695
        %v5545 = vpow.pop %v5544
        %v5546 = vmul.f32 %v5529, 1.442695
        %v5547 = vpow.pop %v5546
        %v5548 = vmul.f32 %v5530, 1.442695
        %v5549 = vpow.pop %v5548
        %v5550 = vmul.f32 %v5531, 1.442695
        %v5551 = vpow.pop %v5550
        %v5552 = vmul.f32 %v5532, 1.442695
        %v5553 = vpow.pop %v5552
        %v5554 = vmul.f32 %v5533, 1.442695
        %v5555 = vpow.pop %v5554
        %v5556 = vmul.f32 %v5534, 1.442695
        %v5557 = vpow.pop %v5556
        %v5558 = vmul.f32 %v5535, 1.442695
        %v5559 = vpow.pop %v5558
        %v5560 = vmul.f32 %v5536, 1.442695
        %v5561 = vpow.pop %v5560
        %v5562 = vmul.f32 %v5537, 1.442695
        %v5563 = vpow.pop %v5562
        %v5564 = vmul.f32 %v5538, 1.442695
        %v5565 = vpow.pop %v5564
        %v5566 = vmul.f32 %v5539, 1.442695
        %v5567 = vpow.pop %v5566
        %v5568 = vmul.f32 %v5540, 1.442695
        %v5569 = vpow.pop %v5568
        %v5570 = vmul.f32 %v5541, 1.442695
        %v5571 = vpow.pop %v5570
        %v5572 = vmul.f32 %v5542, 1.442695
        %v5573 = vpow.pop %v5572
        %v5574 = vmul.f32 %v5543, 1.442695
        %v5575 = vpow.pop %v5574
        %v5576 = vsub.f32 %v5457, %v5497
        %v5577 = vsub.f32 %v5459, %v5499
        %v5578 = vsub.f32 %v5462, %v5501
        %v5579 = vsub.f32 %v5464, %v5503
        %v5580 = vsub.f32 %v5467, %v5505
        %v5581 = vsub.f32 %v5469, %v5507
        %v5582 = vsub.f32 %v5472, %v5509
        %v5583 = vsub.f32 %v5474, %v5511
        %v5584 = vsub.f32 %v5477, %v5513
        %v5585 = vsub.f32 %v5479, %v5515
        %v5586 = vsub.f32 %v5482, %v5517
        %v5587 = vsub.f32 %v5484, %v5519
        %v5588 = vsub.f32 %v5487, %v5521
        %v5589 = vsub.f32 %v5489, %v5523
        %v5590 = vsub.f32 %v5492, %v5525
        %v5591 = vsub.f32 %v5494, %v5527
        %v5592 = vmul.f32 %v5576, 1.442695
        %v5593 = vpow.pop %v5592
        %v5594 = vmul.f32 %v5577, 1.442695
        %v5595 = vpow.pop %v5594
        %v5596 = vmul.f32 %v5578, 1.442695
        %v5597 = vpow.pop %v5596
        %v5598 = vmul.f32 %v5579, 1.442695
        %v5599 = vpow.pop %v5598
        %v5600 = vmul.f32 %v5580, 1.442695
        %v5601 = vpow.pop %v5600
        %v5602 = vmul.f32 %v5581, 1.442695
        %v5603 = vpow.pop %v5602
        %v5604 = vmul.f32 %v5582, 1.442695
        %v5605 = vpow.pop %v5604
        %v5606 = vmul.f32 %v5583, 1.442695
        %v5607 = vpow.pop %v5606
        %v5608 = vmul.f32 %v5584, 1.442695
        %v5609 = vpow.pop %v5608
        %v5610 = vmul.f32 %v5585, 1.442695
        %v5611 = vpow.pop %v5610
        %v5612 = vmul.f32 %v5586, 1.442695
        %v5613 = vpow.pop %v5612
        %v5614 = vmul.f32 %v5587, 1.442695
        %v5615 = vpow.pop %v5614
        %v5616 = vmul.f32 %v5588, 1.442695
        %v5617 = vpow.pop %v5616
        %v5618 = vmul.f32 %v5589, 1.442695
        %v5619 = vpow.pop %v5618
        %v5620 = vmul.f32 %v5590, 1.442695
        %v5621 = vpow.pop %v5620
        %v5622 = vmul.f32 %v5591, 1.442695
        %v5623 = vpow.pop %v5622
        %v5624 = vmul.f32 %v5545, 0.0
        %v5625 = vmul.f32 %v5547, 0.0
        %v5626 = vmul.f32 %v5549, 0.0
        %v5627 = vmul.f32 %v5551, 0.0
        %v5628 = vmul.f32 %v5553, 0.0
        %v5629 = vmul.f32 %v5555, 0.0
        %v5630 = vmul.f32 %v5557, 0.0
        %v5631 = vmul.f32 %v5559, 0.0
        %v5632 = vmul.f32 %v5561, 0.0
        %v5633 = vmul.f32 %v5563, 0.0
        %v5634 = vmul.f32 %v5565, 0.0
        %v5635 = vmul.f32 %v5567, 0.0
        %v5636 = vmul.f32 %v5569, 0.0
        %v5637 = vmul.f32 %v5571, 0.0
        %v5638 = vmul.f32 %v5573, 0.0
        %v5639 = vmul.f32 %v5575, 0.0
        %5640 = vadd.xlane.f32.xlu0 %v5593
        %v5641 = vpop.xlane.xlu0 %5640
        %5642 = vadd.xlane.f32.xlu0 %v5595
        %v5643 = vpop.xlane.xlu0 %5642
        %5644 = vadd.xlane.f32.xlu0 %v5597
        %v5645 = vpop.xlane.xlu0 %5644
        %5646 = vadd.xlane.f32.xlu0 %v5599
        %v5647 = vpop.xlane.xlu0 %5646
        %5648 = vadd.xlane.f32.xlu0 %v5601
        %v5649 = vpop.xlane.xlu0 %5648
        %5650 = vadd.xlane.f32.xlu0 %v5603
        %v5651 = vpop.xlane.xlu0 %5650
        %5652 = vadd.xlane.f32.xlu0 %v5605
        %v5653 = vpop.xlane.xlu0 %5652
        %5654 = vadd.xlane.f32.xlu0 %v5607
        %v5655 = vpop.xlane.xlu0 %5654
        %5656 = vadd.xlane.f32.xlu0 %v5609
        %v5657 = vpop.xlane.xlu0 %5656
        %5658 = vadd.xlane.f32.xlu0 %v5611
        %v5659 = vpop.xlane.xlu0 %5658
        %5660 = vadd.xlane.f32.xlu0 %v5613
        %v5661 = vpop.xlane.xlu0 %5660
        %5662 = vadd.xlane.f32.xlu0 %v5615
        %v5663 = vpop.xlane.xlu0 %5662
        %5664 = vadd.xlane.f32.xlu0 %v5617
        %v5665 = vpop.xlane.xlu0 %5664
        %5666 = vadd.xlane.f32.xlu0 %v5619
        %v5667 = vpop.xlane.xlu0 %5666
        %5668 = vadd.xlane.f32.xlu0 %v5621
        %v5669 = vpop.xlane.xlu0 %5668
        %5670 = vadd.xlane.f32.xlu0 %v5623
        %v5671 = vpop.xlane.xlu0 %5670
        %v5672 = vadd.f32 %v5624, %v5641
        %v5673 = vadd.f32 %v5625, %v5643
        %v5674 = vadd.f32 %v5626, %v5645
        %v5675 = vadd.f32 %v5627, %v5647
        %v5676 = vadd.f32 %v5628, %v5649
        %v5677 = vadd.f32 %v5629, %v5651
        %v5678 = vadd.f32 %v5630, %v5653
        %v5679 = vadd.f32 %v5631, %v5655
        %v5680 = vadd.f32 %v5632, %v5657
        %v5681 = vadd.f32 %v5633, %v5659
        %v5682 = vadd.f32 %v5634, %v5661
        %v5683 = vadd.f32 %v5635, %v5663
        %v5684 = vadd.f32 %v5636, %v5665
        %v5685 = vadd.f32 %v5637, %v5667
        %v5686 = vadd.f32 %v5638, %v5669
        %v5687 = vadd.f32 %v5639, %v5671
        %v5688 = vpack.c.bf16 %v5595, %v5593
        %v5689 = vpack.c.bf16 %v5599, %v5597
        %v5690 = vpack.c.bf16 %v5603, %v5601
        %v5691 = vpack.c.bf16 %v5607, %v5605
        %v5692 = vpack.c.bf16 %v5611, %v5609
        %v5693 = vpack.c.bf16 %v5615, %v5613
        %v5694 = vpack.c.bf16 %v5619, %v5617
        %v5695 = vpack.c.bf16 %v5623, %v5621
        %v5712 = vunpack.c.l.b16 %v5311
        %v5713 = vunpack.c.l.b16 %v5312
        %v5714 = vunpack.c.l.b16 %v5313
        %v5715 = vunpack.c.l.b16 %v5314
        %v5716 = vunpack.c.l.b16 %v5315
        %v5717 = vunpack.c.l.b16 %v5316
        %v5718 = vunpack.c.l.b16 %v5317
        %v5719 = vunpack.c.l.b16 %v5318
        %v5720 = vunpack.c.l.b16 %v5319
        %v5721 = vunpack.c.l.b16 %v5320
        %v5722 = vunpack.c.l.b16 %v5321
        %v5723 = vunpack.c.l.b16 %v5322
        %v5724 = vunpack.c.l.b16 %v5323
        %v5725 = vunpack.c.l.b16 %v5324
        %v5726 = vunpack.c.l.b16 %v5325
        %v5727 = vunpack.c.l.b16 %v5326
        %v5728 = vpack.c.b16 %v5713, %v5712
        %v5729 = vpack.c.b16 %v5715, %v5714
        %v5730 = vpack.c.b16 %v5717, %v5716
        %v5731 = vpack.c.b16 %v5719, %v5718
        %v5732 = vpack.c.b16 %v5721, %v5720
        %v5733 = vpack.c.b16 %v5723, %v5722
        %v5734 = vpack.c.b16 %v5725, %v5724
        %v5735 = vpack.c.b16 %v5727, %v5726
        %5736 = vrot.lane.b32.xlu0 %v5728, 64
        %v5737 = vpop.permute.xlu0 %5736
        %5738 = vrot.lane.b32.xlu0 %v5729, 64
        %v5739 = vpop.permute.xlu0 %5738
        %5740 = vrot.lane.b32.xlu0 %v5730, 64
        %v5741 = vpop.permute.xlu0 %5740
        %5742 = vrot.lane.b32.xlu0 %v5731, 64
        %v5743 = vpop.permute.xlu0 %5742
        %5744 = vrot.lane.b32.xlu0 %v5732, 64
        %v5745 = vpop.permute.xlu0 %5744
        %5746 = vrot.lane.b32.xlu0 %v5733, 64
        %v5747 = vpop.permute.xlu0 %5746
        %5748 = vrot.lane.b32.xlu0 %v5734, 64
        %v5749 = vpop.permute.xlu0 %5748
        %5750 = vrot.lane.b32.xlu0 %v5735, 64
        %v5751 = vpop.permute.xlu0 %5750
        %5760 = vmatpush.bf16.msra.mxu0 %v5751
        %5761 = vmatpush.bf16.msra.mxu0 %v5749
        %5762 = vmatpush.bf16.msra.mxu0 %v5747
        %5763 = vmatpush.bf16.msra.mxu0 %v5745
        %5764 = vmatpush.bf16.msra.mxu0 %v5743
        %5765 = vmatpush.bf16.msra.mxu0 %v5741
        %5766 = vmatpush.bf16.msra.mxu0 %v5739
        %5767 = vmatpush.bf16.msra.mxu0 %v5737
        %5768 = vmatmul.bf16.gmra.mxu0 %v5688
        %v5769 = vpop.f32.mrf.mxu0
        %v5770 = vadd.f32 0.0, %v5769
        %v5771 = vpop.f32.mrf.mxu0
        %v5772 = vadd.f32 0.0, %v5771
        %5773 = vmatmul.bf16.gmra.mxu0 %v5689
        %v5774 = vpop.f32.mrf.mxu0
        %v5775 = vadd.f32 0.0, %v5774
        %v5776 = vpop.f32.mrf.mxu0
        %v5777 = vadd.f32 0.0, %v5776
        %5778 = vmatmul.bf16.gmra.mxu0 %v5690
        %v5779 = vpop.f32.mrf.mxu0
        %v5780 = vadd.f32 0.0, %v5779
        %v5781 = vpop.f32.mrf.mxu0
        %v5782 = vadd.f32 0.0, %v5781
        %5783 = vmatmul.bf16.gmra.mxu0 %v5691
        %v5784 = vpop.f32.mrf.mxu0
        %v5785 = vadd.f32 0.0, %v5784
        %v5786 = vpop.f32.mrf.mxu0
        %v5787 = vadd.f32 0.0, %v5786
        %5788 = vmatmul.bf16.gmra.mxu0 %v5692
        %v5789 = vpop.f32.mrf.mxu0
        %v5790 = vadd.f32 0.0, %v5789
        %v5791 = vpop.f32.mrf.mxu0
        %v5792 = vadd.f32 0.0, %v5791
        %5793 = vmatmul.bf16.gmra.mxu0 %v5693
        %v5794 = vpop.f32.mrf.mxu0
        %v5795 = vadd.f32 0.0, %v5794
        %v5796 = vpop.f32.mrf.mxu0
        %v5797 = vadd.f32 0.0, %v5796
        %5798 = vmatmul.bf16.gmra.mxu0 %v5694
        %v5799 = vpop.f32.mrf.mxu0
        %v5800 = vadd.f32 0.0, %v5799
        %v5801 = vpop.f32.mrf.mxu0
        %v5802 = vadd.f32 0.0, %v5801
        %5803 = vmatmul.bf16.gmra.mxu0 %v5695
        %v5804 = vpop.f32.mrf.mxu0
        %v5805 = vadd.f32 0.0, %v5804
        %v5806 = vpop.f32.mrf.mxu0
        %v5807 = vadd.f32 0.0, %v5806
        %5808 = vdwg.mxu0
        %v5809 = vadd.f32 %v5624, %v5770
        %v5810 = vadd.f32 %v5625, %v5772
        %v5811 = vadd.f32 %v5626, %v5775
        %v5812 = vadd.f32 %v5627, %v5777
        %v5813 = vadd.f32 %v5628, %v5780
        %v5814 = vadd.f32 %v5629, %v5782
        %v5815 = vadd.f32 %v5630, %v5785
        %v5816 = vadd.f32 %v5631, %v5787
        %v5817 = vadd.f32 %v5632, %v5790
        %v5818 = vadd.f32 %v5633, %v5792
        %v5819 = vadd.f32 %v5634, %v5795
        %v5820 = vadd.f32 %v5635, %v5797
        %v5821 = vadd.f32 %v5636, %v5800
        %v5822 = vadd.f32 %v5637, %v5802
        %v5823 = vadd.f32 %v5638, %v5805
        %v5824 = vadd.f32 %v5639, %v5807
        %v5825 = vld [vmem:[%s2496 + $0x4] sm:$0xf]
        %v5826 = vld [vmem:[%s2496 + $0xc] sm:$0xf]
        %v5827 = vld [vmem:[%s2496 + $0x14] sm:$0xf]
        %v5828 = vld [vmem:[%s2496 + $0x1c] sm:$0xf]
        %v5829 = vld [vmem:[%s2496 + $0x24] sm:$0xf]
        %v5830 = vld [vmem:[%s2496 + $0x2c] sm:$0xf]
        %v5831 = vld [vmem:[%s2496 + $0x34] sm:$0xf]
        %v5832 = vld [vmem:[%s2496 + $0x3c] sm:$0xf]
        %v5833 = vld [vmem:[%s2496 + $0x44] sm:$0xf]
        %v5834 = vld [vmem:[%s2496 + $0x4c] sm:$0xf]
        %v5835 = vld [vmem:[%s2496 + $0x54] sm:$0xf]
        %v5836 = vld [vmem:[%s2496 + $0x5c] sm:$0xf]
        %v5837 = vld [vmem:[%s2496 + $0x64] sm:$0xf]
        %v5838 = vld [vmem:[%s2496 + $0x6c] sm:$0xf]
        %v5839 = vld [vmem:[%s2496 + $0x74] sm:$0xf]
        %v5840 = vld [vmem:[%s2496 + $0x7c] sm:$0xf]
        %v5841 = vld [vmem:[%s2514 + $0x4] sm:$0xf]
        %v5842 = vld [vmem:[%s2514 + $0xc] sm:$0xf]
        %v5843 = vld [vmem:[%s2514 + $0x14] sm:$0xf]
        %v5844 = vld [vmem:[%s2514 + $0x1c] sm:$0xf]
        %v5845 = vld [vmem:[%s2514 + $0x24] sm:$0xf]
        %v5846 = vld [vmem:[%s2514 + $0x2c] sm:$0xf]
        %v5847 = vld [vmem:[%s2514 + $0x34] sm:$0xf]
        %v5848 = vld [vmem:[%s2514 + $0x3c] sm:$0xf]
        %v5849 = vld [vmem:[%s2514 + $0x44] sm:$0xf]
        %v5850 = vld [vmem:[%s2514 + $0x4c] sm:$0xf]
        %v5851 = vld [vmem:[%s2514 + $0x54] sm:$0xf]
        %v5852 = vld [vmem:[%s2514 + $0x5c] sm:$0xf]
        %v5853 = vld [vmem:[%s2514 + $0x64] sm:$0xf]
        %v5854 = vld [vmem:[%s2514 + $0x6c] sm:$0xf]
        %v5855 = vld [vmem:[%s2514 + $0x74] sm:$0xf]
        %v5856 = vld [vmem:[%s2514 + $0x7c] sm:$0xf]
        %v5873 = vunpack.c.l.b16 %v5825
        %v5874 = vunpack.c.l.b16 %v5826
        %v5875 = vunpack.c.l.b16 %v5827
        %v5876 = vunpack.c.l.b16 %v5828
        %v5877 = vunpack.c.l.b16 %v5829
        %v5878 = vunpack.c.l.b16 %v5830
        %v5879 = vunpack.c.l.b16 %v5831
        %v5880 = vunpack.c.l.b16 %v5832
        %v5881 = vunpack.c.l.b16 %v5833
        %v5882 = vunpack.c.l.b16 %v5834
        %v5883 = vunpack.c.l.b16 %v5835
        %v5884 = vunpack.c.l.b16 %v5836
        %v5885 = vunpack.c.l.b16 %v5837
        %v5886 = vunpack.c.l.b16 %v5838
        %v5887 = vunpack.c.l.b16 %v5839
        %v5888 = vunpack.c.l.b16 %v5840
        %v5889 = vpack.c.b16 %v5874, %v5873
        %v5890 = vpack.c.b16 %v5876, %v5875
        %v5891 = vpack.c.b16 %v5878, %v5877
        %v5892 = vpack.c.b16 %v5880, %v5879
        %v5893 = vpack.c.b16 %v5882, %v5881
        %v5894 = vpack.c.b16 %v5884, %v5883
        %v5895 = vpack.c.b16 %v5886, %v5885
        %v5896 = vpack.c.b16 %v5888, %v5887
        %5897 = vrot.lane.b32.xlu0 %v5889, 64
        %v5898 = vpop.permute.xlu0 %5897
        %5899 = vrot.lane.b32.xlu0 %v5890, 64
        %v5900 = vpop.permute.xlu0 %5899
        %5901 = vrot.lane.b32.xlu0 %v5891, 64
        %v5902 = vpop.permute.xlu0 %5901
        %5903 = vrot.lane.b32.xlu0 %v5892, 64
        %v5904 = vpop.permute.xlu0 %5903
        %5905 = vrot.lane.b32.xlu0 %v5893, 64
        %v5906 = vpop.permute.xlu0 %5905
        %5907 = vrot.lane.b32.xlu0 %v5894, 64
        %v5908 = vpop.permute.xlu0 %5907
        %5909 = vrot.lane.b32.xlu0 %v5895, 64
        %v5910 = vpop.permute.xlu0 %5909
        %5911 = vrot.lane.b32.xlu0 %v5896, 64
        %v5912 = vpop.permute.xlu0 %5911
        %v5914 = vsel %vm2083, %v5898, 0
        %v5917 = vsel %vm2083, %v5900, 0
        %v5920 = vsel %vm2083, %v5902, 0
        %v5923 = vsel %vm2083, %v5904, 0
        %v5926 = vsel %vm2083, %v5906, 0
        %v5929 = vsel %vm2083, %v5908, 0
        %v5932 = vsel %vm2083, %v5910, 0
        %v5935 = vsel %vm2083, %v5912, 0
        %5937 = vmatpush.bf16.xpose.msra.mxu0 %v5935
        %5938 = vmatpush.bf16.xpose.msra.mxu0 %v5932
        %5939 = vmatpush.bf16.xpose.msra.mxu0 %v5929
        %5940 = vmatpush.bf16.xpose.msra.mxu0 %v5926
        %5941 = vmatpush.bf16.xpose.msra.mxu0 %v5923
        %5942 = vmatpush.bf16.xpose.msra.mxu0 %v5920
        %5943 = vmatpush.bf16.xpose.msra.mxu0 %v5917
        %5944 = vmatpush.bf16.xpose.msra.mxu0 %v5914
        %5945 = vmatmul.bf16.gmra.mxu0 %v5400
        %v5946 = vpop.f32.mrf.mxu0
        %v5947 = vadd.f32 0.0, %v5946
        %v5948 = vpop.f32.mrf.mxu0
        %v5949 = vadd.f32 0.0, %v5948
        %5950 = vmatmul.bf16.gmra.mxu0 %v5403
        %v5951 = vpop.f32.mrf.mxu0
        %v5952 = vadd.f32 0.0, %v5951
        %v5953 = vpop.f32.mrf.mxu0
        %v5954 = vadd.f32 0.0, %v5953
        %5955 = vmatmul.bf16.gmra.mxu0 %v5406
        %v5956 = vpop.f32.mrf.mxu0
        %v5957 = vadd.f32 0.0, %v5956
        %v5958 = vpop.f32.mrf.mxu0
        %v5959 = vadd.f32 0.0, %v5958
        %5960 = vmatmul.bf16.gmra.mxu0 %v5409
        %v5961 = vpop.f32.mrf.mxu0
        %v5962 = vadd.f32 0.0, %v5961
        %v5963 = vpop.f32.mrf.mxu0
        %v5964 = vadd.f32 0.0, %v5963
        %5965 = vmatmul.bf16.gmra.mxu0 %v5412
        %v5966 = vpop.f32.mrf.mxu0
        %v5967 = vadd.f32 0.0, %v5966
        %v5968 = vpop.f32.mrf.mxu0
        %v5969 = vadd.f32 0.0, %v5968
        %5970 = vmatmul.bf16.gmra.mxu0 %v5415
        %v5971 = vpop.f32.mrf.mxu0
        %v5972 = vadd.f32 0.0, %v5971
        %v5973 = vpop.f32.mrf.mxu0
        %v5974 = vadd.f32 0.0, %v5973
        %5975 = vmatmul.bf16.gmra.mxu0 %v5418
        %v5976 = vpop.f32.mrf.mxu0
        %v5977 = vadd.f32 0.0, %v5976
        %v5978 = vpop.f32.mrf.mxu0
        %v5979 = vadd.f32 0.0, %v5978
        %5980 = vmatmul.bf16.gmra.mxu0 %v5421
        %v5981 = vpop.f32.mrf.mxu0
        %v5982 = vadd.f32 0.0, %v5981
        %v5983 = vpop.f32.mrf.mxu0
        %v5984 = vadd.f32 0.0, %v5983
        %5985 = vdwg.mxu0
        %5986 = vmax.xlane.f32.xlu0 %v5947
        %v5987 = vpop.xlane.xlu0 %5986
        %5988 = vmax.xlane.f32.xlu0 %v5949
        %v5989 = vpop.xlane.xlu0 %5988
        %5990 = vmax.xlane.f32.xlu0 %v5952
        %v5991 = vpop.xlane.xlu0 %5990
        %5992 = vmax.xlane.f32.xlu0 %v5954
        %v5993 = vpop.xlane.xlu0 %5992
        %5994 = vmax.xlane.f32.xlu0 %v5957
        %v5995 = vpop.xlane.xlu0 %5994
        %5996 = vmax.xlane.f32.xlu0 %v5959
        %v5997 = vpop.xlane.xlu0 %5996
        %5998 = vmax.xlane.f32.xlu0 %v5962
        %v5999 = vpop.xlane.xlu0 %5998
        %6000 = vmax.xlane.f32.xlu0 %v5964
        %v6001 = vpop.xlane.xlu0 %6000
        %6002 = vmax.xlane.f32.xlu0 %v5967
        %v6003 = vpop.xlane.xlu0 %6002
        %6004 = vmax.xlane.f32.xlu0 %v5969
        %v6005 = vpop.xlane.xlu0 %6004
        %6006 = vmax.xlane.f32.xlu0 %v5972
        %v6007 = vpop.xlane.xlu0 %6006
        %6008 = vmax.xlane.f32.xlu0 %v5974
        %v6009 = vpop.xlane.xlu0 %6008
        %6010 = vmax.xlane.f32.xlu0 %v5977
        %v6011 = vpop.xlane.xlu0 %6010
        %6012 = vmax.xlane.f32.xlu0 %v5979
        %v6013 = vpop.xlane.xlu0 %6012
        %6014 = vmax.xlane.f32.xlu0 %v5982
        %v6015 = vpop.xlane.xlu0 %6014
        %6016 = vmax.xlane.f32.xlu0 %v5984
        %v6017 = vpop.xlane.xlu0 %6016
        %v6018 = vmax.f32 %v5497, %v5987
        %v6019 = vmax.f32 %v5499, %v5989
        %v6020 = vmax.f32 %v5501, %v5991
        %v6021 = vmax.f32 %v5503, %v5993
        %v6022 = vmax.f32 %v5505, %v5995
        %v6023 = vmax.f32 %v5507, %v5997
        %v6024 = vmax.f32 %v5509, %v5999
        %v6025 = vmax.f32 %v5511, %v6001
        %v6026 = vmax.f32 %v5513, %v6003
        %v6027 = vmax.f32 %v5515, %v6005
        %v6028 = vmax.f32 %v5517, %v6007
        %v6029 = vmax.f32 %v5519, %v6009
        %v6030 = vmax.f32 %v5521, %v6011
        %v6031 = vmax.f32 %v5523, %v6013
        %v6032 = vmax.f32 %v5525, %v6015
        %v6033 = vmax.f32 %v5527, %v6017
        %v6034 = vsub.f32 %v5497, %v6018
        %v6035 = vsub.f32 %v5499, %v6019
        %v6036 = vsub.f32 %v5501, %v6020
        %v6037 = vsub.f32 %v5503, %v6021
        %v6038 = vsub.f32 %v5505, %v6022
        %v6039 = vsub.f32 %v5507, %v6023
        %v6040 = vsub.f32 %v5509, %v6024
        %v6041 = vsub.f32 %v5511, %v6025
        %v6042 = vsub.f32 %v5513, %v6026
        %v6043 = vsub.f32 %v5515, %v6027
        %v6044 = vsub.f32 %v5517, %v6028
        %v6045 = vsub.f32 %v5519, %v6029
        %v6046 = vsub.f32 %v5521, %v6030
        %v6047 = vsub.f32 %v5523, %v6031
        %v6048 = vsub.f32 %v5525, %v6032
        %v6049 = vsub.f32 %v5527, %v6033
        %v6050 = vmul.f32 %v6034, 1.442695
        %v6051 = vpow.pop %v6050
        %v6052 = vmul.f32 %v6035, 1.442695
        %v6053 = vpow.pop %v6052
        %v6054 = vmul.f32 %v6036, 1.442695
        %v6055 = vpow.pop %v6054
        %v6056 = vmul.f32 %v6037, 1.442695
        %v6057 = vpow.pop %v6056
        %v6058 = vmul.f32 %v6038, 1.442695
        %v6059 = vpow.pop %v6058
        %v6060 = vmul.f32 %v6039, 1.442695
        %v6061 = vpow.pop %v6060
        %v6062 = vmul.f32 %v6040, 1.442695
        %v6063 = vpow.pop %v6062
        %v6064 = vmul.f32 %v6041, 1.442695
        %v6065 = vpow.pop %v6064
        %v6066 = vmul.f32 %v6042, 1.442695
        %v6067 = vpow.pop %v6066
        %v6068 = vmul.f32 %v6043, 1.442695
        %v6069 = vpow.pop %v6068
        %v6070 = vmul.f32 %v6044, 1.442695
        %v6071 = vpow.pop %v6070
        %v6072 = vmul.f32 %v6045, 1.442695
        %v6073 = vpow.pop %v6072
        %v6074 = vmul.f32 %v6046, 1.442695
        %v6075 = vpow.pop %v6074
        %v6076 = vmul.f32 %v6047, 1.442695
        %v6077 = vpow.pop %v6076
        %v6078 = vmul.f32 %v6048, 1.442695
        %v6079 = vpow.pop %v6078
        %v6080 = vmul.f32 %v6049, 1.442695
        %v6081 = vpow.pop %v6080
        %v6082 = vsub.f32 %v5947, %v6018
        %v6083 = vsub.f32 %v5949, %v6019
        %v6084 = vsub.f32 %v5952, %v6020
        %v6085 = vsub.f32 %v5954, %v6021
        %v6086 = vsub.f32 %v5957, %v6022
        %v6087 = vsub.f32 %v5959, %v6023
        %v6088 = vsub.f32 %v5962, %v6024
        %v6089 = vsub.f32 %v5964, %v6025
        %v6090 = vsub.f32 %v5967, %v6026
        %v6091 = vsub.f32 %v5969, %v6027
        %v6092 = vsub.f32 %v5972, %v6028
        %v6093 = vsub.f32 %v5974, %v6029
        %v6094 = vsub.f32 %v5977, %v6030
        %v6095 = vsub.f32 %v5979, %v6031
        %v6096 = vsub.f32 %v5982, %v6032
        %v6097 = vsub.f32 %v5984, %v6033
        %v6098 = vmul.f32 %v6082, 1.442695
        %v6099 = vpow.pop %v6098
        %v6100 = vmul.f32 %v6083, 1.442695
        %v6101 = vpow.pop %v6100
        %v6102 = vmul.f32 %v6084, 1.442695
        %v6103 = vpow.pop %v6102
        %v6104 = vmul.f32 %v6085, 1.442695
        %v6105 = vpow.pop %v6104
        %v6106 = vmul.f32 %v6086, 1.442695
        %v6107 = vpow.pop %v6106
        %v6108 = vmul.f32 %v6087, 1.442695
        %v6109 = vpow.pop %v6108
        %v6110 = vmul.f32 %v6088, 1.442695
        %v6111 = vpow.pop %v6110
        %v6112 = vmul.f32 %v6089, 1.442695
        %v6113 = vpow.pop %v6112
        %v6114 = vmul.f32 %v6090, 1.442695
        %v6115 = vpow.pop %v6114
        %v6116 = vmul.f32 %v6091, 1.442695
        %v6117 = vpow.pop %v6116
        %v6118 = vmul.f32 %v6092, 1.442695
        %v6119 = vpow.pop %v6118
        %v6120 = vmul.f32 %v6093, 1.442695
        %v6121 = vpow.pop %v6120
        %v6122 = vmul.f32 %v6094, 1.442695
        %v6123 = vpow.pop %v6122
        %v6124 = vmul.f32 %v6095, 1.442695
        %v6125 = vpow.pop %v6124
        %v6126 = vmul.f32 %v6096, 1.442695
        %v6127 = vpow.pop %v6126
        %v6128 = vmul.f32 %v6097, 1.442695
        %v6129 = vpow.pop %v6128
        %v6130 = vmul.f32 %v6051, %v5672
        %v6131 = vmul.f32 %v6053, %v5673
        %v6132 = vmul.f32 %v6055, %v5674
        %v6133 = vmul.f32 %v6057, %v5675
        %v6134 = vmul.f32 %v6059, %v5676
        %v6135 = vmul.f32 %v6061, %v5677
        %v6136 = vmul.f32 %v6063, %v5678
        %v6137 = vmul.f32 %v6065, %v5679
        %v6138 = vmul.f32 %v6067, %v5680
        %v6139 = vmul.f32 %v6069, %v5681
        %v6140 = vmul.f32 %v6071, %v5682
        %v6141 = vmul.f32 %v6073, %v5683
        %v6142 = vmul.f32 %v6075, %v5684
        %v6143 = vmul.f32 %v6077, %v5685
        %v6144 = vmul.f32 %v6079, %v5686
        %v6145 = vmul.f32 %v6081, %v5687
        %6146 = vadd.xlane.f32.xlu0 %v6099
        %v6147 = vpop.xlane.xlu0 %6146
        %6148 = vadd.xlane.f32.xlu0 %v6101
        %v6149 = vpop.xlane.xlu0 %6148
        %6150 = vadd.xlane.f32.xlu0 %v6103
        %v6151 = vpop.xlane.xlu0 %6150
        %6152 = vadd.xlane.f32.xlu0 %v6105
        %v6153 = vpop.xlane.xlu0 %6152
        %6154 = vadd.xlane.f32.xlu0 %v6107
        %v6155 = vpop.xlane.xlu0 %6154
        %6156 = vadd.xlane.f32.xlu0 %v6109
        %v6157 = vpop.xlane.xlu0 %6156
        %6158 = vadd.xlane.f32.xlu0 %v6111
        %v6159 = vpop.xlane.xlu0 %6158
        %6160 = vadd.xlane.f32.xlu0 %v6113
        %v6161 = vpop.xlane.xlu0 %6160
        %6162 = vadd.xlane.f32.xlu0 %v6115
        %v6163 = vpop.xlane.xlu0 %6162
        %6164 = vadd.xlane.f32.xlu0 %v6117
        %v6165 = vpop.xlane.xlu0 %6164
        %6166 = vadd.xlane.f32.xlu0 %v6119
        %v6167 = vpop.xlane.xlu0 %6166
        %6168 = vadd.xlane.f32.xlu0 %v6121
        %v6169 = vpop.xlane.xlu0 %6168
        %6170 = vadd.xlane.f32.xlu0 %v6123
        %v6171 = vpop.xlane.xlu0 %6170
        %6172 = vadd.xlane.f32.xlu0 %v6125
        %v6173 = vpop.xlane.xlu0 %6172
        %6174 = vadd.xlane.f32.xlu0 %v6127
        %v6175 = vpop.xlane.xlu0 %6174
        %6176 = vadd.xlane.f32.xlu0 %v6129
        %v6177 = vpop.xlane.xlu0 %6176
        %v6178 = vadd.f32 %v6130, %v6147
        %v6179 = vadd.f32 %v6131, %v6149
        %v6180 = vadd.f32 %v6132, %v6151
        %v6181 = vadd.f32 %v6133, %v6153
        %v6182 = vadd.f32 %v6134, %v6155
        %v6183 = vadd.f32 %v6135, %v6157
        %v6184 = vadd.f32 %v6136, %v6159
        %v6185 = vadd.f32 %v6137, %v6161
        %v6186 = vadd.f32 %v6138, %v6163
        %v6187 = vadd.f32 %v6139, %v6165
        %v6188 = vadd.f32 %v6140, %v6167
        %v6189 = vadd.f32 %v6141, %v6169
        %v6190 = vadd.f32 %v6142, %v6171
        %v6191 = vadd.f32 %v6143, %v6173
        %v6192 = vadd.f32 %v6144, %v6175
        %v6193 = vadd.f32 %v6145, %v6177
        %v6194 = vmul.f32 %v6051, %v5809
        %v6195 = vmul.f32 %v6053, %v5810
        %v6196 = vmul.f32 %v6055, %v5811
        %v6197 = vmul.f32 %v6057, %v5812
        %v6198 = vmul.f32 %v6059, %v5813
        %v6199 = vmul.f32 %v6061, %v5814
        %v6200 = vmul.f32 %v6063, %v5815
        %v6201 = vmul.f32 %v6065, %v5816
        %v6202 = vmul.f32 %v6067, %v5817
        %v6203 = vmul.f32 %v6069, %v5818
        %v6204 = vmul.f32 %v6071, %v5819
        %v6205 = vmul.f32 %v6073, %v5820
        %v6206 = vmul.f32 %v6075, %v5821
        %v6207 = vmul.f32 %v6077, %v5822
        %v6208 = vmul.f32 %v6079, %v5823
        %v6209 = vmul.f32 %v6081, %v5824
        %v6210 = vpack.c.bf16 %v6101, %v6099
        %v6211 = vpack.c.bf16 %v6105, %v6103
        %v6212 = vpack.c.bf16 %v6109, %v6107
        %v6213 = vpack.c.bf16 %v6113, %v6111
        %v6214 = vpack.c.bf16 %v6117, %v6115
        %v6215 = vpack.c.bf16 %v6121, %v6119
        %v6216 = vpack.c.bf16 %v6125, %v6123
        %v6217 = vpack.c.bf16 %v6129, %v6127
        %v6234 = vunpack.c.l.b16 %v5841
        %v6235 = vunpack.c.l.b16 %v5842
        %v6236 = vunpack.c.l.b16 %v5843
        %v6237 = vunpack.c.l.b16 %v5844
        %v6238 = vunpack.c.l.b16 %v5845
        %v6239 = vunpack.c.l.b16 %v5846
        %v6240 = vunpack.c.l.b16 %v5847
        %v6241 = vunpack.c.l.b16 %v5848
        %v6242 = vunpack.c.l.b16 %v5849
        %v6243 = vunpack.c.l.b16 %v5850
        %v6244 = vunpack.c.l.b16 %v5851
        %v6245 = vunpack.c.l.b16 %v5852
        %v6246 = vunpack.c.l.b16 %v5853
        %v6247 = vunpack.c.l.b16 %v5854
        %v6248 = vunpack.c.l.b16 %v5855
        %v6249 = vunpack.c.l.b16 %v5856
        %v6250 = vpack.c.b16 %v6235, %v6234
        %v6251 = vpack.c.b16 %v6237, %v6236
        %v6252 = vpack.c.b16 %v6239, %v6238
        %v6253 = vpack.c.b16 %v6241, %v6240
        %v6254 = vpack.c.b16 %v6243, %v6242
        %v6255 = vpack.c.b16 %v6245, %v6244
        %v6256 = vpack.c.b16 %v6247, %v6246
        %v6257 = vpack.c.b16 %v6249, %v6248
        %6258 = vrot.lane.b32.xlu0 %v6250, 64
        %v6259 = vpop.permute.xlu0 %6258
        %6260 = vrot.lane.b32.xlu0 %v6251, 64
        %v6261 = vpop.permute.xlu0 %6260
        %6262 = vrot.lane.b32.xlu0 %v6252, 64
        %v6263 = vpop.permute.xlu0 %6262
        %6264 = vrot.lane.b32.xlu0 %v6253, 64
        %v6265 = vpop.permute.xlu0 %6264
        %6266 = vrot.lane.b32.xlu0 %v6254, 64
        %v6267 = vpop.permute.xlu0 %6266
        %6268 = vrot.lane.b32.xlu0 %v6255, 64
        %v6269 = vpop.permute.xlu0 %6268
        %6270 = vrot.lane.b32.xlu0 %v6256, 64
        %v6271 = vpop.permute.xlu0 %6270
        %6272 = vrot.lane.b32.xlu0 %v6257, 64
        %v6273 = vpop.permute.xlu0 %6272
        %6282 = vmatpush.bf16.msra.mxu0 %v6273
        %6283 = vmatpush.bf16.msra.mxu0 %v6271
        %6284 = vmatpush.bf16.msra.mxu0 %v6269
        %6285 = vmatpush.bf16.msra.mxu0 %v6267
        %6286 = vmatpush.bf16.msra.mxu0 %v6265
        %6287 = vmatpush.bf16.msra.mxu0 %v6263
        %6288 = vmatpush.bf16.msra.mxu0 %v6261
        %6289 = vmatpush.bf16.msra.mxu0 %v6259
        %6290 = vmatmul.bf16.gmra.mxu0 %v6210
        %v6291 = vpop.f32.mrf.mxu0
        %v6292 = vadd.f32 0.0, %v6291
        %v6293 = vpop.f32.mrf.mxu0
        %v6294 = vadd.f32 0.0, %v6293
        %6295 = vmatmul.bf16.gmra.mxu0 %v6211
        %v6296 = vpop.f32.mrf.mxu0
        %v6297 = vadd.f32 0.0, %v6296
        %v6298 = vpop.f32.mrf.mxu0
        %v6299 = vadd.f32 0.0, %v6298
        %6300 = vmatmul.bf16.gmra.mxu0 %v6212
        %v6301 = vpop.f32.mrf.mxu0
        %v6302 = vadd.f32 0.0, %v6301
        %v6303 = vpop.f32.mrf.mxu0
        %v6304 = vadd.f32 0.0, %v6303
        %6305 = vmatmul.bf16.gmra.mxu0 %v6213
        %v6306 = vpop.f32.mrf.mxu0
        %v6307 = vadd.f32 0.0, %v6306
        %v6308 = vpop.f32.mrf.mxu0
        %v6309 = vadd.f32 0.0, %v6308
        %6310 = vmatmul.bf16.gmra.mxu0 %v6214
        %v6311 = vpop.f32.mrf.mxu0
        %v6312 = vadd.f32 0.0, %v6311
        %v6313 = vpop.f32.mrf.mxu0
        %v6314 = vadd.f32 0.0, %v6313
        %6315 = vmatmul.bf16.gmra.mxu0 %v6215
        %v6316 = vpop.f32.mrf.mxu0
        %v6317 = vadd.f32 0.0, %v6316
        %v6318 = vpop.f32.mrf.mxu0
        %v6319 = vadd.f32 0.0, %v6318
        %6320 = vmatmul.bf16.gmra.mxu0 %v6216
        %v6321 = vpop.f32.mrf.mxu0
        %v6322 = vadd.f32 0.0, %v6321
        %v6323 = vpop.f32.mrf.mxu0
        %v6324 = vadd.f32 0.0, %v6323
        %6325 = vmatmul.bf16.gmra.mxu0 %v6217
        %v6326 = vpop.f32.mrf.mxu0
        %v6327 = vadd.f32 0.0, %v6326
        %v6328 = vpop.f32.mrf.mxu0
        %v6329 = vadd.f32 0.0, %v6328
        %6330 = vdwg.mxu0
        %v6331 = vadd.f32 %v6194, %v6292
        %v6332 = vadd.f32 %v6195, %v6294
        %v6333 = vadd.f32 %v6196, %v6297
        %v6334 = vadd.f32 %v6197, %v6299
        %v6335 = vadd.f32 %v6198, %v6302
        %v6336 = vadd.f32 %v6199, %v6304
        %v6337 = vadd.f32 %v6200, %v6307
        %v6338 = vadd.f32 %v6201, %v6309
        %v6339 = vadd.f32 %v6202, %v6312
        %v6340 = vadd.f32 %v6203, %v6314
        %v6341 = vadd.f32 %v6204, %v6317
        %v6342 = vadd.f32 %v6205, %v6319
        %v6343 = vadd.f32 %v6206, %v6322
        %v6344 = vadd.f32 %v6207, %v6324
        %v6345 = vadd.f32 %v6208, %v6327
        %v6346 = vadd.f32 %v6209, %v6329
        %v6347 = vrcp.pop %v6178
        %v6348 = vrcp.pop %v6179
        %v6349 = vrcp.pop %v6180
        %v6350 = vrcp.pop %v6181
        %v6351 = vrcp.pop %v6182
        %v6352 = vrcp.pop %v6183
        %v6353 = vrcp.pop %v6184
        %v6354 = vrcp.pop %v6185
        %v6355 = vrcp.pop %v6186
        %v6356 = vrcp.pop %v6187
        %v6357 = vrcp.pop %v6188
        %v6358 = vrcp.pop %v6189
        %v6359 = vrcp.pop %v6190
        %v6360 = vrcp.pop %v6191
        %v6361 = vrcp.pop %v6192
        %v6362 = vrcp.pop %v6193
        %v6363 = vmul.f32 %v6331, %v6347
        %v6364 = vmul.f32 %v6332, %v6348
        %v6365 = vmul.f32 %v6333, %v6349
        %v6366 = vmul.f32 %v6334, %v6350
        %v6367 = vmul.f32 %v6335, %v6351
        %v6368 = vmul.f32 %v6336, %v6352
        %v6369 = vmul.f32 %v6337, %v6353
        %v6370 = vmul.f32 %v6338, %v6354
        %v6371 = vmul.f32 %v6339, %v6355
        %v6372 = vmul.f32 %v6340, %v6356
        %v6373 = vmul.f32 %v6341, %v6357
        %v6374 = vmul.f32 %v6342, %v6358
        %v6375 = vmul.f32 %v6343, %v6359
        %v6376 = vmul.f32 %v6344, %v6360
        %v6377 = vmul.f32 %v6345, %v6361
        %v6378 = vmul.f32 %v6346, %v6362
        %v6379 = vpack.c.bf16 %v6363, %v6363
        %v6380 = vpack.c.bf16 %v6364, %v6364
        %v6381 = vpack.c.bf16 %v6365, %v6365
        %v6382 = vpack.c.bf16 %v6366, %v6366
        %v6383 = vpack.c.bf16 %v6367, %v6367
        %v6384 = vpack.c.bf16 %v6368, %v6368
        %v6385 = vpack.c.bf16 %v6369, %v6369
        %v6386 = vpack.c.bf16 %v6370, %v6370
        %v6387 = vpack.c.bf16 %v6371, %v6371
        %v6388 = vpack.c.bf16 %v6372, %v6372
        %v6389 = vpack.c.bf16 %v6373, %v6373
        %v6390 = vpack.c.bf16 %v6374, %v6374
        %v6391 = vpack.c.bf16 %v6375, %v6375
        %v6392 = vpack.c.bf16 %v6376, %v6376
        %v6393 = vpack.c.bf16 %v6377, %v6377
        %v6394 = vpack.c.bf16 %v6378, %v6378
        %6411 = vrot.lane.b32.xlu0 %v6379, 64
        %v6412 = vpop.permute.xlu0 %6411
        %6413 = vrot.lane.b32.xlu0 %v6380, 64
        %v6414 = vpop.permute.xlu0 %6413
        %6415 = vrot.lane.b32.xlu0 %v6381, 64
        %v6416 = vpop.permute.xlu0 %6415
        %6417 = vrot.lane.b32.xlu0 %v6382, 64
        %v6418 = vpop.permute.xlu0 %6417
        %6419 = vrot.lane.b32.xlu0 %v6383, 64
        %v6420 = vpop.permute.xlu0 %6419
        %6421 = vrot.lane.b32.xlu0 %v6384, 64
        %v6422 = vpop.permute.xlu0 %6421
        %6423 = vrot.lane.b32.xlu0 %v6385, 64
        %v6424 = vpop.permute.xlu0 %6423
        %6425 = vrot.lane.b32.xlu0 %v6386, 64
        %v6426 = vpop.permute.xlu0 %6425
        %6427 = vrot.lane.b32.xlu0 %v6387, 64
        %v6428 = vpop.permute.xlu0 %6427
        %6429 = vrot.lane.b32.xlu0 %v6388, 64
        %v6430 = vpop.permute.xlu0 %6429
        %6431 = vrot.lane.b32.xlu0 %v6389, 64
        %v6432 = vpop.permute.xlu0 %6431
        %6433 = vrot.lane.b32.xlu0 %v6390, 64
        %v6434 = vpop.permute.xlu0 %6433
        %6435 = vrot.lane.b32.xlu0 %v6391, 64
        %v6436 = vpop.permute.xlu0 %6435
        %6437 = vrot.lane.b32.xlu0 %v6392, 64
        %v6438 = vpop.permute.xlu0 %6437
        %6439 = vrot.lane.b32.xlu0 %v6393, 64
        %v6440 = vpop.permute.xlu0 %6439
        %6441 = vrot.lane.b32.xlu0 %v6394, 64
        %v6442 = vpop.permute.xlu0 %6441
        %6459 = vst.msk [vmem:[#allocation4 + $0x4] sm:$0xf] %vm4218, %v6412
        %6460 = vst.msk [vmem:[#allocation4 + $0xc] sm:$0xf] %vm4218, %v6414
        %6461 = vst.msk [vmem:[#allocation4 + $0x14] sm:$0xf] %vm4218, %v6416
        %6462 = vst.msk [vmem:[#allocation4 + $0x1c] sm:$0xf] %vm4218, %v6418
        %6463 = vst.msk [vmem:[#allocation4 + $0x24] sm:$0xf] %vm4218, %v6420
        %6464 = vst.msk [vmem:[#allocation4 + $0x2c] sm:$0xf] %vm4218, %v6422
        %6465 = vst.msk [vmem:[#allocation4 + $0x34] sm:$0xf] %vm4218, %v6424
        %6466 = vst.msk [vmem:[#allocation4 + $0x3c] sm:$0xf] %vm4218, %v6426
        %6467 = vst.msk [vmem:[#allocation4 + $0x44] sm:$0xf] %vm4218, %v6428
        %6468 = vst.msk [vmem:[#allocation4 + $0x4c] sm:$0xf] %vm4218, %v6430
        %6469 = vst.msk [vmem:[#allocation4 + $0x54] sm:$0xf] %vm4218, %v6432
        %6470 = vst.msk [vmem:[#allocation4 + $0x5c] sm:$0xf] %vm4218, %v6434
        %6471 = vst.msk [vmem:[#allocation4 + $0x64] sm:$0xf] %vm4218, %v6436
        %6472 = vst.msk [vmem:[#allocation4 + $0x6c] sm:$0xf] %vm4218, %v6438
        %6473 = vst.msk [vmem:[#allocation4 + $0x74] sm:$0xf] %vm4218, %v6440
        %6474 = vst.msk [vmem:[#allocation4 + $0x7c] sm:$0xf] %vm4218, %v6442
        %v6475 = vld [vmem:[#allocation4] sm:$0xff]
        %v6476 = vld [vmem:[#allocation4 + $0x8] sm:$0xff]
        %v6477 = vld [vmem:[#allocation4 + $0x10] sm:$0xff]
        %v6478 = vld [vmem:[#allocation4 + $0x18] sm:$0xff]
        %v6479 = vld [vmem:[#allocation4 + $0x20] sm:$0xff]
        %v6480 = vld [vmem:[#allocation4 + $0x28] sm:$0xff]
        %v6481 = vld [vmem:[#allocation4 + $0x30] sm:$0xff]
        %v6482 = vld [vmem:[#allocation4 + $0x38] sm:$0xff]
        %v6483 = vld [vmem:[#allocation4 + $0x40] sm:$0xff]
        %v6484 = vld [vmem:[#allocation4 + $0x48] sm:$0xff]
        %v6485 = vld [vmem:[#allocation4 + $0x50] sm:$0xff]
        %v6486 = vld [vmem:[#allocation4 + $0x58] sm:$0xff]
        %v6487 = vld [vmem:[#allocation4 + $0x60] sm:$0xff]
        %v6488 = vld [vmem:[#allocation4 + $0x68] sm:$0xff]
        %v6489 = vld [vmem:[#allocation4 + $0x70] sm:$0xff]
        %v6490 = vld [vmem:[#allocation4 + $0x78] sm:$0xff]
        %v6491 = vld [vmem:[%s2] sm:$0xff]
        %v6492 = vld [vmem:[%s2 + $0x8] sm:$0xff]
        %v6493 = vld [vmem:[%s2 + $0x10] sm:$0xff]
        %v6494 = vld [vmem:[%s2 + $0x18] sm:$0xff]
        %v6495 = vld [vmem:[%s2 + $0x20] sm:$0xff]
        %v6496 = vld [vmem:[%s2 + $0x28] sm:$0xff]
        %v6497 = vld [vmem:[%s2 + $0x30] sm:$0xff]
        %v6498 = vld [vmem:[%s2 + $0x38] sm:$0xff]
        %v6499 = vld [vmem:[%s2 + $0x40] sm:$0xff]
        %v6500 = vld [vmem:[%s2 + $0x48] sm:$0xff]
        %v6501 = vld [vmem:[%s2 + $0x50] sm:$0xff]
        %v6502 = vld [vmem:[%s2 + $0x58] sm:$0xff]
        %v6503 = vld [vmem:[%s2 + $0x60] sm:$0xff]
        %v6504 = vld [vmem:[%s2 + $0x68] sm:$0xff]
        %v6505 = vld [vmem:[%s2 + $0x70] sm:$0xff]
        %v6506 = vld [vmem:[%s2 + $0x78] sm:$0xff]
        %v6507 = vld [vmem:[%s2 + $0x80] sm:$0xff]
        %v6508 = vld [vmem:[%s2 + $0x88] sm:$0xff]
        %v6509 = vld [vmem:[%s2 + $0x90] sm:$0xff]
        %v6510 = vld [vmem:[%s2 + $0x98] sm:$0xff]
        %v6511 = vld [vmem:[%s2 + $0xa0] sm:$0xff]
        %v6512 = vld [vmem:[%s2 + $0xa8] sm:$0xff]
        %v6513 = vld [vmem:[%s2 + $0xb0] sm:$0xff]
        %v6514 = vld [vmem:[%s2 + $0xb8] sm:$0xff]
        %v6515 = vld [vmem:[%s2 + $0xc0] sm:$0xff]
        %v6516 = vld [vmem:[%s2 + $0xc8] sm:$0xff]
        %v6517 = vld [vmem:[%s2 + $0xd0] sm:$0xff]
        %v6518 = vld [vmem:[%s2 + $0xd8] sm:$0xff]
        %v6519 = vld [vmem:[%s2 + $0xe0] sm:$0xff]
        %v6520 = vld [vmem:[%s2 + $0xe8] sm:$0xff]
        %v6521 = vld [vmem:[%s2 + $0xf0] sm:$0xff]
        %v6522 = vld [vmem:[%s2 + $0xf8] sm:$0xff]
        %v6539 = vunpack.c.l.b16 %v6475
        %v6540 = vunpack.c.h.b16 %v6475
        %v6541 = vunpack.c.l.b16 %v6476
        %v6542 = vunpack.c.h.b16 %v6476
        %v6543 = vunpack.c.l.b16 %v6477
        %v6544 = vunpack.c.h.b16 %v6477
        %v6545 = vunpack.c.l.b16 %v6478
        %v6546 = vunpack.c.h.b16 %v6478
        %v6547 = vunpack.c.l.b16 %v6479
        %v6548 = vunpack.c.h.b16 %v6479
        %v6549 = vunpack.c.l.b16 %v6480
        %v6550 = vunpack.c.h.b16 %v6480
        %v6551 = vunpack.c.l.b16 %v6481
        %v6552 = vunpack.c.h.b16 %v6481
        %v6553 = vunpack.c.l.b16 %v6482
        %v6554 = vunpack.c.h.b16 %v6482
        %v6555 = vunpack.c.l.b16 %v6483
        %v6556 = vunpack.c.h.b16 %v6483
        %v6557 = vunpack.c.l.b16 %v6484
        %v6558 = vunpack.c.h.b16 %v6484
        %v6559 = vunpack.c.l.b16 %v6485
        %v6560 = vunpack.c.h.b16 %v6485
        %v6561 = vunpack.c.l.b16 %v6486
        %v6562 = vunpack.c.h.b16 %v6486
        %v6563 = vunpack.c.l.b16 %v6487
        %v6564 = vunpack.c.h.b16 %v6487
        %v6565 = vunpack.c.l.b16 %v6488
        %v6566 = vunpack.c.h.b16 %v6488
        %v6567 = vunpack.c.l.b16 %v6489
        %v6568 = vunpack.c.h.b16 %v6489
        %v6569 = vunpack.c.l.b16 %v6490
        %v6570 = vunpack.c.h.b16 %v6490
        %v6571 = vpack.c.b16 %v6541, %v6539
        %v6572 = vpack.c.b16 %v6542, %v6540
        %v6573 = vpack.c.b16 %v6545, %v6543
        %v6574 = vpack.c.b16 %v6546, %v6544
        %v6575 = vpack.c.b16 %v6549, %v6547
        %v6576 = vpack.c.b16 %v6550, %v6548
        %v6577 = vpack.c.b16 %v6553, %v6551
        %v6578 = vpack.c.b16 %v6554, %v6552
        %v6579 = vpack.c.b16 %v6557, %v6555
        %v6580 = vpack.c.b16 %v6558, %v6556
        %v6581 = vpack.c.b16 %v6561, %v6559
        %v6582 = vpack.c.b16 %v6562, %v6560
        %v6583 = vpack.c.b16 %v6565, %v6563
        %v6584 = vpack.c.b16 %v6566, %v6564
        %v6585 = vpack.c.b16 %v6569, %v6567
        %v6586 = vpack.c.b16 %v6570, %v6568
        %v6635 = vunpack.c.l.b16 %v6491
        %v6636 = vunpack.c.h.b16 %v6491
        %v6637 = vunpack.c.l.b16 %v6492
        %v6638 = vunpack.c.h.b16 %v6492
        %v6639 = vunpack.c.l.b16 %v6493
        %v6640 = vunpack.c.h.b16 %v6493
        %v6641 = vunpack.c.l.b16 %v6494
        %v6642 = vunpack.c.h.b16 %v6494
        %v6643 = vunpack.c.l.b16 %v6495
        %v6644 = vunpack.c.h.b16 %v6495
        %v6645 = vunpack.c.l.b16 %v6496
        %v6646 = vunpack.c.h.b16 %v6496
        %v6647 = vunpack.c.l.b16 %v6497
        %v6648 = vunpack.c.h.b16 %v6497
        %v6649 = vunpack.c.l.b16 %v6498
        %v6650 = vunpack.c.h.b16 %v6498
        %v6651 = vunpack.c.l.b16 %v6499
        %v6652 = vunpack.c.h.b16 %v6499
        %v6653 = vunpack.c.l.b16 %v6500
        %v6654 = vunpack.c.h.b16 %v6500
        %v6655 = vunpack.c.l.b16 %v6501
        %v6656 = vunpack.c.h.b16 %v6501
        %v6657 = vunpack.c.l.b16 %v6502
        %v6658 = vunpack.c.h.b16 %v6502
        %v6659 = vunpack.c.l.b16 %v6503
        %v6660 = vunpack.c.h.b16 %v6503
        %v6661 = vunpack.c.l.b16 %v6504
        %v6662 = vunpack.c.h.b16 %v6504
        %v6663 = vunpack.c.l.b16 %v6505
        %v6664 = vunpack.c.h.b16 %v6505
        %v6665 = vunpack.c.l.b16 %v6506
        %v6666 = vunpack.c.h.b16 %v6506
        %v6667 = vunpack.c.l.b16 %v6507
        %v6668 = vunpack.c.h.b16 %v6507
        %v6669 = vunpack.c.l.b16 %v6508
        %v6670 = vunpack.c.h.b16 %v6508
        %v6671 = vunpack.c.l.b16 %v6509
        %v6672 = vunpack.c.h.b16 %v6509
        %v6673 = vunpack.c.l.b16 %v6510
        %v6674 = vunpack.c.h.b16 %v6510
        %v6675 = vunpack.c.l.b16 %v6511
        %v6676 = vunpack.c.h.b16 %v6511
        %v6677 = vunpack.c.l.b16 %v6512
        %v6678 = vunpack.c.h.b16 %v6512
        %v6679 = vunpack.c.l.b16 %v6513
        %v6680 = vunpack.c.h.b16 %v6513
        %v6681 = vunpack.c.l.b16 %v6514
        %v6682 = vunpack.c.h.b16 %v6514
        %v6683 = vunpack.c.l.b16 %v6515
        %v6684 = vunpack.c.h.b16 %v6515
        %v6685 = vunpack.c.l.b16 %v6516
        %v6686 = vunpack.c.h.b16 %v6516
        %v6687 = vunpack.c.l.b16 %v6517
        %v6688 = vunpack.c.h.b16 %v6517
        %v6689 = vunpack.c.l.b16 %v6518
        %v6690 = vunpack.c.h.b16 %v6518
        %v6691 = vunpack.c.l.b16 %v6519
        %v6692 = vunpack.c.h.b16 %v6519
        %v6693 = vunpack.c.l.b16 %v6520
        %v6694 = vunpack.c.h.b16 %v6520
        %v6695 = vunpack.c.l.b16 %v6521
        %v6696 = vunpack.c.h.b16 %v6521
        %v6697 = vunpack.c.l.b16 %v6522
        %v6698 = vunpack.c.h.b16 %v6522
        %v6699 = vpack.c.b16 %v6637, %v6635
        %v6700 = vpack.c.b16 %v6638, %v6636
        %v6701 = vpack.c.b16 %v6641, %v6639
        %v6702 = vpack.c.b16 %v6642, %v6640
        %v6703 = vpack.c.b16 %v6645, %v6643
        %v6704 = vpack.c.b16 %v6646, %v6644
        %v6705 = vpack.c.b16 %v6649, %v6647
        %v6706 = vpack.c.b16 %v6650, %v6648
        %v6707 = vpack.c.b16 %v6653, %v6651
        %v6708 = vpack.c.b16 %v6654, %v6652
        %v6709 = vpack.c.b16 %v6657, %v6655
        %v6710 = vpack.c.b16 %v6658, %v6656
        %v6711 = vpack.c.b16 %v6661, %v6659
        %v6712 = vpack.c.b16 %v6662, %v6660
        %v6713 = vpack.c.b16 %v6665, %v6663
        %v6714 = vpack.c.b16 %v6666, %v6664
        %v6715 = vpack.c.b16 %v6669, %v6667
        %v6716 = vpack.c.b16 %v6670, %v6668
        %v6717 = vpack.c.b16 %v6673, %v6671
        %v6718 = vpack.c.b16 %v6674, %v6672
        %v6719 = vpack.c.b16 %v6677, %v6675
        %v6720 = vpack.c.b16 %v6678, %v6676
        %v6721 = vpack.c.b16 %v6681, %v6679
        %v6722 = vpack.c.b16 %v6682, %v6680
        %v6723 = vpack.c.b16 %v6685, %v6683
        %v6724 = vpack.c.b16 %v6686, %v6684
        %v6725 = vpack.c.b16 %v6689, %v6687
        %v6726 = vpack.c.b16 %v6690, %v6688
        %v6727 = vpack.c.b16 %v6693, %v6691
        %v6728 = vpack.c.b16 %v6694, %v6692
        %v6729 = vpack.c.b16 %v6697, %v6695
        %v6730 = vpack.c.b16 %v6698, %v6696
        %6763 = vmatpush.bf16.msra.mxu0 %v6713
        %6764 = vmatpush.bf16.msra.mxu0 %v6711
        %6765 = vmatpush.bf16.msra.mxu0 %v6709
        %6766 = vmatpush.bf16.msra.mxu0 %v6707
        %6767 = vmatpush.bf16.msra.mxu0 %v6705
        %6768 = vmatpush.bf16.msra.mxu0 %v6703
        %6769 = vmatpush.bf16.msra.mxu0 %v6701
        %6770 = vmatpush.bf16.msra.mxu0 %v6699
        %6771 = vmatmul.bf16.gmra.mxu0 %v6571
        %v6772 = vpop.f32.mrf.mxu0
        %v6773 = vadd.f32 0.0, %v6772
        %v6774 = vpop.f32.mrf.mxu0
        %v6775 = vadd.f32 0.0, %v6774
        %6776 = vmatmul.bf16.gmra.mxu0 %v6573
        %v6777 = vpop.f32.mrf.mxu0
        %v6778 = vadd.f32 0.0, %v6777
        %v6779 = vpop.f32.mrf.mxu0
        %v6780 = vadd.f32 0.0, %v6779
        %6781 = vmatmul.bf16.gmra.mxu0 %v6575
        %v6782 = vpop.f32.mrf.mxu0
        %v6783 = vadd.f32 0.0, %v6782
        %v6784 = vpop.f32.mrf.mxu0
        %v6785 = vadd.f32 0.0, %v6784
        %6786 = vmatmul.bf16.gmra.mxu0 %v6577
        %v6787 = vpop.f32.mrf.mxu0
        %v6788 = vadd.f32 0.0, %v6787
        %v6789 = vpop.f32.mrf.mxu0
        %v6790 = vadd.f32 0.0, %v6789
        %6791 = vmatmul.bf16.gmra.mxu0 %v6579
        %v6792 = vpop.f32.mrf.mxu0
        %v6793 = vadd.f32 0.0, %v6792
        %v6794 = vpop.f32.mrf.mxu0
        %v6795 = vadd.f32 0.0, %v6794
        %6796 = vmatmul.bf16.gmra.mxu0 %v6581
        %v6797 = vpop.f32.mrf.mxu0
        %v6798 = vadd.f32 0.0, %v6797
        %v6799 = vpop.f32.mrf.mxu0
        %v6800 = vadd.f32 0.0, %v6799
        %6801 = vmatmul.bf16.gmra.mxu0 %v6583
        %v6802 = vpop.f32.mrf.mxu0
        %v6803 = vadd.f32 0.0, %v6802
        %v6804 = vpop.f32.mrf.mxu0
        %v6805 = vadd.f32 0.0, %v6804
        %6806 = vmatmul.bf16.gmra.mxu0 %v6585
        %v6807 = vpop.f32.mrf.mxu0
        %v6808 = vadd.f32 0.0, %v6807
        %v6809 = vpop.f32.mrf.mxu0
        %v6810 = vadd.f32 0.0, %v6809
        %6811 = vdwg.mxu0
        %6812 = vmatpush.bf16.msra.mxu0 %v6729
        %6813 = vmatpush.bf16.msra.mxu0 %v6727
        %6814 = vmatpush.bf16.msra.mxu0 %v6725
        %6815 = vmatpush.bf16.msra.mxu0 %v6723
        %6816 = vmatpush.bf16.msra.mxu0 %v6721
        %6817 = vmatpush.bf16.msra.mxu0 %v6719
        %6818 = vmatpush.bf16.msra.mxu0 %v6717
        %6819 = vmatpush.bf16.msra.mxu0 %v6715
        %6820 = vmatmul.bf16.gmra.mxu0 %v6572
        %v6821 = vpop.f32.mrf.mxu0
        %v6822 = vadd.f32 %v6773, %v6821
        %v6823 = vpop.f32.mrf.mxu0
        %v6824 = vadd.f32 %v6775, %v6823
        %6825 = vmatmul.bf16.gmra.mxu0 %v6574
        %v6826 = vpop.f32.mrf.mxu0
        %v6827 = vadd.f32 %v6778, %v6826
        %v6828 = vpop.f32.mrf.mxu0
        %v6829 = vadd.f32 %v6780, %v6828
        %6830 = vmatmul.bf16.gmra.mxu0 %v6576
        %v6831 = vpop.f32.mrf.mxu0
        %v6832 = vadd.f32 %v6783, %v6831
        %v6833 = vpop.f32.mrf.mxu0
        %v6834 = vadd.f32 %v6785, %v6833
        %6835 = vmatmul.bf16.gmra.mxu0 %v6578
        %v6836 = vpop.f32.mrf.mxu0
        %v6837 = vadd.f32 %v6788, %v6836
        %v6838 = vpop.f32.mrf.mxu0
        %v6839 = vadd.f32 %v6790, %v6838
        %6840 = vmatmul.bf16.gmra.mxu0 %v6580
        %v6841 = vpop.f32.mrf.mxu0
        %v6842 = vadd.f32 %v6793, %v6841
        %v6843 = vpop.f32.mrf.mxu0
        %v6844 = vadd.f32 %v6795, %v6843
        %6845 = vmatmul.bf16.gmra.mxu0 %v6582
        %v6846 = vpop.f32.mrf.mxu0
        %v6847 = vadd.f32 %v6798, %v6846
        %v6848 = vpop.f32.mrf.mxu0
        %v6849 = vadd.f32 %v6800, %v6848
        %6850 = vmatmul.bf16.gmra.mxu0 %v6584
        %v6851 = vpop.f32.mrf.mxu0
        %v6852 = vadd.f32 %v6803, %v6851
        %v6853 = vpop.f32.mrf.mxu0
        %v6854 = vadd.f32 %v6805, %v6853
        %6855 = vmatmul.bf16.gmra.mxu0 %v6586
        %v6856 = vpop.f32.mrf.mxu0
        %v6857 = vadd.f32 %v6808, %v6856
        %v6858 = vpop.f32.mrf.mxu0
        %v6859 = vadd.f32 %v6810, %v6858
        %6860 = vdwg.mxu0
        %6861 = vmatpush.bf16.msra.mxu0 %v6714
        %6862 = vmatpush.bf16.msra.mxu0 %v6712
        %6863 = vmatpush.bf16.msra.mxu0 %v6710
        %6864 = vmatpush.bf16.msra.mxu0 %v6708
        %6865 = vmatpush.bf16.msra.mxu0 %v6706
        %6866 = vmatpush.bf16.msra.mxu0 %v6704
        %6867 = vmatpush.bf16.msra.mxu0 %v6702
        %6868 = vmatpush.bf16.msra.mxu0 %v6700
        %6869 = vmatmul.bf16.gmra.mxu0 %v6571
        %v6870 = vpop.f32.mrf.mxu0
        %v6871 = vadd.f32 0.0, %v6870
        %v6872 = vpop.f32.mrf.mxu0
        %v6873 = vadd.f32 0.0, %v6872
        %6874 = vmatmul.bf16.gmra.mxu0 %v6573
        %v6875 = vpop.f32.mrf.mxu0
        %v6876 = vadd.f32 0.0, %v6875
        %v6877 = vpop.f32.mrf.mxu0
        %v6878 = vadd.f32 0.0, %v6877
        %6879 = vmatmul.bf16.gmra.mxu0 %v6575
        %v6880 = vpop.f32.mrf.mxu0
        %v6881 = vadd.f32 0.0, %v6880
        %v6882 = vpop.f32.mrf.mxu0
        %v6883 = vadd.f32 0.0, %v6882
        %6884 = vmatmul.bf16.gmra.mxu0 %v6577
        %v6885 = vpop.f32.mrf.mxu0
        %v6886 = vadd.f32 0.0, %v6885
        %v6887 = vpop.f32.mrf.mxu0
        %v6888 = vadd.f32 0.0, %v6887
        %6889 = vmatmul.bf16.gmra.mxu0 %v6579
        %v6890 = vpop.f32.mrf.mxu0
        %v6891 = vadd.f32 0.0, %v6890
        %v6892 = vpop.f32.mrf.mxu0
        %v6893 = vadd.f32 0.0, %v6892
        %6894 = vmatmul.bf16.gmra.mxu0 %v6581
        %v6895 = vpop.f32.mrf.mxu0
        %v6896 = vadd.f32 0.0, %v6895
        %v6897 = vpop.f32.mrf.mxu0
        %v6898 = vadd.f32 0.0, %v6897
        %6899 = vmatmul.bf16.gmra.mxu0 %v6583
        %v6900 = vpop.f32.mrf.mxu0
        %v6901 = vadd.f32 0.0, %v6900
        %v6902 = vpop.f32.mrf.mxu0
        %v6903 = vadd.f32 0.0, %v6902
        %6904 = vmatmul.bf16.gmra.mxu0 %v6585
        %v6905 = vpop.f32.mrf.mxu0
        %v6906 = vadd.f32 0.0, %v6905
        %v6907 = vpop.f32.mrf.mxu0
        %v6908 = vadd.f32 0.0, %v6907
        %6909 = vdwg.mxu0
        %6910 = vmatpush.bf16.msra.mxu0 %v6730
        %6911 = vmatpush.bf16.msra.mxu0 %v6728
        %6912 = vmatpush.bf16.msra.mxu0 %v6726
        %6913 = vmatpush.bf16.msra.mxu0 %v6724
        %6914 = vmatpush.bf16.msra.mxu0 %v6722
        %6915 = vmatpush.bf16.msra.mxu0 %v6720
        %6916 = vmatpush.bf16.msra.mxu0 %v6718
        %6917 = vmatpush.bf16.msra.mxu0 %v6716
        %6918 = vmatmul.bf16.gmra.mxu0 %v6572
        %v6919 = vpop.f32.mrf.mxu0
        %v6920 = vadd.f32 %v6871, %v6919
        %v6921 = vpop.f32.mrf.mxu0
        %v6922 = vadd.f32 %v6873, %v6921
        %6923 = vmatmul.bf16.gmra.mxu0 %v6574
        %v6924 = vpop.f32.mrf.mxu0
        %v6925 = vadd.f32 %v6876, %v6924
        %v6926 = vpop.f32.mrf.mxu0
        %v6927 = vadd.f32 %v6878, %v6926
        %6928 = vmatmul.bf16.gmra.mxu0 %v6576
        %v6929 = vpop.f32.mrf.mxu0
        %v6930 = vadd.f32 %v6881, %v6929
        %v6931 = vpop.f32.mrf.mxu0
        %v6932 = vadd.f32 %v6883, %v6931
        %6933 = vmatmul.bf16.gmra.mxu0 %v6578
        %v6934 = vpop.f32.mrf.mxu0
        %v6935 = vadd.f32 %v6886, %v6934
        %v6936 = vpop.f32.mrf.mxu0
        %v6937 = vadd.f32 %v6888, %v6936
        %6938 = vmatmul.bf16.gmra.mxu0 %v6580
        %v6939 = vpop.f32.mrf.mxu0
        %v6940 = vadd.f32 %v6891, %v6939
        %v6941 = vpop.f32.mrf.mxu0
        %v6942 = vadd.f32 %v6893, %v6941
        %6943 = vmatmul.bf16.gmra.mxu0 %v6582
        %v6944 = vpop.f32.mrf.mxu0
        %v6945 = vadd.f32 %v6896, %v6944
        %v6946 = vpop.f32.mrf.mxu0
        %v6947 = vadd.f32 %v6898, %v6946
        %6948 = vmatmul.bf16.gmra.mxu0 %v6584
        %v6949 = vpop.f32.mrf.mxu0
        %v6950 = vadd.f32 %v6901, %v6949
        %v6951 = vpop.f32.mrf.mxu0
        %v6952 = vadd.f32 %v6903, %v6951
        %6953 = vmatmul.bf16.gmra.mxu0 %v6586
        %v6954 = vpop.f32.mrf.mxu0
        %v6955 = vadd.f32 %v6906, %v6954
        %v6956 = vpop.f32.mrf.mxu0
        %v6957 = vadd.f32 %v6908, %v6956
        %6958 = vdwg.mxu0
        %v6959 = vpack.c.bf16 %v6920, %v6822
        %v6960 = vpack.c.bf16 %v6922, %v6824
        %v6961 = vpack.c.bf16 %v6925, %v6827
        %v6962 = vpack.c.bf16 %v6927, %v6829
        %v6963 = vpack.c.bf16 %v6930, %v6832
        %v6964 = vpack.c.bf16 %v6932, %v6834
        %v6965 = vpack.c.bf16 %v6935, %v6837
        %v6966 = vpack.c.bf16 %v6937, %v6839
        %v6967 = vpack.c.bf16 %v6940, %v6842
        %v6968 = vpack.c.bf16 %v6942, %v6844
        %v6969 = vpack.c.bf16 %v6945, %v6847
        %v6970 = vpack.c.bf16 %v6947, %v6849
        %v6971 = vpack.c.bf16 %v6950, %v6852
        %v6972 = vpack.c.bf16 %v6952, %v6854
        %v6973 = vpack.c.bf16 %v6955, %v6857
        %v6974 = vpack.c.bf16 %v6957, %v6859
        %6975 = vst [vmem:[%s177] sm:$0xff] %v6959
        %6976 = vst [vmem:[%s177 + $0x8] sm:$0xff] %v6960
        %6977 = vst [vmem:[%s177 + $0x10] sm:$0xff] %v6961
        %6978 = vst [vmem:[%s177 + $0x18] sm:$0xff] %v6962
        %6979 = vst [vmem:[%s177 + $0x20] sm:$0xff] %v6963
        %6980 = vst [vmem:[%s177 + $0x28] sm:$0xff] %v6964
        %6981 = vst [vmem:[%s177 + $0x30] sm:$0xff] %v6965
        %6982 = vst [vmem:[%s177 + $0x38] sm:$0xff] %v6966
        %6983 = vst [vmem:[%s177 + $0x40] sm:$0xff] %v6967
        %6984 = vst [vmem:[%s177 + $0x48] sm:$0xff] %v6968
        %6985 = vst [vmem:[%s177 + $0x50] sm:$0xff] %v6969
        %6986 = vst [vmem:[%s177 + $0x58] sm:$0xff] %v6970
        %6987 = vst [vmem:[%s177 + $0x60] sm:$0xff] %v6971
        %6988 = vst [vmem:[%s177 + $0x68] sm:$0xff] %v6972
        %6989 = vst [vmem:[%s177 + $0x70] sm:$0xff] %v6973
        %6990 = vst [vmem:[%s177 + $0x78] sm:$0xff] %v6974
        %s6991 = sand.u32 %s107, 1
        %s6992 = scalar_lea.sflag [#allocation6], %s6991
        %s6993 = sand.u32 %s107, 1
        %s6994 = smul.addr %s6993, 128
        %s6995 = scalar_lea.vmem [#allocation5], %s6994
        // Predicated region
        $region37: #{_lambda_.1} parent=31 // pred_check
          %p6996 = pneg %p117
        $region38: #{_lambda_.1} parent=31 // pred_check_branch
          %6998 = sbr.rel (%p6996) target = $region40
        $region39: #{_lambda_.1} parent=31 // pred_region
          %s6999 = smul.u32 16, %s22
          %7001 = vsyncadd %s6992, 0
          %s7002 = smul.addr %s6999, 2
          %s7003 = smul.addr %s21, 64
          %s7004 = sadd.s32 %s7002, %s7003
          %s7005 = smul.addr %s7004, 4
          %s7006 = scalar_lea.hbm %s3, %s7005
          %s7007 = sshll.u32 %s6995, 4
          %s7008 = int_to_ptr.vmem [resolvable:$true] %s7007
          %s7009 = sshll.u32 %s7006, 4
          %s7010 = int_to_ptr.hbm [resolvable:$true] %s7009
          %7015 = dma.vmem_to_hbm [thread:$0]  %s7008, 2048, %s7010, %s6992, 128, 128, 8
        $region40: #{_lambda_.1} parent=31 // pred_fallthru
          _
      $region32: #{_lambda_.1} parent=5 // pred_fallthru
        _
      %p7016 = scmp.le.s32.totalorder 2, %s12
      // Predicated region
      $region41: #{_lambda_.1} parent=5 // pred_check
        %p7017 = pneg %p7016
      $region42: #{_lambda_.1} parent=5 // pred_check_branch
        %7019 = sbr.rel (%p7017) target = $region44
      $region43: #{_lambda_.1} parent=5 // pred_region
        %s7020 = ssub.s32 %s12, 2
        // Predicated region
        $region45: #{_lambda_.1} parent=43 // pred_check
          %p7021 = pneg %p123
        $region46: #{_lambda_.1} parent=43 // pred_check_branch
          %7023 = sbr.rel (%p7021) target = $region48
        $region47: #{_lambda_.1} parent=43 // pred_region
          %s7024 = sand.u32 %s108, 1
          %s7025 = scalar_lea.sflag [#allocation6], %s7024
          %s7026 = sand.u32 %s108, 1
          %s7027 = smul.addr %s7026, 128
          %s7028 = scalar_lea.vmem [#allocation5], %s7027
          %7030 = dma.done %s7025, 2048
        $region48: #{_lambda_.1} parent=43 // pred_fallthru
          _
      $region44: #{_lambda_.1} parent=5 // pred_fallthru
        _
    $region6: #{_lambda_.1} parent=1 // loop_footer
      %s16 = sadd.s32 1, %s12
    $region7: #{_lambda_.1} parent=1 // loop_footer_branch
      %11 = sbr.rel target = $region3
    $region8: #{_lambda_.1} parent=1 // loop_exit
      _
    %7031 = vsyncpa [#allocation6], 1
    %s7032 = scalar_lea.sflag [#allocation6], 1
    %7033 = vsyncpa %s7032, 1

</llo_original>
